<compile_context>
chip_gen: v5e
topology: v5e:2x2
jax: 0.10.0
libtpu: 0.0.40
codegen_flags: <defaults>
</compile_context>

<pallas_src>
import jax
import jax.numpy as jnp
from jax.experimental import pallas as pl
from jax.experimental.pallas import tpu as pltpu

# ----------------------------- model dims -----------------------------------
C_EFF = 1280          # EfficientNet-B0 feature channels
C_VIT = 768           # ViT-base hidden size
HID = 1024            # fusion hidden size
NUM_CLASSES = 10
EFF_H = EFF_W = 7     # EfficientNet-B0 spatial output for 224x224 input
VIT_SEQ = 197         # ViT-base/16 sequence length (CLS + 14*14 patches)

# Below roughly this batch, the duplicated per-TensorCore weight DMA (~4.25 MiB)
# outweighs per-core activation traffic, so keep a single grid step (one fetch).
_MEGACORE_MIN_BATCH = 2048


def _round_up(x, m):
    return ((x + m - 1) // m) * m


def ensemble_head_kernel(pooled_ref, vit_ref, w1e_ref, w1v_ref, b1_ref,
                         w2_ref, b2_ref, out_ref):
    # pooled_ref (TB, C_EFF) bf16, vit_ref (TB, C_VIT) bf16
    # w1e (C_EFF, HID) bf16, w1v (C_VIT, HID) bf16, b1 (1, HID) f32
    # w2 (HID, NC_PAD) bf16, b2 (1, NC_PAD) f32, out_ref (TB, NC_PAD) f32
    #
    # fusion: cat([pooled, vit]) @ W1 + b1  (split-matmul form), then ReLU.
    h = (jnp.dot(pooled_ref[...], w1e_ref[...], preferred_element_type=jnp.float32)
         + jnp.dot(vit_ref[...], w1v_ref[...], preferred_element_type=jnp.float32)
         + b1_ref[...])
    h = jnp.maximum(h, 0.0)            # ReLU; Dropout(0.2) is identity at inference
    # classifier (lane-padded to NC_PAD columns; true columns sliced off outside)
    out_ref[...] = (jnp.dot(h.astype(jnp.bfloat16), w2_ref[...],
                            preferred_element_type=jnp.float32)
                    + b2_ref[...])


def prepare_head_params(params):
    """One-time weight prep, hoisted out of the per-call path: bf16 casts and
    lane-dense zero padding of the classifier weights to a multiple of 128."""
    nc = params["w2"].shape[1]
    nc_pad = _round_up(nc, 128)
    w2 = jnp.zeros((HID, nc_pad), jnp.bfloat16).at[:, :nc].set(
        params["w2"].astype(jnp.bfloat16))
    b2 = jnp.zeros((1, nc_pad), jnp.float32).at[:, :nc].set(
        params["b2"].astype(jnp.float32))
    return {
        "w1e": params["w1e"].astype(jnp.bfloat16),
        "w1v": params["w1v"].astype(jnp.bfloat16),
        "b1": params["b1"].astype(jnp.float32).reshape(1, HID),
        "w2": w2,
        "b2": b2,
        "num_classes": nc,
        "nc_pad": nc_pad,
    }


def ensemble_head(eff_map_nchw, vit_last_hidden_state, prepared, *, block_b=256):
    """eff_map_nchw: (B, C_EFF, H, W)  -- EfficientNet feature map (NCHW, like PyTorch)
       vit_last_hidden_state: (B, SEQ, C_VIT)
       prepared: output of prepare_head_params() (weights already bf16 / padded)
    """
    B, C = eff_map_nchw.shape[0], eff_map_nchw.shape[1]
    assert C == C_EFF
    nc, nc_pad = prepared["num_classes"], prepared["nc_pad"]

    # AdaptiveAvgPool2d((1,1)) + flatten in the wrapper (fuses with the backbone
    # producer under XLA).  f32 accumulation, bf16 activations into the kernel.
    pooled = jnp.mean(eff_map_nchw, axis=(2, 3),
                      dtype=jnp.float32).astype(jnp.bfloat16)             # (B, 1280)
    vit_cls = vit_last_hidden_state[:, 0, :].astype(jnp.bfloat16)         # (B, 768)

    # Batch tile: multiple of 16 (bf16 sublane packing), capped at block_b.
    block_b = max(16, _round_up(block_b, 16))
    tb = min(block_b, _round_up(max(B, 16), 16))
    if B >= _MEGACORE_MIN_BATCH:
        # Large batch: force >=2 grid steps so dimension_semantics=("parallel",)
        # can shard the batch across both v7x TensorCores.
        tb = min(tb, _round_up(pl.cdiv(B, 2), 16))
    b_pad = _round_up(B, tb)
    if b_pad != B:
        pooled = jnp.pad(pooled, ((0, b_pad - B), (0, 0)))
        vit_cls = jnp.pad(vit_cls, ((0, b_pad - B), (0, 0)))

    # VMEM budget derived from actual footprint: single-buffered weights +
    # double-buffered activation/output blocks, plus headroom.  ~10-13 MiB in
    # practice -> safe under v5e's 16 MiB scoped default and leaves room on
    # v6e/v7x for surrounding fusions.
    weight_bytes = ((C_EFF + C_VIT) * HID + HID * nc_pad) * 2 + (HID + nc_pad) * 4
    act_bytes = 2 * tb * (C_EFF + C_VIT) * 2          # double-buffered bf16 inputs
    out_bytes = 2 * tb * nc_pad * 4                   # double-buffered f32 output
    vmem_limit = min(int(1.5 * (weight_bytes + act_bytes + out_bytes)) + (2 << 20),
                     32 * 1024 * 1024)

    resident = dict(pipeline_mode=pl.Buffered(1))     # constant block: single buffer

    out = pl.pallas_call(
        ensemble_head_kernel,
        out_shape=jax.ShapeDtypeStruct((b_pad, nc_pad), jnp.float32),
        grid=(b_pad // tb,),
        in_specs=[
            pl.BlockSpec((tb, C_EFF), lambda i: (i, 0)),              # pooled acts
            pl.BlockSpec((tb, C_VIT), lambda i: (i, 0)),              # ViT CLS acts
            pl.BlockSpec((C_EFF, HID), lambda i: (0, 0), **resident),  # weights:
            pl.BlockSpec((C_VIT, HID), lambda i: (0, 0), **resident),  # VMEM-resident,
            pl.BlockSpec((1, HID), lambda i: (0, 0), **resident),      # single-buffered
            pl.BlockSpec((HID, nc_pad), lambda i: (0, 0), **resident),
            pl.BlockSpec((1, nc_pad), lambda i: (0, 0), **resident),
        ],
        out_specs=pl.BlockSpec((tb, nc_pad), lambda i: (i, 0)),
        compiler_params=pltpu.CompilerParams(
            dimension_semantics=("parallel",),        # 2-TC sharding on v7x (large B)
            vmem_limit_bytes=vmem_limit),
    )(pooled, vit_cls, prepared["w1e"], prepared["w1v"], prepared["b1"],
      prepared["w2"], prepared["b2"])

    return out[:B, :nc]


def init_params(key):
    k1, k2 = jax.random.split(key, 2)
    # fusion Linear(1280+768 -> 1024), split row-wise into eff / vit halves
    w1 = jax.random.normal(k1, (C_EFF + C_VIT, HID), jnp.float32) * 0.02
    b1 = jnp.zeros((1, HID), jnp.float32)
    w2 = jax.random.normal(k2, (HID, NUM_CLASSES), jnp.float32) * 0.02
    b2 = jnp.zeros((1, NUM_CLASSES), jnp.float32)
    return {"w1e": w1[:C_EFF], "w1v": w1[C_EFF:], "b1": b1, "w2": w2, "b2": b2}


def reference_head(eff_map_nchw, vit_last_hidden_state, params):
    # pure-JAX f32 reference (mirrors the PyTorch forward of the head)
    pooled = jnp.mean(eff_map_nchw, axis=(2, 3))                  # (B, 1280)
    vit_cls = vit_last_hidden_state[:, 0, :]                      # (B, 768)
    feats = jnp.concatenate([pooled, vit_cls], axis=1)            # (B, 2048)
    w1 = jnp.concatenate([params["w1e"], params["w1v"]], axis=0)
    h = jnp.maximum(feats @ w1 + params["b1"], 0.0)
    return h @ params["w2"] + params["b2"]


if __name__ == "__main__":
    key = jax.random.PRNGKey(0)
    kp, ke, kv = jax.random.split(key, 3)
    params = init_params(kp)
    prepared = prepare_head_params(params)          # one-time weight prep (hoisted)

    # Synthetic backbone outputs (deterministic), small batch.
    B = 2
    eff_map = jax.random.normal(ke, (B, C_EFF, EFF_H, EFF_W), jnp.float32)   # EfficientNet features (NCHW)
    vit_hidden = jax.random.normal(kv, (B, VIT_SEQ, C_VIT), jnp.float32)     # ViT last_hidden_state

    out = jax.block_until_ready(ensemble_head(eff_map, vit_hidden, prepared))
    ref = reference_head(eff_map, vit_hidden, params)
    assert out.shape == (B, NUM_CLASSES)
    # bf16 weights/activations -> loose tolerance (expected quantization error)
    assert jnp.allclose(out, ref, atol=3e-2, rtol=3e-2)

    # Exercise the multi-step batch grid: 16-aligned bf16 tiles, weights stay
    # VMEM-resident (single-buffered) across steps.
    B2 = 20
    ke2, kv2 = jax.random.split(jax.random.PRNGKey(1))
    eff_map2 = jax.random.normal(ke2, (B2, C_EFF, EFF_H, EFF_W), jnp.float32)
    vit_hidden2 = jax.random.normal(kv2, (B2, VIT_SEQ, C_VIT), jnp.float32)
    out2 = jax.block_until_ready(
        ensemble_head(eff_map2, vit_hidden2, prepared, block_b=16))
    ref2 = reference_head(eff_map2, vit_hidden2, params)
    assert out2.shape == (B2, NUM_CLASSES)
    assert jnp.allclose(out2, ref2, atol=3e-2, rtol=3e-2)

    print("KERNEL_OK")
</pallas_src>

<mosaic_0001>
module attributes {stable_mosaic.version = 11 : i64} {
  func.func @ensemble_head_kernel(%arg0: i32, %arg1: memref<16x1280xbf16, #tpu.memory_space<vmem>>, %arg2: memref<16x768xbf16, #tpu.memory_space<vmem>>, %arg3: memref<1280x1024xbf16, #tpu.memory_space<vmem>>, %arg4: memref<768x1024xbf16, #tpu.memory_space<vmem>>, %arg5: memref<1x1024xf32, #tpu.memory_space<vmem>>, %arg6: memref<1024x128xbf16, #tpu.memory_space<vmem>>, %arg7: memref<1x128xf32, #tpu.memory_space<vmem>>, %arg8: memref<16x128xf32, #tpu.memory_space<vmem>>) attributes {dimension_semantics = [#tpu.dimension_semantics<parallel>], iteration_bounds = array<i64: 1>, scalar_prefetch = 0 : i64, scratch_operands = 0 : i64, tpu.core_type = #tpu.core_type<tc>, window_params = [{transform_indices = @transform_0, window_bounds = array<i64: 16, 1280>}, {transform_indices = @transform_1, window_bounds = array<i64: 16, 768>}, {pipeline_mode = #tpu.pipeline_mode<synchronous>, transform_indices = @transform_2, window_bounds = array<i64: 1280, 1024>}, {pipeline_mode = #tpu.pipeline_mode<synchronous>, transform_indices = @transform_3, window_bounds = array<i64: 768, 1024>}, {pipeline_mode = #tpu.pipeline_mode<synchronous>, transform_indices = @transform_4, window_bounds = array<i64: 1, 1024>}, {pipeline_mode = #tpu.pipeline_mode<synchronous>, transform_indices = @transform_5, window_bounds = array<i64: 1024, 128>}, {pipeline_mode = #tpu.pipeline_mode<synchronous>, transform_indices = @transform_6, window_bounds = array<i64: 1, 128>}, {transform_indices = @transform_7, window_bounds = array<i64: 16, 128>}]} {
    %c0 = arith.constant 0 : index
    %c0_0 = arith.constant 0 : index
    %0 = vector.load %arg1[%c0, %c0_0] : memref<16x1280xbf16, #tpu.memory_space<vmem>>, vector<16x1280xbf16>
    %c0_1 = arith.constant 0 : index
    %c0_2 = arith.constant 0 : index
    %1 = vector.load %arg3[%c0_1, %c0_2] : memref<1280x1024xbf16, #tpu.memory_space<vmem>>, vector<1280x1024xbf16>
    %cst = arith.constant dense<0.000000e+00> : vector<16x1024xf32>
    %2 = tpu.matmul %0, %1, %cst {dimension_numbers = #tpu.dot_dimension_numbers<[1], [0], [0], [1], [0, 0, 1, 1], [], []>} : vector<16x1280xbf16>, vector<1280x1024xbf16>, vector<16x1024xf32> -> vector<16x1024xf32>
    %c0_3 = arith.constant 0 : index
    %c0_4 = arith.constant 0 : index
    %3 = vector.load %arg2[%c0_3, %c0_4] : memref<16x768xbf16, #tpu.memory_space<vmem>>, vector<16x768xbf16>
    %c0_5 = arith.constant 0 : index
    %c0_6 = arith.constant 0 : index
    %4 = vector.load %arg4[%c0_5, %c0_6] : memref<768x1024xbf16, #tpu.memory_space<vmem>>, vector<768x1024xbf16>
    %cst_7 = arith.constant dense<0.000000e+00> : vector<16x1024xf32>
    %5 = tpu.matmul %3, %4, %cst_7 {dimension_numbers = #tpu.dot_dimension_numbers<[1], [0], [0], [1], [0, 0, 1, 1], [], []>} : vector<16x768xbf16>, vector<768x1024xbf16>, vector<16x1024xf32> -> vector<16x1024xf32>
    %6 = arith.addf %2, %5 : vector<16x1024xf32>
    %c0_8 = arith.constant 0 : index
    %c0_9 = arith.constant 0 : index
    %7 = vector.load %arg5[%c0_8, %c0_9] : memref<1x1024xf32, #tpu.memory_space<vmem>>, vector<1x1024xf32>
    %8 = vector.broadcast %7 : vector<1x1024xf32> to vector<16x1024xf32>
    %9 = arith.addf %6, %8 : vector<16x1024xf32>
    %cst_10 = arith.constant 0.000000e+00 : f32
    %10 = vector.broadcast %cst_10 : f32 to vector<16x1024xf32>
    %11 = arith.maximumf %9, %10 : vector<16x1024xf32>
    %12 = arith.truncf %11 : vector<16x1024xf32> to vector<16x1024xbf16>
    %c0_11 = arith.constant 0 : index
    %c0_12 = arith.constant 0 : index
    %13 = vector.load %arg6[%c0_11, %c0_12] : memref<1024x128xbf16, #tpu.memory_space<vmem>>, vector<1024x128xbf16>
    %cst_13 = arith.constant dense<0.000000e+00> : vector<16x128xf32>
    %14 = tpu.matmul %12, %13, %cst_13 {dimension_numbers = #tpu.dot_dimension_numbers<[1], [0], [0], [1], [0, 0, 1, 1], [], []>} : vector<16x1024xbf16>, vector<1024x128xbf16>, vector<16x128xf32> -> vector<16x128xf32>
    %c0_14 = arith.constant 0 : index
    %c0_15 = arith.constant 0 : index
    %15 = vector.load %arg7[%c0_14, %c0_15] : memref<1x128xf32, #tpu.memory_space<vmem>>, vector<1x128xf32>
    %16 = vector.broadcast %15 : vector<1x128xf32> to vector<16x128xf32>
    %17 = arith.addf %14, %16 : vector<16x128xf32>
    %c0_16 = arith.constant 0 : index
    %c0_17 = arith.constant 0 : index
    %18 = vector.load %arg8[%c0_16, %c0_17] : memref<16x128xf32, #tpu.memory_space<vmem>>, vector<16x128xf32>
    tpu.vector_store %arg8[%c0_16, %c0_17], %17 {strides = array<i32>} : memref<16x128xf32, #tpu.memory_space<vmem>>, vector<16x128xf32>,
    return
  }
  func.func @transform_0(%arg0: i32) -> (i32, i32) {
    %c0_i32 = arith.constant 0 : i32
    %c0_i32_0 = arith.constant 0 : i32
    return %arg0, %c0_i32 : i32, i32
  }
  func.func @transform_1(%arg0: i32) -> (i32, i32) {
    %c0_i32 = arith.constant 0 : i32
    %c0_i32_0 = arith.constant 0 : i32
    return %arg0, %c0_i32 : i32, i32
  }
  func.func @transform_2(%arg0: i32) -> (i32, i32) {
    %c0_i32 = arith.constant 0 : i32
    %c0_i32_0 = arith.constant 0 : i32
    %c0_i32_1 = arith.constant 0 : i32
    return %c0_i32, %c0_i32_0 : i32, i32
  }
  func.func @transform_3(%arg0: i32) -> (i32, i32) {
    %c0_i32 = arith.constant 0 : i32
    %c0_i32_0 = arith.constant 0 : i32
    %c0_i32_1 = arith.constant 0 : i32
    return %c0_i32, %c0_i32_0 : i32, i32
  }
  func.func @transform_4(%arg0: i32) -> (i32, i32) {
    %c0_i32 = arith.constant 0 : i32
    %c0_i32_0 = arith.constant 0 : i32
    %c0_i32_1 = arith.constant 0 : i32
    return %c0_i32, %c0_i32_0 : i32, i32
  }
  func.func @transform_5(%arg0: i32) -> (i32, i32) {
    %c0_i32 = arith.constant 0 : i32
    %c0_i32_0 = arith.constant 0 : i32
    %c0_i32_1 = arith.constant 0 : i32
    return %c0_i32, %c0_i32_0 : i32, i32
  }
  func.func @transform_6(%arg0: i32) -> (i32, i32) {
    %c0_i32 = arith.constant 0 : i32
    %c0_i32_0 = arith.constant 0 : i32
    %c0_i32_1 = arith.constant 0 : i32
    return %c0_i32, %c0_i32_0 : i32, i32
  }
  func.func @transform_7(%arg0: i32) -> (i32, i32) {
    %c0_i32 = arith.constant 0 : i32
    %c0_i32_0 = arith.constant 0 : i32
    return %arg0, %c0_i32 : i32, i32
  }
}

</mosaic_0001>

<llo_original>
// kernel: tpu_custom_call.1
$region0: #{tpu_custom_call.1}
  #allocation0 [shape = 'u32[]', space=smem, size = 0x4, offset = 0x4, fixed_abs, tag = 'smem constant byte address 0x4 - core index']
  #allocation1 [shape = 'u32[72,128]{1,0:T(1,128)}', space=vmem, size = 0x9000, scoped, tag = 'internal scratch']
  %s0 = inlined_call_operand.hbm [shape: bf16[16,1280], index: 0, kind: input, shape index: {}]
  %s1 = inlined_call_operand.hbm [shape: bf16[16,768], index: 1, kind: input, shape index: {}]
  %s2 = inlined_call_operand.hbm [shape: bf16[1280,1024], index: 2, kind: input, shape index: {}]
  %s3 = inlined_call_operand.hbm [shape: bf16[768,1024], index: 3, kind: input, shape index: {}]
  %s4 = inlined_call_operand.hbm [shape: f32[1,1024], index: 4, kind: input, shape index: {}]
  %s5 = inlined_call_operand.hbm [shape: bf16[1024,128], index: 5, kind: input, shape index: {}]
  %s6 = inlined_call_operand.hbm [shape: f32[1,128], index: 6, kind: input, shape index: {}]
  %s7 = inlined_call_operand.hbm [shape: f32[16,128], index: 7, kind: output, shape index: {}]
  %s8 = sld [smem:[#allocation0]]
  $region66: #{tpu_custom_call.1} parent=0
    _
  %s10 = ssub.s32 1, %s8
  %s11 = scalar_select 0, %s10, %s8
  $region1: #{tpu_custom_call.1} parent=0
    #allocation2 [shape = 'u8[40960]{0}', space=vmem, size = 0xa000, scoped, tag = 'input window, operand 0, single buffered']
    #allocation3 [shape = 's32[1]{0}', space=sflag, size = 0x4, scoped, tag = 'scoped memory for tpu_custom_call.1']
    #allocation4 [shape = 's32[1]{0}', space=sflag, size = 0x4, scoped, tag = 'scoped memory for tpu_custom_call.1']
    #allocation5 [shape = 'u8[24576]{0}', space=vmem, size = 0x6000, scoped, tag = 'input window, operand 1, single buffered']
    #allocation6 [shape = 's32[1]{0}', space=sflag, size = 0x4, scoped, tag = 'scoped memory for tpu_custom_call.1']
    #allocation7 [shape = 'u8[2621440]{0}', space=vmem, size = 0x280000, scoped, tag = 'input window, operand 2, single buffered']
    #allocation8 [shape = 'u8[1572864]{0}', space=vmem, size = 0x180000, scoped, tag = 'input window, operand 3, single buffered']
    #allocation9 [shape = 's32[1]{0}', space=sflag, size = 0x4, scoped, tag = 'scoped memory for tpu_custom_call.1']
    #allocation10 [shape = 'u8[4096]{0}', space=vmem, size = 0x1000, scoped, tag = 'input window, operand 4, single buffered']
    #allocation11 [shape = 'u8[262144]{0}', space=vmem, size = 0x40000, scoped, tag = 'input window, operand 5, single buffered']
    #allocation12 [shape = 's32[1]{0}', space=sflag, size = 0x4, scoped, tag = 'scoped memory for tpu_custom_call.1']
    #allocation13 [shape = 'u8[512]{0}', space=vmem, size = 0x400, scoped, tag = 'input window, operand 6, single buffered']
    #allocation14 [shape = 'u8[8192]{0}', space=vmem, size = 0x2000, scoped, tag = 'output window, operand 0, single buffered']
    %12 = vsyncpa [#allocation3], 0
    %13 = vsyncpa [#allocation6], 0
    %14 = vsyncpa [#allocation9], 0
    %15 = vsyncpa [#allocation12], 0
    %16 = vsyncpa [#allocation4], 0
    // Predicated region
    $region2: #{tpu_custom_call.1} parent=1 // pred_check
      _
    $region3: #{tpu_custom_call.1} parent=1 // pred_check_branch
      %18 = sbr.rel (0) target = $region5
    $region4: #{tpu_custom_call.1} parent=1 // pred_region
      %20 = vsyncadd [#allocation3], 0
      %s21 = sshll.u32 %s0, 4
      %s22 = int_to_ptr.hbm [resolvable:$true] %s21
      %s23 = sshll.u32 [#allocation2], 4
      %s24 = int_to_ptr.vmem [resolvable:$true] %s23
      %29 = dma.hbm_to_vmem [thread:$0]  %s22, 1280, %s24, [#allocation3], 640, 640, 40
    $region5: #{tpu_custom_call.1} parent=1 // pred_fallthru
      _
    // Predicated region
    $region6: #{tpu_custom_call.1} parent=1 // pred_check
      _
    $region7: #{tpu_custom_call.1} parent=1 // pred_check_branch
      %31 = sbr.rel (0) target = $region9
    $region8: #{tpu_custom_call.1} parent=1 // pred_region
      %33 = vsyncadd [#allocation6], 0
      %s34 = sshll.u32 %s1, 4
      %s35 = int_to_ptr.hbm [resolvable:$true] %s34
      %s36 = sshll.u32 [#allocation5], 4
      %s37 = int_to_ptr.vmem [resolvable:$true] %s36
      %42 = dma.hbm_to_vmem [thread:$0]  %s35, 768, %s37, [#allocation6], 384, 384, 24
    $region9: #{tpu_custom_call.1} parent=1 // pred_fallthru
      _
    // Predicated region
    $region10: #{tpu_custom_call.1} parent=1 // pred_check
      _
    $region11: #{tpu_custom_call.1} parent=1 // pred_check_branch
      %44 = sbr.rel (0) target = $region13
    $region12: #{tpu_custom_call.1} parent=1 // pred_region
      %46 = vsyncadd [#allocation6], 0
      %s47 = sshll.u32 %s2, 4
      %s48 = int_to_ptr.hbm [resolvable:$true] %s47
      %s49 = sshll.u32 [#allocation7], 4
      %s50 = int_to_ptr.vmem [resolvable:$true] %s49
      %55 = dma.hbm_to_vmem [thread:$0]  %s48, 81920, %s50, [#allocation6], 512, 512, 32
    $region13: #{tpu_custom_call.1} parent=1 // pred_fallthru
      _
    // Predicated region
    $region14: #{tpu_custom_call.1} parent=1 // pred_check
      _
    $region15: #{tpu_custom_call.1} parent=1 // pred_check_branch
      %57 = sbr.rel (0) target = $region17
    $region16: #{tpu_custom_call.1} parent=1 // pred_region
      %59 = vsyncadd [#allocation9], 0
      %s60 = sshll.u32 %s3, 4
      %s61 = int_to_ptr.hbm [resolvable:$true] %s60
      %s62 = sshll.u32 [#allocation8], 4
      %s63 = int_to_ptr.vmem [resolvable:$true] %s62
      %68 = dma.hbm_to_vmem [thread:$0]  %s61, 49152, %s63, [#allocation9], 512, 512, 32
    $region17: #{tpu_custom_call.1} parent=1 // pred_fallthru
      _
    // Predicated region
    $region18: #{tpu_custom_call.1} parent=1 // pred_check
      _
    $region19: #{tpu_custom_call.1} parent=1 // pred_check_branch
      %70 = sbr.rel (0) target = $region21
    $region20: #{tpu_custom_call.1} parent=1 // pred_region
      %72 = vsyncadd [#allocation9], 0
      %s74 = sshll.u32 %s4, 4
      %s75 = int_to_ptr.hbm [resolvable:$true] %s74
      %s76 = sshll.u32 [#allocation10], 4
      %s77 = int_to_ptr.vmem [resolvable:$true] %s76
      %79 = dma.hbm_to_vmem [thread:$0]  %s75, 128, %s77, [#allocation9]
    $region21: #{tpu_custom_call.1} parent=1 // pred_fallthru
      _
    // Predicated region
    $region22: #{tpu_custom_call.1} parent=1 // pred_check
      _
    $region23: #{tpu_custom_call.1} parent=1 // pred_check_branch
      %81 = sbr.rel (0) target = $region25
    $region24: #{tpu_custom_call.1} parent=1 // pred_region
      %83 = vsyncadd [#allocation12], 0
      %s84 = sshll.u32 %s5, 4
      %s85 = int_to_ptr.hbm [resolvable:$true] %s84
      %s86 = sshll.u32 [#allocation11], 4
      %s87 = int_to_ptr.vmem [resolvable:$true] %s86
      %92 = dma.hbm_to_vmem [thread:$0]  %s85, 8192, %s87, [#allocation12], 64, 64, 4
    $region25: #{tpu_custom_call.1} parent=1 // pred_fallthru
      _
    // Predicated region
    $region26: #{tpu_custom_call.1} parent=1 // pred_check
      _
    $region27: #{tpu_custom_call.1} parent=1 // pred_check_branch
      %94 = sbr.rel (0) target = $region29
    $region28: #{tpu_custom_call.1} parent=1 // pred_region
      %96 = vsyncadd [#allocation12], 0
      %s98 = sshll.u32 %s6, 4
      %s99 = int_to_ptr.hbm [resolvable:$true] %s98
      %s100 = sshll.u32 [#allocation13], 4
      %s101 = int_to_ptr.vmem [resolvable:$true] %s100
      %103 = dma.hbm_to_vmem [thread:$0]  %s99, 16, %s101, [#allocation12]
    $region29: #{tpu_custom_call.1} parent=1 // pred_fallthru
      _
    // Predicated region
    $region30: #{tpu_custom_call.1} parent=1 // pred_check
      _
    $region31: #{tpu_custom_call.1} parent=1 // pred_check_branch
      %105 = sbr.rel (0) target = $region33
    $region32: #{tpu_custom_call.1} parent=1 // pred_region
      %107 = dma.done [#allocation3], 1280
    $region33: #{tpu_custom_call.1} parent=1 // pred_fallthru
      _
    // Predicated region
    $region34: #{tpu_custom_call.1} parent=1 // pred_check
      _
    $region35: #{tpu_custom_call.1} parent=1 // pred_check_branch
      %109 = sbr.rel (0) target = $region37
    $region36: #{tpu_custom_call.1} parent=1 // pred_region
      %111 = dma.done [#allocation6], 768
    $region37: #{tpu_custom_call.1} parent=1 // pred_fallthru
      _
    // Predicated region
    $region38: #{tpu_custom_call.1} parent=1 // pred_check
      _
    $region39: #{tpu_custom_call.1} parent=1 // pred_check_branch
      %113 = sbr.rel (0) target = $region41
    $region40: #{tpu_custom_call.1} parent=1 // pred_region
      %115 = dma.done [#allocation6], 81920
    $region41: #{tpu_custom_call.1} parent=1 // pred_fallthru
      _
    // Predicated region
    $region42: #{tpu_custom_call.1} parent=1 // pred_check
      _
    $region43: #{tpu_custom_call.1} parent=1 // pred_check_branch
      %117 = sbr.rel (0) target = $region45
    $region44: #{tpu_custom_call.1} parent=1 // pred_region
      %119 = dma.done [#allocation9], 49152
    $region45: #{tpu_custom_call.1} parent=1 // pred_fallthru
      _
    // Predicated region
    $region46: #{tpu_custom_call.1} parent=1 // pred_check
      _
    $region47: #{tpu_custom_call.1} parent=1 // pred_check_branch
      %121 = sbr.rel (0) target = $region49
    $region48: #{tpu_custom_call.1} parent=1 // pred_region
      %123 = dma.done [#allocation9], 128
    $region49: #{tpu_custom_call.1} parent=1 // pred_fallthru
      _
    // Predicated region
    $region50: #{tpu_custom_call.1} parent=1 // pred_check
      _
    $region51: #{tpu_custom_call.1} parent=1 // pred_check_branch
      %125 = sbr.rel (0) target = $region53
    $region52: #{tpu_custom_call.1} parent=1 // pred_region
      %127 = dma.done [#allocation12], 8192
    $region53: #{tpu_custom_call.1} parent=1 // pred_fallthru
      _
    // Predicated region
    $region54: #{tpu_custom_call.1} parent=1 // pred_check
      _
    $region55: #{tpu_custom_call.1} parent=1 // pred_check_branch
      %129 = sbr.rel (0) target = $region57
    $region56: #{tpu_custom_call.1} parent=1 // pred_region
      %131 = dma.done [#allocation12], 16
    $region57: #{tpu_custom_call.1} parent=1 // pred_fallthru
      _
    %v132 = vld [vmem:[#allocation2] sm:$0xff]
    %v133 = vld [vmem:[#allocation2 + $0x8] sm:$0xff]
    %v134 = vld [vmem:[#allocation2 + $0x10] sm:$0xff]
    %v135 = vld [vmem:[#allocation2 + $0x18] sm:$0xff]
    %v136 = vld [vmem:[#allocation2 + $0x20] sm:$0xff]
    %v137 = vld [vmem:[#allocation2 + $0x28] sm:$0xff]
    %v138 = vld [vmem:[#allocation2 + $0x30] sm:$0xff]
    %v139 = vld [vmem:[#allocation2 + $0x38] sm:$0xff]
    %v140 = vld [vmem:[#allocation2 + $0x40] sm:$0xff]
    %v141 = vld [vmem:[#allocation2 + $0x48] sm:$0xff]
    %v142 = vld [vmem:[#allocation7] sm:$0xff]
    %v143 = vld [vmem:[#allocation7 + $0x8] sm:$0xff]
    %v144 = vld [vmem:[#allocation7 + $0x10] sm:$0xff]
    %v145 = vld [vmem:[#allocation7 + $0x18] sm:$0xff]
    %v146 = vld [vmem:[#allocation7 + $0x20] sm:$0xff]
    %v147 = vld [vmem:[#allocation7 + $0x28] sm:$0xff]
    %v148 = vld [vmem:[#allocation7 + $0x30] sm:$0xff]
    %v149 = vld [vmem:[#allocation7 + $0x38] sm:$0xff]
    %v150 = vld [vmem:[#allocation7 + $0x40] sm:$0xff]
    %v151 = vld [vmem:[#allocation7 + $0x48] sm:$0xff]
    %v152 = vld [vmem:[#allocation7 + $0x50] sm:$0xff]
    %v153 = vld [vmem:[#allocation7 + $0x58] sm:$0xff]
    %v154 = vld [vmem:[#allocation7 + $0x60] sm:$0xff]
    %v155 = vld [vmem:[#allocation7 + $0x68] sm:$0xff]
    %v156 = vld [vmem:[#allocation7 + $0x70] sm:$0xff]
    %v157 = vld [vmem:[#allocation7 + $0x78] sm:$0xff]
    %v158 = vld [vmem:[#allocation7 + $0x80] sm:$0xff]
    %v159 = vld [vmem:[#allocation7 + $0x88] sm:$0xff]
    %v160 = vld [vmem:[#allocation7 + $0x90] sm:$0xff]
    %v161 = vld [vmem:[#allocation7 + $0x98] sm:$0xff]
    %v162 = vld [vmem:[#allocation7 + $0xa0] sm:$0xff]
    %v163 = vld [vmem:[#allocation7 + $0xa8] sm:$0xff]
    %v164 = vld [vmem:[#allocation7 + $0xb0] sm:$0xff]
    %v165 = vld [vmem:[#allocation7 + $0xb8] sm:$0xff]
    %v166 = vld [vmem:[#allocation7 + $0xc0] sm:$0xff]
    %v167 = vld [vmem:[#allocation7 + $0xc8] sm:$0xff]
    %v168 = vld [vmem:[#allocation7 + $0xd0] sm:$0xff]
    %v169 = vld [vmem:[#allocation7 + $0xd8] sm:$0xff]
    %v170 = vld [vmem:[#allocation7 + $0xe0] sm:$0xff]
    %v171 = vld [vmem:[#allocation7 + $0xe8] sm:$0xff]
    %v172 = vld [vmem:[#allocation7 + $0xf0] sm:$0xff]
    %v173 = vld [vmem:[#allocation7 + $0xf8] sm:$0xff]
    %v174 = vld [vmem:[#allocation7 + $0x100] sm:$0xff]
    %v175 = vld [vmem:[#allocation7 + $0x108] sm:$0xff]
    %v176 = vld [vmem:[#allocation7 + $0x110] sm:$0xff]
    %v177 = vld [vmem:[#allocation7 + $0x118] sm:$0xff]
    %v178 = vld [vmem:[#allocation7 + $0x120] sm:$0xff]
    %v179 = vld [vmem:[#allocation7 + $0x128] sm:$0xff]
    %v180 = vld [vmem:[#allocation7 + $0x130] sm:$0xff]
    %v181 = vld [vmem:[#allocation7 + $0x138] sm:$0xff]
    %v182 = vld [vmem:[#allocation7 + $0x140] sm:$0xff]
    %v183 = vld [vmem:[#allocation7 + $0x148] sm:$0xff]
    %v184 = vld [vmem:[#allocation7 + $0x150] sm:$0xff]
    %v185 = vld [vmem:[#allocation7 + $0x158] sm:$0xff]
    %v186 = vld [vmem:[#allocation7 + $0x160] sm:$0xff]
    %v187 = vld [vmem:[#allocation7 + $0x168] sm:$0xff]
    %v188 = vld [vmem:[#allocation7 + $0x170] sm:$0xff]
    %v189 = vld [vmem:[#allocation7 + $0x178] sm:$0xff]
    %v190 = vld [vmem:[#allocation7 + $0x180] sm:$0xff]
    %v191 = vld [vmem:[#allocation7 + $0x188] sm:$0xff]
    %v192 = vld [vmem:[#allocation7 + $0x190] sm:$0xff]
    %v193 = vld [vmem:[#allocation7 + $0x198] sm:$0xff]
    %v194 = vld [vmem:[#allocation7 + $0x1a0] sm:$0xff]
    %v195 = vld [vmem:[#allocation7 + $0x1a8] sm:$0xff]
    %v196 = vld [vmem:[#allocation7 + $0x1b0] sm:$0xff]
    %v197 = vld [vmem:[#allocation7 + $0x1b8] sm:$0xff]
    %v198 = vld [vmem:[#allocation7 + $0x1c0] sm:$0xff]
    %v199 = vld [vmem:[#allocation7 + $0x1c8] sm:$0xff]
    %v200 = vld [vmem:[#allocation7 + $0x1d0] sm:$0xff]
    %v201 = vld [vmem:[#allocation7 + $0x1d8] sm:$0xff]
    %v202 = vld [vmem:[#allocation7 + $0x1e0] sm:$0xff]
    %v203 = vld [vmem:[#allocation7 + $0x1e8] sm:$0xff]
    %v204 = vld [vmem:[#allocation7 + $0x1f0] sm:$0xff]
    %v205 = vld [vmem:[#allocation7 + $0x1f8] sm:$0xff]
    %v206 = vld [vmem:[#allocation7 + $0x200] sm:$0xff]
    %v207 = vld [vmem:[#allocation7 + $0x208] sm:$0xff]
    %v208 = vld [vmem:[#allocation7 + $0x210] sm:$0xff]
    %v209 = vld [vmem:[#allocation7 + $0x218] sm:$0xff]
    %v210 = vld [vmem:[#allocation7 + $0x220] sm:$0xff]
    %v211 = vld [vmem:[#allocation7 + $0x228] sm:$0xff]
    %v212 = vld [vmem:[#allocation7 + $0x230] sm:$0xff]
    %v213 = vld [vmem:[#allocation7 + $0x238] sm:$0xff]
    %v214 = vld [vmem:[#allocation7 + $0x240] sm:$0xff]
    %v215 = vld [vmem:[#allocation7 + $0x248] sm:$0xff]
    %v216 = vld [vmem:[#allocation7 + $0x250] sm:$0xff]
    %v217 = vld [vmem:[#allocation7 + $0x258] sm:$0xff]
    %v218 = vld [vmem:[#allocation7 + $0x260] sm:$0xff]
    %v219 = vld [vmem:[#allocation7 + $0x268] sm:$0xff]
    %v220 = vld [vmem:[#allocation7 + $0x270] sm:$0xff]
    %v221 = vld [vmem:[#allocation7 + $0x278] sm:$0xff]
    %v222 = vld [vmem:[#allocation7 + $0x280] sm:$0xff]
    %v223 = vld [vmem:[#allocation7 + $0x288] sm:$0xff]
    %v224 = vld [vmem:[#allocation7 + $0x290] sm:$0xff]
    %v225 = vld [vmem:[#allocation7 + $0x298] sm:$0xff]
    %v226 = vld [vmem:[#allocation7 + $0x2a0] sm:$0xff]
    %v227 = vld [vmem:[#allocation7 + $0x2a8] sm:$0xff]
    %v228 = vld [vmem:[#allocation7 + $0x2b0] sm:$0xff]
    %v229 = vld [vmem:[#allocation7 + $0x2b8] sm:$0xff]
    %v230 = vld [vmem:[#allocation7 + $0x2c0] sm:$0xff]
    %v231 = vld [vmem:[#allocation7 + $0x2c8] sm:$0xff]
    %v232 = vld [vmem:[#allocation7 + $0x2d0] sm:$0xff]
    %v233 = vld [vmem:[#allocation7 + $0x2d8] sm:$0xff]
    %v234 = vld [vmem:[#allocation7 + $0x2e0] sm:$0xff]
    %v235 = vld [vmem:[#allocation7 + $0x2e8] sm:$0xff]
    %v236 = vld [vmem:[#allocation7 + $0x2f0] sm:$0xff]
    %v237 = vld [vmem:[#allocation7 + $0x2f8] sm:$0xff]
    %v238 = vld [vmem:[#allocation7 + $0x300] sm:$0xff]
    %v239 = vld [vmem:[#allocation7 + $0x308] sm:$0xff]
    %v240 = vld [vmem:[#allocation7 + $0x310] sm:$0xff]
    %v241 = vld [vmem:[#allocation7 + $0x318] sm:$0xff]
    %v242 = vld [vmem:[#allocation7 + $0x320] sm:$0xff]
    %v243 = vld [vmem:[#allocation7 + $0x328] sm:$0xff]
    %v244 = vld [vmem:[#allocation7 + $0x330] sm:$0xff]
    %v245 = vld [vmem:[#allocation7 + $0x338] sm:$0xff]
    %v246 = vld [vmem:[#allocation7 + $0x340] sm:$0xff]
    %v247 = vld [vmem:[#allocation7 + $0x348] sm:$0xff]
    %v248 = vld [vmem:[#allocation7 + $0x350] sm:$0xff]
    %v249 = vld [vmem:[#allocation7 + $0x358] sm:$0xff]
    %v250 = vld [vmem:[#allocation7 + $0x360] sm:$0xff]
    %v251 = vld [vmem:[#allocation7 + $0x368] sm:$0xff]
    %v252 = vld [vmem:[#allocation7 + $0x370] sm:$0xff]
    %v253 = vld [vmem:[#allocation7 + $0x378] sm:$0xff]
    %v254 = vld [vmem:[#allocation7 + $0x380] sm:$0xff]
    %v255 = vld [vmem:[#allocation7 + $0x388] sm:$0xff]
    %v256 = vld [vmem:[#allocation7 + $0x390] sm:$0xff]
    %v257 = vld [vmem:[#allocation7 + $0x398] sm:$0xff]
    %v258 = vld [vmem:[#allocation7 + $0x3a0] sm:$0xff]
    %v259 = vld [vmem:[#allocation7 + $0x3a8] sm:$0xff]
    %v260 = vld [vmem:[#allocation7 + $0x3b0] sm:$0xff]
    %v261 = vld [vmem:[#allocation7 + $0x3b8] sm:$0xff]
    %v262 = vld [vmem:[#allocation7 + $0x3c0] sm:$0xff]
    %v263 = vld [vmem:[#allocation7 + $0x3c8] sm:$0xff]
    %v264 = vld [vmem:[#allocation7 + $0x3d0] sm:$0xff]
    %v265 = vld [vmem:[#allocation7 + $0x3d8] sm:$0xff]
    %v266 = vld [vmem:[#allocation7 + $0x3e0] sm:$0xff]
    %v267 = vld [vmem:[#allocation7 + $0x3e8] sm:$0xff]
    %v268 = vld [vmem:[#allocation7 + $0x3f0] sm:$0xff]
    %v269 = vld [vmem:[#allocation7 + $0x3f8] sm:$0xff]
    %v270 = vld [vmem:[#allocation7 + $0x400] sm:$0xff]
    %v271 = vld [vmem:[#allocation7 + $0x408] sm:$0xff]
    %v272 = vld [vmem:[#allocation7 + $0x410] sm:$0xff]
    %v273 = vld [vmem:[#allocation7 + $0x418] sm:$0xff]
    %v274 = vld [vmem:[#allocation7 + $0x420] sm:$0xff]
    %v275 = vld [vmem:[#allocation7 + $0x428] sm:$0xff]
    %v276 = vld [vmem:[#allocation7 + $0x430] sm:$0xff]
    %v277 = vld [vmem:[#allocation7 + $0x438] sm:$0xff]
    %v278 = vld [vmem:[#allocation7 + $0x440] sm:$0xff]
    %v279 = vld [vmem:[#allocation7 + $0x448] sm:$0xff]
    %v280 = vld [vmem:[#allocation7 + $0x450] sm:$0xff]
    %v281 = vld [vmem:[#allocation7 + $0x458] sm:$0xff]
    %v282 = vld [vmem:[#allocation7 + $0x460] sm:$0xff]
    %v283 = vld [vmem:[#allocation7 + $0x468] sm:$0xff]
    %v284 = vld [vmem:[#allocation7 + $0x470] sm:$0xff]
    %v285 = vld [vmem:[#allocation7 + $0x478] sm:$0xff]
    %v286 = vld [vmem:[#allocation7 + $0x480] sm:$0xff]
    %v287 = vld [vmem:[#allocation7 + $0x488] sm:$0xff]
    %v288 = vld [vmem:[#allocation7 + $0x490] sm:$0xff]
    %v289 = vld [vmem:[#allocation7 + $0x498] sm:$0xff]
    %v290 = vld [vmem:[#allocation7 + $0x4a0] sm:$0xff]
    %v291 = vld [vmem:[#allocation7 + $0x4a8] sm:$0xff]
    %v292 = vld [vmem:[#allocation7 + $0x4b0] sm:$0xff]
    %v293 = vld [vmem:[#allocation7 + $0x4b8] sm:$0xff]
    %v294 = vld [vmem:[#allocation7 + $0x4c0] sm:$0xff]
    %v295 = vld [vmem:[#allocation7 + $0x4c8] sm:$0xff]
    %v296 = vld [vmem:[#allocation7 + $0x4d0] sm:$0xff]
    %v297 = vld [vmem:[#allocation7 + $0x4d8] sm:$0xff]
    %v298 = vld [vmem:[#allocation7 + $0x4e0] sm:$0xff]
    %v299 = vld [vmem:[#allocation7 + $0x4e8] sm:$0xff]
    %v300 = vld [vmem:[#allocation7 + $0x4f0] sm:$0xff]
    %v301 = vld [vmem:[#allocation7 + $0x4f8] sm:$0xff]
    %v302 = vld [vmem:[#allocation7 + $0x500] sm:$0xff]
    %v303 = vld [vmem:[#allocation7 + $0x508] sm:$0xff]
    %v304 = vld [vmem:[#allocation7 + $0x510] sm:$0xff]
    %v305 = vld [vmem:[#allocation7 + $0x518] sm:$0xff]
    %v306 = vld [vmem:[#allocation7 + $0x520] sm:$0xff]
    %v307 = vld [vmem:[#allocation7 + $0x528] sm:$0xff]
    %v308 = vld [vmem:[#allocation7 + $0x530] sm:$0xff]
    %v309 = vld [vmem:[#allocation7 + $0x538] sm:$0xff]
    %v310 = vld [vmem:[#allocation7 + $0x540] sm:$0xff]
    %v311 = vld [vmem:[#allocation7 + $0x548] sm:$0xff]
    %v312 = vld [vmem:[#allocation7 + $0x550] sm:$0xff]
    %v313 = vld [vmem:[#allocation7 + $0x558] sm:$0xff]
    %v314 = vld [vmem:[#allocation7 + $0x560] sm:$0xff]
    %v315 = vld [vmem:[#allocation7 + $0x568] sm:$0xff]
    %v316 = vld [vmem:[#allocation7 + $0x570] sm:$0xff]
    %v317 = vld [vmem:[#allocation7 + $0x578] sm:$0xff]
    %v318 = vld [vmem:[#allocation7 + $0x580] sm:$0xff]
    %v319 = vld [vmem:[#allocation7 + $0x588] sm:$0xff]
    %v320 = vld [vmem:[#allocation7 + $0x590] sm:$0xff]
    %v321 = vld [vmem:[#allocation7 + $0x598] sm:$0xff]
    %v322 = vld [vmem:[#allocation7 + $0x5a0] sm:$0xff]
    %v323 = vld [vmem:[#allocation7 + $0x5a8] sm:$0xff]
    %v324 = vld [vmem:[#allocation7 + $0x5b0] sm:$0xff]
    %v325 = vld [vmem:[#allocation7 + $0x5b8] sm:$0xff]
    %v326 = vld [vmem:[#allocation7 + $0x5c0] sm:$0xff]
    %v327 = vld [vmem:[#allocation7 + $0x5c8] sm:$0xff]
    %v328 = vld [vmem:[#allocation7 + $0x5d0] sm:$0xff]
    %v329 = vld [vmem:[#allocation7 + $0x5d8] sm:$0xff]
    %v330 = vld [vmem:[#allocation7 + $0x5e0] sm:$0xff]
    %v331 = vld [vmem:[#allocation7 + $0x5e8] sm:$0xff]
    %v332 = vld [vmem:[#allocation7 + $0x5f0] sm:$0xff]
    %v333 = vld [vmem:[#allocation7 + $0x5f8] sm:$0xff]
    %v334 = vld [vmem:[#allocation7 + $0x600] sm:$0xff]
    %v335 = vld [vmem:[#allocation7 + $0x608] sm:$0xff]
    %v336 = vld [vmem:[#allocation7 + $0x610] sm:$0xff]
    %v337 = vld [vmem:[#allocation7 + $0x618] sm:$0xff]
    %v338 = vld [vmem:[#allocation7 + $0x620] sm:$0xff]
    %v339 = vld [vmem:[#allocation7 + $0x628] sm:$0xff]
    %v340 = vld [vmem:[#allocation7 + $0x630] sm:$0xff]
    %v341 = vld [vmem:[#allocation7 + $0x638] sm:$0xff]
    %v342 = vld [vmem:[#allocation7 + $0x640] sm:$0xff]
    %v343 = vld [vmem:[#allocation7 + $0x648] sm:$0xff]
    %v344 = vld [vmem:[#allocation7 + $0x650] sm:$0xff]
    %v345 = vld [vmem:[#allocation7 + $0x658] sm:$0xff]
    %v346 = vld [vmem:[#allocation7 + $0x660] sm:$0xff]
    %v347 = vld [vmem:[#allocation7 + $0x668] sm:$0xff]
    %v348 = vld [vmem:[#allocation7 + $0x670] sm:$0xff]
    %v349 = vld [vmem:[#allocation7 + $0x678] sm:$0xff]
    %v350 = vld [vmem:[#allocation7 + $0x680] sm:$0xff]
    %v351 = vld [vmem:[#allocation7 + $0x688] sm:$0xff]
    %v352 = vld [vmem:[#allocation7 + $0x690] sm:$0xff]
    %v353 = vld [vmem:[#allocation7 + $0x698] sm:$0xff]
    %v354 = vld [vmem:[#allocation7 + $0x6a0] sm:$0xff]
    %v355 = vld [vmem:[#allocation7 + $0x6a8] sm:$0xff]
    %v356 = vld [vmem:[#allocation7 + $0x6b0] sm:$0xff]
    %v357 = vld [vmem:[#allocation7 + $0x6b8] sm:$0xff]
    %v358 = vld [vmem:[#allocation7 + $0x6c0] sm:$0xff]
    %v359 = vld [vmem:[#allocation7 + $0x6c8] sm:$0xff]
    %v360 = vld [vmem:[#allocation7 + $0x6d0] sm:$0xff]
    %v361 = vld [vmem:[#allocation7 + $0x6d8] sm:$0xff]
    %v362 = vld [vmem:[#allocation7 + $0x6e0] sm:$0xff]
    %v363 = vld [vmem:[#allocation7 + $0x6e8] sm:$0xff]
    %v364 = vld [vmem:[#allocation7 + $0x6f0] sm:$0xff]
    %v365 = vld [vmem:[#allocation7 + $0x6f8] sm:$0xff]
    %v366 = vld [vmem:[#allocation7 + $0x700] sm:$0xff]
    %v367 = vld [vmem:[#allocation7 + $0x708] sm:$0xff]
    %v368 = vld [vmem:[#allocation7 + $0x710] sm:$0xff]
    %v369 = vld [vmem:[#allocation7 + $0x718] sm:$0xff]
    %v370 = vld [vmem:[#allocation7 + $0x720] sm:$0xff]
    %v371 = vld [vmem:[#allocation7 + $0x728] sm:$0xff]
    %v372 = vld [vmem:[#allocation7 + $0x730] sm:$0xff]
    %v373 = vld [vmem:[#allocation7 + $0x738] sm:$0xff]
    %v374 = vld [vmem:[#allocation7 + $0x740] sm:$0xff]
    %v375 = vld [vmem:[#allocation7 + $0x748] sm:$0xff]
    %v376 = vld [vmem:[#allocation7 + $0x750] sm:$0xff]
    %v377 = vld [vmem:[#allocation7 + $0x758] sm:$0xff]
    %v378 = vld [vmem:[#allocation7 + $0x760] sm:$0xff]
    %v379 = vld [vmem:[#allocation7 + $0x768] sm:$0xff]
    %v380 = vld [vmem:[#allocation7 + $0x770] sm:$0xff]
    %v381 = vld [vmem:[#allocation7 + $0x778] sm:$0xff]
    %v382 = vld [vmem:[#allocation7 + $0x780] sm:$0xff]
    %v383 = vld [vmem:[#allocation7 + $0x788] sm:$0xff]
    %v384 = vld [vmem:[#allocation7 + $0x790] sm:$0xff]
    %v385 = vld [vmem:[#allocation7 + $0x798] sm:$0xff]
    %v386 = vld [vmem:[#allocation7 + $0x7a0] sm:$0xff]
    %v387 = vld [vmem:[#allocation7 + $0x7a8] sm:$0xff]
    %v388 = vld [vmem:[#allocation7 + $0x7b0] sm:$0xff]
    %v389 = vld [vmem:[#allocation7 + $0x7b8] sm:$0xff]
    %v390 = vld [vmem:[#allocation7 + $0x7c0] sm:$0xff]
    %v391 = vld [vmem:[#allocation7 + $0x7c8] sm:$0xff]
    %v392 = vld [vmem:[#allocation7 + $0x7d0] sm:$0xff]
    %v393 = vld [vmem:[#allocation7 + $0x7d8] sm:$0xff]
    %v394 = vld [vmem:[#allocation7 + $0x7e0] sm:$0xff]
    %v395 = vld [vmem:[#allocation7 + $0x7e8] sm:$0xff]
    %v396 = vld [vmem:[#allocation7 + $0x7f0] sm:$0xff]
    %v397 = vld [vmem:[#allocation7 + $0x7f8] sm:$0xff]
    %v398 = vld [vmem:[#allocation7 + $0x800] sm:$0xff]
    %v399 = vld [vmem:[#allocation7 + $0x808] sm:$0xff]
    %v400 = vld [vmem:[#allocation7 + $0x810] sm:$0xff]
    %v401 = vld [vmem:[#allocation7 + $0x818] sm:$0xff]
    %v402 = vld [vmem:[#allocation7 + $0x820] sm:$0xff]
    %v403 = vld [vmem:[#allocation7 + $0x828] sm:$0xff]
    %v404 = vld [vmem:[#allocation7 + $0x830] sm:$0xff]
    %v405 = vld [vmem:[#allocation7 + $0x838] sm:$0xff]
    %v406 = vld [vmem:[#allocation7 + $0x840] sm:$0xff]
    %v407 = vld [vmem:[#allocation7 + $0x848] sm:$0xff]
    %v408 = vld [vmem:[#allocation7 + $0x850] sm:$0xff]
    %v409 = vld [vmem:[#allocation7 + $0x858] sm:$0xff]
    %v410 = vld [vmem:[#allocation7 + $0x860] sm:$0xff]
    %v411 = vld [vmem:[#allocation7 + $0x868] sm:$0xff]
    %v412 = vld [vmem:[#allocation7 + $0x870] sm:$0xff]
    %v413 = vld [vmem:[#allocation7 + $0x878] sm:$0xff]
    %v414 = vld [vmem:[#allocation7 + $0x880] sm:$0xff]
    %v415 = vld [vmem:[#allocation7 + $0x888] sm:$0xff]
    %v416 = vld [vmem:[#allocation7 + $0x890] sm:$0xff]
    %v417 = vld [vmem:[#allocation7 + $0x898] sm:$0xff]
    %v418 = vld [vmem:[#allocation7 + $0x8a0] sm:$0xff]
    %v419 = vld [vmem:[#allocation7 + $0x8a8] sm:$0xff]
    %v420 = vld [vmem:[#allocation7 + $0x8b0] sm:$0xff]
    %v421 = vld [vmem:[#allocation7 + $0x8b8] sm:$0xff]
    %v422 = vld [vmem:[#allocation7 + $0x8c0] sm:$0xff]
    %v423 = vld [vmem:[#allocation7 + $0x8c8] sm:$0xff]
    %v424 = vld [vmem:[#allocation7 + $0x8d0] sm:$0xff]
    %v425 = vld [vmem:[#allocation7 + $0x8d8] sm:$0xff]
    %v426 = vld [vmem:[#allocation7 + $0x8e0] sm:$0xff]
    %v427 = vld [vmem:[#allocation7 + $0x8e8] sm:$0xff]
    %v428 = vld [vmem:[#allocation7 + $0x8f0] sm:$0xff]
    %v429 = vld [vmem:[#allocation7 + $0x8f8] sm:$0xff]
    %v430 = vld [vmem:[#allocation7 + $0x900] sm:$0xff]
    %v431 = vld [vmem:[#allocation7 + $0x908] sm:$0xff]
    %v432 = vld [vmem:[#allocation7 + $0x910] sm:$0xff]
    %v433 = vld [vmem:[#allocation7 + $0x918] sm:$0xff]
    %v434 = vld [vmem:[#allocation7 + $0x920] sm:$0xff]
    %v435 = vld [vmem:[#allocation7 + $0x928] sm:$0xff]
    %v436 = vld [vmem:[#allocation7 + $0x930] sm:$0xff]
    %v437 = vld [vmem:[#allocation7 + $0x938] sm:$0xff]
    %v438 = vld [vmem:[#allocation7 + $0x940] sm:$0xff]
    %v439 = vld [vmem:[#allocation7 + $0x948] sm:$0xff]
    %v440 = vld [vmem:[#allocation7 + $0x950] sm:$0xff]
    %v441 = vld [vmem:[#allocation7 + $0x958] sm:$0xff]
    %v442 = vld [vmem:[#allocation7 + $0x960] sm:$0xff]
    %v443 = vld [vmem:[#allocation7 + $0x968] sm:$0xff]
    %v444 = vld [vmem:[#allocation7 + $0x970] sm:$0xff]
    %v445 = vld [vmem:[#allocation7 + $0x978] sm:$0xff]
    %v446 = vld [vmem:[#allocation7 + $0x980] sm:$0xff]
    %v447 = vld [vmem:[#allocation7 + $0x988] sm:$0xff]
    %v448 = vld [vmem:[#allocation7 + $0x990] sm:$0xff]
    %v449 = vld [vmem:[#allocation7 + $0x998] sm:$0xff]
    %v450 = vld [vmem:[#allocation7 + $0x9a0] sm:$0xff]
    %v451 = vld [vmem:[#allocation7 + $0x9a8] sm:$0xff]
    %v452 = vld [vmem:[#allocation7 + $0x9b0] sm:$0xff]
    %v453 = vld [vmem:[#allocation7 + $0x9b8] sm:$0xff]
    %v454 = vld [vmem:[#allocation7 + $0x9c0] sm:$0xff]
    %v455 = vld [vmem:[#allocation7 + $0x9c8] sm:$0xff]
    %v456 = vld [vmem:[#allocation7 + $0x9d0] sm:$0xff]
    %v457 = vld [vmem:[#allocation7 + $0x9d8] sm:$0xff]
    %v458 = vld [vmem:[#allocation7 + $0x9e0] sm:$0xff]
    %v459 = vld [vmem:[#allocation7 + $0x9e8] sm:$0xff]
    %v460 = vld [vmem:[#allocation7 + $0x9f0] sm:$0xff]
    %v461 = vld [vmem:[#allocation7 + $0x9f8] sm:$0xff]
    %v462 = vld [vmem:[#allocation7 + $0xa00] sm:$0xff]
    %v463 = vld [vmem:[#allocation7 + $0xa08] sm:$0xff]
    %v464 = vld [vmem:[#allocation7 + $0xa10] sm:$0xff]
    %v465 = vld [vmem:[#allocation7 + $0xa18] sm:$0xff]
    %v466 = vld [vmem:[#allocation7 + $0xa20] sm:$0xff]
    %v467 = vld [vmem:[#allocation7 + $0xa28] sm:$0xff]
    %v468 = vld [vmem:[#allocation7 + $0xa30] sm:$0xff]
    %v469 = vld [vmem:[#allocation7 + $0xa38] sm:$0xff]
    %v470 = vld [vmem:[#allocation7 + $0xa40] sm:$0xff]
    %v471 = vld [vmem:[#allocation7 + $0xa48] sm:$0xff]
    %v472 = vld [vmem:[#allocation7 + $0xa50] sm:$0xff]
    %v473 = vld [vmem:[#allocation7 + $0xa58] sm:$0xff]
    %v474 = vld [vmem:[#allocation7 + $0xa60] sm:$0xff]
    %v475 = vld [vmem:[#allocation7 + $0xa68] sm:$0xff]
    %v476 = vld [vmem:[#allocation7 + $0xa70] sm:$0xff]
    %v477 = vld [vmem:[#allocation7 + $0xa78] sm:$0xff]
    %v478 = vld [vmem:[#allocation7 + $0xa80] sm:$0xff]
    %v479 = vld [vmem:[#allocation7 + $0xa88] sm:$0xff]
    %v480 = vld [vmem:[#allocation7 + $0xa90] sm:$0xff]
    %v481 = vld [vmem:[#allocation7 + $0xa98] sm:$0xff]
    %v482 = vld [vmem:[#allocation7 + $0xaa0] sm:$0xff]
    %v483 = vld [vmem:[#allocation7 + $0xaa8] sm:$0xff]
    %v484 = vld [vmem:[#allocation7 + $0xab0] sm:$0xff]
    %v485 = vld [vmem:[#allocation7 + $0xab8] sm:$0xff]
    %v486 = vld [vmem:[#allocation7 + $0xac0] sm:$0xff]
    %v487 = vld [vmem:[#allocation7 + $0xac8] sm:$0xff]
    %v488 = vld [vmem:[#allocation7 + $0xad0] sm:$0xff]
    %v489 = vld [vmem:[#allocation7 + $0xad8] sm:$0xff]
    %v490 = vld [vmem:[#allocation7 + $0xae0] sm:$0xff]
    %v491 = vld [vmem:[#allocation7 + $0xae8] sm:$0xff]
    %v492 = vld [vmem:[#allocation7 + $0xaf0] sm:$0xff]
    %v493 = vld [vmem:[#allocation7 + $0xaf8] sm:$0xff]
    %v494 = vld [vmem:[#allocation7 + $0xb00] sm:$0xff]
    %v495 = vld [vmem:[#allocation7 + $0xb08] sm:$0xff]
    %v496 = vld [vmem:[#allocation7 + $0xb10] sm:$0xff]
    %v497 = vld [vmem:[#allocation7 + $0xb18] sm:$0xff]
    %v498 = vld [vmem:[#allocation7 + $0xb20] sm:$0xff]
    %v499 = vld [vmem:[#allocation7 + $0xb28] sm:$0xff]
    %v500 = vld [vmem:[#allocation7 + $0xb30] sm:$0xff]
    %v501 = vld [vmem:[#allocation7 + $0xb38] sm:$0xff]
    %v502 = vld [vmem:[#allocation7 + $0xb40] sm:$0xff]
    %v503 = vld [vmem:[#allocation7 + $0xb48] sm:$0xff]
    %v504 = vld [vmem:[#allocation7 + $0xb50] sm:$0xff]
    %v505 = vld [vmem:[#allocation7 + $0xb58] sm:$0xff]
    %v506 = vld [vmem:[#allocation7 + $0xb60] sm:$0xff]
    %v507 = vld [vmem:[#allocation7 + $0xb68] sm:$0xff]
    %v508 = vld [vmem:[#allocation7 + $0xb70] sm:$0xff]
    %v509 = vld [vmem:[#allocation7 + $0xb78] sm:$0xff]
    %v510 = vld [vmem:[#allocation7 + $0xb80] sm:$0xff]
    %v511 = vld [vmem:[#allocation7 + $0xb88] sm:$0xff]
    %v512 = vld [vmem:[#allocation7 + $0xb90] sm:$0xff]
    %v513 = vld [vmem:[#allocation7 + $0xb98] sm:$0xff]
    %v514 = vld [vmem:[#allocation7 + $0xba0] sm:$0xff]
    %v515 = vld [vmem:[#allocation7 + $0xba8] sm:$0xff]
    %v516 = vld [vmem:[#allocation7 + $0xbb0] sm:$0xff]
    %v517 = vld [vmem:[#allocation7 + $0xbb8] sm:$0xff]
    %v518 = vld [vmem:[#allocation7 + $0xbc0] sm:$0xff]
    %v519 = vld [vmem:[#allocation7 + $0xbc8] sm:$0xff]
    %v520 = vld [vmem:[#allocation7 + $0xbd0] sm:$0xff]
    %v521 = vld [vmem:[#allocation7 + $0xbd8] sm:$0xff]
    %v522 = vld [vmem:[#allocation7 + $0xbe0] sm:$0xff]
    %v523 = vld [vmem:[#allocation7 + $0xbe8] sm:$0xff]
    %v524 = vld [vmem:[#allocation7 + $0xbf0] sm:$0xff]
    %v525 = vld [vmem:[#allocation7 + $0xbf8] sm:$0xff]
    %v526 = vld [vmem:[#allocation7 + $0xc00] sm:$0xff]
    %v527 = vld [vmem:[#allocation7 + $0xc08] sm:$0xff]
    %v528 = vld [vmem:[#allocation7 + $0xc10] sm:$0xff]
    %v529 = vld [vmem:[#allocation7 + $0xc18] sm:$0xff]
    %v530 = vld [vmem:[#allocation7 + $0xc20] sm:$0xff]
    %v531 = vld [vmem:[#allocation7 + $0xc28] sm:$0xff]
    %v532 = vld [vmem:[#allocation7 + $0xc30] sm:$0xff]
    %v533 = vld [vmem:[#allocation7 + $0xc38] sm:$0xff]
    %v534 = vld [vmem:[#allocation7 + $0xc40] sm:$0xff]
    %v535 = vld [vmem:[#allocation7 + $0xc48] sm:$0xff]
    %v536 = vld [vmem:[#allocation7 + $0xc50] sm:$0xff]
    %v537 = vld [vmem:[#allocation7 + $0xc58] sm:$0xff]
    %v538 = vld [vmem:[#allocation7 + $0xc60] sm:$0xff]
    %v539 = vld [vmem:[#allocation7 + $0xc68] sm:$0xff]
    %v540 = vld [vmem:[#allocation7 + $0xc70] sm:$0xff]
    %v541 = vld [vmem:[#allocation7 + $0xc78] sm:$0xff]
    %v542 = vld [vmem:[#allocation7 + $0xc80] sm:$0xff]
    %v543 = vld [vmem:[#allocation7 + $0xc88] sm:$0xff]
    %v544 = vld [vmem:[#allocation7 + $0xc90] sm:$0xff]
    %v545 = vld [vmem:[#allocation7 + $0xc98] sm:$0xff]
    %v546 = vld [vmem:[#allocation7 + $0xca0] sm:$0xff]
    %v547 = vld [vmem:[#allocation7 + $0xca8] sm:$0xff]
    %v548 = vld [vmem:[#allocation7 + $0xcb0] sm:$0xff]
    %v549 = vld [vmem:[#allocation7 + $0xcb8] sm:$0xff]
    %v550 = vld [vmem:[#allocation7 + $0xcc0] sm:$0xff]
    %v551 = vld [vmem:[#allocation7 + $0xcc8] sm:$0xff]
    %v552 = vld [vmem:[#allocation7 + $0xcd0] sm:$0xff]
    %v553 = vld [vmem:[#allocation7 + $0xcd8] sm:$0xff]
    %v554 = vld [vmem:[#allocation7 + $0xce0] sm:$0xff]
    %v555 = vld [vmem:[#allocation7 + $0xce8] sm:$0xff]
    %v556 = vld [vmem:[#allocation7 + $0xcf0] sm:$0xff]
    %v557 = vld [vmem:[#allocation7 + $0xcf8] sm:$0xff]
    %v558 = vld [vmem:[#allocation7 + $0xd00] sm:$0xff]
    %v559 = vld [vmem:[#allocation7 + $0xd08] sm:$0xff]
    %v560 = vld [vmem:[#allocation7 + $0xd10] sm:$0xff]
    %v561 = vld [vmem:[#allocation7 + $0xd18] sm:$0xff]
    %v562 = vld [vmem:[#allocation7 + $0xd20] sm:$0xff]
    %v563 = vld [vmem:[#allocation7 + $0xd28] sm:$0xff]
    %v564 = vld [vmem:[#allocation7 + $0xd30] sm:$0xff]
    %v565 = vld [vmem:[#allocation7 + $0xd38] sm:$0xff]
    %v566 = vld [vmem:[#allocation7 + $0xd40] sm:$0xff]
    %v567 = vld [vmem:[#allocation7 + $0xd48] sm:$0xff]
    %v568 = vld [vmem:[#allocation7 + $0xd50] sm:$0xff]
    %v569 = vld [vmem:[#allocation7 + $0xd58] sm:$0xff]
    %v570 = vld [vmem:[#allocation7 + $0xd60] sm:$0xff]
    %v571 = vld [vmem:[#allocation7 + $0xd68] sm:$0xff]
    %v572 = vld [vmem:[#allocation7 + $0xd70] sm:$0xff]
    %v573 = vld [vmem:[#allocation7 + $0xd78] sm:$0xff]
    %v574 = vld [vmem:[#allocation7 + $0xd80] sm:$0xff]
    %v575 = vld [vmem:[#allocation7 + $0xd88] sm:$0xff]
    %v576 = vld [vmem:[#allocation7 + $0xd90] sm:$0xff]
    %v577 = vld [vmem:[#allocation7 + $0xd98] sm:$0xff]
    %v578 = vld [vmem:[#allocation7 + $0xda0] sm:$0xff]
    %v579 = vld [vmem:[#allocation7 + $0xda8] sm:$0xff]
    %v580 = vld [vmem:[#allocation7 + $0xdb0] sm:$0xff]
    %v581 = vld [vmem:[#allocation7 + $0xdb8] sm:$0xff]
    %v582 = vld [vmem:[#allocation7 + $0xdc0] sm:$0xff]
    %v583 = vld [vmem:[#allocation7 + $0xdc8] sm:$0xff]
    %v584 = vld [vmem:[#allocation7 + $0xdd0] sm:$0xff]
    %v585 = vld [vmem:[#allocation7 + $0xdd8] sm:$0xff]
    %v586 = vld [vmem:[#allocation7 + $0xde0] sm:$0xff]
    %v587 = vld [vmem:[#allocation7 + $0xde8] sm:$0xff]
    %v588 = vld [vmem:[#allocation7 + $0xdf0] sm:$0xff]
    %v589 = vld [vmem:[#allocation7 + $0xdf8] sm:$0xff]
    %v590 = vld [vmem:[#allocation7 + $0xe00] sm:$0xff]
    %v591 = vld [vmem:[#allocation7 + $0xe08] sm:$0xff]
    %v592 = vld [vmem:[#allocation7 + $0xe10] sm:$0xff]
    %v593 = vld [vmem:[#allocation7 + $0xe18] sm:$0xff]
    %v594 = vld [vmem:[#allocation7 + $0xe20] sm:$0xff]
    %v595 = vld [vmem:[#allocation7 + $0xe28] sm:$0xff]
    %v596 = vld [vmem:[#allocation7 + $0xe30] sm:$0xff]
    %v597 = vld [vmem:[#allocation7 + $0xe38] sm:$0xff]
    %v598 = vld [vmem:[#allocation7 + $0xe40] sm:$0xff]
    %v599 = vld [vmem:[#allocation7 + $0xe48] sm:$0xff]
    %v600 = vld [vmem:[#allocation7 + $0xe50] sm:$0xff]
    %v601 = vld [vmem:[#allocation7 + $0xe58] sm:$0xff]
    %v602 = vld [vmem:[#allocation7 + $0xe60] sm:$0xff]
    %v603 = vld [vmem:[#allocation7 + $0xe68] sm:$0xff]
    %v604 = vld [vmem:[#allocation7 + $0xe70] sm:$0xff]
    %v605 = vld [vmem:[#allocation7 + $0xe78] sm:$0xff]
    %v606 = vld [vmem:[#allocation7 + $0xe80] sm:$0xff]
    %v607 = vld [vmem:[#allocation7 + $0xe88] sm:$0xff]
    %v608 = vld [vmem:[#allocation7 + $0xe90] sm:$0xff]
    %v609 = vld [vmem:[#allocation7 + $0xe98] sm:$0xff]
    %v610 = vld [vmem:[#allocation7 + $0xea0] sm:$0xff]
    %v611 = vld [vmem:[#allocation7 + $0xea8] sm:$0xff]
    %v612 = vld [vmem:[#allocation7 + $0xeb0] sm:$0xff]
    %v613 = vld [vmem:[#allocation7 + $0xeb8] sm:$0xff]
    %v614 = vld [vmem:[#allocation7 + $0xec0] sm:$0xff]
    %v615 = vld [vmem:[#allocation7 + $0xec8] sm:$0xff]
    %v616 = vld [vmem:[#allocation7 + $0xed0] sm:$0xff]
    %v617 = vld [vmem:[#allocation7 + $0xed8] sm:$0xff]
    %v618 = vld [vmem:[#allocation7 + $0xee0] sm:$0xff]
    %v619 = vld [vmem:[#allocation7 + $0xee8] sm:$0xff]
    %v620 = vld [vmem:[#allocation7 + $0xef0] sm:$0xff]
    %v621 = vld [vmem:[#allocation7 + $0xef8] sm:$0xff]
    %v622 = vld [vmem:[#allocation7 + $0xf00] sm:$0xff]
    %v623 = vld [vmem:[#allocation7 + $0xf08] sm:$0xff]
    %v624 = vld [vmem:[#allocation7 + $0xf10] sm:$0xff]
    %v625 = vld [vmem:[#allocation7 + $0xf18] sm:$0xff]
    %v626 = vld [vmem:[#allocation7 + $0xf20] sm:$0xff]
    %v627 = vld [vmem:[#allocation7 + $0xf28] sm:$0xff]
    %v628 = vld [vmem:[#allocation7 + $0xf30] sm:$0xff]
    %v629 = vld [vmem:[#allocation7 + $0xf38] sm:$0xff]
    %v630 = vld [vmem:[#allocation7 + $0xf40] sm:$0xff]
    %v631 = vld [vmem:[#allocation7 + $0xf48] sm:$0xff]
    %v632 = vld [vmem:[#allocation7 + $0xf50] sm:$0xff]
    %v633 = vld [vmem:[#allocation7 + $0xf58] sm:$0xff]
    %v634 = vld [vmem:[#allocation7 + $0xf60] sm:$0xff]
    %v635 = vld [vmem:[#allocation7 + $0xf68] sm:$0xff]
    %v636 = vld [vmem:[#allocation7 + $0xf70] sm:$0xff]
    %v637 = vld [vmem:[#allocation7 + $0xf78] sm:$0xff]
    %v638 = vld [vmem:[#allocation7 + $0xf80] sm:$0xff]
    %v639 = vld [vmem:[#allocation7 + $0xf88] sm:$0xff]
    %v640 = vld [vmem:[#allocation7 + $0xf90] sm:$0xff]
    %v641 = vld [vmem:[#allocation7 + $0xf98] sm:$0xff]
    %v642 = vld [vmem:[#allocation7 + $0xfa0] sm:$0xff]
    %v643 = vld [vmem:[#allocation7 + $0xfa8] sm:$0xff]
    %v644 = vld [vmem:[#allocation7 + $0xfb0] sm:$0xff]
    %v645 = vld [vmem:[#allocation7 + $0xfb8] sm:$0xff]
    %v646 = vld [vmem:[#allocation7 + $0xfc0] sm:$0xff]
    %v647 = vld [vmem:[#allocation7 + $0xfc8] sm:$0xff]
    %v648 = vld [vmem:[#allocation7 + $0xfd0] sm:$0xff]
    %v649 = vld [vmem:[#allocation7 + $0xfd8] sm:$0xff]
    %v650 = vld [vmem:[#allocation7 + $0xfe0] sm:$0xff]
    %v651 = vld [vmem:[#allocation7 + $0xfe8] sm:$0xff]
    %v652 = vld [vmem:[#allocation7 + $0xff0] sm:$0xff]
    %v653 = vld [vmem:[#allocation7 + $0xff8] sm:$0xff]
    %v654 = vld [vmem:[#allocation7 + $0x1000] sm:$0xff]
    %v655 = vld [vmem:[#allocation7 + $0x1008] sm:$0xff]
    %v656 = vld [vmem:[#allocation7 + $0x1010] sm:$0xff]
    %v657 = vld [vmem:[#allocation7 + $0x1018] sm:$0xff]
    %v658 = vld [vmem:[#allocation7 + $0x1020] sm:$0xff]
    %v659 = vld [vmem:[#allocation7 + $0x1028] sm:$0xff]
    %v660 = vld [vmem:[#allocation7 + $0x1030] sm:$0xff]
    %v661 = vld [vmem:[#allocation7 + $0x1038] sm:$0xff]
    %v662 = vld [vmem:[#allocation7 + $0x1040] sm:$0xff]
    %v663 = vld [vmem:[#allocation7 + $0x1048] sm:$0xff]
    %v664 = vld [vmem:[#allocation7 + $0x1050] sm:$0xff]
    %v665 = vld [vmem:[#allocation7 + $0x1058] sm:$0xff]
    %v666 = vld [vmem:[#allocation7 + $0x1060] sm:$0xff]
    %v667 = vld [vmem:[#allocation7 + $0x1068] sm:$0xff]
    %v668 = vld [vmem:[#allocation7 + $0x1070] sm:$0xff]
    %v669 = vld [vmem:[#allocation7 + $0x1078] sm:$0xff]
    %v670 = vld [vmem:[#allocation7 + $0x1080] sm:$0xff]
    %v671 = vld [vmem:[#allocation7 + $0x1088] sm:$0xff]
    %v672 = vld [vmem:[#allocation7 + $0x1090] sm:$0xff]
    %v673 = vld [vmem:[#allocation7 + $0x1098] sm:$0xff]
    %v674 = vld [vmem:[#allocation7 + $0x10a0] sm:$0xff]
    %v675 = vld [vmem:[#allocation7 + $0x10a8] sm:$0xff]
    %v676 = vld [vmem:[#allocation7 + $0x10b0] sm:$0xff]
    %v677 = vld [vmem:[#allocation7 + $0x10b8] sm:$0xff]
    %v678 = vld [vmem:[#allocation7 + $0x10c0] sm:$0xff]
    %v679 = vld [vmem:[#allocation7 + $0x10c8] sm:$0xff]
    %v680 = vld [vmem:[#allocation7 + $0x10d0] sm:$0xff]
    %v681 = vld [vmem:[#allocation7 + $0x10d8] sm:$0xff]
    %v682 = vld [vmem:[#allocation7 + $0x10e0] sm:$0xff]
    %v683 = vld [vmem:[#allocation7 + $0x10e8] sm:$0xff]
    %v684 = vld [vmem:[#allocation7 + $0x10f0] sm:$0xff]
    %v685 = vld [vmem:[#allocation7 + $0x10f8] sm:$0xff]
    %v686 = vld [vmem:[#allocation7 + $0x1100] sm:$0xff]
    %v687 = vld [vmem:[#allocation7 + $0x1108] sm:$0xff]
    %v688 = vld [vmem:[#allocation7 + $0x1110] sm:$0xff]
    %v689 = vld [vmem:[#allocation7 + $0x1118] sm:$0xff]
    %v690 = vld [vmem:[#allocation7 + $0x1120] sm:$0xff]
    %v691 = vld [vmem:[#allocation7 + $0x1128] sm:$0xff]
    %v692 = vld [vmem:[#allocation7 + $0x1130] sm:$0xff]
    %v693 = vld [vmem:[#allocation7 + $0x1138] sm:$0xff]
    %v694 = vld [vmem:[#allocation7 + $0x1140] sm:$0xff]
    %v695 = vld [vmem:[#allocation7 + $0x1148] sm:$0xff]
    %v696 = vld [vmem:[#allocation7 + $0x1150] sm:$0xff]
    %v697 = vld [vmem:[#allocation7 + $0x1158] sm:$0xff]
    %v698 = vld [vmem:[#allocation7 + $0x1160] sm:$0xff]
    %v699 = vld [vmem:[#allocation7 + $0x1168] sm:$0xff]
    %v700 = vld [vmem:[#allocation7 + $0x1170] sm:$0xff]
    %v701 = vld [vmem:[#allocation7 + $0x1178] sm:$0xff]
    %v702 = vld [vmem:[#allocation7 + $0x1180] sm:$0xff]
    %v703 = vld [vmem:[#allocation7 + $0x1188] sm:$0xff]
    %v704 = vld [vmem:[#allocation7 + $0x1190] sm:$0xff]
    %v705 = vld [vmem:[#allocation7 + $0x1198] sm:$0xff]
    %v706 = vld [vmem:[#allocation7 + $0x11a0] sm:$0xff]
    %v707 = vld [vmem:[#allocation7 + $0x11a8] sm:$0xff]
    %v708 = vld [vmem:[#allocation7 + $0x11b0] sm:$0xff]
    %v709 = vld [vmem:[#allocation7 + $0x11b8] sm:$0xff]
    %v710 = vld [vmem:[#allocation7 + $0x11c0] sm:$0xff]
    %v711 = vld [vmem:[#allocation7 + $0x11c8] sm:$0xff]
    %v712 = vld [vmem:[#allocation7 + $0x11d0] sm:$0xff]
    %v713 = vld [vmem:[#allocation7 + $0x11d8] sm:$0xff]
    %v714 = vld [vmem:[#allocation7 + $0x11e0] sm:$0xff]
    %v715 = vld [vmem:[#allocation7 + $0x11e8] sm:$0xff]
    %v716 = vld [vmem:[#allocation7 + $0x11f0] sm:$0xff]
    %v717 = vld [vmem:[#allocation7 + $0x11f8] sm:$0xff]
    %v718 = vld [vmem:[#allocation7 + $0x1200] sm:$0xff]
    %v719 = vld [vmem:[#allocation7 + $0x1208] sm:$0xff]
    %v720 = vld [vmem:[#allocation7 + $0x1210] sm:$0xff]
    %v721 = vld [vmem:[#allocation7 + $0x1218] sm:$0xff]
    %v722 = vld [vmem:[#allocation7 + $0x1220] sm:$0xff]
    %v723 = vld [vmem:[#allocation7 + $0x1228] sm:$0xff]
    %v724 = vld [vmem:[#allocation7 + $0x1230] sm:$0xff]
    %v725 = vld [vmem:[#allocation7 + $0x1238] sm:$0xff]
    %v726 = vld [vmem:[#allocation7 + $0x1240] sm:$0xff]
    %v727 = vld [vmem:[#allocation7 + $0x1248] sm:$0xff]
    %v728 = vld [vmem:[#allocation7 + $0x1250] sm:$0xff]
    %v729 = vld [vmem:[#allocation7 + $0x1258] sm:$0xff]
    %v730 = vld [vmem:[#allocation7 + $0x1260] sm:$0xff]
    %v731 = vld [vmem:[#allocation7 + $0x1268] sm:$0xff]
    %v732 = vld [vmem:[#allocation7 + $0x1270] sm:$0xff]
    %v733 = vld [vmem:[#allocation7 + $0x1278] sm:$0xff]
    %v734 = vld [vmem:[#allocation7 + $0x1280] sm:$0xff]
    %v735 = vld [vmem:[#allocation7 + $0x1288] sm:$0xff]
    %v736 = vld [vmem:[#allocation7 + $0x1290] sm:$0xff]
    %v737 = vld [vmem:[#allocation7 + $0x1298] sm:$0xff]
    %v738 = vld [vmem:[#allocation7 + $0x12a0] sm:$0xff]
    %v739 = vld [vmem:[#allocation7 + $0x12a8] sm:$0xff]
    %v740 = vld [vmem:[#allocation7 + $0x12b0] sm:$0xff]
    %v741 = vld [vmem:[#allocation7 + $0x12b8] sm:$0xff]
    %v742 = vld [vmem:[#allocation7 + $0x12c0] sm:$0xff]
    %v743 = vld [vmem:[#allocation7 + $0x12c8] sm:$0xff]
    %v744 = vld [vmem:[#allocation7 + $0x12d0] sm:$0xff]
    %v745 = vld [vmem:[#allocation7 + $0x12d8] sm:$0xff]
    %v746 = vld [vmem:[#allocation7 + $0x12e0] sm:$0xff]
    %v747 = vld [vmem:[#allocation7 + $0x12e8] sm:$0xff]
    %v748 = vld [vmem:[#allocation7 + $0x12f0] sm:$0xff]
    %v749 = vld [vmem:[#allocation7 + $0x12f8] sm:$0xff]
    %v750 = vld [vmem:[#allocation7 + $0x1300] sm:$0xff]
    %v751 = vld [vmem:[#allocation7 + $0x1308] sm:$0xff]
    %v752 = vld [vmem:[#allocation7 + $0x1310] sm:$0xff]
    %v753 = vld [vmem:[#allocation7 + $0x1318] sm:$0xff]
    %v754 = vld [vmem:[#allocation7 + $0x1320] sm:$0xff]
    %v755 = vld [vmem:[#allocation7 + $0x1328] sm:$0xff]
    %v756 = vld [vmem:[#allocation7 + $0x1330] sm:$0xff]
    %v757 = vld [vmem:[#allocation7 + $0x1338] sm:$0xff]
    %v758 = vld [vmem:[#allocation7 + $0x1340] sm:$0xff]
    %v759 = vld [vmem:[#allocation7 + $0x1348] sm:$0xff]
    %v760 = vld [vmem:[#allocation7 + $0x1350] sm:$0xff]
    %v761 = vld [vmem:[#allocation7 + $0x1358] sm:$0xff]
    %v762 = vld [vmem:[#allocation7 + $0x1360] sm:$0xff]
    %v763 = vld [vmem:[#allocation7 + $0x1368] sm:$0xff]
    %v764 = vld [vmem:[#allocation7 + $0x1370] sm:$0xff]
    %v765 = vld [vmem:[#allocation7 + $0x1378] sm:$0xff]
    %v766 = vld [vmem:[#allocation7 + $0x1380] sm:$0xff]
    %v767 = vld [vmem:[#allocation7 + $0x1388] sm:$0xff]
    %v768 = vld [vmem:[#allocation7 + $0x1390] sm:$0xff]
    %v769 = vld [vmem:[#allocation7 + $0x1398] sm:$0xff]
    %v770 = vld [vmem:[#allocation7 + $0x13a0] sm:$0xff]
    %v771 = vld [vmem:[#allocation7 + $0x13a8] sm:$0xff]
    %v772 = vld [vmem:[#allocation7 + $0x13b0] sm:$0xff]
    %v773 = vld [vmem:[#allocation7 + $0x13b8] sm:$0xff]
    %v774 = vld [vmem:[#allocation7 + $0x13c0] sm:$0xff]
    %v775 = vld [vmem:[#allocation7 + $0x13c8] sm:$0xff]
    %v776 = vld [vmem:[#allocation7 + $0x13d0] sm:$0xff]
    %v777 = vld [vmem:[#allocation7 + $0x13d8] sm:$0xff]
    %v778 = vld [vmem:[#allocation7 + $0x13e0] sm:$0xff]
    %v779 = vld [vmem:[#allocation7 + $0x13e8] sm:$0xff]
    %v780 = vld [vmem:[#allocation7 + $0x13f0] sm:$0xff]
    %v781 = vld [vmem:[#allocation7 + $0x13f8] sm:$0xff]
    %v782 = vld [vmem:[#allocation5] sm:$0xff]
    %v783 = vld [vmem:[#allocation5 + $0x8] sm:$0xff]
    %v784 = vld [vmem:[#allocation5 + $0x10] sm:$0xff]
    %v785 = vld [vmem:[#allocation5 + $0x18] sm:$0xff]
    %v786 = vld [vmem:[#allocation5 + $0x20] sm:$0xff]
    %v787 = vld [vmem:[#allocation5 + $0x28] sm:$0xff]
    %v788 = vld [vmem:[#allocation8] sm:$0xff]
    %v789 = vld [vmem:[#allocation8 + $0x8] sm:$0xff]
    %v790 = vld [vmem:[#allocation8 + $0x10] sm:$0xff]
    %v791 = vld [vmem:[#allocation8 + $0x18] sm:$0xff]
    %v792 = vld [vmem:[#allocation8 + $0x20] sm:$0xff]
    %v793 = vld [vmem:[#allocation8 + $0x28] sm:$0xff]
    %v794 = vld [vmem:[#allocation8 + $0x30] sm:$0xff]
    %v795 = vld [vmem:[#allocation8 + $0x38] sm:$0xff]
    %v796 = vld [vmem:[#allocation8 + $0x40] sm:$0xff]
    %v797 = vld [vmem:[#allocation8 + $0x48] sm:$0xff]
    %v798 = vld [vmem:[#allocation8 + $0x50] sm:$0xff]
    %v799 = vld [vmem:[#allocation8 + $0x58] sm:$0xff]
    %v800 = vld [vmem:[#allocation8 + $0x60] sm:$0xff]
    %v801 = vld [vmem:[#allocation8 + $0x68] sm:$0xff]
    %v802 = vld [vmem:[#allocation8 + $0x70] sm:$0xff]
    %v803 = vld [vmem:[#allocation8 + $0x78] sm:$0xff]
    %v804 = vld [vmem:[#allocation8 + $0x80] sm:$0xff]
    %v805 = vld [vmem:[#allocation8 + $0x88] sm:$0xff]
    %v806 = vld [vmem:[#allocation8 + $0x90] sm:$0xff]
    %v807 = vld [vmem:[#allocation8 + $0x98] sm:$0xff]
    %v808 = vld [vmem:[#allocation8 + $0xa0] sm:$0xff]
    %v809 = vld [vmem:[#allocation8 + $0xa8] sm:$0xff]
    %v810 = vld [vmem:[#allocation8 + $0xb0] sm:$0xff]
    %v811 = vld [vmem:[#allocation8 + $0xb8] sm:$0xff]
    %v812 = vld [vmem:[#allocation8 + $0xc0] sm:$0xff]
    %v813 = vld [vmem:[#allocation8 + $0xc8] sm:$0xff]
    %v814 = vld [vmem:[#allocation8 + $0xd0] sm:$0xff]
    %v815 = vld [vmem:[#allocation8 + $0xd8] sm:$0xff]
    %v816 = vld [vmem:[#allocation8 + $0xe0] sm:$0xff]
    %v817 = vld [vmem:[#allocation8 + $0xe8] sm:$0xff]
    %v818 = vld [vmem:[#allocation8 + $0xf0] sm:$0xff]
    %v819 = vld [vmem:[#allocation8 + $0xf8] sm:$0xff]
    %v820 = vld [vmem:[#allocation8 + $0x100] sm:$0xff]
    %v821 = vld [vmem:[#allocation8 + $0x108] sm:$0xff]
    %v822 = vld [vmem:[#allocation8 + $0x110] sm:$0xff]
    %v823 = vld [vmem:[#allocation8 + $0x118] sm:$0xff]
    %v824 = vld [vmem:[#allocation8 + $0x120] sm:$0xff]
    %v825 = vld [vmem:[#allocation8 + $0x128] sm:$0xff]
    %v826 = vld [vmem:[#allocation8 + $0x130] sm:$0xff]
    %v827 = vld [vmem:[#allocation8 + $0x138] sm:$0xff]
    %v828 = vld [vmem:[#allocation8 + $0x140] sm:$0xff]
    %v829 = vld [vmem:[#allocation8 + $0x148] sm:$0xff]
    %v830 = vld [vmem:[#allocation8 + $0x150] sm:$0xff]
    %v831 = vld [vmem:[#allocation8 + $0x158] sm:$0xff]
    %v832 = vld [vmem:[#allocation8 + $0x160] sm:$0xff]
    %v833 = vld [vmem:[#allocation8 + $0x168] sm:$0xff]
    %v834 = vld [vmem:[#allocation8 + $0x170] sm:$0xff]
    %v835 = vld [vmem:[#allocation8 + $0x178] sm:$0xff]
    %v836 = vld [vmem:[#allocation8 + $0x180] sm:$0xff]
    %v837 = vld [vmem:[#allocation8 + $0x188] sm:$0xff]
    %v838 = vld [vmem:[#allocation8 + $0x190] sm:$0xff]
    %v839 = vld [vmem:[#allocation8 + $0x198] sm:$0xff]
    %v840 = vld [vmem:[#allocation8 + $0x1a0] sm:$0xff]
    %v841 = vld [vmem:[#allocation8 + $0x1a8] sm:$0xff]
    %v842 = vld [vmem:[#allocation8 + $0x1b0] sm:$0xff]
    %v843 = vld [vmem:[#allocation8 + $0x1b8] sm:$0xff]
    %v844 = vld [vmem:[#allocation8 + $0x1c0] sm:$0xff]
    %v845 = vld [vmem:[#allocation8 + $0x1c8] sm:$0xff]
    %v846 = vld [vmem:[#allocation8 + $0x1d0] sm:$0xff]
    %v847 = vld [vmem:[#allocation8 + $0x1d8] sm:$0xff]
    %v848 = vld [vmem:[#allocation8 + $0x1e0] sm:$0xff]
    %v849 = vld [vmem:[#allocation8 + $0x1e8] sm:$0xff]
    %v850 = vld [vmem:[#allocation8 + $0x1f0] sm:$0xff]
    %v851 = vld [vmem:[#allocation8 + $0x1f8] sm:$0xff]
    %v852 = vld [vmem:[#allocation8 + $0x200] sm:$0xff]
    %v853 = vld [vmem:[#allocation8 + $0x208] sm:$0xff]
    %v854 = vld [vmem:[#allocation8 + $0x210] sm:$0xff]
    %v855 = vld [vmem:[#allocation8 + $0x218] sm:$0xff]
    %v856 = vld [vmem:[#allocation8 + $0x220] sm:$0xff]
    %v857 = vld [vmem:[#allocation8 + $0x228] sm:$0xff]
    %v858 = vld [vmem:[#allocation8 + $0x230] sm:$0xff]
    %v859 = vld [vmem:[#allocation8 + $0x238] sm:$0xff]
    %v860 = vld [vmem:[#allocation8 + $0x240] sm:$0xff]
    %v861 = vld [vmem:[#allocation8 + $0x248] sm:$0xff]
    %v862 = vld [vmem:[#allocation8 + $0x250] sm:$0xff]
    %v863 = vld [vmem:[#allocation8 + $0x258] sm:$0xff]
    %v864 = vld [vmem:[#allocation8 + $0x260] sm:$0xff]
    %v865 = vld [vmem:[#allocation8 + $0x268] sm:$0xff]
    %v866 = vld [vmem:[#allocation8 + $0x270] sm:$0xff]
    %v867 = vld [vmem:[#allocation8 + $0x278] sm:$0xff]
    %v868 = vld [vmem:[#allocation8 + $0x280] sm:$0xff]
    %v869 = vld [vmem:[#allocation8 + $0x288] sm:$0xff]
    %v870 = vld [vmem:[#allocation8 + $0x290] sm:$0xff]
    %v871 = vld [vmem:[#allocation8 + $0x298] sm:$0xff]
    %v872 = vld [vmem:[#allocation8 + $0x2a0] sm:$0xff]
    %v873 = vld [vmem:[#allocation8 + $0x2a8] sm:$0xff]
    %v874 = vld [vmem:[#allocation8 + $0x2b0] sm:$0xff]
    %v875 = vld [vmem:[#allocation8 + $0x2b8] sm:$0xff]
    %v876 = vld [vmem:[#allocation8 + $0x2c0] sm:$0xff]
    %v877 = vld [vmem:[#allocation8 + $0x2c8] sm:$0xff]
    %v878 = vld [vmem:[#allocation8 + $0x2d0] sm:$0xff]
    %v879 = vld [vmem:[#allocation8 + $0x2d8] sm:$0xff]
    %v880 = vld [vmem:[#allocation8 + $0x2e0] sm:$0xff]
    %v881 = vld [vmem:[#allocation8 + $0x2e8] sm:$0xff]
    %v882 = vld [vmem:[#allocation8 + $0x2f0] sm:$0xff]
    %v883 = vld [vmem:[#allocation8 + $0x2f8] sm:$0xff]
    %v884 = vld [vmem:[#allocation8 + $0x300] sm:$0xff]
    %v885 = vld [vmem:[#allocation8 + $0x308] sm:$0xff]
    %v886 = vld [vmem:[#allocation8 + $0x310] sm:$0xff]
    %v887 = vld [vmem:[#allocation8 + $0x318] sm:$0xff]
    %v888 = vld [vmem:[#allocation8 + $0x320] sm:$0xff]
    %v889 = vld [vmem:[#allocation8 + $0x328] sm:$0xff]
    %v890 = vld [vmem:[#allocation8 + $0x330] sm:$0xff]
    %v891 = vld [vmem:[#allocation8 + $0x338] sm:$0xff]
    %v892 = vld [vmem:[#allocation8 + $0x340] sm:$0xff]
    %v893 = vld [vmem:[#allocation8 + $0x348] sm:$0xff]
    %v894 = vld [vmem:[#allocation8 + $0x350] sm:$0xff]
    %v895 = vld [vmem:[#allocation8 + $0x358] sm:$0xff]
    %v896 = vld [vmem:[#allocation8 + $0x360] sm:$0xff]
    %v897 = vld [vmem:[#allocation8 + $0x368] sm:$0xff]
    %v898 = vld [vmem:[#allocation8 + $0x370] sm:$0xff]
    %v899 = vld [vmem:[#allocation8 + $0x378] sm:$0xff]
    %v900 = vld [vmem:[#allocation8 + $0x380] sm:$0xff]
    %v901 = vld [vmem:[#allocation8 + $0x388] sm:$0xff]
    %v902 = vld [vmem:[#allocation8 + $0x390] sm:$0xff]
    %v903 = vld [vmem:[#allocation8 + $0x398] sm:$0xff]
    %v904 = vld [vmem:[#allocation8 + $0x3a0] sm:$0xff]
    %v905 = vld [vmem:[#allocation8 + $0x3a8] sm:$0xff]
    %v906 = vld [vmem:[#allocation8 + $0x3b0] sm:$0xff]
    %v907 = vld [vmem:[#allocation8 + $0x3b8] sm:$0xff]
    %v908 = vld [vmem:[#allocation8 + $0x3c0] sm:$0xff]
    %v909 = vld [vmem:[#allocation8 + $0x3c8] sm:$0xff]
    %v910 = vld [vmem:[#allocation8 + $0x3d0] sm:$0xff]
    %v911 = vld [vmem:[#allocation8 + $0x3d8] sm:$0xff]
    %v912 = vld [vmem:[#allocation8 + $0x3e0] sm:$0xff]
    %v913 = vld [vmem:[#allocation8 + $0x3e8] sm:$0xff]
    %v914 = vld [vmem:[#allocation8 + $0x3f0] sm:$0xff]
    %v915 = vld [vmem:[#allocation8 + $0x3f8] sm:$0xff]
    %v916 = vld [vmem:[#allocation8 + $0x400] sm:$0xff]
    %v917 = vld [vmem:[#allocation8 + $0x408] sm:$0xff]
    %v918 = vld [vmem:[#allocation8 + $0x410] sm:$0xff]
    %v919 = vld [vmem:[#allocation8 + $0x418] sm:$0xff]
    %v920 = vld [vmem:[#allocation8 + $0x420] sm:$0xff]
    %v921 = vld [vmem:[#allocation8 + $0x428] sm:$0xff]
    %v922 = vld [vmem:[#allocation8 + $0x430] sm:$0xff]
    %v923 = vld [vmem:[#allocation8 + $0x438] sm:$0xff]
    %v924 = vld [vmem:[#allocation8 + $0x440] sm:$0xff]
    %v925 = vld [vmem:[#allocation8 + $0x448] sm:$0xff]
    %v926 = vld [vmem:[#allocation8 + $0x450] sm:$0xff]
    %v927 = vld [vmem:[#allocation8 + $0x458] sm:$0xff]
    %v928 = vld [vmem:[#allocation8 + $0x460] sm:$0xff]
    %v929 = vld [vmem:[#allocation8 + $0x468] sm:$0xff]
    %v930 = vld [vmem:[#allocation8 + $0x470] sm:$0xff]
    %v931 = vld [vmem:[#allocation8 + $0x478] sm:$0xff]
    %v932 = vld [vmem:[#allocation8 + $0x480] sm:$0xff]
    %v933 = vld [vmem:[#allocation8 + $0x488] sm:$0xff]
    %v934 = vld [vmem:[#allocation8 + $0x490] sm:$0xff]
    %v935 = vld [vmem:[#allocation8 + $0x498] sm:$0xff]
    %v936 = vld [vmem:[#allocation8 + $0x4a0] sm:$0xff]
    %v937 = vld [vmem:[#allocation8 + $0x4a8] sm:$0xff]
    %v938 = vld [vmem:[#allocation8 + $0x4b0] sm:$0xff]
    %v939 = vld [vmem:[#allocation8 + $0x4b8] sm:$0xff]
    %v940 = vld [vmem:[#allocation8 + $0x4c0] sm:$0xff]
    %v941 = vld [vmem:[#allocation8 + $0x4c8] sm:$0xff]
    %v942 = vld [vmem:[#allocation8 + $0x4d0] sm:$0xff]
    %v943 = vld [vmem:[#allocation8 + $0x4d8] sm:$0xff]
    %v944 = vld [vmem:[#allocation8 + $0x4e0] sm:$0xff]
    %v945 = vld [vmem:[#allocation8 + $0x4e8] sm:$0xff]
    %v946 = vld [vmem:[#allocation8 + $0x4f0] sm:$0xff]
    %v947 = vld [vmem:[#allocation8 + $0x4f8] sm:$0xff]
    %v948 = vld [vmem:[#allocation8 + $0x500] sm:$0xff]
    %v949 = vld [vmem:[#allocation8 + $0x508] sm:$0xff]
    %v950 = vld [vmem:[#allocation8 + $0x510] sm:$0xff]
    %v951 = vld [vmem:[#allocation8 + $0x518] sm:$0xff]
    %v952 = vld [vmem:[#allocation8 + $0x520] sm:$0xff]
    %v953 = vld [vmem:[#allocation8 + $0x528] sm:$0xff]
    %v954 = vld [vmem:[#allocation8 + $0x530] sm:$0xff]
    %v955 = vld [vmem:[#allocation8 + $0x538] sm:$0xff]
    %v956 = vld [vmem:[#allocation8 + $0x540] sm:$0xff]
    %v957 = vld [vmem:[#allocation8 + $0x548] sm:$0xff]
    %v958 = vld [vmem:[#allocation8 + $0x550] sm:$0xff]
    %v959 = vld [vmem:[#allocation8 + $0x558] sm:$0xff]
    %v960 = vld [vmem:[#allocation8 + $0x560] sm:$0xff]
    %v961 = vld [vmem:[#allocation8 + $0x568] sm:$0xff]
    %v962 = vld [vmem:[#allocation8 + $0x570] sm:$0xff]
    %v963 = vld [vmem:[#allocation8 + $0x578] sm:$0xff]
    %v964 = vld [vmem:[#allocation8 + $0x580] sm:$0xff]
    %v965 = vld [vmem:[#allocation8 + $0x588] sm:$0xff]
    %v966 = vld [vmem:[#allocation8 + $0x590] sm:$0xff]
    %v967 = vld [vmem:[#allocation8 + $0x598] sm:$0xff]
    %v968 = vld [vmem:[#allocation8 + $0x5a0] sm:$0xff]
    %v969 = vld [vmem:[#allocation8 + $0x5a8] sm:$0xff]
    %v970 = vld [vmem:[#allocation8 + $0x5b0] sm:$0xff]
    %v971 = vld [vmem:[#allocation8 + $0x5b8] sm:$0xff]
    %v972 = vld [vmem:[#allocation8 + $0x5c0] sm:$0xff]
    %v973 = vld [vmem:[#allocation8 + $0x5c8] sm:$0xff]
    %v974 = vld [vmem:[#allocation8 + $0x5d0] sm:$0xff]
    %v975 = vld [vmem:[#allocation8 + $0x5d8] sm:$0xff]
    %v976 = vld [vmem:[#allocation8 + $0x5e0] sm:$0xff]
    %v977 = vld [vmem:[#allocation8 + $0x5e8] sm:$0xff]
    %v978 = vld [vmem:[#allocation8 + $0x5f0] sm:$0xff]
    %v979 = vld [vmem:[#allocation8 + $0x5f8] sm:$0xff]
    %v980 = vld [vmem:[#allocation8 + $0x600] sm:$0xff]
    %v981 = vld [vmem:[#allocation8 + $0x608] sm:$0xff]
    %v982 = vld [vmem:[#allocation8 + $0x610] sm:$0xff]
    %v983 = vld [vmem:[#allocation8 + $0x618] sm:$0xff]
    %v984 = vld [vmem:[#allocation8 + $0x620] sm:$0xff]
    %v985 = vld [vmem:[#allocation8 + $0x628] sm:$0xff]
    %v986 = vld [vmem:[#allocation8 + $0x630] sm:$0xff]
    %v987 = vld [vmem:[#allocation8 + $0x638] sm:$0xff]
    %v988 = vld [vmem:[#allocation8 + $0x640] sm:$0xff]
    %v989 = vld [vmem:[#allocation8 + $0x648] sm:$0xff]
    %v990 = vld [vmem:[#allocation8 + $0x650] sm:$0xff]
    %v991 = vld [vmem:[#allocation8 + $0x658] sm:$0xff]
    %v992 = vld [vmem:[#allocation8 + $0x660] sm:$0xff]
    %v993 = vld [vmem:[#allocation8 + $0x668] sm:$0xff]
    %v994 = vld [vmem:[#allocation8 + $0x670] sm:$0xff]
    %v995 = vld [vmem:[#allocation8 + $0x678] sm:$0xff]
    %v996 = vld [vmem:[#allocation8 + $0x680] sm:$0xff]
    %v997 = vld [vmem:[#allocation8 + $0x688] sm:$0xff]
    %v998 = vld [vmem:[#allocation8 + $0x690] sm:$0xff]
    %v999 = vld [vmem:[#allocation8 + $0x698] sm:$0xff]
    %v1000 = vld [vmem:[#allocation8 + $0x6a0] sm:$0xff]
    %v1001 = vld [vmem:[#allocation8 + $0x6a8] sm:$0xff]
    %v1002 = vld [vmem:[#allocation8 + $0x6b0] sm:$0xff]
    %v1003 = vld [vmem:[#allocation8 + $0x6b8] sm:$0xff]
    %v1004 = vld [vmem:[#allocation8 + $0x6c0] sm:$0xff]
    %v1005 = vld [vmem:[#allocation8 + $0x6c8] sm:$0xff]
    %v1006 = vld [vmem:[#allocation8 + $0x6d0] sm:$0xff]
    %v1007 = vld [vmem:[#allocation8 + $0x6d8] sm:$0xff]
    %v1008 = vld [vmem:[#allocation8 + $0x6e0] sm:$0xff]
    %v1009 = vld [vmem:[#allocation8 + $0x6e8] sm:$0xff]
    %v1010 = vld [vmem:[#allocation8 + $0x6f0] sm:$0xff]
    %v1011 = vld [vmem:[#allocation8 + $0x6f8] sm:$0xff]
    %v1012 = vld [vmem:[#allocation8 + $0x700] sm:$0xff]
    %v1013 = vld [vmem:[#allocation8 + $0x708] sm:$0xff]
    %v1014 = vld [vmem:[#allocation8 + $0x710] sm:$0xff]
    %v1015 = vld [vmem:[#allocation8 + $0x718] sm:$0xff]
    %v1016 = vld [vmem:[#allocation8 + $0x720] sm:$0xff]
    %v1017 = vld [vmem:[#allocation8 + $0x728] sm:$0xff]
    %v1018 = vld [vmem:[#allocation8 + $0x730] sm:$0xff]
    %v1019 = vld [vmem:[#allocation8 + $0x738] sm:$0xff]
    %v1020 = vld [vmem:[#allocation8 + $0x740] sm:$0xff]
    %v1021 = vld [vmem:[#allocation8 + $0x748] sm:$0xff]
    %v1022 = vld [vmem:[#allocation8 + $0x750] sm:$0xff]
    %v1023 = vld [vmem:[#allocation8 + $0x758] sm:$0xff]
    %v1024 = vld [vmem:[#allocation8 + $0x760] sm:$0xff]
    %v1025 = vld [vmem:[#allocation8 + $0x768] sm:$0xff]
    %v1026 = vld [vmem:[#allocation8 + $0x770] sm:$0xff]
    %v1027 = vld [vmem:[#allocation8 + $0x778] sm:$0xff]
    %v1028 = vld [vmem:[#allocation8 + $0x780] sm:$0xff]
    %v1029 = vld [vmem:[#allocation8 + $0x788] sm:$0xff]
    %v1030 = vld [vmem:[#allocation8 + $0x790] sm:$0xff]
    %v1031 = vld [vmem:[#allocation8 + $0x798] sm:$0xff]
    %v1032 = vld [vmem:[#allocation8 + $0x7a0] sm:$0xff]
    %v1033 = vld [vmem:[#allocation8 + $0x7a8] sm:$0xff]
    %v1034 = vld [vmem:[#allocation8 + $0x7b0] sm:$0xff]
    %v1035 = vld [vmem:[#allocation8 + $0x7b8] sm:$0xff]
    %v1036 = vld [vmem:[#allocation8 + $0x7c0] sm:$0xff]
    %v1037 = vld [vmem:[#allocation8 + $0x7c8] sm:$0xff]
    %v1038 = vld [vmem:[#allocation8 + $0x7d0] sm:$0xff]
    %v1039 = vld [vmem:[#allocation8 + $0x7d8] sm:$0xff]
    %v1040 = vld [vmem:[#allocation8 + $0x7e0] sm:$0xff]
    %v1041 = vld [vmem:[#allocation8 + $0x7e8] sm:$0xff]
    %v1042 = vld [vmem:[#allocation8 + $0x7f0] sm:$0xff]
    %v1043 = vld [vmem:[#allocation8 + $0x7f8] sm:$0xff]
    %v1044 = vld [vmem:[#allocation8 + $0x800] sm:$0xff]
    %v1045 = vld [vmem:[#allocation8 + $0x808] sm:$0xff]
    %v1046 = vld [vmem:[#allocation8 + $0x810] sm:$0xff]
    %v1047 = vld [vmem:[#allocation8 + $0x818] sm:$0xff]
    %v1048 = vld [vmem:[#allocation8 + $0x820] sm:$0xff]
    %v1049 = vld [vmem:[#allocation8 + $0x828] sm:$0xff]
    %v1050 = vld [vmem:[#allocation8 + $0x830] sm:$0xff]
    %v1051 = vld [vmem:[#allocation8 + $0x838] sm:$0xff]
    %v1052 = vld [vmem:[#allocation8 + $0x840] sm:$0xff]
    %v1053 = vld [vmem:[#allocation8 + $0x848] sm:$0xff]
    %v1054 = vld [vmem:[#allocation8 + $0x850] sm:$0xff]
    %v1055 = vld [vmem:[#allocation8 + $0x858] sm:$0xff]
    %v1056 = vld [vmem:[#allocation8 + $0x860] sm:$0xff]
    %v1057 = vld [vmem:[#allocation8 + $0x868] sm:$0xff]
    %v1058 = vld [vmem:[#allocation8 + $0x870] sm:$0xff]
    %v1059 = vld [vmem:[#allocation8 + $0x878] sm:$0xff]
    %v1060 = vld [vmem:[#allocation8 + $0x880] sm:$0xff]
    %v1061 = vld [vmem:[#allocation8 + $0x888] sm:$0xff]
    %v1062 = vld [vmem:[#allocation8 + $0x890] sm:$0xff]
    %v1063 = vld [vmem:[#allocation8 + $0x898] sm:$0xff]
    %v1064 = vld [vmem:[#allocation8 + $0x8a0] sm:$0xff]
    %v1065 = vld [vmem:[#allocation8 + $0x8a8] sm:$0xff]
    %v1066 = vld [vmem:[#allocation8 + $0x8b0] sm:$0xff]
    %v1067 = vld [vmem:[#allocation8 + $0x8b8] sm:$0xff]
    %v1068 = vld [vmem:[#allocation8 + $0x8c0] sm:$0xff]
    %v1069 = vld [vmem:[#allocation8 + $0x8c8] sm:$0xff]
    %v1070 = vld [vmem:[#allocation8 + $0x8d0] sm:$0xff]
    %v1071 = vld [vmem:[#allocation8 + $0x8d8] sm:$0xff]
    %v1072 = vld [vmem:[#allocation8 + $0x8e0] sm:$0xff]
    %v1073 = vld [vmem:[#allocation8 + $0x8e8] sm:$0xff]
    %v1074 = vld [vmem:[#allocation8 + $0x8f0] sm:$0xff]
    %v1075 = vld [vmem:[#allocation8 + $0x8f8] sm:$0xff]
    %v1076 = vld [vmem:[#allocation8 + $0x900] sm:$0xff]
    %v1077 = vld [vmem:[#allocation8 + $0x908] sm:$0xff]
    %v1078 = vld [vmem:[#allocation8 + $0x910] sm:$0xff]
    %v1079 = vld [vmem:[#allocation8 + $0x918] sm:$0xff]
    %v1080 = vld [vmem:[#allocation8 + $0x920] sm:$0xff]
    %v1081 = vld [vmem:[#allocation8 + $0x928] sm:$0xff]
    %v1082 = vld [vmem:[#allocation8 + $0x930] sm:$0xff]
    %v1083 = vld [vmem:[#allocation8 + $0x938] sm:$0xff]
    %v1084 = vld [vmem:[#allocation8 + $0x940] sm:$0xff]
    %v1085 = vld [vmem:[#allocation8 + $0x948] sm:$0xff]
    %v1086 = vld [vmem:[#allocation8 + $0x950] sm:$0xff]
    %v1087 = vld [vmem:[#allocation8 + $0x958] sm:$0xff]
    %v1088 = vld [vmem:[#allocation8 + $0x960] sm:$0xff]
    %v1089 = vld [vmem:[#allocation8 + $0x968] sm:$0xff]
    %v1090 = vld [vmem:[#allocation8 + $0x970] sm:$0xff]
    %v1091 = vld [vmem:[#allocation8 + $0x978] sm:$0xff]
    %v1092 = vld [vmem:[#allocation8 + $0x980] sm:$0xff]
    %v1093 = vld [vmem:[#allocation8 + $0x988] sm:$0xff]
    %v1094 = vld [vmem:[#allocation8 + $0x990] sm:$0xff]
    %v1095 = vld [vmem:[#allocation8 + $0x998] sm:$0xff]
    %v1096 = vld [vmem:[#allocation8 + $0x9a0] sm:$0xff]
    %v1097 = vld [vmem:[#allocation8 + $0x9a8] sm:$0xff]
    %v1098 = vld [vmem:[#allocation8 + $0x9b0] sm:$0xff]
    %v1099 = vld [vmem:[#allocation8 + $0x9b8] sm:$0xff]
    %v1100 = vld [vmem:[#allocation8 + $0x9c0] sm:$0xff]
    %v1101 = vld [vmem:[#allocation8 + $0x9c8] sm:$0xff]
    %v1102 = vld [vmem:[#allocation8 + $0x9d0] sm:$0xff]
    %v1103 = vld [vmem:[#allocation8 + $0x9d8] sm:$0xff]
    %v1104 = vld [vmem:[#allocation8 + $0x9e0] sm:$0xff]
    %v1105 = vld [vmem:[#allocation8 + $0x9e8] sm:$0xff]
    %v1106 = vld [vmem:[#allocation8 + $0x9f0] sm:$0xff]
    %v1107 = vld [vmem:[#allocation8 + $0x9f8] sm:$0xff]
    %v1108 = vld [vmem:[#allocation8 + $0xa00] sm:$0xff]
    %v1109 = vld [vmem:[#allocation8 + $0xa08] sm:$0xff]
    %v1110 = vld [vmem:[#allocation8 + $0xa10] sm:$0xff]
    %v1111 = vld [vmem:[#allocation8 + $0xa18] sm:$0xff]
    %v1112 = vld [vmem:[#allocation8 + $0xa20] sm:$0xff]
    %v1113 = vld [vmem:[#allocation8 + $0xa28] sm:$0xff]
    %v1114 = vld [vmem:[#allocation8 + $0xa30] sm:$0xff]
    %v1115 = vld [vmem:[#allocation8 + $0xa38] sm:$0xff]
    %v1116 = vld [vmem:[#allocation8 + $0xa40] sm:$0xff]
    %v1117 = vld [vmem:[#allocation8 + $0xa48] sm:$0xff]
    %v1118 = vld [vmem:[#allocation8 + $0xa50] sm:$0xff]
    %v1119 = vld [vmem:[#allocation8 + $0xa58] sm:$0xff]
    %v1120 = vld [vmem:[#allocation8 + $0xa60] sm:$0xff]
    %v1121 = vld [vmem:[#allocation8 + $0xa68] sm:$0xff]
    %v1122 = vld [vmem:[#allocation8 + $0xa70] sm:$0xff]
    %v1123 = vld [vmem:[#allocation8 + $0xa78] sm:$0xff]
    %v1124 = vld [vmem:[#allocation8 + $0xa80] sm:$0xff]
    %v1125 = vld [vmem:[#allocation8 + $0xa88] sm:$0xff]
    %v1126 = vld [vmem:[#allocation8 + $0xa90] sm:$0xff]
    %v1127 = vld [vmem:[#allocation8 + $0xa98] sm:$0xff]
    %v1128 = vld [vmem:[#allocation8 + $0xaa0] sm:$0xff]
    %v1129 = vld [vmem:[#allocation8 + $0xaa8] sm:$0xff]
    %v1130 = vld [vmem:[#allocation8 + $0xab0] sm:$0xff]
    %v1131 = vld [vmem:[#allocation8 + $0xab8] sm:$0xff]
    %v1132 = vld [vmem:[#allocation8 + $0xac0] sm:$0xff]
    %v1133 = vld [vmem:[#allocation8 + $0xac8] sm:$0xff]
    %v1134 = vld [vmem:[#allocation8 + $0xad0] sm:$0xff]
    %v1135 = vld [vmem:[#allocation8 + $0xad8] sm:$0xff]
    %v1136 = vld [vmem:[#allocation8 + $0xae0] sm:$0xff]
    %v1137 = vld [vmem:[#allocation8 + $0xae8] sm:$0xff]
    %v1138 = vld [vmem:[#allocation8 + $0xaf0] sm:$0xff]
    %v1139 = vld [vmem:[#allocation8 + $0xaf8] sm:$0xff]
    %v1140 = vld [vmem:[#allocation8 + $0xb00] sm:$0xff]
    %v1141 = vld [vmem:[#allocation8 + $0xb08] sm:$0xff]
    %v1142 = vld [vmem:[#allocation8 + $0xb10] sm:$0xff]
    %v1143 = vld [vmem:[#allocation8 + $0xb18] sm:$0xff]
    %v1144 = vld [vmem:[#allocation8 + $0xb20] sm:$0xff]
    %v1145 = vld [vmem:[#allocation8 + $0xb28] sm:$0xff]
    %v1146 = vld [vmem:[#allocation8 + $0xb30] sm:$0xff]
    %v1147 = vld [vmem:[#allocation8 + $0xb38] sm:$0xff]
    %v1148 = vld [vmem:[#allocation8 + $0xb40] sm:$0xff]
    %v1149 = vld [vmem:[#allocation8 + $0xb48] sm:$0xff]
    %v1150 = vld [vmem:[#allocation8 + $0xb50] sm:$0xff]
    %v1151 = vld [vmem:[#allocation8 + $0xb58] sm:$0xff]
    %v1152 = vld [vmem:[#allocation8 + $0xb60] sm:$0xff]
    %v1153 = vld [vmem:[#allocation8 + $0xb68] sm:$0xff]
    %v1154 = vld [vmem:[#allocation8 + $0xb70] sm:$0xff]
    %v1155 = vld [vmem:[#allocation8 + $0xb78] sm:$0xff]
    %v1156 = vld [vmem:[#allocation8 + $0xb80] sm:$0xff]
    %v1157 = vld [vmem:[#allocation8 + $0xb88] sm:$0xff]
    %v1158 = vld [vmem:[#allocation8 + $0xb90] sm:$0xff]
    %v1159 = vld [vmem:[#allocation8 + $0xb98] sm:$0xff]
    %v1160 = vld [vmem:[#allocation8 + $0xba0] sm:$0xff]
    %v1161 = vld [vmem:[#allocation8 + $0xba8] sm:$0xff]
    %v1162 = vld [vmem:[#allocation8 + $0xbb0] sm:$0xff]
    %v1163 = vld [vmem:[#allocation8 + $0xbb8] sm:$0xff]
    %v1164 = vld [vmem:[#allocation8 + $0xbc0] sm:$0xff]
    %v1165 = vld [vmem:[#allocation8 + $0xbc8] sm:$0xff]
    %v1166 = vld [vmem:[#allocation8 + $0xbd0] sm:$0xff]
    %v1167 = vld [vmem:[#allocation8 + $0xbd8] sm:$0xff]
    %v1168 = vld [vmem:[#allocation8 + $0xbe0] sm:$0xff]
    %v1169 = vld [vmem:[#allocation8 + $0xbe8] sm:$0xff]
    %v1170 = vld [vmem:[#allocation8 + $0xbf0] sm:$0xff]
    %v1171 = vld [vmem:[#allocation8 + $0xbf8] sm:$0xff]
    %v1178 = vunpack.c.l.b16 %v782
    %v1179 = vunpack.c.h.b16 %v782
    %v1180 = vunpack.c.l.b16 %v783
    %v1181 = vunpack.c.h.b16 %v783
    %v1182 = vunpack.c.l.b16 %v784
    %v1183 = vunpack.c.h.b16 %v784
    %v1184 = vunpack.c.l.b16 %v785
    %v1185 = vunpack.c.h.b16 %v785
    %v1186 = vunpack.c.l.b16 %v786
    %v1187 = vunpack.c.h.b16 %v786
    %v1188 = vunpack.c.l.b16 %v787
    %v1189 = vunpack.c.h.b16 %v787
    %v1190 = vpack.c.b16 %v1184, %v1178
    %v1191 = vpack.c.b16 %v1185, %v1179
    %v1192 = vpack.c.b16 %v1186, %v1180
    %v1193 = vpack.c.b16 %v1187, %v1181
    %v1194 = vpack.c.b16 %v1188, %v1182
    %v1195 = vpack.c.b16 %v1189, %v1183
    %v1586 = vunpack.c.l.b16 %v788
    %v1587 = vunpack.c.h.b16 %v788
    %v1588 = vunpack.c.l.b16 %v789
    %v1589 = vunpack.c.h.b16 %v789
    %v1590 = vunpack.c.l.b16 %v790
    %v1591 = vunpack.c.h.b16 %v790
    %v1592 = vunpack.c.l.b16 %v791
    %v1593 = vunpack.c.h.b16 %v791
    %v1594 = vunpack.c.l.b16 %v792
    %v1595 = vunpack.c.h.b16 %v792
    %v1596 = vunpack.c.l.b16 %v793
    %v1597 = vunpack.c.h.b16 %v793
    %v1598 = vunpack.c.l.b16 %v794
    %v1599 = vunpack.c.h.b16 %v794
    %v1600 = vunpack.c.l.b16 %v795
    %v1601 = vunpack.c.h.b16 %v795
    %v1602 = vunpack.c.l.b16 %v796
    %v1603 = vunpack.c.h.b16 %v796
    %v1604 = vunpack.c.l.b16 %v797
    %v1605 = vunpack.c.h.b16 %v797
    %v1606 = vunpack.c.l.b16 %v798
    %v1607 = vunpack.c.h.b16 %v798
    %v1608 = vunpack.c.l.b16 %v799
    %v1609 = vunpack.c.h.b16 %v799
    %v1610 = vunpack.c.l.b16 %v800
    %v1611 = vunpack.c.h.b16 %v800
    %v1612 = vunpack.c.l.b16 %v801
    %v1613 = vunpack.c.h.b16 %v801
    %v1614 = vunpack.c.l.b16 %v802
    %v1615 = vunpack.c.h.b16 %v802
    %v1616 = vunpack.c.l.b16 %v803
    %v1617 = vunpack.c.h.b16 %v803
    %v1618 = vunpack.c.l.b16 %v804
    %v1619 = vunpack.c.h.b16 %v804
    %v1620 = vunpack.c.l.b16 %v805
    %v1621 = vunpack.c.h.b16 %v805
    %v1622 = vunpack.c.l.b16 %v806
    %v1623 = vunpack.c.h.b16 %v806
    %v1624 = vunpack.c.l.b16 %v807
    %v1625 = vunpack.c.h.b16 %v807
    %v1626 = vunpack.c.l.b16 %v808
    %v1627 = vunpack.c.h.b16 %v808
    %v1628 = vunpack.c.l.b16 %v809
    %v1629 = vunpack.c.h.b16 %v809
    %v1630 = vunpack.c.l.b16 %v810
    %v1631 = vunpack.c.h.b16 %v810
    %v1632 = vunpack.c.l.b16 %v811
    %v1633 = vunpack.c.h.b16 %v811
    %v1634 = vunpack.c.l.b16 %v812
    %v1635 = vunpack.c.h.b16 %v812
    %v1636 = vunpack.c.l.b16 %v813
    %v1637 = vunpack.c.h.b16 %v813
    %v1638 = vunpack.c.l.b16 %v814
    %v1639 = vunpack.c.h.b16 %v814
    %v1640 = vunpack.c.l.b16 %v815
    %v1641 = vunpack.c.h.b16 %v815
    %v1642 = vunpack.c.l.b16 %v816
    %v1643 = vunpack.c.h.b16 %v816
    %v1644 = vunpack.c.l.b16 %v817
    %v1645 = vunpack.c.h.b16 %v817
    %v1646 = vunpack.c.l.b16 %v818
    %v1647 = vunpack.c.h.b16 %v818
    %v1648 = vunpack.c.l.b16 %v819
    %v1649 = vunpack.c.h.b16 %v819
    %v1650 = vunpack.c.l.b16 %v820
    %v1651 = vunpack.c.h.b16 %v820
    %v1652 = vunpack.c.l.b16 %v821
    %v1653 = vunpack.c.h.b16 %v821
    %v1654 = vunpack.c.l.b16 %v822
    %v1655 = vunpack.c.h.b16 %v822
    %v1656 = vunpack.c.l.b16 %v823
    %v1657 = vunpack.c.h.b16 %v823
    %v1658 = vunpack.c.l.b16 %v824
    %v1659 = vunpack.c.h.b16 %v824
    %v1660 = vunpack.c.l.b16 %v825
    %v1661 = vunpack.c.h.b16 %v825
    %v1662 = vunpack.c.l.b16 %v826
    %v1663 = vunpack.c.h.b16 %v826
    %v1664 = vunpack.c.l.b16 %v827
    %v1665 = vunpack.c.h.b16 %v827
    %v1666 = vunpack.c.l.b16 %v828
    %v1667 = vunpack.c.h.b16 %v828
    %v1668 = vunpack.c.l.b16 %v829
    %v1669 = vunpack.c.h.b16 %v829
    %v1670 = vunpack.c.l.b16 %v830
    %v1671 = vunpack.c.h.b16 %v830
    %v1672 = vunpack.c.l.b16 %v831
    %v1673 = vunpack.c.h.b16 %v831
    %v1674 = vunpack.c.l.b16 %v832
    %v1675 = vunpack.c.h.b16 %v832
    %v1676 = vunpack.c.l.b16 %v833
    %v1677 = vunpack.c.h.b16 %v833
    %v1678 = vunpack.c.l.b16 %v834
    %v1679 = vunpack.c.h.b16 %v834
    %v1680 = vunpack.c.l.b16 %v835
    %v1681 = vunpack.c.h.b16 %v835
    %v1682 = vunpack.c.l.b16 %v836
    %v1683 = vunpack.c.h.b16 %v836
    %v1684 = vunpack.c.l.b16 %v837
    %v1685 = vunpack.c.h.b16 %v837
    %v1686 = vunpack.c.l.b16 %v838
    %v1687 = vunpack.c.h.b16 %v838
    %v1688 = vunpack.c.l.b16 %v839
    %v1689 = vunpack.c.h.b16 %v839
    %v1690 = vunpack.c.l.b16 %v840
    %v1691 = vunpack.c.h.b16 %v840
    %v1692 = vunpack.c.l.b16 %v841
    %v1693 = vunpack.c.h.b16 %v841
    %v1694 = vunpack.c.l.b16 %v842
    %v1695 = vunpack.c.h.b16 %v842
    %v1696 = vunpack.c.l.b16 %v843
    %v1697 = vunpack.c.h.b16 %v843
    %v1698 = vunpack.c.l.b16 %v844
    %v1699 = vunpack.c.h.b16 %v844
    %v1700 = vunpack.c.l.b16 %v845
    %v1701 = vunpack.c.h.b16 %v845
    %v1702 = vunpack.c.l.b16 %v846
    %v1703 = vunpack.c.h.b16 %v846
    %v1704 = vunpack.c.l.b16 %v847
    %v1705 = vunpack.c.h.b16 %v847
    %v1706 = vunpack.c.l.b16 %v848
    %v1707 = vunpack.c.h.b16 %v848
    %v1708 = vunpack.c.l.b16 %v849
    %v1709 = vunpack.c.h.b16 %v849
    %v1710 = vunpack.c.l.b16 %v850
    %v1711 = vunpack.c.h.b16 %v850
    %v1712 = vunpack.c.l.b16 %v851
    %v1713 = vunpack.c.h.b16 %v851
    %v1714 = vunpack.c.l.b16 %v852
    %v1715 = vunpack.c.h.b16 %v852
    %v1716 = vunpack.c.l.b16 %v853
    %v1717 = vunpack.c.h.b16 %v853
    %v1718 = vunpack.c.l.b16 %v854
    %v1719 = vunpack.c.h.b16 %v854
    %v1720 = vunpack.c.l.b16 %v855
    %v1721 = vunpack.c.h.b16 %v855
    %v1722 = vunpack.c.l.b16 %v856
    %v1723 = vunpack.c.h.b16 %v856
    %v1724 = vunpack.c.l.b16 %v857
    %v1725 = vunpack.c.h.b16 %v857
    %v1726 = vunpack.c.l.b16 %v858
    %v1727 = vunpack.c.h.b16 %v858
    %v1728 = vunpack.c.l.b16 %v859
    %v1729 = vunpack.c.h.b16 %v859
    %v1730 = vunpack.c.l.b16 %v860
    %v1731 = vunpack.c.h.b16 %v860
    %v1732 = vunpack.c.l.b16 %v861
    %v1733 = vunpack.c.h.b16 %v861
    %v1734 = vunpack.c.l.b16 %v862
    %v1735 = vunpack.c.h.b16 %v862
    %v1736 = vunpack.c.l.b16 %v863
    %v1737 = vunpack.c.h.b16 %v863
    %v1738 = vunpack.c.l.b16 %v864
    %v1739 = vunpack.c.h.b16 %v864
    %v1740 = vunpack.c.l.b16 %v865
    %v1741 = vunpack.c.h.b16 %v865
    %v1742 = vunpack.c.l.b16 %v866
    %v1743 = vunpack.c.h.b16 %v866
    %v1744 = vunpack.c.l.b16 %v867
    %v1745 = vunpack.c.h.b16 %v867
    %v1746 = vunpack.c.l.b16 %v868
    %v1747 = vunpack.c.h.b16 %v868
    %v1748 = vunpack.c.l.b16 %v869
    %v1749 = vunpack.c.h.b16 %v869
    %v1750 = vunpack.c.l.b16 %v870
    %v1751 = vunpack.c.h.b16 %v870
    %v1752 = vunpack.c.l.b16 %v871
    %v1753 = vunpack.c.h.b16 %v871
    %v1754 = vunpack.c.l.b16 %v872
    %v1755 = vunpack.c.h.b16 %v872
    %v1756 = vunpack.c.l.b16 %v873
    %v1757 = vunpack.c.h.b16 %v873
    %v1758 = vunpack.c.l.b16 %v874
    %v1759 = vunpack.c.h.b16 %v874
    %v1760 = vunpack.c.l.b16 %v875
    %v1761 = vunpack.c.h.b16 %v875
    %v1762 = vunpack.c.l.b16 %v876
    %v1763 = vunpack.c.h.b16 %v876
    %v1764 = vunpack.c.l.b16 %v877
    %v1765 = vunpack.c.h.b16 %v877
    %v1766 = vunpack.c.l.b16 %v878
    %v1767 = vunpack.c.h.b16 %v878
    %v1768 = vunpack.c.l.b16 %v879
    %v1769 = vunpack.c.h.b16 %v879
    %v1770 = vunpack.c.l.b16 %v880
    %v1771 = vunpack.c.h.b16 %v880
    %v1772 = vunpack.c.l.b16 %v881
    %v1773 = vunpack.c.h.b16 %v881
    %v1774 = vunpack.c.l.b16 %v882
    %v1775 = vunpack.c.h.b16 %v882
    %v1776 = vunpack.c.l.b16 %v883
    %v1777 = vunpack.c.h.b16 %v883
    %v1778 = vunpack.c.l.b16 %v884
    %v1779 = vunpack.c.h.b16 %v884
    %v1780 = vunpack.c.l.b16 %v885
    %v1781 = vunpack.c.h.b16 %v885
    %v1782 = vunpack.c.l.b16 %v886
    %v1783 = vunpack.c.h.b16 %v886
    %v1784 = vunpack.c.l.b16 %v887
    %v1785 = vunpack.c.h.b16 %v887
    %v1786 = vunpack.c.l.b16 %v888
    %v1787 = vunpack.c.h.b16 %v888
    %v1788 = vunpack.c.l.b16 %v889
    %v1789 = vunpack.c.h.b16 %v889
    %v1790 = vunpack.c.l.b16 %v890
    %v1791 = vunpack.c.h.b16 %v890
    %v1792 = vunpack.c.l.b16 %v891
    %v1793 = vunpack.c.h.b16 %v891
    %v1794 = vunpack.c.l.b16 %v892
    %v1795 = vunpack.c.h.b16 %v892
    %v1796 = vunpack.c.l.b16 %v893
    %v1797 = vunpack.c.h.b16 %v893
    %v1798 = vunpack.c.l.b16 %v894
    %v1799 = vunpack.c.h.b16 %v894
    %v1800 = vunpack.c.l.b16 %v895
    %v1801 = vunpack.c.h.b16 %v895
    %v1802 = vunpack.c.l.b16 %v896
    %v1803 = vunpack.c.h.b16 %v896
    %v1804 = vunpack.c.l.b16 %v897
    %v1805 = vunpack.c.h.b16 %v897
    %v1806 = vunpack.c.l.b16 %v898
    %v1807 = vunpack.c.h.b16 %v898
    %v1808 = vunpack.c.l.b16 %v899
    %v1809 = vunpack.c.h.b16 %v899
    %v1810 = vunpack.c.l.b16 %v900
    %v1811 = vunpack.c.h.b16 %v900
    %v1812 = vunpack.c.l.b16 %v901
    %v1813 = vunpack.c.h.b16 %v901
    %v1814 = vunpack.c.l.b16 %v902
    %v1815 = vunpack.c.h.b16 %v902
    %v1816 = vunpack.c.l.b16 %v903
    %v1817 = vunpack.c.h.b16 %v903
    %v1818 = vunpack.c.l.b16 %v904
    %v1819 = vunpack.c.h.b16 %v904
    %v1820 = vunpack.c.l.b16 %v905
    %v1821 = vunpack.c.h.b16 %v905
    %v1822 = vunpack.c.l.b16 %v906
    %v1823 = vunpack.c.h.b16 %v906
    %v1824 = vunpack.c.l.b16 %v907
    %v1825 = vunpack.c.h.b16 %v907
    %v1826 = vunpack.c.l.b16 %v908
    %v1827 = vunpack.c.h.b16 %v908
    %v1828 = vunpack.c.l.b16 %v909
    %v1829 = vunpack.c.h.b16 %v909
    %v1830 = vunpack.c.l.b16 %v910
    %v1831 = vunpack.c.h.b16 %v910
    %v1832 = vunpack.c.l.b16 %v911
    %v1833 = vunpack.c.h.b16 %v911
    %v1834 = vunpack.c.l.b16 %v912
    %v1835 = vunpack.c.h.b16 %v912
    %v1836 = vunpack.c.l.b16 %v913
    %v1837 = vunpack.c.h.b16 %v913
    %v1838 = vunpack.c.l.b16 %v914
    %v1839 = vunpack.c.h.b16 %v914
    %v1840 = vunpack.c.l.b16 %v915
    %v1841 = vunpack.c.h.b16 %v915
    %v1842 = vunpack.c.l.b16 %v916
    %v1843 = vunpack.c.h.b16 %v916
    %v1844 = vunpack.c.l.b16 %v917
    %v1845 = vunpack.c.h.b16 %v917
    %v1846 = vunpack.c.l.b16 %v918
    %v1847 = vunpack.c.h.b16 %v918
    %v1848 = vunpack.c.l.b16 %v919
    %v1849 = vunpack.c.h.b16 %v919
    %v1850 = vunpack.c.l.b16 %v920
    %v1851 = vunpack.c.h.b16 %v920
    %v1852 = vunpack.c.l.b16 %v921
    %v1853 = vunpack.c.h.b16 %v921
    %v1854 = vunpack.c.l.b16 %v922
    %v1855 = vunpack.c.h.b16 %v922
    %v1856 = vunpack.c.l.b16 %v923
    %v1857 = vunpack.c.h.b16 %v923
    %v1858 = vunpack.c.l.b16 %v924
    %v1859 = vunpack.c.h.b16 %v924
    %v1860 = vunpack.c.l.b16 %v925
    %v1861 = vunpack.c.h.b16 %v925
    %v1862 = vunpack.c.l.b16 %v926
    %v1863 = vunpack.c.h.b16 %v926
    %v1864 = vunpack.c.l.b16 %v927
    %v1865 = vunpack.c.h.b16 %v927
    %v1866 = vunpack.c.l.b16 %v928
    %v1867 = vunpack.c.h.b16 %v928
    %v1868 = vunpack.c.l.b16 %v929
    %v1869 = vunpack.c.h.b16 %v929
    %v1870 = vunpack.c.l.b16 %v930
    %v1871 = vunpack.c.h.b16 %v930
    %v1872 = vunpack.c.l.b16 %v931
    %v1873 = vunpack.c.h.b16 %v931
    %v1874 = vunpack.c.l.b16 %v932
    %v1875 = vunpack.c.h.b16 %v932
    %v1876 = vunpack.c.l.b16 %v933
    %v1877 = vunpack.c.h.b16 %v933
    %v1878 = vunpack.c.l.b16 %v934
    %v1879 = vunpack.c.h.b16 %v934
    %v1880 = vunpack.c.l.b16 %v935
    %v1881 = vunpack.c.h.b16 %v935
    %v1882 = vunpack.c.l.b16 %v936
    %v1883 = vunpack.c.h.b16 %v936
    %v1884 = vunpack.c.l.b16 %v937
    %v1885 = vunpack.c.h.b16 %v937
    %v1886 = vunpack.c.l.b16 %v938
    %v1887 = vunpack.c.h.b16 %v938
    %v1888 = vunpack.c.l.b16 %v939
    %v1889 = vunpack.c.h.b16 %v939
    %v1890 = vunpack.c.l.b16 %v940
    %v1891 = vunpack.c.h.b16 %v940
    %v1892 = vunpack.c.l.b16 %v941
    %v1893 = vunpack.c.h.b16 %v941
    %v1894 = vunpack.c.l.b16 %v942
    %v1895 = vunpack.c.h.b16 %v942
    %v1896 = vunpack.c.l.b16 %v943
    %v1897 = vunpack.c.h.b16 %v943
    %v1898 = vunpack.c.l.b16 %v944
    %v1899 = vunpack.c.h.b16 %v944
    %v1900 = vunpack.c.l.b16 %v945
    %v1901 = vunpack.c.h.b16 %v945
    %v1902 = vunpack.c.l.b16 %v946
    %v1903 = vunpack.c.h.b16 %v946
    %v1904 = vunpack.c.l.b16 %v947
    %v1905 = vunpack.c.h.b16 %v947
    %v1906 = vunpack.c.l.b16 %v948
    %v1907 = vunpack.c.h.b16 %v948
    %v1908 = vunpack.c.l.b16 %v949
    %v1909 = vunpack.c.h.b16 %v949
    %v1910 = vunpack.c.l.b16 %v950
    %v1911 = vunpack.c.h.b16 %v950
    %v1912 = vunpack.c.l.b16 %v951
    %v1913 = vunpack.c.h.b16 %v951
    %v1914 = vunpack.c.l.b16 %v952
    %v1915 = vunpack.c.h.b16 %v952
    %v1916 = vunpack.c.l.b16 %v953
    %v1917 = vunpack.c.h.b16 %v953
    %v1918 = vunpack.c.l.b16 %v954
    %v1919 = vunpack.c.h.b16 %v954
    %v1920 = vunpack.c.l.b16 %v955
    %v1921 = vunpack.c.h.b16 %v955
    %v1922 = vunpack.c.l.b16 %v956
    %v1923 = vunpack.c.h.b16 %v956
    %v1924 = vunpack.c.l.b16 %v957
    %v1925 = vunpack.c.h.b16 %v957
    %v1926 = vunpack.c.l.b16 %v958
    %v1927 = vunpack.c.h.b16 %v958
    %v1928 = vunpack.c.l.b16 %v959
    %v1929 = vunpack.c.h.b16 %v959
    %v1930 = vunpack.c.l.b16 %v960
    %v1931 = vunpack.c.h.b16 %v960
    %v1932 = vunpack.c.l.b16 %v961
    %v1933 = vunpack.c.h.b16 %v961
    %v1934 = vunpack.c.l.b16 %v962
    %v1935 = vunpack.c.h.b16 %v962
    %v1936 = vunpack.c.l.b16 %v963
    %v1937 = vunpack.c.h.b16 %v963
    %v1938 = vunpack.c.l.b16 %v964
    %v1939 = vunpack.c.h.b16 %v964
    %v1940 = vunpack.c.l.b16 %v965
    %v1941 = vunpack.c.h.b16 %v965
    %v1942 = vunpack.c.l.b16 %v966
    %v1943 = vunpack.c.h.b16 %v966
    %v1944 = vunpack.c.l.b16 %v967
    %v1945 = vunpack.c.h.b16 %v967
    %v1946 = vunpack.c.l.b16 %v968
    %v1947 = vunpack.c.h.b16 %v968
    %v1948 = vunpack.c.l.b16 %v969
    %v1949 = vunpack.c.h.b16 %v969
    %v1950 = vunpack.c.l.b16 %v970
    %v1951 = vunpack.c.h.b16 %v970
    %v1952 = vunpack.c.l.b16 %v971
    %v1953 = vunpack.c.h.b16 %v971
    %v1954 = vunpack.c.l.b16 %v972
    %v1955 = vunpack.c.h.b16 %v972
    %v1956 = vunpack.c.l.b16 %v973
    %v1957 = vunpack.c.h.b16 %v973
    %v1958 = vunpack.c.l.b16 %v974
    %v1959 = vunpack.c.h.b16 %v974
    %v1960 = vunpack.c.l.b16 %v975
    %v1961 = vunpack.c.h.b16 %v975
    %v1962 = vunpack.c.l.b16 %v976
    %v1963 = vunpack.c.h.b16 %v976
    %v1964 = vunpack.c.l.b16 %v977
    %v1965 = vunpack.c.h.b16 %v977
    %v1966 = vunpack.c.l.b16 %v978
    %v1967 = vunpack.c.h.b16 %v978
    %v1968 = vunpack.c.l.b16 %v979
    %v1969 = vunpack.c.h.b16 %v979
    %v1970 = vunpack.c.l.b16 %v980
    %v1971 = vunpack.c.h.b16 %v980
    %v1972 = vunpack.c.l.b16 %v981
    %v1973 = vunpack.c.h.b16 %v981
    %v1974 = vunpack.c.l.b16 %v982
    %v1975 = vunpack.c.h.b16 %v982
    %v1976 = vunpack.c.l.b16 %v983
    %v1977 = vunpack.c.h.b16 %v983
    %v1978 = vunpack.c.l.b16 %v984
    %v1979 = vunpack.c.h.b16 %v984
    %v1980 = vunpack.c.l.b16 %v985
    %v1981 = vunpack.c.h.b16 %v985
    %v1982 = vunpack.c.l.b16 %v986
    %v1983 = vunpack.c.h.b16 %v986
    %v1984 = vunpack.c.l.b16 %v987
    %v1985 = vunpack.c.h.b16 %v987
    %v1986 = vunpack.c.l.b16 %v988
    %v1987 = vunpack.c.h.b16 %v988
    %v1988 = vunpack.c.l.b16 %v989
    %v1989 = vunpack.c.h.b16 %v989
    %v1990 = vunpack.c.l.b16 %v990
    %v1991 = vunpack.c.h.b16 %v990
    %v1992 = vunpack.c.l.b16 %v991
    %v1993 = vunpack.c.h.b16 %v991
    %v1994 = vunpack.c.l.b16 %v992
    %v1995 = vunpack.c.h.b16 %v992
    %v1996 = vunpack.c.l.b16 %v993
    %v1997 = vunpack.c.h.b16 %v993
    %v1998 = vunpack.c.l.b16 %v994
    %v1999 = vunpack.c.h.b16 %v994
    %v2000 = vunpack.c.l.b16 %v995
    %v2001 = vunpack.c.h.b16 %v995
    %v2002 = vunpack.c.l.b16 %v996
    %v2003 = vunpack.c.h.b16 %v996
    %v2004 = vunpack.c.l.b16 %v997
    %v2005 = vunpack.c.h.b16 %v997
    %v2006 = vunpack.c.l.b16 %v998
    %v2007 = vunpack.c.h.b16 %v998
    %v2008 = vunpack.c.l.b16 %v999
    %v2009 = vunpack.c.h.b16 %v999
    %v2010 = vunpack.c.l.b16 %v1000
    %v2011 = vunpack.c.h.b16 %v1000
    %v2012 = vunpack.c.l.b16 %v1001
    %v2013 = vunpack.c.h.b16 %v1001
    %v2014 = vunpack.c.l.b16 %v1002
    %v2015 = vunpack.c.h.b16 %v1002
    %v2016 = vunpack.c.l.b16 %v1003
    %v2017 = vunpack.c.h.b16 %v1003
    %v2018 = vunpack.c.l.b16 %v1004
    %v2019 = vunpack.c.h.b16 %v1004
    %v2020 = vunpack.c.l.b16 %v1005
    %v2021 = vunpack.c.h.b16 %v1005
    %v2022 = vunpack.c.l.b16 %v1006
    %v2023 = vunpack.c.h.b16 %v1006
    %v2024 = vunpack.c.l.b16 %v1007
    %v2025 = vunpack.c.h.b16 %v1007
    %v2026 = vunpack.c.l.b16 %v1008
    %v2027 = vunpack.c.h.b16 %v1008
    %v2028 = vunpack.c.l.b16 %v1009
    %v2029 = vunpack.c.h.b16 %v1009
    %v2030 = vunpack.c.l.b16 %v1010
    %v2031 = vunpack.c.h.b16 %v1010
    %v2032 = vunpack.c.l.b16 %v1011
    %v2033 = vunpack.c.h.b16 %v1011
    %v2034 = vunpack.c.l.b16 %v1012
    %v2035 = vunpack.c.h.b16 %v1012
    %v2036 = vunpack.c.l.b16 %v1013
    %v2037 = vunpack.c.h.b16 %v1013
    %v2038 = vunpack.c.l.b16 %v1014
    %v2039 = vunpack.c.h.b16 %v1014
    %v2040 = vunpack.c.l.b16 %v1015
    %v2041 = vunpack.c.h.b16 %v1015
    %v2042 = vunpack.c.l.b16 %v1016
    %v2043 = vunpack.c.h.b16 %v1016
    %v2044 = vunpack.c.l.b16 %v1017
    %v2045 = vunpack.c.h.b16 %v1017
    %v2046 = vunpack.c.l.b16 %v1018
    %v2047 = vunpack.c.h.b16 %v1018
    %v2048 = vunpack.c.l.b16 %v1019
    %v2049 = vunpack.c.h.b16 %v1019
    %v2050 = vunpack.c.l.b16 %v1020
    %v2051 = vunpack.c.h.b16 %v1020
    %v2052 = vunpack.c.l.b16 %v1021
    %v2053 = vunpack.c.h.b16 %v1021
    %v2054 = vunpack.c.l.b16 %v1022
    %v2055 = vunpack.c.h.b16 %v1022
    %v2056 = vunpack.c.l.b16 %v1023
    %v2057 = vunpack.c.h.b16 %v1023
    %v2058 = vunpack.c.l.b16 %v1024
    %v2059 = vunpack.c.h.b16 %v1024
    %v2060 = vunpack.c.l.b16 %v1025
    %v2061 = vunpack.c.h.b16 %v1025
    %v2062 = vunpack.c.l.b16 %v1026
    %v2063 = vunpack.c.h.b16 %v1026
    %v2064 = vunpack.c.l.b16 %v1027
    %v2065 = vunpack.c.h.b16 %v1027
    %v2066 = vunpack.c.l.b16 %v1028
    %v2067 = vunpack.c.h.b16 %v1028
    %v2068 = vunpack.c.l.b16 %v1029
    %v2069 = vunpack.c.h.b16 %v1029
    %v2070 = vunpack.c.l.b16 %v1030
    %v2071 = vunpack.c.h.b16 %v1030
    %v2072 = vunpack.c.l.b16 %v1031
    %v2073 = vunpack.c.h.b16 %v1031
    %v2074 = vunpack.c.l.b16 %v1032
    %v2075 = vunpack.c.h.b16 %v1032
    %v2076 = vunpack.c.l.b16 %v1033
    %v2077 = vunpack.c.h.b16 %v1033
    %v2078 = vunpack.c.l.b16 %v1034
    %v2079 = vunpack.c.h.b16 %v1034
    %v2080 = vunpack.c.l.b16 %v1035
    %v2081 = vunpack.c.h.b16 %v1035
    %v2082 = vunpack.c.l.b16 %v1036
    %v2083 = vunpack.c.h.b16 %v1036
    %v2084 = vunpack.c.l.b16 %v1037
    %v2085 = vunpack.c.h.b16 %v1037
    %v2086 = vunpack.c.l.b16 %v1038
    %v2087 = vunpack.c.h.b16 %v1038
    %v2088 = vunpack.c.l.b16 %v1039
    %v2089 = vunpack.c.h.b16 %v1039
    %v2090 = vunpack.c.l.b16 %v1040
    %v2091 = vunpack.c.h.b16 %v1040
    %v2092 = vunpack.c.l.b16 %v1041
    %v2093 = vunpack.c.h.b16 %v1041
    %v2094 = vunpack.c.l.b16 %v1042
    %v2095 = vunpack.c.h.b16 %v1042
    %v2096 = vunpack.c.l.b16 %v1043
    %v2097 = vunpack.c.h.b16 %v1043
    %v2098 = vunpack.c.l.b16 %v1044
    %v2099 = vunpack.c.h.b16 %v1044
    %v2100 = vunpack.c.l.b16 %v1045
    %v2101 = vunpack.c.h.b16 %v1045
    %v2102 = vunpack.c.l.b16 %v1046
    %v2103 = vunpack.c.h.b16 %v1046
    %v2104 = vunpack.c.l.b16 %v1047
    %v2105 = vunpack.c.h.b16 %v1047
    %v2106 = vunpack.c.l.b16 %v1048
    %v2107 = vunpack.c.h.b16 %v1048
    %v2108 = vunpack.c.l.b16 %v1049
    %v2109 = vunpack.c.h.b16 %v1049
    %v2110 = vunpack.c.l.b16 %v1050
    %v2111 = vunpack.c.h.b16 %v1050
    %v2112 = vunpack.c.l.b16 %v1051
    %v2113 = vunpack.c.h.b16 %v1051
    %v2114 = vunpack.c.l.b16 %v1052
    %v2115 = vunpack.c.h.b16 %v1052
    %v2116 = vunpack.c.l.b16 %v1053
    %v2117 = vunpack.c.h.b16 %v1053
    %v2118 = vunpack.c.l.b16 %v1054
    %v2119 = vunpack.c.h.b16 %v1054
    %v2120 = vunpack.c.l.b16 %v1055
    %v2121 = vunpack.c.h.b16 %v1055
    %v2122 = vunpack.c.l.b16 %v1056
    %v2123 = vunpack.c.h.b16 %v1056
    %v2124 = vunpack.c.l.b16 %v1057
    %v2125 = vunpack.c.h.b16 %v1057
    %v2126 = vunpack.c.l.b16 %v1058
    %v2127 = vunpack.c.h.b16 %v1058
    %v2128 = vunpack.c.l.b16 %v1059
    %v2129 = vunpack.c.h.b16 %v1059
    %v2130 = vunpack.c.l.b16 %v1060
    %v2131 = vunpack.c.h.b16 %v1060
    %v2132 = vunpack.c.l.b16 %v1061
    %v2133 = vunpack.c.h.b16 %v1061
    %v2134 = vunpack.c.l.b16 %v1062
    %v2135 = vunpack.c.h.b16 %v1062
    %v2136 = vunpack.c.l.b16 %v1063
    %v2137 = vunpack.c.h.b16 %v1063
    %v2138 = vunpack.c.l.b16 %v1064
    %v2139 = vunpack.c.h.b16 %v1064
    %v2140 = vunpack.c.l.b16 %v1065
    %v2141 = vunpack.c.h.b16 %v1065
    %v2142 = vunpack.c.l.b16 %v1066
    %v2143 = vunpack.c.h.b16 %v1066
    %v2144 = vunpack.c.l.b16 %v1067
    %v2145 = vunpack.c.h.b16 %v1067
    %v2146 = vunpack.c.l.b16 %v1068
    %v2147 = vunpack.c.h.b16 %v1068
    %v2148 = vunpack.c.l.b16 %v1069
    %v2149 = vunpack.c.h.b16 %v1069
    %v2150 = vunpack.c.l.b16 %v1070
    %v2151 = vunpack.c.h.b16 %v1070
    %v2152 = vunpack.c.l.b16 %v1071
    %v2153 = vunpack.c.h.b16 %v1071
    %v2154 = vunpack.c.l.b16 %v1072
    %v2155 = vunpack.c.h.b16 %v1072
    %v2156 = vunpack.c.l.b16 %v1073
    %v2157 = vunpack.c.h.b16 %v1073
    %v2158 = vunpack.c.l.b16 %v1074
    %v2159 = vunpack.c.h.b16 %v1074
    %v2160 = vunpack.c.l.b16 %v1075
    %v2161 = vunpack.c.h.b16 %v1075
    %v2162 = vunpack.c.l.b16 %v1076
    %v2163 = vunpack.c.h.b16 %v1076
    %v2164 = vunpack.c.l.b16 %v1077
    %v2165 = vunpack.c.h.b16 %v1077
    %v2166 = vunpack.c.l.b16 %v1078
    %v2167 = vunpack.c.h.b16 %v1078
    %v2168 = vunpack.c.l.b16 %v1079
    %v2169 = vunpack.c.h.b16 %v1079
    %v2170 = vunpack.c.l.b16 %v1080
    %v2171 = vunpack.c.h.b16 %v1080
    %v2172 = vunpack.c.l.b16 %v1081
    %v2173 = vunpack.c.h.b16 %v1081
    %v2174 = vunpack.c.l.b16 %v1082
    %v2175 = vunpack.c.h.b16 %v1082
    %v2176 = vunpack.c.l.b16 %v1083
    %v2177 = vunpack.c.h.b16 %v1083
    %v2178 = vunpack.c.l.b16 %v1084
    %v2179 = vunpack.c.h.b16 %v1084
    %v2180 = vunpack.c.l.b16 %v1085
    %v2181 = vunpack.c.h.b16 %v1085
    %v2182 = vunpack.c.l.b16 %v1086
    %v2183 = vunpack.c.h.b16 %v1086
    %v2184 = vunpack.c.l.b16 %v1087
    %v2185 = vunpack.c.h.b16 %v1087
    %v2186 = vunpack.c.l.b16 %v1088
    %v2187 = vunpack.c.h.b16 %v1088
    %v2188 = vunpack.c.l.b16 %v1089
    %v2189 = vunpack.c.h.b16 %v1089
    %v2190 = vunpack.c.l.b16 %v1090
    %v2191 = vunpack.c.h.b16 %v1090
    %v2192 = vunpack.c.l.b16 %v1091
    %v2193 = vunpack.c.h.b16 %v1091
    %v2194 = vunpack.c.l.b16 %v1092
    %v2195 = vunpack.c.h.b16 %v1092
    %v2196 = vunpack.c.l.b16 %v1093
    %v2197 = vunpack.c.h.b16 %v1093
    %v2198 = vunpack.c.l.b16 %v1094
    %v2199 = vunpack.c.h.b16 %v1094
    %v2200 = vunpack.c.l.b16 %v1095
    %v2201 = vunpack.c.h.b16 %v1095
    %v2202 = vunpack.c.l.b16 %v1096
    %v2203 = vunpack.c.h.b16 %v1096
    %v2204 = vunpack.c.l.b16 %v1097
    %v2205 = vunpack.c.h.b16 %v1097
    %v2206 = vunpack.c.l.b16 %v1098
    %v2207 = vunpack.c.h.b16 %v1098
    %v2208 = vunpack.c.l.b16 %v1099
    %v2209 = vunpack.c.h.b16 %v1099
    %v2210 = vunpack.c.l.b16 %v1100
    %v2211 = vunpack.c.h.b16 %v1100
    %v2212 = vunpack.c.l.b16 %v1101
    %v2213 = vunpack.c.h.b16 %v1101
    %v2214 = vunpack.c.l.b16 %v1102
    %v2215 = vunpack.c.h.b16 %v1102
    %v2216 = vunpack.c.l.b16 %v1103
    %v2217 = vunpack.c.h.b16 %v1103
    %v2218 = vunpack.c.l.b16 %v1104
    %v2219 = vunpack.c.h.b16 %v1104
    %v2220 = vunpack.c.l.b16 %v1105
    %v2221 = vunpack.c.h.b16 %v1105
    %v2222 = vunpack.c.l.b16 %v1106
    %v2223 = vunpack.c.h.b16 %v1106
    %v2224 = vunpack.c.l.b16 %v1107
    %v2225 = vunpack.c.h.b16 %v1107
    %v2226 = vunpack.c.l.b16 %v1108
    %v2227 = vunpack.c.h.b16 %v1108
    %v2228 = vunpack.c.l.b16 %v1109
    %v2229 = vunpack.c.h.b16 %v1109
    %v2230 = vunpack.c.l.b16 %v1110
    %v2231 = vunpack.c.h.b16 %v1110
    %v2232 = vunpack.c.l.b16 %v1111
    %v2233 = vunpack.c.h.b16 %v1111
    %v2234 = vunpack.c.l.b16 %v1112
    %v2235 = vunpack.c.h.b16 %v1112
    %v2236 = vunpack.c.l.b16 %v1113
    %v2237 = vunpack.c.h.b16 %v1113
    %v2238 = vunpack.c.l.b16 %v1114
    %v2239 = vunpack.c.h.b16 %v1114
    %v2240 = vunpack.c.l.b16 %v1115
    %v2241 = vunpack.c.h.b16 %v1115
    %v2242 = vunpack.c.l.b16 %v1116
    %v2243 = vunpack.c.h.b16 %v1116
    %v2244 = vunpack.c.l.b16 %v1117
    %v2245 = vunpack.c.h.b16 %v1117
    %v2246 = vunpack.c.l.b16 %v1118
    %v2247 = vunpack.c.h.b16 %v1118
    %v2248 = vunpack.c.l.b16 %v1119
    %v2249 = vunpack.c.h.b16 %v1119
    %v2250 = vunpack.c.l.b16 %v1120
    %v2251 = vunpack.c.h.b16 %v1120
    %v2252 = vunpack.c.l.b16 %v1121
    %v2253 = vunpack.c.h.b16 %v1121
    %v2254 = vunpack.c.l.b16 %v1122
    %v2255 = vunpack.c.h.b16 %v1122
    %v2256 = vunpack.c.l.b16 %v1123
    %v2257 = vunpack.c.h.b16 %v1123
    %v2258 = vunpack.c.l.b16 %v1124
    %v2259 = vunpack.c.h.b16 %v1124
    %v2260 = vunpack.c.l.b16 %v1125
    %v2261 = vunpack.c.h.b16 %v1125
    %v2262 = vunpack.c.l.b16 %v1126
    %v2263 = vunpack.c.h.b16 %v1126
    %v2264 = vunpack.c.l.b16 %v1127
    %v2265 = vunpack.c.h.b16 %v1127
    %v2266 = vunpack.c.l.b16 %v1128
    %v2267 = vunpack.c.h.b16 %v1128
    %v2268 = vunpack.c.l.b16 %v1129
    %v2269 = vunpack.c.h.b16 %v1129
    %v2270 = vunpack.c.l.b16 %v1130
    %v2271 = vunpack.c.h.b16 %v1130
    %v2272 = vunpack.c.l.b16 %v1131
    %v2273 = vunpack.c.h.b16 %v1131
    %v2274 = vunpack.c.l.b16 %v1132
    %v2275 = vunpack.c.h.b16 %v1132
    %v2276 = vunpack.c.l.b16 %v1133
    %v2277 = vunpack.c.h.b16 %v1133
    %v2278 = vunpack.c.l.b16 %v1134
    %v2279 = vunpack.c.h.b16 %v1134
    %v2280 = vunpack.c.l.b16 %v1135
    %v2281 = vunpack.c.h.b16 %v1135
    %v2282 = vunpack.c.l.b16 %v1136
    %v2283 = vunpack.c.h.b16 %v1136
    %v2284 = vunpack.c.l.b16 %v1137
    %v2285 = vunpack.c.h.b16 %v1137
    %v2286 = vunpack.c.l.b16 %v1138
    %v2287 = vunpack.c.h.b16 %v1138
    %v2288 = vunpack.c.l.b16 %v1139
    %v2289 = vunpack.c.h.b16 %v1139
    %v2290 = vunpack.c.l.b16 %v1140
    %v2291 = vunpack.c.h.b16 %v1140
    %v2292 = vunpack.c.l.b16 %v1141
    %v2293 = vunpack.c.h.b16 %v1141
    %v2294 = vunpack.c.l.b16 %v1142
    %v2295 = vunpack.c.h.b16 %v1142
    %v2296 = vunpack.c.l.b16 %v1143
    %v2297 = vunpack.c.h.b16 %v1143
    %v2298 = vunpack.c.l.b16 %v1144
    %v2299 = vunpack.c.h.b16 %v1144
    %v2300 = vunpack.c.l.b16 %v1145
    %v2301 = vunpack.c.h.b16 %v1145
    %v2302 = vunpack.c.l.b16 %v1146
    %v2303 = vunpack.c.h.b16 %v1146
    %v2304 = vunpack.c.l.b16 %v1147
    %v2305 = vunpack.c.h.b16 %v1147
    %v2306 = vunpack.c.l.b16 %v1148
    %v2307 = vunpack.c.h.b16 %v1148
    %v2308 = vunpack.c.l.b16 %v1149
    %v2309 = vunpack.c.h.b16 %v1149
    %v2310 = vunpack.c.l.b16 %v1150
    %v2311 = vunpack.c.h.b16 %v1150
    %v2312 = vunpack.c.l.b16 %v1151
    %v2313 = vunpack.c.h.b16 %v1151
    %v2314 = vunpack.c.l.b16 %v1152
    %v2315 = vunpack.c.h.b16 %v1152
    %v2316 = vunpack.c.l.b16 %v1153
    %v2317 = vunpack.c.h.b16 %v1153
    %v2318 = vunpack.c.l.b16 %v1154
    %v2319 = vunpack.c.h.b16 %v1154
    %v2320 = vunpack.c.l.b16 %v1155
    %v2321 = vunpack.c.h.b16 %v1155
    %v2322 = vunpack.c.l.b16 %v1156
    %v2323 = vunpack.c.h.b16 %v1156
    %v2324 = vunpack.c.l.b16 %v1157
    %v2325 = vunpack.c.h.b16 %v1157
    %v2326 = vunpack.c.l.b16 %v1158
    %v2327 = vunpack.c.h.b16 %v1158
    %v2328 = vunpack.c.l.b16 %v1159
    %v2329 = vunpack.c.h.b16 %v1159
    %v2330 = vunpack.c.l.b16 %v1160
    %v2331 = vunpack.c.h.b16 %v1160
    %v2332 = vunpack.c.l.b16 %v1161
    %v2333 = vunpack.c.h.b16 %v1161
    %v2334 = vunpack.c.l.b16 %v1162
    %v2335 = vunpack.c.h.b16 %v1162
    %v2336 = vunpack.c.l.b16 %v1163
    %v2337 = vunpack.c.h.b16 %v1163
    %v2338 = vunpack.c.l.b16 %v1164
    %v2339 = vunpack.c.h.b16 %v1164
    %v2340 = vunpack.c.l.b16 %v1165
    %v2341 = vunpack.c.h.b16 %v1165
    %v2342 = vunpack.c.l.b16 %v1166
    %v2343 = vunpack.c.h.b16 %v1166
    %v2344 = vunpack.c.l.b16 %v1167
    %v2345 = vunpack.c.h.b16 %v1167
    %v2346 = vunpack.c.l.b16 %v1168
    %v2347 = vunpack.c.h.b16 %v1168
    %v2348 = vunpack.c.l.b16 %v1169
    %v2349 = vunpack.c.h.b16 %v1169
    %v2350 = vunpack.c.l.b16 %v1170
    %v2351 = vunpack.c.h.b16 %v1170
    %v2352 = vunpack.c.l.b16 %v1171
    %v2353 = vunpack.c.h.b16 %v1171
    %v2354 = vpack.c.b16 %v1594, %v1586
    %v2355 = vpack.c.b16 %v1595, %v1587
    %v2356 = vpack.c.b16 %v1596, %v1588
    %v2357 = vpack.c.b16 %v1597, %v1589
    %v2358 = vpack.c.b16 %v1598, %v1590
    %v2359 = vpack.c.b16 %v1599, %v1591
    %v2360 = vpack.c.b16 %v1600, %v1592
    %v2361 = vpack.c.b16 %v1601, %v1593
    %v2362 = vpack.c.b16 %v1610, %v1602
    %v2363 = vpack.c.b16 %v1611, %v1603
    %v2364 = vpack.c.b16 %v1612, %v1604
    %v2365 = vpack.c.b16 %v1613, %v1605
    %v2366 = vpack.c.b16 %v1614, %v1606
    %v2367 = vpack.c.b16 %v1615, %v1607
    %v2368 = vpack.c.b16 %v1616, %v1608
    %v2369 = vpack.c.b16 %v1617, %v1609
    %v2370 = vpack.c.b16 %v1626, %v1618
    %v2371 = vpack.c.b16 %v1627, %v1619
    %v2372 = vpack.c.b16 %v1628, %v1620
    %v2373 = vpack.c.b16 %v1629, %v1621
    %v2374 = vpack.c.b16 %v1630, %v1622
    %v2375 = vpack.c.b16 %v1631, %v1623
    %v2376 = vpack.c.b16 %v1632, %v1624
    %v2377 = vpack.c.b16 %v1633, %v1625
    %v2378 = vpack.c.b16 %v1642, %v1634
    %v2379 = vpack.c.b16 %v1643, %v1635
    %v2380 = vpack.c.b16 %v1644, %v1636
    %v2381 = vpack.c.b16 %v1645, %v1637
    %v2382 = vpack.c.b16 %v1646, %v1638
    %v2383 = vpack.c.b16 %v1647, %v1639
    %v2384 = vpack.c.b16 %v1648, %v1640
    %v2385 = vpack.c.b16 %v1649, %v1641
    %v2386 = vpack.c.b16 %v1658, %v1650
    %v2387 = vpack.c.b16 %v1659, %v1651
    %v2388 = vpack.c.b16 %v1660, %v1652
    %v2389 = vpack.c.b16 %v1661, %v1653
    %v2390 = vpack.c.b16 %v1662, %v1654
    %v2391 = vpack.c.b16 %v1663, %v1655
    %v2392 = vpack.c.b16 %v1664, %v1656
    %v2393 = vpack.c.b16 %v1665, %v1657
    %v2394 = vpack.c.b16 %v1674, %v1666
    %v2395 = vpack.c.b16 %v1675, %v1667
    %v2396 = vpack.c.b16 %v1676, %v1668
    %v2397 = vpack.c.b16 %v1677, %v1669
    %v2398 = vpack.c.b16 %v1678, %v1670
    %v2399 = vpack.c.b16 %v1679, %v1671
    %v2400 = vpack.c.b16 %v1680, %v1672
    %v2401 = vpack.c.b16 %v1681, %v1673
    %v2402 = vpack.c.b16 %v1690, %v1682
    %v2403 = vpack.c.b16 %v1691, %v1683
    %v2404 = vpack.c.b16 %v1692, %v1684
    %v2405 = vpack.c.b16 %v1693, %v1685
    %v2406 = vpack.c.b16 %v1694, %v1686
    %v2407 = vpack.c.b16 %v1695, %v1687
    %v2408 = vpack.c.b16 %v1696, %v1688
    %v2409 = vpack.c.b16 %v1697, %v1689
    %v2410 = vpack.c.b16 %v1706, %v1698
    %v2411 = vpack.c.b16 %v1707, %v1699
    %v2412 = vpack.c.b16 %v1708, %v1700
    %v2413 = vpack.c.b16 %v1709, %v1701
    %v2414 = vpack.c.b16 %v1710, %v1702
    %v2415 = vpack.c.b16 %v1711, %v1703
    %v2416 = vpack.c.b16 %v1712, %v1704
    %v2417 = vpack.c.b16 %v1713, %v1705
    %v2418 = vpack.c.b16 %v1722, %v1714
    %v2419 = vpack.c.b16 %v1723, %v1715
    %v2420 = vpack.c.b16 %v1724, %v1716
    %v2421 = vpack.c.b16 %v1725, %v1717
    %v2422 = vpack.c.b16 %v1726, %v1718
    %v2423 = vpack.c.b16 %v1727, %v1719
    %v2424 = vpack.c.b16 %v1728, %v1720
    %v2425 = vpack.c.b16 %v1729, %v1721
    %v2426 = vpack.c.b16 %v1738, %v1730
    %v2427 = vpack.c.b16 %v1739, %v1731
    %v2428 = vpack.c.b16 %v1740, %v1732
    %v2429 = vpack.c.b16 %v1741, %v1733
    %v2430 = vpack.c.b16 %v1742, %v1734
    %v2431 = vpack.c.b16 %v1743, %v1735
    %v2432 = vpack.c.b16 %v1744, %v1736
    %v2433 = vpack.c.b16 %v1745, %v1737
    %v2434 = vpack.c.b16 %v1754, %v1746
    %v2435 = vpack.c.b16 %v1755, %v1747
    %v2436 = vpack.c.b16 %v1756, %v1748
    %v2437 = vpack.c.b16 %v1757, %v1749
    %v2438 = vpack.c.b16 %v1758, %v1750
    %v2439 = vpack.c.b16 %v1759, %v1751
    %v2440 = vpack.c.b16 %v1760, %v1752
    %v2441 = vpack.c.b16 %v1761, %v1753
    %v2442 = vpack.c.b16 %v1770, %v1762
    %v2443 = vpack.c.b16 %v1771, %v1763
    %v2444 = vpack.c.b16 %v1772, %v1764
    %v2445 = vpack.c.b16 %v1773, %v1765
    %v2446 = vpack.c.b16 %v1774, %v1766
    %v2447 = vpack.c.b16 %v1775, %v1767
    %v2448 = vpack.c.b16 %v1776, %v1768
    %v2449 = vpack.c.b16 %v1777, %v1769
    %v2450 = vpack.c.b16 %v1786, %v1778
    %v2451 = vpack.c.b16 %v1787, %v1779
    %v2452 = vpack.c.b16 %v1788, %v1780
    %v2453 = vpack.c.b16 %v1789, %v1781
    %v2454 = vpack.c.b16 %v1790, %v1782
    %v2455 = vpack.c.b16 %v1791, %v1783
    %v2456 = vpack.c.b16 %v1792, %v1784
    %v2457 = vpack.c.b16 %v1793, %v1785
    %v2458 = vpack.c.b16 %v1802, %v1794
    %v2459 = vpack.c.b16 %v1803, %v1795
    %v2460 = vpack.c.b16 %v1804, %v1796
    %v2461 = vpack.c.b16 %v1805, %v1797
    %v2462 = vpack.c.b16 %v1806, %v1798
    %v2463 = vpack.c.b16 %v1807, %v1799
    %v2464 = vpack.c.b16 %v1808, %v1800
    %v2465 = vpack.c.b16 %v1809, %v1801
    %v2466 = vpack.c.b16 %v1818, %v1810
    %v2467 = vpack.c.b16 %v1819, %v1811
    %v2468 = vpack.c.b16 %v1820, %v1812
    %v2469 = vpack.c.b16 %v1821, %v1813
    %v2470 = vpack.c.b16 %v1822, %v1814
    %v2471 = vpack.c.b16 %v1823, %v1815
    %v2472 = vpack.c.b16 %v1824, %v1816
    %v2473 = vpack.c.b16 %v1825, %v1817
    %v2474 = vpack.c.b16 %v1834, %v1826
    %v2475 = vpack.c.b16 %v1835, %v1827
    %v2476 = vpack.c.b16 %v1836, %v1828
    %v2477 = vpack.c.b16 %v1837, %v1829
    %v2478 = vpack.c.b16 %v1838, %v1830
    %v2479 = vpack.c.b16 %v1839, %v1831
    %v2480 = vpack.c.b16 %v1840, %v1832
    %v2481 = vpack.c.b16 %v1841, %v1833
    %v2482 = vpack.c.b16 %v1850, %v1842
    %v2483 = vpack.c.b16 %v1851, %v1843
    %v2484 = vpack.c.b16 %v1852, %v1844
    %v2485 = vpack.c.b16 %v1853, %v1845
    %v2486 = vpack.c.b16 %v1854, %v1846
    %v2487 = vpack.c.b16 %v1855, %v1847
    %v2488 = vpack.c.b16 %v1856, %v1848
    %v2489 = vpack.c.b16 %v1857, %v1849
    %v2490 = vpack.c.b16 %v1866, %v1858
    %v2491 = vpack.c.b16 %v1867, %v1859
    %v2492 = vpack.c.b16 %v1868, %v1860
    %v2493 = vpack.c.b16 %v1869, %v1861
    %v2494 = vpack.c.b16 %v1870, %v1862
    %v2495 = vpack.c.b16 %v1871, %v1863
    %v2496 = vpack.c.b16 %v1872, %v1864
    %v2497 = vpack.c.b16 %v1873, %v1865
    %v2498 = vpack.c.b16 %v1882, %v1874
    %v2499 = vpack.c.b16 %v1883, %v1875
    %v2500 = vpack.c.b16 %v1884, %v1876
    %v2501 = vpack.c.b16 %v1885, %v1877
    %v2502 = vpack.c.b16 %v1886, %v1878
    %v2503 = vpack.c.b16 %v1887, %v1879
    %v2504 = vpack.c.b16 %v1888, %v1880
    %v2505 = vpack.c.b16 %v1889, %v1881
    %v2506 = vpack.c.b16 %v1898, %v1890
    %v2507 = vpack.c.b16 %v1899, %v1891
    %v2508 = vpack.c.b16 %v1900, %v1892
    %v2509 = vpack.c.b16 %v1901, %v1893
    %v2510 = vpack.c.b16 %v1902, %v1894
    %v2511 = vpack.c.b16 %v1903, %v1895
    %v2512 = vpack.c.b16 %v1904, %v1896
    %v2513 = vpack.c.b16 %v1905, %v1897
    %v2514 = vpack.c.b16 %v1914, %v1906
    %v2515 = vpack.c.b16 %v1915, %v1907
    %v2516 = vpack.c.b16 %v1916, %v1908
    %v2517 = vpack.c.b16 %v1917, %v1909
    %v2518 = vpack.c.b16 %v1918, %v1910
    %v2519 = vpack.c.b16 %v1919, %v1911
    %v2520 = vpack.c.b16 %v1920, %v1912
    %v2521 = vpack.c.b16 %v1921, %v1913
    %v2522 = vpack.c.b16 %v1930, %v1922
    %v2523 = vpack.c.b16 %v1931, %v1923
    %v2524 = vpack.c.b16 %v1932, %v1924
    %v2525 = vpack.c.b16 %v1933, %v1925
    %v2526 = vpack.c.b16 %v1934, %v1926
    %v2527 = vpack.c.b16 %v1935, %v1927
    %v2528 = vpack.c.b16 %v1936, %v1928
    %v2529 = vpack.c.b16 %v1937, %v1929
    %v2530 = vpack.c.b16 %v1946, %v1938
    %v2531 = vpack.c.b16 %v1947, %v1939
    %v2532 = vpack.c.b16 %v1948, %v1940
    %v2533 = vpack.c.b16 %v1949, %v1941
    %v2534 = vpack.c.b16 %v1950, %v1942
    %v2535 = vpack.c.b16 %v1951, %v1943
    %v2536 = vpack.c.b16 %v1952, %v1944
    %v2537 = vpack.c.b16 %v1953, %v1945
    %v2538 = vpack.c.b16 %v1962, %v1954
    %v2539 = vpack.c.b16 %v1963, %v1955
    %v2540 = vpack.c.b16 %v1964, %v1956
    %v2541 = vpack.c.b16 %v1965, %v1957
    %v2542 = vpack.c.b16 %v1966, %v1958
    %v2543 = vpack.c.b16 %v1967, %v1959
    %v2544 = vpack.c.b16 %v1968, %v1960
    %v2545 = vpack.c.b16 %v1969, %v1961
    %v2546 = vpack.c.b16 %v1978, %v1970
    %v2547 = vpack.c.b16 %v1979, %v1971
    %v2548 = vpack.c.b16 %v1980, %v1972
    %v2549 = vpack.c.b16 %v1981, %v1973
    %v2550 = vpack.c.b16 %v1982, %v1974
    %v2551 = vpack.c.b16 %v1983, %v1975
    %v2552 = vpack.c.b16 %v1984, %v1976
    %v2553 = vpack.c.b16 %v1985, %v1977
    %v2554 = vpack.c.b16 %v1994, %v1986
    %v2555 = vpack.c.b16 %v1995, %v1987
    %v2556 = vpack.c.b16 %v1996, %v1988
    %v2557 = vpack.c.b16 %v1997, %v1989
    %v2558 = vpack.c.b16 %v1998, %v1990
    %v2559 = vpack.c.b16 %v1999, %v1991
    %v2560 = vpack.c.b16 %v2000, %v1992
    %v2561 = vpack.c.b16 %v2001, %v1993
    %v2562 = vpack.c.b16 %v2010, %v2002
    %v2563 = vpack.c.b16 %v2011, %v2003
    %v2564 = vpack.c.b16 %v2012, %v2004
    %v2565 = vpack.c.b16 %v2013, %v2005
    %v2566 = vpack.c.b16 %v2014, %v2006
    %v2567 = vpack.c.b16 %v2015, %v2007
    %v2568 = vpack.c.b16 %v2016, %v2008
    %v2569 = vpack.c.b16 %v2017, %v2009
    %v2570 = vpack.c.b16 %v2026, %v2018
    %v2571 = vpack.c.b16 %v2027, %v2019
    %v2572 = vpack.c.b16 %v2028, %v2020
    %v2573 = vpack.c.b16 %v2029, %v2021
    %v2574 = vpack.c.b16 %v2030, %v2022
    %v2575 = vpack.c.b16 %v2031, %v2023
    %v2576 = vpack.c.b16 %v2032, %v2024
    %v2577 = vpack.c.b16 %v2033, %v2025
    %v2578 = vpack.c.b16 %v2042, %v2034
    %v2579 = vpack.c.b16 %v2043, %v2035
    %v2580 = vpack.c.b16 %v2044, %v2036
    %v2581 = vpack.c.b16 %v2045, %v2037
    %v2582 = vpack.c.b16 %v2046, %v2038
    %v2583 = vpack.c.b16 %v2047, %v2039
    %v2584 = vpack.c.b16 %v2048, %v2040
    %v2585 = vpack.c.b16 %v2049, %v2041
    %v2586 = vpack.c.b16 %v2058, %v2050
    %v2587 = vpack.c.b16 %v2059, %v2051
    %v2588 = vpack.c.b16 %v2060, %v2052
    %v2589 = vpack.c.b16 %v2061, %v2053
    %v2590 = vpack.c.b16 %v2062, %v2054
    %v2591 = vpack.c.b16 %v2063, %v2055
    %v2592 = vpack.c.b16 %v2064, %v2056
    %v2593 = vpack.c.b16 %v2065, %v2057
    %v2594 = vpack.c.b16 %v2074, %v2066
    %v2595 = vpack.c.b16 %v2075, %v2067
    %v2596 = vpack.c.b16 %v2076, %v2068
    %v2597 = vpack.c.b16 %v2077, %v2069
    %v2598 = vpack.c.b16 %v2078, %v2070
    %v2599 = vpack.c.b16 %v2079, %v2071
    %v2600 = vpack.c.b16 %v2080, %v2072
    %v2601 = vpack.c.b16 %v2081, %v2073
    %v2602 = vpack.c.b16 %v2090, %v2082
    %v2603 = vpack.c.b16 %v2091, %v2083
    %v2604 = vpack.c.b16 %v2092, %v2084
    %v2605 = vpack.c.b16 %v2093, %v2085
    %v2606 = vpack.c.b16 %v2094, %v2086
    %v2607 = vpack.c.b16 %v2095, %v2087
    %v2608 = vpack.c.b16 %v2096, %v2088
    %v2609 = vpack.c.b16 %v2097, %v2089
    %v2610 = vpack.c.b16 %v2106, %v2098
    %v2611 = vpack.c.b16 %v2107, %v2099
    %v2612 = vpack.c.b16 %v2108, %v2100
    %v2613 = vpack.c.b16 %v2109, %v2101
    %v2614 = vpack.c.b16 %v2110, %v2102
    %v2615 = vpack.c.b16 %v2111, %v2103
    %v2616 = vpack.c.b16 %v2112, %v2104
    %v2617 = vpack.c.b16 %v2113, %v2105
    %v2618 = vpack.c.b16 %v2122, %v2114
    %v2619 = vpack.c.b16 %v2123, %v2115
    %v2620 = vpack.c.b16 %v2124, %v2116
    %v2621 = vpack.c.b16 %v2125, %v2117
    %v2622 = vpack.c.b16 %v2126, %v2118
    %v2623 = vpack.c.b16 %v2127, %v2119
    %v2624 = vpack.c.b16 %v2128, %v2120
    %v2625 = vpack.c.b16 %v2129, %v2121
    %v2626 = vpack.c.b16 %v2138, %v2130
    %v2627 = vpack.c.b16 %v2139, %v2131
    %v2628 = vpack.c.b16 %v2140, %v2132
    %v2629 = vpack.c.b16 %v2141, %v2133
    %v2630 = vpack.c.b16 %v2142, %v2134
    %v2631 = vpack.c.b16 %v2143, %v2135
    %v2632 = vpack.c.b16 %v2144, %v2136
    %v2633 = vpack.c.b16 %v2145, %v2137
    %v2634 = vpack.c.b16 %v2154, %v2146
    %v2635 = vpack.c.b16 %v2155, %v2147
    %v2636 = vpack.c.b16 %v2156, %v2148
    %v2637 = vpack.c.b16 %v2157, %v2149
    %v2638 = vpack.c.b16 %v2158, %v2150
    %v2639 = vpack.c.b16 %v2159, %v2151
    %v2640 = vpack.c.b16 %v2160, %v2152
    %v2641 = vpack.c.b16 %v2161, %v2153
    %v2642 = vpack.c.b16 %v2170, %v2162
    %v2643 = vpack.c.b16 %v2171, %v2163
    %v2644 = vpack.c.b16 %v2172, %v2164
    %v2645 = vpack.c.b16 %v2173, %v2165
    %v2646 = vpack.c.b16 %v2174, %v2166
    %v2647 = vpack.c.b16 %v2175, %v2167
    %v2648 = vpack.c.b16 %v2176, %v2168
    %v2649 = vpack.c.b16 %v2177, %v2169
    %v2650 = vpack.c.b16 %v2186, %v2178
    %v2651 = vpack.c.b16 %v2187, %v2179
    %v2652 = vpack.c.b16 %v2188, %v2180
    %v2653 = vpack.c.b16 %v2189, %v2181
    %v2654 = vpack.c.b16 %v2190, %v2182
    %v2655 = vpack.c.b16 %v2191, %v2183
    %v2656 = vpack.c.b16 %v2192, %v2184
    %v2657 = vpack.c.b16 %v2193, %v2185
    %v2658 = vpack.c.b16 %v2202, %v2194
    %v2659 = vpack.c.b16 %v2203, %v2195
    %v2660 = vpack.c.b16 %v2204, %v2196
    %v2661 = vpack.c.b16 %v2205, %v2197
    %v2662 = vpack.c.b16 %v2206, %v2198
    %v2663 = vpack.c.b16 %v2207, %v2199
    %v2664 = vpack.c.b16 %v2208, %v2200
    %v2665 = vpack.c.b16 %v2209, %v2201
    %v2666 = vpack.c.b16 %v2218, %v2210
    %v2667 = vpack.c.b16 %v2219, %v2211
    %v2668 = vpack.c.b16 %v2220, %v2212
    %v2669 = vpack.c.b16 %v2221, %v2213
    %v2670 = vpack.c.b16 %v2222, %v2214
    %v2671 = vpack.c.b16 %v2223, %v2215
    %v2672 = vpack.c.b16 %v2224, %v2216
    %v2673 = vpack.c.b16 %v2225, %v2217
    %v2674 = vpack.c.b16 %v2234, %v2226
    %v2675 = vpack.c.b16 %v2235, %v2227
    %v2676 = vpack.c.b16 %v2236, %v2228
    %v2677 = vpack.c.b16 %v2237, %v2229
    %v2678 = vpack.c.b16 %v2238, %v2230
    %v2679 = vpack.c.b16 %v2239, %v2231
    %v2680 = vpack.c.b16 %v2240, %v2232
    %v2681 = vpack.c.b16 %v2241, %v2233
    %v2682 = vpack.c.b16 %v2250, %v2242
    %v2683 = vpack.c.b16 %v2251, %v2243
    %v2684 = vpack.c.b16 %v2252, %v2244
    %v2685 = vpack.c.b16 %v2253, %v2245
    %v2686 = vpack.c.b16 %v2254, %v2246
    %v2687 = vpack.c.b16 %v2255, %v2247
    %v2688 = vpack.c.b16 %v2256, %v2248
    %v2689 = vpack.c.b16 %v2257, %v2249
    %v2690 = vpack.c.b16 %v2266, %v2258
    %v2691 = vpack.c.b16 %v2267, %v2259
    %v2692 = vpack.c.b16 %v2268, %v2260
    %v2693 = vpack.c.b16 %v2269, %v2261
    %v2694 = vpack.c.b16 %v2270, %v2262
    %v2695 = vpack.c.b16 %v2271, %v2263
    %v2696 = vpack.c.b16 %v2272, %v2264
    %v2697 = vpack.c.b16 %v2273, %v2265
    %v2698 = vpack.c.b16 %v2282, %v2274
    %v2699 = vpack.c.b16 %v2283, %v2275
    %v2700 = vpack.c.b16 %v2284, %v2276
    %v2701 = vpack.c.b16 %v2285, %v2277
    %v2702 = vpack.c.b16 %v2286, %v2278
    %v2703 = vpack.c.b16 %v2287, %v2279
    %v2704 = vpack.c.b16 %v2288, %v2280
    %v2705 = vpack.c.b16 %v2289, %v2281
    %v2706 = vpack.c.b16 %v2298, %v2290
    %v2707 = vpack.c.b16 %v2299, %v2291
    %v2708 = vpack.c.b16 %v2300, %v2292
    %v2709 = vpack.c.b16 %v2301, %v2293
    %v2710 = vpack.c.b16 %v2302, %v2294
    %v2711 = vpack.c.b16 %v2303, %v2295
    %v2712 = vpack.c.b16 %v2304, %v2296
    %v2713 = vpack.c.b16 %v2305, %v2297
    %v2714 = vpack.c.b16 %v2314, %v2306
    %v2715 = vpack.c.b16 %v2315, %v2307
    %v2716 = vpack.c.b16 %v2316, %v2308
    %v2717 = vpack.c.b16 %v2317, %v2309
    %v2718 = vpack.c.b16 %v2318, %v2310
    %v2719 = vpack.c.b16 %v2319, %v2311
    %v2720 = vpack.c.b16 %v2320, %v2312
    %v2721 = vpack.c.b16 %v2321, %v2313
    %v2722 = vpack.c.b16 %v2330, %v2322
    %v2723 = vpack.c.b16 %v2331, %v2323
    %v2724 = vpack.c.b16 %v2332, %v2324
    %v2725 = vpack.c.b16 %v2333, %v2325
    %v2726 = vpack.c.b16 %v2334, %v2326
    %v2727 = vpack.c.b16 %v2335, %v2327
    %v2728 = vpack.c.b16 %v2336, %v2328
    %v2729 = vpack.c.b16 %v2337, %v2329
    %v2730 = vpack.c.b16 %v2346, %v2338
    %v2731 = vpack.c.b16 %v2347, %v2339
    %v2732 = vpack.c.b16 %v2348, %v2340
    %v2733 = vpack.c.b16 %v2349, %v2341
    %v2734 = vpack.c.b16 %v2350, %v2342
    %v2735 = vpack.c.b16 %v2351, %v2343
    %v2736 = vpack.c.b16 %v2352, %v2344
    %v2737 = vpack.c.b16 %v2353, %v2345
    %3122 = vmatpush.bf16.msra.mxu0 %v2410
    %3123 = vmatpush.bf16.msra.mxu0 %v2402
    %3124 = vmatpush.bf16.msra.mxu0 %v2394
    %3125 = vmatpush.bf16.msra.mxu0 %v2386
    %3126 = vmatpush.bf16.msra.mxu0 %v2378
    %3127 = vmatpush.bf16.msra.mxu0 %v2370
    %3128 = vmatpush.bf16.msra.mxu0 %v2362
    %3129 = vmatpush.bf16.msra.mxu0 %v2354
    %3130 = vmatmul.bf16.gmra.mxu0 %v1190
    %v3131 = vpop.f32.mrf.mxu0
    %v3132 = vadd.f32 0.0, %v3131
    %v3133 = vpop.f32.mrf.mxu0
    %v3134 = vadd.f32 0.0, %v3133
    %3135 = vdwg.mxu0
    %3136 = vmatpush.bf16.msra.mxu0 %v2474
    %3137 = vmatpush.bf16.msra.mxu0 %v2466
    %3138 = vmatpush.bf16.msra.mxu0 %v2458
    %3139 = vmatpush.bf16.msra.mxu0 %v2450
    %3140 = vmatpush.bf16.msra.mxu0 %v2442
    %3141 = vmatpush.bf16.msra.mxu0 %v2434
    %3142 = vmatpush.bf16.msra.mxu0 %v2426
    %3143 = vmatpush.bf16.msra.mxu0 %v2418
    %3144 = vmatmul.bf16.gmra.mxu0 %v1191
    %v3145 = vpop.f32.mrf.mxu0
    %v3146 = vadd.f32 %v3132, %v3145
    %v3147 = vpop.f32.mrf.mxu0
    %v3148 = vadd.f32 %v3134, %v3147
    %3149 = vdwg.mxu0
    %3150 = vmatpush.bf16.msra.mxu0 %v2538
    %3151 = vmatpush.bf16.msra.mxu0 %v2530
    %3152 = vmatpush.bf16.msra.mxu0 %v2522
    %3153 = vmatpush.bf16.msra.mxu0 %v2514
    %3154 = vmatpush.bf16.msra.mxu0 %v2506
    %3155 = vmatpush.bf16.msra.mxu0 %v2498
    %3156 = vmatpush.bf16.msra.mxu0 %v2490
    %3157 = vmatpush.bf16.msra.mxu0 %v2482
    %3158 = vmatmul.bf16.gmra.mxu0 %v1192
    %v3159 = vpop.f32.mrf.mxu0
    %v3160 = vadd.f32 %v3146, %v3159
    %v3161 = vpop.f32.mrf.mxu0
    %v3162 = vadd.f32 %v3148, %v3161
    %3163 = vdwg.mxu0
    %3164 = vmatpush.bf16.msra.mxu0 %v2602
    %3165 = vmatpush.bf16.msra.mxu0 %v2594
    %3166 = vmatpush.bf16.msra.mxu0 %v2586
    %3167 = vmatpush.bf16.msra.mxu0 %v2578
    %3168 = vmatpush.bf16.msra.mxu0 %v2570
    %3169 = vmatpush.bf16.msra.mxu0 %v2562
    %3170 = vmatpush.bf16.msra.mxu0 %v2554
    %3171 = vmatpush.bf16.msra.mxu0 %v2546
    %3172 = vmatmul.bf16.gmra.mxu0 %v1193
    %v3173 = vpop.f32.mrf.mxu0
    %v3174 = vadd.f32 %v3160, %v3173
    %v3175 = vpop.f32.mrf.mxu0
    %v3176 = vadd.f32 %v3162, %v3175
    %3177 = vdwg.mxu0
    %3178 = vmatpush.bf16.msra.mxu0 %v2666
    %3179 = vmatpush.bf16.msra.mxu0 %v2658
    %3180 = vmatpush.bf16.msra.mxu0 %v2650
    %3181 = vmatpush.bf16.msra.mxu0 %v2642
    %3182 = vmatpush.bf16.msra.mxu0 %v2634
    %3183 = vmatpush.bf16.msra.mxu0 %v2626
    %3184 = vmatpush.bf16.msra.mxu0 %v2618
    %3185 = vmatpush.bf16.msra.mxu0 %v2610
    %3186 = vmatmul.bf16.gmra.mxu0 %v1194
    %v3187 = vpop.f32.mrf.mxu0
    %v3188 = vadd.f32 %v3174, %v3187
    %v3189 = vpop.f32.mrf.mxu0
    %v3190 = vadd.f32 %v3176, %v3189
    %3191 = vdwg.mxu0
    %3192 = vmatpush.bf16.msra.mxu0 %v2730
    %3193 = vmatpush.bf16.msra.mxu0 %v2722
    %3194 = vmatpush.bf16.msra.mxu0 %v2714
    %3195 = vmatpush.bf16.msra.mxu0 %v2706
    %3196 = vmatpush.bf16.msra.mxu0 %v2698
    %3197 = vmatpush.bf16.msra.mxu0 %v2690
    %3198 = vmatpush.bf16.msra.mxu0 %v2682
    %3199 = vmatpush.bf16.msra.mxu0 %v2674
    %3200 = vmatmul.bf16.gmra.mxu0 %v1195
    %v3201 = vpop.f32.mrf.mxu0
    %v3202 = vadd.f32 %v3188, %v3201
    %v3203 = vpop.f32.mrf.mxu0
    %v3204 = vadd.f32 %v3190, %v3203
    %3205 = vdwg.mxu0
    %3206 = vmatpush.bf16.msra.mxu0 %v2411
    %3207 = vmatpush.bf16.msra.mxu0 %v2403
    %3208 = vmatpush.bf16.msra.mxu0 %v2395
    %3209 = vmatpush.bf16.msra.mxu0 %v2387
    %3210 = vmatpush.bf16.msra.mxu0 %v2379
    %3211 = vmatpush.bf16.msra.mxu0 %v2371
    %3212 = vmatpush.bf16.msra.mxu0 %v2363
    %3213 = vmatpush.bf16.msra.mxu0 %v2355
    %3214 = vmatmul.bf16.gmra.mxu0 %v1190
    %v3215 = vpop.f32.mrf.mxu0
    %v3216 = vadd.f32 0.0, %v3215
    %v3217 = vpop.f32.mrf.mxu0
    %v3218 = vadd.f32 0.0, %v3217
    %3219 = vdwg.mxu0
    %3220 = vmatpush.bf16.msra.mxu0 %v2475
    %3221 = vmatpush.bf16.msra.mxu0 %v2467
    %3222 = vmatpush.bf16.msra.mxu0 %v2459
    %3223 = vmatpush.bf16.msra.mxu0 %v2451
    %3224 = vmatpush.bf16.msra.mxu0 %v2443
    %3225 = vmatpush.bf16.msra.mxu0 %v2435
    %3226 = vmatpush.bf16.msra.mxu0 %v2427
    %3227 = vmatpush.bf16.msra.mxu0 %v2419
    %3228 = vmatmul.bf16.gmra.mxu0 %v1191
    %v3229 = vpop.f32.mrf.mxu0
    %v3230 = vadd.f32 %v3216, %v3229
    %v3231 = vpop.f32.mrf.mxu0
    %v3232 = vadd.f32 %v3218, %v3231
    %3233 = vdwg.mxu0
    %3234 = vmatpush.bf16.msra.mxu0 %v2539
    %3235 = vmatpush.bf16.msra.mxu0 %v2531
    %3236 = vmatpush.bf16.msra.mxu0 %v2523
    %3237 = vmatpush.bf16.msra.mxu0 %v2515
    %3238 = vmatpush.bf16.msra.mxu0 %v2507
    %3239 = vmatpush.bf16.msra.mxu0 %v2499
    %3240 = vmatpush.bf16.msra.mxu0 %v2491
    %3241 = vmatpush.bf16.msra.mxu0 %v2483
    %3242 = vmatmul.bf16.gmra.mxu0 %v1192
    %v3243 = vpop.f32.mrf.mxu0
    %v3244 = vadd.f32 %v3230, %v3243
    %v3245 = vpop.f32.mrf.mxu0
    %v3246 = vadd.f32 %v3232, %v3245
    %3247 = vdwg.mxu0
    %3248 = vmatpush.bf16.msra.mxu0 %v2603
    %3249 = vmatpush.bf16.msra.mxu0 %v2595
    %3250 = vmatpush.bf16.msra.mxu0 %v2587
    %3251 = vmatpush.bf16.msra.mxu0 %v2579
    %3252 = vmatpush.bf16.msra.mxu0 %v2571
    %3253 = vmatpush.bf16.msra.mxu0 %v2563
    %3254 = vmatpush.bf16.msra.mxu0 %v2555
    %3255 = vmatpush.bf16.msra.mxu0 %v2547
    %3256 = vmatmul.bf16.gmra.mxu0 %v1193
    %v3257 = vpop.f32.mrf.mxu0
    %v3258 = vadd.f32 %v3244, %v3257
    %v3259 = vpop.f32.mrf.mxu0
    %v3260 = vadd.f32 %v3246, %v3259
    %3261 = vdwg.mxu0
    %3262 = vmatpush.bf16.msra.mxu0 %v2667
    %3263 = vmatpush.bf16.msra.mxu0 %v2659
    %3264 = vmatpush.bf16.msra.mxu0 %v2651
    %3265 = vmatpush.bf16.msra.mxu0 %v2643
    %3266 = vmatpush.bf16.msra.mxu0 %v2635
    %3267 = vmatpush.bf16.msra.mxu0 %v2627
    %3268 = vmatpush.bf16.msra.mxu0 %v2619
    %3269 = vmatpush.bf16.msra.mxu0 %v2611
    %3270 = vmatmul.bf16.gmra.mxu0 %v1194
    %v3271 = vpop.f32.mrf.mxu0
    %v3272 = vadd.f32 %v3258, %v3271
    %v3273 = vpop.f32.mrf.mxu0
    %v3274 = vadd.f32 %v3260, %v3273
    %3275 = vdwg.mxu0
    %3276 = vmatpush.bf16.msra.mxu0 %v2731
    %3277 = vmatpush.bf16.msra.mxu0 %v2723
    %3278 = vmatpush.bf16.msra.mxu0 %v2715
    %3279 = vmatpush.bf16.msra.mxu0 %v2707
    %3280 = vmatpush.bf16.msra.mxu0 %v2699
    %3281 = vmatpush.bf16.msra.mxu0 %v2691
    %3282 = vmatpush.bf16.msra.mxu0 %v2683
    %3283 = vmatpush.bf16.msra.mxu0 %v2675
    %3284 = vmatmul.bf16.gmra.mxu0 %v1195
    %v3285 = vpop.f32.mrf.mxu0
    %v3286 = vadd.f32 %v3272, %v3285
    %v3287 = vpop.f32.mrf.mxu0
    %v3288 = vadd.f32 %v3274, %v3287
    %3289 = vdwg.mxu0
    %3290 = vmatpush.bf16.msra.mxu0 %v2412
    %3291 = vmatpush.bf16.msra.mxu0 %v2404
    %3292 = vmatpush.bf16.msra.mxu0 %v2396
    %3293 = vmatpush.bf16.msra.mxu0 %v2388
    %3294 = vmatpush.bf16.msra.mxu0 %v2380
    %3295 = vmatpush.bf16.msra.mxu0 %v2372
    %3296 = vmatpush.bf16.msra.mxu0 %v2364
    %3297 = vmatpush.bf16.msra.mxu0 %v2356
    %3298 = vmatmul.bf16.gmra.mxu0 %v1190
    %v3299 = vpop.f32.mrf.mxu0
    %v3300 = vadd.f32 0.0, %v3299
    %v3301 = vpop.f32.mrf.mxu0
    %v3302 = vadd.f32 0.0, %v3301
    %3303 = vdwg.mxu0
    %3304 = vmatpush.bf16.msra.mxu0 %v2476
    %3305 = vmatpush.bf16.msra.mxu0 %v2468
    %3306 = vmatpush.bf16.msra.mxu0 %v2460
    %3307 = vmatpush.bf16.msra.mxu0 %v2452
    %3308 = vmatpush.bf16.msra.mxu0 %v2444
    %3309 = vmatpush.bf16.msra.mxu0 %v2436
    %3310 = vmatpush.bf16.msra.mxu0 %v2428
    %3311 = vmatpush.bf16.msra.mxu0 %v2420
    %3312 = vmatmul.bf16.gmra.mxu0 %v1191
    %v3313 = vpop.f32.mrf.mxu0
    %v3314 = vadd.f32 %v3300, %v3313
    %v3315 = vpop.f32.mrf.mxu0
    %v3316 = vadd.f32 %v3302, %v3315
    %3317 = vdwg.mxu0
    %3318 = vmatpush.bf16.msra.mxu0 %v2540
    %3319 = vmatpush.bf16.msra.mxu0 %v2532
    %3320 = vmatpush.bf16.msra.mxu0 %v2524
    %3321 = vmatpush.bf16.msra.mxu0 %v2516
    %3322 = vmatpush.bf16.msra.mxu0 %v2508
    %3323 = vmatpush.bf16.msra.mxu0 %v2500
    %3324 = vmatpush.bf16.msra.mxu0 %v2492
    %3325 = vmatpush.bf16.msra.mxu0 %v2484
    %3326 = vmatmul.bf16.gmra.mxu0 %v1192
    %v3327 = vpop.f32.mrf.mxu0
    %v3328 = vadd.f32 %v3314, %v3327
    %v3329 = vpop.f32.mrf.mxu0
    %v3330 = vadd.f32 %v3316, %v3329
    %3331 = vdwg.mxu0
    %3332 = vmatpush.bf16.msra.mxu0 %v2604
    %3333 = vmatpush.bf16.msra.mxu0 %v2596
    %3334 = vmatpush.bf16.msra.mxu0 %v2588
    %3335 = vmatpush.bf16.msra.mxu0 %v2580
    %3336 = vmatpush.bf16.msra.mxu0 %v2572
    %3337 = vmatpush.bf16.msra.mxu0 %v2564
    %3338 = vmatpush.bf16.msra.mxu0 %v2556
    %3339 = vmatpush.bf16.msra.mxu0 %v2548
    %3340 = vmatmul.bf16.gmra.mxu0 %v1193
    %v3341 = vpop.f32.mrf.mxu0
    %v3342 = vadd.f32 %v3328, %v3341
    %v3343 = vpop.f32.mrf.mxu0
    %v3344 = vadd.f32 %v3330, %v3343
    %3345 = vdwg.mxu0
    %3346 = vmatpush.bf16.msra.mxu0 %v2668
    %3347 = vmatpush.bf16.msra.mxu0 %v2660
    %3348 = vmatpush.bf16.msra.mxu0 %v2652
    %3349 = vmatpush.bf16.msra.mxu0 %v2644
    %3350 = vmatpush.bf16.msra.mxu0 %v2636
    %3351 = vmatpush.bf16.msra.mxu0 %v2628
    %3352 = vmatpush.bf16.msra.mxu0 %v2620
    %3353 = vmatpush.bf16.msra.mxu0 %v2612
    %3354 = vmatmul.bf16.gmra.mxu0 %v1194
    %v3355 = vpop.f32.mrf.mxu0
    %v3356 = vadd.f32 %v3342, %v3355
    %v3357 = vpop.f32.mrf.mxu0
    %v3358 = vadd.f32 %v3344, %v3357
    %3359 = vdwg.mxu0
    %3360 = vmatpush.bf16.msra.mxu0 %v2732
    %3361 = vmatpush.bf16.msra.mxu0 %v2724
    %3362 = vmatpush.bf16.msra.mxu0 %v2716
    %3363 = vmatpush.bf16.msra.mxu0 %v2708
    %3364 = vmatpush.bf16.msra.mxu0 %v2700
    %3365 = vmatpush.bf16.msra.mxu0 %v2692
    %3366 = vmatpush.bf16.msra.mxu0 %v2684
    %3367 = vmatpush.bf16.msra.mxu0 %v2676
    %3368 = vmatmul.bf16.gmra.mxu0 %v1195
    %v3369 = vpop.f32.mrf.mxu0
    %v3370 = vadd.f32 %v3356, %v3369
    %v3371 = vpop.f32.mrf.mxu0
    %v3372 = vadd.f32 %v3358, %v3371
    %3373 = vdwg.mxu0
    %3374 = vmatpush.bf16.msra.mxu0 %v2413
    %3375 = vmatpush.bf16.msra.mxu0 %v2405
    %3376 = vmatpush.bf16.msra.mxu0 %v2397
    %3377 = vmatpush.bf16.msra.mxu0 %v2389
    %3378 = vmatpush.bf16.msra.mxu0 %v2381
    %3379 = vmatpush.bf16.msra.mxu0 %v2373
    %3380 = vmatpush.bf16.msra.mxu0 %v2365
    %3381 = vmatpush.bf16.msra.mxu0 %v2357
    %3382 = vmatmul.bf16.gmra.mxu0 %v1190
    %v3383 = vpop.f32.mrf.mxu0
    %v3384 = vadd.f32 0.0, %v3383
    %v3385 = vpop.f32.mrf.mxu0
    %v3386 = vadd.f32 0.0, %v3385
    %3387 = vdwg.mxu0
    %3388 = vmatpush.bf16.msra.mxu0 %v2477
    %3389 = vmatpush.bf16.msra.mxu0 %v2469
    %3390 = vmatpush.bf16.msra.mxu0 %v2461
    %3391 = vmatpush.bf16.msra.mxu0 %v2453
    %3392 = vmatpush.bf16.msra.mxu0 %v2445
    %3393 = vmatpush.bf16.msra.mxu0 %v2437
    %3394 = vmatpush.bf16.msra.mxu0 %v2429
    %3395 = vmatpush.bf16.msra.mxu0 %v2421
    %3396 = vmatmul.bf16.gmra.mxu0 %v1191
    %v3397 = vpop.f32.mrf.mxu0
    %v3398 = vadd.f32 %v3384, %v3397
    %v3399 = vpop.f32.mrf.mxu0
    %v3400 = vadd.f32 %v3386, %v3399
    %3401 = vdwg.mxu0
    %3402 = vmatpush.bf16.msra.mxu0 %v2541
    %3403 = vmatpush.bf16.msra.mxu0 %v2533
    %3404 = vmatpush.bf16.msra.mxu0 %v2525
    %3405 = vmatpush.bf16.msra.mxu0 %v2517
    %3406 = vmatpush.bf16.msra.mxu0 %v2509
    %3407 = vmatpush.bf16.msra.mxu0 %v2501
    %3408 = vmatpush.bf16.msra.mxu0 %v2493
    %3409 = vmatpush.bf16.msra.mxu0 %v2485
    %3410 = vmatmul.bf16.gmra.mxu0 %v1192
    %v3411 = vpop.f32.mrf.mxu0
    %v3412 = vadd.f32 %v3398, %v3411
    %v3413 = vpop.f32.mrf.mxu0
    %v3414 = vadd.f32 %v3400, %v3413
    %3415 = vdwg.mxu0
    %3416 = vmatpush.bf16.msra.mxu0 %v2605
    %3417 = vmatpush.bf16.msra.mxu0 %v2597
    %3418 = vmatpush.bf16.msra.mxu0 %v2589
    %3419 = vmatpush.bf16.msra.mxu0 %v2581
    %3420 = vmatpush.bf16.msra.mxu0 %v2573
    %3421 = vmatpush.bf16.msra.mxu0 %v2565
    %3422 = vmatpush.bf16.msra.mxu0 %v2557
    %3423 = vmatpush.bf16.msra.mxu0 %v2549
    %3424 = vmatmul.bf16.gmra.mxu0 %v1193
    %v3425 = vpop.f32.mrf.mxu0
    %v3426 = vadd.f32 %v3412, %v3425
    %v3427 = vpop.f32.mrf.mxu0
    %v3428 = vadd.f32 %v3414, %v3427
    %3429 = vdwg.mxu0
    %3430 = vmatpush.bf16.msra.mxu0 %v2669
    %3431 = vmatpush.bf16.msra.mxu0 %v2661
    %3432 = vmatpush.bf16.msra.mxu0 %v2653
    %3433 = vmatpush.bf16.msra.mxu0 %v2645
    %3434 = vmatpush.bf16.msra.mxu0 %v2637
    %3435 = vmatpush.bf16.msra.mxu0 %v2629
    %3436 = vmatpush.bf16.msra.mxu0 %v2621
    %3437 = vmatpush.bf16.msra.mxu0 %v2613
    %3438 = vmatmul.bf16.gmra.mxu0 %v1194
    %v3439 = vpop.f32.mrf.mxu0
    %v3440 = vadd.f32 %v3426, %v3439
    %v3441 = vpop.f32.mrf.mxu0
    %v3442 = vadd.f32 %v3428, %v3441
    %3443 = vdwg.mxu0
    %3444 = vmatpush.bf16.msra.mxu0 %v2733
    %3445 = vmatpush.bf16.msra.mxu0 %v2725
    %3446 = vmatpush.bf16.msra.mxu0 %v2717
    %3447 = vmatpush.bf16.msra.mxu0 %v2709
    %3448 = vmatpush.bf16.msra.mxu0 %v2701
    %3449 = vmatpush.bf16.msra.mxu0 %v2693
    %3450 = vmatpush.bf16.msra.mxu0 %v2685
    %3451 = vmatpush.bf16.msra.mxu0 %v2677
    %3452 = vmatmul.bf16.gmra.mxu0 %v1195
    %v3453 = vpop.f32.mrf.mxu0
    %v3454 = vadd.f32 %v3440, %v3453
    %v3455 = vpop.f32.mrf.mxu0
    %v3456 = vadd.f32 %v3442, %v3455
    %3457 = vdwg.mxu0
    %3458 = vmatpush.bf16.msra.mxu0 %v2414
    %3459 = vmatpush.bf16.msra.mxu0 %v2406
    %3460 = vmatpush.bf16.msra.mxu0 %v2398
    %3461 = vmatpush.bf16.msra.mxu0 %v2390
    %3462 = vmatpush.bf16.msra.mxu0 %v2382
    %3463 = vmatpush.bf16.msra.mxu0 %v2374
    %3464 = vmatpush.bf16.msra.mxu0 %v2366
    %3465 = vmatpush.bf16.msra.mxu0 %v2358
    %3466 = vmatmul.bf16.gmra.mxu0 %v1190
    %v3467 = vpop.f32.mrf.mxu0
    %v3468 = vadd.f32 0.0, %v3467
    %v3469 = vpop.f32.mrf.mxu0
    %v3470 = vadd.f32 0.0, %v3469
    %3471 = vdwg.mxu0
    %3472 = vmatpush.bf16.msra.mxu0 %v2478
    %3473 = vmatpush.bf16.msra.mxu0 %v2470
    %3474 = vmatpush.bf16.msra.mxu0 %v2462
    %3475 = vmatpush.bf16.msra.mxu0 %v2454
    %3476 = vmatpush.bf16.msra.mxu0 %v2446
    %3477 = vmatpush.bf16.msra.mxu0 %v2438
    %3478 = vmatpush.bf16.msra.mxu0 %v2430
    %3479 = vmatpush.bf16.msra.mxu0 %v2422
    %3480 = vmatmul.bf16.gmra.mxu0 %v1191
    %v3481 = vpop.f32.mrf.mxu0
    %v3482 = vadd.f32 %v3468, %v3481
    %v3483 = vpop.f32.mrf.mxu0
    %v3484 = vadd.f32 %v3470, %v3483
    %3485 = vdwg.mxu0
    %3486 = vmatpush.bf16.msra.mxu0 %v2542
    %3487 = vmatpush.bf16.msra.mxu0 %v2534
    %3488 = vmatpush.bf16.msra.mxu0 %v2526
    %3489 = vmatpush.bf16.msra.mxu0 %v2518
    %3490 = vmatpush.bf16.msra.mxu0 %v2510
    %3491 = vmatpush.bf16.msra.mxu0 %v2502
    %3492 = vmatpush.bf16.msra.mxu0 %v2494
    %3493 = vmatpush.bf16.msra.mxu0 %v2486
    %3494 = vmatmul.bf16.gmra.mxu0 %v1192
    %v3495 = vpop.f32.mrf.mxu0
    %v3496 = vadd.f32 %v3482, %v3495
    %v3497 = vpop.f32.mrf.mxu0
    %v3498 = vadd.f32 %v3484, %v3497
    %3499 = vdwg.mxu0
    %3500 = vmatpush.bf16.msra.mxu0 %v2606
    %3501 = vmatpush.bf16.msra.mxu0 %v2598
    %3502 = vmatpush.bf16.msra.mxu0 %v2590
    %3503 = vmatpush.bf16.msra.mxu0 %v2582
    %3504 = vmatpush.bf16.msra.mxu0 %v2574
    %3505 = vmatpush.bf16.msra.mxu0 %v2566
    %3506 = vmatpush.bf16.msra.mxu0 %v2558
    %3507 = vmatpush.bf16.msra.mxu0 %v2550
    %3508 = vmatmul.bf16.gmra.mxu0 %v1193
    %v3509 = vpop.f32.mrf.mxu0
    %v3510 = vadd.f32 %v3496, %v3509
    %v3511 = vpop.f32.mrf.mxu0
    %v3512 = vadd.f32 %v3498, %v3511
    %3513 = vdwg.mxu0
    %3514 = vmatpush.bf16.msra.mxu0 %v2670
    %3515 = vmatpush.bf16.msra.mxu0 %v2662
    %3516 = vmatpush.bf16.msra.mxu0 %v2654
    %3517 = vmatpush.bf16.msra.mxu0 %v2646
    %3518 = vmatpush.bf16.msra.mxu0 %v2638
    %3519 = vmatpush.bf16.msra.mxu0 %v2630
    %3520 = vmatpush.bf16.msra.mxu0 %v2622
    %3521 = vmatpush.bf16.msra.mxu0 %v2614
    %3522 = vmatmul.bf16.gmra.mxu0 %v1194
    %v3523 = vpop.f32.mrf.mxu0
    %v3524 = vadd.f32 %v3510, %v3523
    %v3525 = vpop.f32.mrf.mxu0
    %v3526 = vadd.f32 %v3512, %v3525
    %3527 = vdwg.mxu0
    %3528 = vmatpush.bf16.msra.mxu0 %v2734
    %3529 = vmatpush.bf16.msra.mxu0 %v2726
    %3530 = vmatpush.bf16.msra.mxu0 %v2718
    %3531 = vmatpush.bf16.msra.mxu0 %v2710
    %3532 = vmatpush.bf16.msra.mxu0 %v2702
    %3533 = vmatpush.bf16.msra.mxu0 %v2694
    %3534 = vmatpush.bf16.msra.mxu0 %v2686
    %3535 = vmatpush.bf16.msra.mxu0 %v2678
    %3536 = vmatmul.bf16.gmra.mxu0 %v1195
    %v3537 = vpop.f32.mrf.mxu0
    %v3538 = vadd.f32 %v3524, %v3537
    %v3539 = vpop.f32.mrf.mxu0
    %v3540 = vadd.f32 %v3526, %v3539
    %3541 = vdwg.mxu0
    %3542 = vmatpush.bf16.msra.mxu0 %v2415
    %3543 = vmatpush.bf16.msra.mxu0 %v2407
    %3544 = vmatpush.bf16.msra.mxu0 %v2399
    %3545 = vmatpush.bf16.msra.mxu0 %v2391
    %3546 = vmatpush.bf16.msra.mxu0 %v2383
    %3547 = vmatpush.bf16.msra.mxu0 %v2375
    %3548 = vmatpush.bf16.msra.mxu0 %v2367
    %3549 = vmatpush.bf16.msra.mxu0 %v2359
    %3550 = vmatmul.bf16.gmra.mxu0 %v1190
    %v3551 = vpop.f32.mrf.mxu0
    %v3552 = vadd.f32 0.0, %v3551
    %v3553 = vpop.f32.mrf.mxu0
    %v3554 = vadd.f32 0.0, %v3553
    %3555 = vdwg.mxu0
    %3556 = vmatpush.bf16.msra.mxu0 %v2479
    %3557 = vmatpush.bf16.msra.mxu0 %v2471
    %3558 = vmatpush.bf16.msra.mxu0 %v2463
    %3559 = vmatpush.bf16.msra.mxu0 %v2455
    %3560 = vmatpush.bf16.msra.mxu0 %v2447
    %3561 = vmatpush.bf16.msra.mxu0 %v2439
    %3562 = vmatpush.bf16.msra.mxu0 %v2431
    %3563 = vmatpush.bf16.msra.mxu0 %v2423
    %3564 = vmatmul.bf16.gmra.mxu0 %v1191
    %v3565 = vpop.f32.mrf.mxu0
    %v3566 = vadd.f32 %v3552, %v3565
    %v3567 = vpop.f32.mrf.mxu0
    %v3568 = vadd.f32 %v3554, %v3567
    %3569 = vdwg.mxu0
    %3570 = vmatpush.bf16.msra.mxu0 %v2543
    %3571 = vmatpush.bf16.msra.mxu0 %v2535
    %3572 = vmatpush.bf16.msra.mxu0 %v2527
    %3573 = vmatpush.bf16.msra.mxu0 %v2519
    %3574 = vmatpush.bf16.msra.mxu0 %v2511
    %3575 = vmatpush.bf16.msra.mxu0 %v2503
    %3576 = vmatpush.bf16.msra.mxu0 %v2495
    %3577 = vmatpush.bf16.msra.mxu0 %v2487
    %3578 = vmatmul.bf16.gmra.mxu0 %v1192
    %v3579 = vpop.f32.mrf.mxu0
    %v3580 = vadd.f32 %v3566, %v3579
    %v3581 = vpop.f32.mrf.mxu0
    %v3582 = vadd.f32 %v3568, %v3581
    %3583 = vdwg.mxu0
    %3584 = vmatpush.bf16.msra.mxu0 %v2607
    %3585 = vmatpush.bf16.msra.mxu0 %v2599
    %3586 = vmatpush.bf16.msra.mxu0 %v2591
    %3587 = vmatpush.bf16.msra.mxu0 %v2583
    %3588 = vmatpush.bf16.msra.mxu0 %v2575
    %3589 = vmatpush.bf16.msra.mxu0 %v2567
    %3590 = vmatpush.bf16.msra.mxu0 %v2559
    %3591 = vmatpush.bf16.msra.mxu0 %v2551
    %3592 = vmatmul.bf16.gmra.mxu0 %v1193
    %v3593 = vpop.f32.mrf.mxu0
    %v3594 = vadd.f32 %v3580, %v3593
    %v3595 = vpop.f32.mrf.mxu0
    %v3596 = vadd.f32 %v3582, %v3595
    %3597 = vdwg.mxu0
    %3598 = vmatpush.bf16.msra.mxu0 %v2671
    %3599 = vmatpush.bf16.msra.mxu0 %v2663
    %3600 = vmatpush.bf16.msra.mxu0 %v2655
    %3601 = vmatpush.bf16.msra.mxu0 %v2647
    %3602 = vmatpush.bf16.msra.mxu0 %v2639
    %3603 = vmatpush.bf16.msra.mxu0 %v2631
    %3604 = vmatpush.bf16.msra.mxu0 %v2623
    %3605 = vmatpush.bf16.msra.mxu0 %v2615
    %3606 = vmatmul.bf16.gmra.mxu0 %v1194
    %v3607 = vpop.f32.mrf.mxu0
    %v3608 = vadd.f32 %v3594, %v3607
    %v3609 = vpop.f32.mrf.mxu0
    %v3610 = vadd.f32 %v3596, %v3609
    %3611 = vdwg.mxu0
    %3612 = vmatpush.bf16.msra.mxu0 %v2735
    %3613 = vmatpush.bf16.msra.mxu0 %v2727
    %3614 = vmatpush.bf16.msra.mxu0 %v2719
    %3615 = vmatpush.bf16.msra.mxu0 %v2711
    %3616 = vmatpush.bf16.msra.mxu0 %v2703
    %3617 = vmatpush.bf16.msra.mxu0 %v2695
    %3618 = vmatpush.bf16.msra.mxu0 %v2687
    %3619 = vmatpush.bf16.msra.mxu0 %v2679
    %3620 = vmatmul.bf16.gmra.mxu0 %v1195
    %v3621 = vpop.f32.mrf.mxu0
    %v3622 = vadd.f32 %v3608, %v3621
    %v3623 = vpop.f32.mrf.mxu0
    %v3624 = vadd.f32 %v3610, %v3623
    %3625 = vdwg.mxu0
    %3626 = vmatpush.bf16.msra.mxu0 %v2416
    %3627 = vmatpush.bf16.msra.mxu0 %v2408
    %3628 = vmatpush.bf16.msra.mxu0 %v2400
    %3629 = vmatpush.bf16.msra.mxu0 %v2392
    %3630 = vmatpush.bf16.msra.mxu0 %v2384
    %3631 = vmatpush.bf16.msra.mxu0 %v2376
    %3632 = vmatpush.bf16.msra.mxu0 %v2368
    %3633 = vmatpush.bf16.msra.mxu0 %v2360
    %3634 = vmatmul.bf16.gmra.mxu0 %v1190
    %v3635 = vpop.f32.mrf.mxu0
    %v3636 = vadd.f32 0.0, %v3635
    %v3637 = vpop.f32.mrf.mxu0
    %v3638 = vadd.f32 0.0, %v3637
    %3639 = vdwg.mxu0
    %3640 = vmatpush.bf16.msra.mxu0 %v2480
    %3641 = vmatpush.bf16.msra.mxu0 %v2472
    %3642 = vmatpush.bf16.msra.mxu0 %v2464
    %3643 = vmatpush.bf16.msra.mxu0 %v2456
    %3644 = vmatpush.bf16.msra.mxu0 %v2448
    %3645 = vmatpush.bf16.msra.mxu0 %v2440
    %3646 = vmatpush.bf16.msra.mxu0 %v2432
    %3647 = vmatpush.bf16.msra.mxu0 %v2424
    %3648 = vmatmul.bf16.gmra.mxu0 %v1191
    %v3649 = vpop.f32.mrf.mxu0
    %v3650 = vadd.f32 %v3636, %v3649
    %v3651 = vpop.f32.mrf.mxu0
    %v3652 = vadd.f32 %v3638, %v3651
    %3653 = vdwg.mxu0
    %3654 = vmatpush.bf16.msra.mxu0 %v2544
    %3655 = vmatpush.bf16.msra.mxu0 %v2536
    %3656 = vmatpush.bf16.msra.mxu0 %v2528
    %3657 = vmatpush.bf16.msra.mxu0 %v2520
    %3658 = vmatpush.bf16.msra.mxu0 %v2512
    %3659 = vmatpush.bf16.msra.mxu0 %v2504
    %3660 = vmatpush.bf16.msra.mxu0 %v2496
    %3661 = vmatpush.bf16.msra.mxu0 %v2488
    %3662 = vmatmul.bf16.gmra.mxu0 %v1192
    %v3663 = vpop.f32.mrf.mxu0
    %v3664 = vadd.f32 %v3650, %v3663
    %v3665 = vpop.f32.mrf.mxu0
    %v3666 = vadd.f32 %v3652, %v3665
    %3667 = vdwg.mxu0
    %3668 = vmatpush.bf16.msra.mxu0 %v2608
    %3669 = vmatpush.bf16.msra.mxu0 %v2600
    %3670 = vmatpush.bf16.msra.mxu0 %v2592
    %3671 = vmatpush.bf16.msra.mxu0 %v2584
    %3672 = vmatpush.bf16.msra.mxu0 %v2576
    %3673 = vmatpush.bf16.msra.mxu0 %v2568
    %3674 = vmatpush.bf16.msra.mxu0 %v2560
    %3675 = vmatpush.bf16.msra.mxu0 %v2552
    %3676 = vmatmul.bf16.gmra.mxu0 %v1193
    %v3677 = vpop.f32.mrf.mxu0
    %v3678 = vadd.f32 %v3664, %v3677
    %v3679 = vpop.f32.mrf.mxu0
    %v3680 = vadd.f32 %v3666, %v3679
    %3681 = vdwg.mxu0
    %3682 = vmatpush.bf16.msra.mxu0 %v2672
    %3683 = vmatpush.bf16.msra.mxu0 %v2664
    %3684 = vmatpush.bf16.msra.mxu0 %v2656
    %3685 = vmatpush.bf16.msra.mxu0 %v2648
    %3686 = vmatpush.bf16.msra.mxu0 %v2640
    %3687 = vmatpush.bf16.msra.mxu0 %v2632
    %3688 = vmatpush.bf16.msra.mxu0 %v2624
    %3689 = vmatpush.bf16.msra.mxu0 %v2616
    %3690 = vmatmul.bf16.gmra.mxu0 %v1194
    %v3691 = vpop.f32.mrf.mxu0
    %v3692 = vadd.f32 %v3678, %v3691
    %v3693 = vpop.f32.mrf.mxu0
    %v3694 = vadd.f32 %v3680, %v3693
    %3695 = vdwg.mxu0
    %3696 = vmatpush.bf16.msra.mxu0 %v2736
    %3697 = vmatpush.bf16.msra.mxu0 %v2728
    %3698 = vmatpush.bf16.msra.mxu0 %v2720
    %3699 = vmatpush.bf16.msra.mxu0 %v2712
    %3700 = vmatpush.bf16.msra.mxu0 %v2704
    %3701 = vmatpush.bf16.msra.mxu0 %v2696
    %3702 = vmatpush.bf16.msra.mxu0 %v2688
    %3703 = vmatpush.bf16.msra.mxu0 %v2680
    %3704 = vmatmul.bf16.gmra.mxu0 %v1195
    %v3705 = vpop.f32.mrf.mxu0
    %v3706 = vadd.f32 %v3692, %v3705
    %v3707 = vpop.f32.mrf.mxu0
    %v3708 = vadd.f32 %v3694, %v3707
    %3709 = vdwg.mxu0
    %3710 = vmatpush.bf16.msra.mxu0 %v2417
    %3711 = vmatpush.bf16.msra.mxu0 %v2409
    %3712 = vmatpush.bf16.msra.mxu0 %v2401
    %3713 = vmatpush.bf16.msra.mxu0 %v2393
    %3714 = vmatpush.bf16.msra.mxu0 %v2385
    %3715 = vmatpush.bf16.msra.mxu0 %v2377
    %3716 = vmatpush.bf16.msra.mxu0 %v2369
    %3717 = vmatpush.bf16.msra.mxu0 %v2361
    %3718 = vmatmul.bf16.gmra.mxu0 %v1190
    %v3719 = vpop.f32.mrf.mxu0
    %v3720 = vadd.f32 0.0, %v3719
    %v3721 = vpop.f32.mrf.mxu0
    %v3722 = vadd.f32 0.0, %v3721
    %3723 = vdwg.mxu0
    %3724 = vmatpush.bf16.msra.mxu0 %v2481
    %3725 = vmatpush.bf16.msra.mxu0 %v2473
    %3726 = vmatpush.bf16.msra.mxu0 %v2465
    %3727 = vmatpush.bf16.msra.mxu0 %v2457
    %3728 = vmatpush.bf16.msra.mxu0 %v2449
    %3729 = vmatpush.bf16.msra.mxu0 %v2441
    %3730 = vmatpush.bf16.msra.mxu0 %v2433
    %3731 = vmatpush.bf16.msra.mxu0 %v2425
    %3732 = vmatmul.bf16.gmra.mxu0 %v1191
    %v3733 = vpop.f32.mrf.mxu0
    %v3734 = vadd.f32 %v3720, %v3733
    %v3735 = vpop.f32.mrf.mxu0
    %v3736 = vadd.f32 %v3722, %v3735
    %3737 = vdwg.mxu0
    %3738 = vmatpush.bf16.msra.mxu0 %v2545
    %3739 = vmatpush.bf16.msra.mxu0 %v2537
    %3740 = vmatpush.bf16.msra.mxu0 %v2529
    %3741 = vmatpush.bf16.msra.mxu0 %v2521
    %3742 = vmatpush.bf16.msra.mxu0 %v2513
    %3743 = vmatpush.bf16.msra.mxu0 %v2505
    %3744 = vmatpush.bf16.msra.mxu0 %v2497
    %3745 = vmatpush.bf16.msra.mxu0 %v2489
    %3746 = vmatmul.bf16.gmra.mxu0 %v1192
    %v3747 = vpop.f32.mrf.mxu0
    %v3748 = vadd.f32 %v3734, %v3747
    %v3749 = vpop.f32.mrf.mxu0
    %v3750 = vadd.f32 %v3736, %v3749
    %3751 = vdwg.mxu0
    %3752 = vmatpush.bf16.msra.mxu0 %v2609
    %3753 = vmatpush.bf16.msra.mxu0 %v2601
    %3754 = vmatpush.bf16.msra.mxu0 %v2593
    %3755 = vmatpush.bf16.msra.mxu0 %v2585
    %3756 = vmatpush.bf16.msra.mxu0 %v2577
    %3757 = vmatpush.bf16.msra.mxu0 %v2569
    %3758 = vmatpush.bf16.msra.mxu0 %v2561
    %3759 = vmatpush.bf16.msra.mxu0 %v2553
    %3760 = vmatmul.bf16.gmra.mxu0 %v1193
    %v3761 = vpop.f32.mrf.mxu0
    %v3762 = vadd.f32 %v3748, %v3761
    %v3763 = vpop.f32.mrf.mxu0
    %v3764 = vadd.f32 %v3750, %v3763
    %3765 = vdwg.mxu0
    %3766 = vmatpush.bf16.msra.mxu0 %v2673
    %3767 = vmatpush.bf16.msra.mxu0 %v2665
    %3768 = vmatpush.bf16.msra.mxu0 %v2657
    %3769 = vmatpush.bf16.msra.mxu0 %v2649
    %3770 = vmatpush.bf16.msra.mxu0 %v2641
    %3771 = vmatpush.bf16.msra.mxu0 %v2633
    %3772 = vmatpush.bf16.msra.mxu0 %v2625
    %3773 = vmatpush.bf16.msra.mxu0 %v2617
    %3774 = vmatmul.bf16.gmra.mxu0 %v1194
    %v3775 = vpop.f32.mrf.mxu0
    %v3776 = vadd.f32 %v3762, %v3775
    %v3777 = vpop.f32.mrf.mxu0
    %v3778 = vadd.f32 %v3764, %v3777
    %3779 = vdwg.mxu0
    %3780 = vmatpush.bf16.msra.mxu0 %v2737
    %3781 = vmatpush.bf16.msra.mxu0 %v2729
    %3782 = vmatpush.bf16.msra.mxu0 %v2721
    %3783 = vmatpush.bf16.msra.mxu0 %v2713
    %3784 = vmatpush.bf16.msra.mxu0 %v2705
    %3785 = vmatpush.bf16.msra.mxu0 %v2697
    %3786 = vmatpush.bf16.msra.mxu0 %v2689
    %3787 = vmatpush.bf16.msra.mxu0 %v2681
    %3788 = vmatmul.bf16.gmra.mxu0 %v1195
    %v3789 = vpop.f32.mrf.mxu0
    %v3790 = vadd.f32 %v3776, %v3789
    %v3791 = vpop.f32.mrf.mxu0
    %v3792 = vadd.f32 %v3778, %v3791
    %3793 = vdwg.mxu0
    %v3804 = vunpack.c.l.b16 %v132
    %v3805 = vunpack.c.h.b16 %v132
    %v3806 = vunpack.c.l.b16 %v133
    %v3807 = vunpack.c.h.b16 %v133
    %v3808 = vunpack.c.l.b16 %v134
    %v3809 = vunpack.c.h.b16 %v134
    %v3810 = vunpack.c.l.b16 %v135
    %v3811 = vunpack.c.h.b16 %v135
    %v3812 = vunpack.c.l.b16 %v136
    %v3813 = vunpack.c.h.b16 %v136
    %v3814 = vunpack.c.l.b16 %v137
    %v3815 = vunpack.c.h.b16 %v137
    %v3816 = vunpack.c.l.b16 %v138
    %v3817 = vunpack.c.h.b16 %v138
    %v3818 = vunpack.c.l.b16 %v139
    %v3819 = vunpack.c.h.b16 %v139
    %v3820 = vunpack.c.l.b16 %v140
    %v3821 = vunpack.c.h.b16 %v140
    %v3822 = vunpack.c.l.b16 %v141
    %v3823 = vunpack.c.h.b16 %v141
    %v3824 = vpack.c.b16 %v3814, %v3804
    %v3825 = vpack.c.b16 %v3815, %v3805
    %v3826 = vpack.c.b16 %v3816, %v3806
    %v3827 = vpack.c.b16 %v3817, %v3807
    %v3828 = vpack.c.b16 %v3818, %v3808
    %v3829 = vpack.c.b16 %v3819, %v3809
    %v3830 = vpack.c.b16 %v3820, %v3810
    %v3831 = vpack.c.b16 %v3821, %v3811
    %v3832 = vpack.c.b16 %v3822, %v3812
    %v3833 = vpack.c.b16 %v3823, %v3813
    %v4484 = vunpack.c.l.b16 %v142
    %v4485 = vunpack.c.h.b16 %v142
    %v4486 = vunpack.c.l.b16 %v143
    %v4487 = vunpack.c.h.b16 %v143
    %v4488 = vunpack.c.l.b16 %v144
    %v4489 = vunpack.c.h.b16 %v144
    %v4490 = vunpack.c.l.b16 %v145
    %v4491 = vunpack.c.h.b16 %v145
    %v4492 = vunpack.c.l.b16 %v146
    %v4493 = vunpack.c.h.b16 %v146
    %v4494 = vunpack.c.l.b16 %v147
    %v4495 = vunpack.c.h.b16 %v147
    %v4496 = vunpack.c.l.b16 %v148
    %v4497 = vunpack.c.h.b16 %v148
    %v4498 = vunpack.c.l.b16 %v149
    %v4499 = vunpack.c.h.b16 %v149
    %v4500 = vunpack.c.l.b16 %v150
    %v4501 = vunpack.c.h.b16 %v150
    %v4502 = vunpack.c.l.b16 %v151
    %v4503 = vunpack.c.h.b16 %v151
    %v4504 = vunpack.c.l.b16 %v152
    %v4505 = vunpack.c.h.b16 %v152
    %v4506 = vunpack.c.l.b16 %v153
    %v4507 = vunpack.c.h.b16 %v153
    %v4508 = vunpack.c.l.b16 %v154
    %v4509 = vunpack.c.h.b16 %v154
    %v4510 = vunpack.c.l.b16 %v155
    %v4511 = vunpack.c.h.b16 %v155
    %v4512 = vunpack.c.l.b16 %v156
    %v4513 = vunpack.c.h.b16 %v156
    %v4514 = vunpack.c.l.b16 %v157
    %v4515 = vunpack.c.h.b16 %v157
    %v4516 = vunpack.c.l.b16 %v158
    %v4517 = vunpack.c.h.b16 %v158
    %v4518 = vunpack.c.l.b16 %v159
    %v4519 = vunpack.c.h.b16 %v159
    %v4520 = vunpack.c.l.b16 %v160
    %v4521 = vunpack.c.h.b16 %v160
    %v4522 = vunpack.c.l.b16 %v161
    %v4523 = vunpack.c.h.b16 %v161
    %v4524 = vunpack.c.l.b16 %v162
    %v4525 = vunpack.c.h.b16 %v162
    %v4526 = vunpack.c.l.b16 %v163
    %v4527 = vunpack.c.h.b16 %v163
    %v4528 = vunpack.c.l.b16 %v164
    %v4529 = vunpack.c.h.b16 %v164
    %v4530 = vunpack.c.l.b16 %v165
    %v4531 = vunpack.c.h.b16 %v165
    %v4532 = vunpack.c.l.b16 %v166
    %v4533 = vunpack.c.h.b16 %v166
    %v4534 = vunpack.c.l.b16 %v167
    %v4535 = vunpack.c.h.b16 %v167
    %v4536 = vunpack.c.l.b16 %v168
    %v4537 = vunpack.c.h.b16 %v168
    %v4538 = vunpack.c.l.b16 %v169
    %v4539 = vunpack.c.h.b16 %v169
    %v4540 = vunpack.c.l.b16 %v170
    %v4541 = vunpack.c.h.b16 %v170
    %v4542 = vunpack.c.l.b16 %v171
    %v4543 = vunpack.c.h.b16 %v171
    %v4544 = vunpack.c.l.b16 %v172
    %v4545 = vunpack.c.h.b16 %v172
    %v4546 = vunpack.c.l.b16 %v173
    %v4547 = vunpack.c.h.b16 %v173
    %v4548 = vunpack.c.l.b16 %v174
    %v4549 = vunpack.c.h.b16 %v174
    %v4550 = vunpack.c.l.b16 %v175
    %v4551 = vunpack.c.h.b16 %v175
    %v4552 = vunpack.c.l.b16 %v176
    %v4553 = vunpack.c.h.b16 %v176
    %v4554 = vunpack.c.l.b16 %v177
    %v4555 = vunpack.c.h.b16 %v177
    %v4556 = vunpack.c.l.b16 %v178
    %v4557 = vunpack.c.h.b16 %v178
    %v4558 = vunpack.c.l.b16 %v179
    %v4559 = vunpack.c.h.b16 %v179
    %v4560 = vunpack.c.l.b16 %v180
    %v4561 = vunpack.c.h.b16 %v180
    %v4562 = vunpack.c.l.b16 %v181
    %v4563 = vunpack.c.h.b16 %v181
    %v4564 = vunpack.c.l.b16 %v182
    %v4565 = vunpack.c.h.b16 %v182
    %v4566 = vunpack.c.l.b16 %v183
    %v4567 = vunpack.c.h.b16 %v183
    %v4568 = vunpack.c.l.b16 %v184
    %v4569 = vunpack.c.h.b16 %v184
    %v4570 = vunpack.c.l.b16 %v185
    %v4571 = vunpack.c.h.b16 %v185
    %v4572 = vunpack.c.l.b16 %v186
    %v4573 = vunpack.c.h.b16 %v186
    %v4574 = vunpack.c.l.b16 %v187
    %v4575 = vunpack.c.h.b16 %v187
    %v4576 = vunpack.c.l.b16 %v188
    %v4577 = vunpack.c.h.b16 %v188
    %v4578 = vunpack.c.l.b16 %v189
    %v4579 = vunpack.c.h.b16 %v189
    %v4580 = vunpack.c.l.b16 %v190
    %v4581 = vunpack.c.h.b16 %v190
    %v4582 = vunpack.c.l.b16 %v191
    %v4583 = vunpack.c.h.b16 %v191
    %v4584 = vunpack.c.l.b16 %v192
    %v4585 = vunpack.c.h.b16 %v192
    %v4586 = vunpack.c.l.b16 %v193
    %v4587 = vunpack.c.h.b16 %v193
    %v4588 = vunpack.c.l.b16 %v194
    %v4589 = vunpack.c.h.b16 %v194
    %v4590 = vunpack.c.l.b16 %v195
    %v4591 = vunpack.c.h.b16 %v195
    %v4592 = vunpack.c.l.b16 %v196
    %v4593 = vunpack.c.h.b16 %v196
    %v4594 = vunpack.c.l.b16 %v197
    %v4595 = vunpack.c.h.b16 %v197
    %v4596 = vunpack.c.l.b16 %v198
    %v4597 = vunpack.c.h.b16 %v198
    %v4598 = vunpack.c.l.b16 %v199
    %v4599 = vunpack.c.h.b16 %v199
    %v4600 = vunpack.c.l.b16 %v200
    %v4601 = vunpack.c.h.b16 %v200
    %v4602 = vunpack.c.l.b16 %v201
    %v4603 = vunpack.c.h.b16 %v201
    %v4604 = vunpack.c.l.b16 %v202
    %v4605 = vunpack.c.h.b16 %v202
    %v4606 = vunpack.c.l.b16 %v203
    %v4607 = vunpack.c.h.b16 %v203
    %v4608 = vunpack.c.l.b16 %v204
    %v4609 = vunpack.c.h.b16 %v204
    %v4610 = vunpack.c.l.b16 %v205
    %v4611 = vunpack.c.h.b16 %v205
    %v4612 = vunpack.c.l.b16 %v206
    %v4613 = vunpack.c.h.b16 %v206
    %v4614 = vunpack.c.l.b16 %v207
    %v4615 = vunpack.c.h.b16 %v207
    %v4616 = vunpack.c.l.b16 %v208
    %v4617 = vunpack.c.h.b16 %v208
    %v4618 = vunpack.c.l.b16 %v209
    %v4619 = vunpack.c.h.b16 %v209
    %v4620 = vunpack.c.l.b16 %v210
    %v4621 = vunpack.c.h.b16 %v210
    %v4622 = vunpack.c.l.b16 %v211
    %v4623 = vunpack.c.h.b16 %v211
    %v4624 = vunpack.c.l.b16 %v212
    %v4625 = vunpack.c.h.b16 %v212
    %v4626 = vunpack.c.l.b16 %v213
    %v4627 = vunpack.c.h.b16 %v213
    %v4628 = vunpack.c.l.b16 %v214
    %v4629 = vunpack.c.h.b16 %v214
    %v4630 = vunpack.c.l.b16 %v215
    %v4631 = vunpack.c.h.b16 %v215
    %v4632 = vunpack.c.l.b16 %v216
    %v4633 = vunpack.c.h.b16 %v216
    %v4634 = vunpack.c.l.b16 %v217
    %v4635 = vunpack.c.h.b16 %v217
    %v4636 = vunpack.c.l.b16 %v218
    %v4637 = vunpack.c.h.b16 %v218
    %v4638 = vunpack.c.l.b16 %v219
    %v4639 = vunpack.c.h.b16 %v219
    %v4640 = vunpack.c.l.b16 %v220
    %v4641 = vunpack.c.h.b16 %v220
    %v4642 = vunpack.c.l.b16 %v221
    %v4643 = vunpack.c.h.b16 %v221
    %v4644 = vunpack.c.l.b16 %v222
    %v4645 = vunpack.c.h.b16 %v222
    %v4646 = vunpack.c.l.b16 %v223
    %v4647 = vunpack.c.h.b16 %v223
    %v4648 = vunpack.c.l.b16 %v224
    %v4649 = vunpack.c.h.b16 %v224
    %v4650 = vunpack.c.l.b16 %v225
    %v4651 = vunpack.c.h.b16 %v225
    %v4652 = vunpack.c.l.b16 %v226
    %v4653 = vunpack.c.h.b16 %v226
    %v4654 = vunpack.c.l.b16 %v227
    %v4655 = vunpack.c.h.b16 %v227
    %v4656 = vunpack.c.l.b16 %v228
    %v4657 = vunpack.c.h.b16 %v228
    %v4658 = vunpack.c.l.b16 %v229
    %v4659 = vunpack.c.h.b16 %v229
    %v4660 = vunpack.c.l.b16 %v230
    %v4661 = vunpack.c.h.b16 %v230
    %v4662 = vunpack.c.l.b16 %v231
    %v4663 = vunpack.c.h.b16 %v231
    %v4664 = vunpack.c.l.b16 %v232
    %v4665 = vunpack.c.h.b16 %v232
    %v4666 = vunpack.c.l.b16 %v233
    %v4667 = vunpack.c.h.b16 %v233
    %v4668 = vunpack.c.l.b16 %v234
    %v4669 = vunpack.c.h.b16 %v234
    %v4670 = vunpack.c.l.b16 %v235
    %v4671 = vunpack.c.h.b16 %v235
    %v4672 = vunpack.c.l.b16 %v236
    %v4673 = vunpack.c.h.b16 %v236
    %v4674 = vunpack.c.l.b16 %v237
    %v4675 = vunpack.c.h.b16 %v237
    %v4676 = vunpack.c.l.b16 %v238
    %v4677 = vunpack.c.h.b16 %v238
    %v4678 = vunpack.c.l.b16 %v239
    %v4679 = vunpack.c.h.b16 %v239
    %v4680 = vunpack.c.l.b16 %v240
    %v4681 = vunpack.c.h.b16 %v240
    %v4682 = vunpack.c.l.b16 %v241
    %v4683 = vunpack.c.h.b16 %v241
    %v4684 = vunpack.c.l.b16 %v242
    %v4685 = vunpack.c.h.b16 %v242
    %v4686 = vunpack.c.l.b16 %v243
    %v4687 = vunpack.c.h.b16 %v243
    %v4688 = vunpack.c.l.b16 %v244
    %v4689 = vunpack.c.h.b16 %v244
    %v4690 = vunpack.c.l.b16 %v245
    %v4691 = vunpack.c.h.b16 %v245
    %v4692 = vunpack.c.l.b16 %v246
    %v4693 = vunpack.c.h.b16 %v246
    %v4694 = vunpack.c.l.b16 %v247
    %v4695 = vunpack.c.h.b16 %v247
    %v4696 = vunpack.c.l.b16 %v248
    %v4697 = vunpack.c.h.b16 %v248
    %v4698 = vunpack.c.l.b16 %v249
    %v4699 = vunpack.c.h.b16 %v249
    %v4700 = vunpack.c.l.b16 %v250
    %v4701 = vunpack.c.h.b16 %v250
    %v4702 = vunpack.c.l.b16 %v251
    %v4703 = vunpack.c.h.b16 %v251
    %v4704 = vunpack.c.l.b16 %v252
    %v4705 = vunpack.c.h.b16 %v252
    %v4706 = vunpack.c.l.b16 %v253
    %v4707 = vunpack.c.h.b16 %v253
    %v4708 = vunpack.c.l.b16 %v254
    %v4709 = vunpack.c.h.b16 %v254
    %v4710 = vunpack.c.l.b16 %v255
    %v4711 = vunpack.c.h.b16 %v255
    %v4712 = vunpack.c.l.b16 %v256
    %v4713 = vunpack.c.h.b16 %v256
    %v4714 = vunpack.c.l.b16 %v257
    %v4715 = vunpack.c.h.b16 %v257
    %v4716 = vunpack.c.l.b16 %v258
    %v4717 = vunpack.c.h.b16 %v258
    %v4718 = vunpack.c.l.b16 %v259
    %v4719 = vunpack.c.h.b16 %v259
    %v4720 = vunpack.c.l.b16 %v260
    %v4721 = vunpack.c.h.b16 %v260
    %v4722 = vunpack.c.l.b16 %v261
    %v4723 = vunpack.c.h.b16 %v261
    %v4724 = vunpack.c.l.b16 %v262
    %v4725 = vunpack.c.h.b16 %v262
    %v4726 = vunpack.c.l.b16 %v263
    %v4727 = vunpack.c.h.b16 %v263
    %v4728 = vunpack.c.l.b16 %v264
    %v4729 = vunpack.c.h.b16 %v264
    %v4730 = vunpack.c.l.b16 %v265
    %v4731 = vunpack.c.h.b16 %v265
    %v4732 = vunpack.c.l.b16 %v266
    %v4733 = vunpack.c.h.b16 %v266
    %v4734 = vunpack.c.l.b16 %v267
    %v4735 = vunpack.c.h.b16 %v267
    %v4736 = vunpack.c.l.b16 %v268
    %v4737 = vunpack.c.h.b16 %v268
    %v4738 = vunpack.c.l.b16 %v269
    %v4739 = vunpack.c.h.b16 %v269
    %v4740 = vunpack.c.l.b16 %v270
    %v4741 = vunpack.c.h.b16 %v270
    %v4742 = vunpack.c.l.b16 %v271
    %v4743 = vunpack.c.h.b16 %v271
    %v4744 = vunpack.c.l.b16 %v272
    %v4745 = vunpack.c.h.b16 %v272
    %v4746 = vunpack.c.l.b16 %v273
    %v4747 = vunpack.c.h.b16 %v273
    %v4748 = vunpack.c.l.b16 %v274
    %v4749 = vunpack.c.h.b16 %v274
    %v4750 = vunpack.c.l.b16 %v275
    %v4751 = vunpack.c.h.b16 %v275
    %v4752 = vunpack.c.l.b16 %v276
    %v4753 = vunpack.c.h.b16 %v276
    %v4754 = vunpack.c.l.b16 %v277
    %v4755 = vunpack.c.h.b16 %v277
    %v4756 = vunpack.c.l.b16 %v278
    %v4757 = vunpack.c.h.b16 %v278
    %v4758 = vunpack.c.l.b16 %v279
    %v4759 = vunpack.c.h.b16 %v279
    %v4760 = vunpack.c.l.b16 %v280
    %v4761 = vunpack.c.h.b16 %v280
    %v4762 = vunpack.c.l.b16 %v281
    %v4763 = vunpack.c.h.b16 %v281
    %v4764 = vunpack.c.l.b16 %v282
    %v4765 = vunpack.c.h.b16 %v282
    %v4766 = vunpack.c.l.b16 %v283
    %v4767 = vunpack.c.h.b16 %v283
    %v4768 = vunpack.c.l.b16 %v284
    %v4769 = vunpack.c.h.b16 %v284
    %v4770 = vunpack.c.l.b16 %v285
    %v4771 = vunpack.c.h.b16 %v285
    %v4772 = vunpack.c.l.b16 %v286
    %v4773 = vunpack.c.h.b16 %v286
    %v4774 = vunpack.c.l.b16 %v287
    %v4775 = vunpack.c.h.b16 %v287
    %v4776 = vunpack.c.l.b16 %v288
    %v4777 = vunpack.c.h.b16 %v288
    %v4778 = vunpack.c.l.b16 %v289
    %v4779 = vunpack.c.h.b16 %v289
    %v4780 = vunpack.c.l.b16 %v290
    %v4781 = vunpack.c.h.b16 %v290
    %v4782 = vunpack.c.l.b16 %v291
    %v4783 = vunpack.c.h.b16 %v291
    %v4784 = vunpack.c.l.b16 %v292
    %v4785 = vunpack.c.h.b16 %v292
    %v4786 = vunpack.c.l.b16 %v293
    %v4787 = vunpack.c.h.b16 %v293
    %v4788 = vunpack.c.l.b16 %v294
    %v4789 = vunpack.c.h.b16 %v294
    %v4790 = vunpack.c.l.b16 %v295
    %v4791 = vunpack.c.h.b16 %v295
    %v4792 = vunpack.c.l.b16 %v296
    %v4793 = vunpack.c.h.b16 %v296
    %v4794 = vunpack.c.l.b16 %v297
    %v4795 = vunpack.c.h.b16 %v297
    %v4796 = vunpack.c.l.b16 %v298
    %v4797 = vunpack.c.h.b16 %v298
    %v4798 = vunpack.c.l.b16 %v299
    %v4799 = vunpack.c.h.b16 %v299
    %v4800 = vunpack.c.l.b16 %v300
    %v4801 = vunpack.c.h.b16 %v300
    %v4802 = vunpack.c.l.b16 %v301
    %v4803 = vunpack.c.h.b16 %v301
    %v4804 = vunpack.c.l.b16 %v302
    %v4805 = vunpack.c.h.b16 %v302
    %v4806 = vunpack.c.l.b16 %v303
    %v4807 = vunpack.c.h.b16 %v303
    %v4808 = vunpack.c.l.b16 %v304
    %v4809 = vunpack.c.h.b16 %v304
    %v4810 = vunpack.c.l.b16 %v305
    %v4811 = vunpack.c.h.b16 %v305
    %v4812 = vunpack.c.l.b16 %v306
    %v4813 = vunpack.c.h.b16 %v306
    %v4814 = vunpack.c.l.b16 %v307
    %v4815 = vunpack.c.h.b16 %v307
    %v4816 = vunpack.c.l.b16 %v308
    %v4817 = vunpack.c.h.b16 %v308
    %v4818 = vunpack.c.l.b16 %v309
    %v4819 = vunpack.c.h.b16 %v309
    %v4820 = vunpack.c.l.b16 %v310
    %v4821 = vunpack.c.h.b16 %v310
    %v4822 = vunpack.c.l.b16 %v311
    %v4823 = vunpack.c.h.b16 %v311
    %v4824 = vunpack.c.l.b16 %v312
    %v4825 = vunpack.c.h.b16 %v312
    %v4826 = vunpack.c.l.b16 %v313
    %v4827 = vunpack.c.h.b16 %v313
    %v4828 = vunpack.c.l.b16 %v314
    %v4829 = vunpack.c.h.b16 %v314
    %v4830 = vunpack.c.l.b16 %v315
    %v4831 = vunpack.c.h.b16 %v315
    %v4832 = vunpack.c.l.b16 %v316
    %v4833 = vunpack.c.h.b16 %v316
    %v4834 = vunpack.c.l.b16 %v317
    %v4835 = vunpack.c.h.b16 %v317
    %v4836 = vunpack.c.l.b16 %v318
    %v4837 = vunpack.c.h.b16 %v318
    %v4838 = vunpack.c.l.b16 %v319
    %v4839 = vunpack.c.h.b16 %v319
    %v4840 = vunpack.c.l.b16 %v320
    %v4841 = vunpack.c.h.b16 %v320
    %v4842 = vunpack.c.l.b16 %v321
    %v4843 = vunpack.c.h.b16 %v321
    %v4844 = vunpack.c.l.b16 %v322
    %v4845 = vunpack.c.h.b16 %v322
    %v4846 = vunpack.c.l.b16 %v323
    %v4847 = vunpack.c.h.b16 %v323
    %v4848 = vunpack.c.l.b16 %v324
    %v4849 = vunpack.c.h.b16 %v324
    %v4850 = vunpack.c.l.b16 %v325
    %v4851 = vunpack.c.h.b16 %v325
    %v4852 = vunpack.c.l.b16 %v326
    %v4853 = vunpack.c.h.b16 %v326
    %v4854 = vunpack.c.l.b16 %v327
    %v4855 = vunpack.c.h.b16 %v327
    %v4856 = vunpack.c.l.b16 %v328
    %v4857 = vunpack.c.h.b16 %v328
    %v4858 = vunpack.c.l.b16 %v329
    %v4859 = vunpack.c.h.b16 %v329
    %v4860 = vunpack.c.l.b16 %v330
    %v4861 = vunpack.c.h.b16 %v330
    %v4862 = vunpack.c.l.b16 %v331
    %v4863 = vunpack.c.h.b16 %v331
    %v4864 = vunpack.c.l.b16 %v332
    %v4865 = vunpack.c.h.b16 %v332
    %v4866 = vunpack.c.l.b16 %v333
    %v4867 = vunpack.c.h.b16 %v333
    %v4868 = vunpack.c.l.b16 %v334
    %v4869 = vunpack.c.h.b16 %v334
    %v4870 = vunpack.c.l.b16 %v335
    %v4871 = vunpack.c.h.b16 %v335
    %v4872 = vunpack.c.l.b16 %v336
    %v4873 = vunpack.c.h.b16 %v336
    %v4874 = vunpack.c.l.b16 %v337
    %v4875 = vunpack.c.h.b16 %v337
    %v4876 = vunpack.c.l.b16 %v338
    %v4877 = vunpack.c.h.b16 %v338
    %v4878 = vunpack.c.l.b16 %v339
    %v4879 = vunpack.c.h.b16 %v339
    %v4880 = vunpack.c.l.b16 %v340
    %v4881 = vunpack.c.h.b16 %v340
    %v4882 = vunpack.c.l.b16 %v341
    %v4883 = vunpack.c.h.b16 %v341
    %v4884 = vunpack.c.l.b16 %v342
    %v4885 = vunpack.c.h.b16 %v342
    %v4886 = vunpack.c.l.b16 %v343
    %v4887 = vunpack.c.h.b16 %v343
    %v4888 = vunpack.c.l.b16 %v344
    %v4889 = vunpack.c.h.b16 %v344
    %v4890 = vunpack.c.l.b16 %v345
    %v4891 = vunpack.c.h.b16 %v345
    %v4892 = vunpack.c.l.b16 %v346
    %v4893 = vunpack.c.h.b16 %v346
    %v4894 = vunpack.c.l.b16 %v347
    %v4895 = vunpack.c.h.b16 %v347
    %v4896 = vunpack.c.l.b16 %v348
    %v4897 = vunpack.c.h.b16 %v348
    %v4898 = vunpack.c.l.b16 %v349
    %v4899 = vunpack.c.h.b16 %v349
    %v4900 = vunpack.c.l.b16 %v350
    %v4901 = vunpack.c.h.b16 %v350
    %v4902 = vunpack.c.l.b16 %v351
    %v4903 = vunpack.c.h.b16 %v351
    %v4904 = vunpack.c.l.b16 %v352
    %v4905 = vunpack.c.h.b16 %v352
    %v4906 = vunpack.c.l.b16 %v353
    %v4907 = vunpack.c.h.b16 %v353
    %v4908 = vunpack.c.l.b16 %v354
    %v4909 = vunpack.c.h.b16 %v354
    %v4910 = vunpack.c.l.b16 %v355
    %v4911 = vunpack.c.h.b16 %v355
    %v4912 = vunpack.c.l.b16 %v356
    %v4913 = vunpack.c.h.b16 %v356
    %v4914 = vunpack.c.l.b16 %v357
    %v4915 = vunpack.c.h.b16 %v357
    %v4916 = vunpack.c.l.b16 %v358
    %v4917 = vunpack.c.h.b16 %v358
    %v4918 = vunpack.c.l.b16 %v359
    %v4919 = vunpack.c.h.b16 %v359
    %v4920 = vunpack.c.l.b16 %v360
    %v4921 = vunpack.c.h.b16 %v360
    %v4922 = vunpack.c.l.b16 %v361
    %v4923 = vunpack.c.h.b16 %v361
    %v4924 = vunpack.c.l.b16 %v362
    %v4925 = vunpack.c.h.b16 %v362
    %v4926 = vunpack.c.l.b16 %v363
    %v4927 = vunpack.c.h.b16 %v363
    %v4928 = vunpack.c.l.b16 %v364
    %v4929 = vunpack.c.h.b16 %v364
    %v4930 = vunpack.c.l.b16 %v365
    %v4931 = vunpack.c.h.b16 %v365
    %v4932 = vunpack.c.l.b16 %v366
    %v4933 = vunpack.c.h.b16 %v366
    %v4934 = vunpack.c.l.b16 %v367
    %v4935 = vunpack.c.h.b16 %v367
    %v4936 = vunpack.c.l.b16 %v368
    %v4937 = vunpack.c.h.b16 %v368
    %v4938 = vunpack.c.l.b16 %v369
    %v4939 = vunpack.c.h.b16 %v369
    %v4940 = vunpack.c.l.b16 %v370
    %v4941 = vunpack.c.h.b16 %v370
    %v4942 = vunpack.c.l.b16 %v371
    %v4943 = vunpack.c.h.b16 %v371
    %v4944 = vunpack.c.l.b16 %v372
    %v4945 = vunpack.c.h.b16 %v372
    %v4946 = vunpack.c.l.b16 %v373
    %v4947 = vunpack.c.h.b16 %v373
    %v4948 = vunpack.c.l.b16 %v374
    %v4949 = vunpack.c.h.b16 %v374
    %v4950 = vunpack.c.l.b16 %v375
    %v4951 = vunpack.c.h.b16 %v375
    %v4952 = vunpack.c.l.b16 %v376
    %v4953 = vunpack.c.h.b16 %v376
    %v4954 = vunpack.c.l.b16 %v377
    %v4955 = vunpack.c.h.b16 %v377
    %v4956 = vunpack.c.l.b16 %v378
    %v4957 = vunpack.c.h.b16 %v378
    %v4958 = vunpack.c.l.b16 %v379
    %v4959 = vunpack.c.h.b16 %v379
    %v4960 = vunpack.c.l.b16 %v380
    %v4961 = vunpack.c.h.b16 %v380
    %v4962 = vunpack.c.l.b16 %v381
    %v4963 = vunpack.c.h.b16 %v381
    %v4964 = vunpack.c.l.b16 %v382
    %v4965 = vunpack.c.h.b16 %v382
    %v4966 = vunpack.c.l.b16 %v383
    %v4967 = vunpack.c.h.b16 %v383
    %v4968 = vunpack.c.l.b16 %v384
    %v4969 = vunpack.c.h.b16 %v384
    %v4970 = vunpack.c.l.b16 %v385
    %v4971 = vunpack.c.h.b16 %v385
    %v4972 = vunpack.c.l.b16 %v386
    %v4973 = vunpack.c.h.b16 %v386
    %v4974 = vunpack.c.l.b16 %v387
    %v4975 = vunpack.c.h.b16 %v387
    %v4976 = vunpack.c.l.b16 %v388
    %v4977 = vunpack.c.h.b16 %v388
    %v4978 = vunpack.c.l.b16 %v389
    %v4979 = vunpack.c.h.b16 %v389
    %v4980 = vunpack.c.l.b16 %v390
    %v4981 = vunpack.c.h.b16 %v390
    %v4982 = vunpack.c.l.b16 %v391
    %v4983 = vunpack.c.h.b16 %v391
    %v4984 = vunpack.c.l.b16 %v392
    %v4985 = vunpack.c.h.b16 %v392
    %v4986 = vunpack.c.l.b16 %v393
    %v4987 = vunpack.c.h.b16 %v393
    %v4988 = vunpack.c.l.b16 %v394
    %v4989 = vunpack.c.h.b16 %v394
    %v4990 = vunpack.c.l.b16 %v395
    %v4991 = vunpack.c.h.b16 %v395
    %v4992 = vunpack.c.l.b16 %v396
    %v4993 = vunpack.c.h.b16 %v396
    %v4994 = vunpack.c.l.b16 %v397
    %v4995 = vunpack.c.h.b16 %v397
    %v4996 = vunpack.c.l.b16 %v398
    %v4997 = vunpack.c.h.b16 %v398
    %v4998 = vunpack.c.l.b16 %v399
    %v4999 = vunpack.c.h.b16 %v399
    %v5000 = vunpack.c.l.b16 %v400
    %v5001 = vunpack.c.h.b16 %v400
    %v5002 = vunpack.c.l.b16 %v401
    %v5003 = vunpack.c.h.b16 %v401
    %v5004 = vunpack.c.l.b16 %v402
    %v5005 = vunpack.c.h.b16 %v402
    %v5006 = vunpack.c.l.b16 %v403
    %v5007 = vunpack.c.h.b16 %v403
    %v5008 = vunpack.c.l.b16 %v404
    %v5009 = vunpack.c.h.b16 %v404
    %v5010 = vunpack.c.l.b16 %v405
    %v5011 = vunpack.c.h.b16 %v405
    %v5012 = vunpack.c.l.b16 %v406
    %v5013 = vunpack.c.h.b16 %v406
    %v5014 = vunpack.c.l.b16 %v407
    %v5015 = vunpack.c.h.b16 %v407
    %v5016 = vunpack.c.l.b16 %v408
    %v5017 = vunpack.c.h.b16 %v408
    %v5018 = vunpack.c.l.b16 %v409
    %v5019 = vunpack.c.h.b16 %v409
    %v5020 = vunpack.c.l.b16 %v410
    %v5021 = vunpack.c.h.b16 %v410
    %v5022 = vunpack.c.l.b16 %v411
    %v5023 = vunpack.c.h.b16 %v411
    %v5024 = vunpack.c.l.b16 %v412
    %v5025 = vunpack.c.h.b16 %v412
    %v5026 = vunpack.c.l.b16 %v413
    %v5027 = vunpack.c.h.b16 %v413
    %v5028 = vunpack.c.l.b16 %v414
    %v5029 = vunpack.c.h.b16 %v414
    %v5030 = vunpack.c.l.b16 %v415
    %v5031 = vunpack.c.h.b16 %v415
    %v5032 = vunpack.c.l.b16 %v416
    %v5033 = vunpack.c.h.b16 %v416
    %v5034 = vunpack.c.l.b16 %v417
    %v5035 = vunpack.c.h.b16 %v417
    %v5036 = vunpack.c.l.b16 %v418
    %v5037 = vunpack.c.h.b16 %v418
    %v5038 = vunpack.c.l.b16 %v419
    %v5039 = vunpack.c.h.b16 %v419
    %v5040 = vunpack.c.l.b16 %v420
    %v5041 = vunpack.c.h.b16 %v420
    %v5042 = vunpack.c.l.b16 %v421
    %v5043 = vunpack.c.h.b16 %v421
    %v5044 = vunpack.c.l.b16 %v422
    %v5045 = vunpack.c.h.b16 %v422
    %v5046 = vunpack.c.l.b16 %v423
    %v5047 = vunpack.c.h.b16 %v423
    %v5048 = vunpack.c.l.b16 %v424
    %v5049 = vunpack.c.h.b16 %v424
    %v5050 = vunpack.c.l.b16 %v425
    %v5051 = vunpack.c.h.b16 %v425
    %v5052 = vunpack.c.l.b16 %v426
    %v5053 = vunpack.c.h.b16 %v426
    %v5054 = vunpack.c.l.b16 %v427
    %v5055 = vunpack.c.h.b16 %v427
    %v5056 = vunpack.c.l.b16 %v428
    %v5057 = vunpack.c.h.b16 %v428
    %v5058 = vunpack.c.l.b16 %v429
    %v5059 = vunpack.c.h.b16 %v429
    %v5060 = vunpack.c.l.b16 %v430
    %v5061 = vunpack.c.h.b16 %v430
    %v5062 = vunpack.c.l.b16 %v431
    %v5063 = vunpack.c.h.b16 %v431
    %v5064 = vunpack.c.l.b16 %v432
    %v5065 = vunpack.c.h.b16 %v432
    %v5066 = vunpack.c.l.b16 %v433
    %v5067 = vunpack.c.h.b16 %v433
    %v5068 = vunpack.c.l.b16 %v434
    %v5069 = vunpack.c.h.b16 %v434
    %v5070 = vunpack.c.l.b16 %v435
    %v5071 = vunpack.c.h.b16 %v435
    %v5072 = vunpack.c.l.b16 %v436
    %v5073 = vunpack.c.h.b16 %v436
    %v5074 = vunpack.c.l.b16 %v437
    %v5075 = vunpack.c.h.b16 %v437
    %v5076 = vunpack.c.l.b16 %v438
    %v5077 = vunpack.c.h.b16 %v438
    %v5078 = vunpack.c.l.b16 %v439
    %v5079 = vunpack.c.h.b16 %v439
    %v5080 = vunpack.c.l.b16 %v440
    %v5081 = vunpack.c.h.b16 %v440
    %v5082 = vunpack.c.l.b16 %v441
    %v5083 = vunpack.c.h.b16 %v441
    %v5084 = vunpack.c.l.b16 %v442
    %v5085 = vunpack.c.h.b16 %v442
    %v5086 = vunpack.c.l.b16 %v443
    %v5087 = vunpack.c.h.b16 %v443
    %v5088 = vunpack.c.l.b16 %v444
    %v5089 = vunpack.c.h.b16 %v444
    %v5090 = vunpack.c.l.b16 %v445
    %v5091 = vunpack.c.h.b16 %v445
    %v5092 = vunpack.c.l.b16 %v446
    %v5093 = vunpack.c.h.b16 %v446
    %v5094 = vunpack.c.l.b16 %v447
    %v5095 = vunpack.c.h.b16 %v447
    %v5096 = vunpack.c.l.b16 %v448
    %v5097 = vunpack.c.h.b16 %v448
    %v5098 = vunpack.c.l.b16 %v449
    %v5099 = vunpack.c.h.b16 %v449
    %v5100 = vunpack.c.l.b16 %v450
    %v5101 = vunpack.c.h.b16 %v450
    %v5102 = vunpack.c.l.b16 %v451
    %v5103 = vunpack.c.h.b16 %v451
    %v5104 = vunpack.c.l.b16 %v452
    %v5105 = vunpack.c.h.b16 %v452
    %v5106 = vunpack.c.l.b16 %v453
    %v5107 = vunpack.c.h.b16 %v453
    %v5108 = vunpack.c.l.b16 %v454
    %v5109 = vunpack.c.h.b16 %v454
    %v5110 = vunpack.c.l.b16 %v455
    %v5111 = vunpack.c.h.b16 %v455
    %v5112 = vunpack.c.l.b16 %v456
    %v5113 = vunpack.c.h.b16 %v456
    %v5114 = vunpack.c.l.b16 %v457
    %v5115 = vunpack.c.h.b16 %v457
    %v5116 = vunpack.c.l.b16 %v458
    %v5117 = vunpack.c.h.b16 %v458
    %v5118 = vunpack.c.l.b16 %v459
    %v5119 = vunpack.c.h.b16 %v459
    %v5120 = vunpack.c.l.b16 %v460
    %v5121 = vunpack.c.h.b16 %v460
    %v5122 = vunpack.c.l.b16 %v461
    %v5123 = vunpack.c.h.b16 %v461
    %v5124 = vunpack.c.l.b16 %v462
    %v5125 = vunpack.c.h.b16 %v462
    %v5126 = vunpack.c.l.b16 %v463
    %v5127 = vunpack.c.h.b16 %v463
    %v5128 = vunpack.c.l.b16 %v464
    %v5129 = vunpack.c.h.b16 %v464
    %v5130 = vunpack.c.l.b16 %v465
    %v5131 = vunpack.c.h.b16 %v465
    %v5132 = vunpack.c.l.b16 %v466
    %v5133 = vunpack.c.h.b16 %v466
    %v5134 = vunpack.c.l.b16 %v467
    %v5135 = vunpack.c.h.b16 %v467
    %v5136 = vunpack.c.l.b16 %v468
    %v5137 = vunpack.c.h.b16 %v468
    %v5138 = vunpack.c.l.b16 %v469
    %v5139 = vunpack.c.h.b16 %v469
    %v5140 = vunpack.c.l.b16 %v470
    %v5141 = vunpack.c.h.b16 %v470
    %v5142 = vunpack.c.l.b16 %v471
    %v5143 = vunpack.c.h.b16 %v471
    %v5144 = vunpack.c.l.b16 %v472
    %v5145 = vunpack.c.h.b16 %v472
    %v5146 = vunpack.c.l.b16 %v473
    %v5147 = vunpack.c.h.b16 %v473
    %v5148 = vunpack.c.l.b16 %v474
    %v5149 = vunpack.c.h.b16 %v474
    %v5150 = vunpack.c.l.b16 %v475
    %v5151 = vunpack.c.h.b16 %v475
    %v5152 = vunpack.c.l.b16 %v476
    %v5153 = vunpack.c.h.b16 %v476
    %v5154 = vunpack.c.l.b16 %v477
    %v5155 = vunpack.c.h.b16 %v477
    %v5156 = vunpack.c.l.b16 %v478
    %v5157 = vunpack.c.h.b16 %v478
    %v5158 = vunpack.c.l.b16 %v479
    %v5159 = vunpack.c.h.b16 %v479
    %v5160 = vunpack.c.l.b16 %v480
    %v5161 = vunpack.c.h.b16 %v480
    %v5162 = vunpack.c.l.b16 %v481
    %v5163 = vunpack.c.h.b16 %v481
    %v5164 = vunpack.c.l.b16 %v482
    %v5165 = vunpack.c.h.b16 %v482
    %v5166 = vunpack.c.l.b16 %v483
    %v5167 = vunpack.c.h.b16 %v483
    %v5168 = vunpack.c.l.b16 %v484
    %v5169 = vunpack.c.h.b16 %v484
    %v5170 = vunpack.c.l.b16 %v485
    %v5171 = vunpack.c.h.b16 %v485
    %v5172 = vunpack.c.l.b16 %v486
    %v5173 = vunpack.c.h.b16 %v486
    %v5174 = vunpack.c.l.b16 %v487
    %v5175 = vunpack.c.h.b16 %v487
    %v5176 = vunpack.c.l.b16 %v488
    %v5177 = vunpack.c.h.b16 %v488
    %v5178 = vunpack.c.l.b16 %v489
    %v5179 = vunpack.c.h.b16 %v489
    %v5180 = vunpack.c.l.b16 %v490
    %v5181 = vunpack.c.h.b16 %v490
    %v5182 = vunpack.c.l.b16 %v491
    %v5183 = vunpack.c.h.b16 %v491
    %v5184 = vunpack.c.l.b16 %v492
    %v5185 = vunpack.c.h.b16 %v492
    %v5186 = vunpack.c.l.b16 %v493
    %v5187 = vunpack.c.h.b16 %v493
    %v5188 = vunpack.c.l.b16 %v494
    %v5189 = vunpack.c.h.b16 %v494
    %v5190 = vunpack.c.l.b16 %v495
    %v5191 = vunpack.c.h.b16 %v495
    %v5192 = vunpack.c.l.b16 %v496
    %v5193 = vunpack.c.h.b16 %v496
    %v5194 = vunpack.c.l.b16 %v497
    %v5195 = vunpack.c.h.b16 %v497
    %v5196 = vunpack.c.l.b16 %v498
    %v5197 = vunpack.c.h.b16 %v498
    %v5198 = vunpack.c.l.b16 %v499
    %v5199 = vunpack.c.h.b16 %v499
    %v5200 = vunpack.c.l.b16 %v500
    %v5201 = vunpack.c.h.b16 %v500
    %v5202 = vunpack.c.l.b16 %v501
    %v5203 = vunpack.c.h.b16 %v501
    %v5204 = vunpack.c.l.b16 %v502
    %v5205 = vunpack.c.h.b16 %v502
    %v5206 = vunpack.c.l.b16 %v503
    %v5207 = vunpack.c.h.b16 %v503
    %v5208 = vunpack.c.l.b16 %v504
    %v5209 = vunpack.c.h.b16 %v504
    %v5210 = vunpack.c.l.b16 %v505
    %v5211 = vunpack.c.h.b16 %v505
    %v5212 = vunpack.c.l.b16 %v506
    %v5213 = vunpack.c.h.b16 %v506
    %v5214 = vunpack.c.l.b16 %v507
    %v5215 = vunpack.c.h.b16 %v507
    %v5216 = vunpack.c.l.b16 %v508
    %v5217 = vunpack.c.h.b16 %v508
    %v5218 = vunpack.c.l.b16 %v509
    %v5219 = vunpack.c.h.b16 %v509
    %v5220 = vunpack.c.l.b16 %v510
    %v5221 = vunpack.c.h.b16 %v510
    %v5222 = vunpack.c.l.b16 %v511
    %v5223 = vunpack.c.h.b16 %v511
    %v5224 = vunpack.c.l.b16 %v512
    %v5225 = vunpack.c.h.b16 %v512
    %v5226 = vunpack.c.l.b16 %v513
    %v5227 = vunpack.c.h.b16 %v513
    %v5228 = vunpack.c.l.b16 %v514
    %v5229 = vunpack.c.h.b16 %v514
    %v5230 = vunpack.c.l.b16 %v515
    %v5231 = vunpack.c.h.b16 %v515
    %v5232 = vunpack.c.l.b16 %v516
    %v5233 = vunpack.c.h.b16 %v516
    %v5234 = vunpack.c.l.b16 %v517
    %v5235 = vunpack.c.h.b16 %v517
    %v5236 = vunpack.c.l.b16 %v518
    %v5237 = vunpack.c.h.b16 %v518
    %v5238 = vunpack.c.l.b16 %v519
    %v5239 = vunpack.c.h.b16 %v519
    %v5240 = vunpack.c.l.b16 %v520
    %v5241 = vunpack.c.h.b16 %v520
    %v5242 = vunpack.c.l.b16 %v521
    %v5243 = vunpack.c.h.b16 %v521
    %v5244 = vunpack.c.l.b16 %v522
    %v5245 = vunpack.c.h.b16 %v522
    %v5246 = vunpack.c.l.b16 %v523
    %v5247 = vunpack.c.h.b16 %v523
    %v5248 = vunpack.c.l.b16 %v524
    %v5249 = vunpack.c.h.b16 %v524
    %v5250 = vunpack.c.l.b16 %v525
    %v5251 = vunpack.c.h.b16 %v525
    %v5252 = vunpack.c.l.b16 %v526
    %v5253 = vunpack.c.h.b16 %v526
    %v5254 = vunpack.c.l.b16 %v527
    %v5255 = vunpack.c.h.b16 %v527
    %v5256 = vunpack.c.l.b16 %v528
    %v5257 = vunpack.c.h.b16 %v528
    %v5258 = vunpack.c.l.b16 %v529
    %v5259 = vunpack.c.h.b16 %v529
    %v5260 = vunpack.c.l.b16 %v530
    %v5261 = vunpack.c.h.b16 %v530
    %v5262 = vunpack.c.l.b16 %v531
    %v5263 = vunpack.c.h.b16 %v531
    %v5264 = vunpack.c.l.b16 %v532
    %v5265 = vunpack.c.h.b16 %v532
    %v5266 = vunpack.c.l.b16 %v533
    %v5267 = vunpack.c.h.b16 %v533
    %v5268 = vunpack.c.l.b16 %v534
    %v5269 = vunpack.c.h.b16 %v534
    %v5270 = vunpack.c.l.b16 %v535
    %v5271 = vunpack.c.h.b16 %v535
    %v5272 = vunpack.c.l.b16 %v536
    %v5273 = vunpack.c.h.b16 %v536
    %v5274 = vunpack.c.l.b16 %v537
    %v5275 = vunpack.c.h.b16 %v537
    %v5276 = vunpack.c.l.b16 %v538
    %v5277 = vunpack.c.h.b16 %v538
    %v5278 = vunpack.c.l.b16 %v539
    %v5279 = vunpack.c.h.b16 %v539
    %v5280 = vunpack.c.l.b16 %v540
    %v5281 = vunpack.c.h.b16 %v540
    %v5282 = vunpack.c.l.b16 %v541
    %v5283 = vunpack.c.h.b16 %v541
    %v5284 = vunpack.c.l.b16 %v542
    %v5285 = vunpack.c.h.b16 %v542
    %v5286 = vunpack.c.l.b16 %v543
    %v5287 = vunpack.c.h.b16 %v543
    %v5288 = vunpack.c.l.b16 %v544
    %v5289 = vunpack.c.h.b16 %v544
    %v5290 = vunpack.c.l.b16 %v545
    %v5291 = vunpack.c.h.b16 %v545
    %v5292 = vunpack.c.l.b16 %v546
    %v5293 = vunpack.c.h.b16 %v546
    %v5294 = vunpack.c.l.b16 %v547
    %v5295 = vunpack.c.h.b16 %v547
    %v5296 = vunpack.c.l.b16 %v548
    %v5297 = vunpack.c.h.b16 %v548
    %v5298 = vunpack.c.l.b16 %v549
    %v5299 = vunpack.c.h.b16 %v549
    %v5300 = vunpack.c.l.b16 %v550
    %v5301 = vunpack.c.h.b16 %v550
    %v5302 = vunpack.c.l.b16 %v551
    %v5303 = vunpack.c.h.b16 %v551
    %v5304 = vunpack.c.l.b16 %v552
    %v5305 = vunpack.c.h.b16 %v552
    %v5306 = vunpack.c.l.b16 %v553
    %v5307 = vunpack.c.h.b16 %v553
    %v5308 = vunpack.c.l.b16 %v554
    %v5309 = vunpack.c.h.b16 %v554
    %v5310 = vunpack.c.l.b16 %v555
    %v5311 = vunpack.c.h.b16 %v555
    %v5312 = vunpack.c.l.b16 %v556
    %v5313 = vunpack.c.h.b16 %v556
    %v5314 = vunpack.c.l.b16 %v557
    %v5315 = vunpack.c.h.b16 %v557
    %v5316 = vunpack.c.l.b16 %v558
    %v5317 = vunpack.c.h.b16 %v558
    %v5318 = vunpack.c.l.b16 %v559
    %v5319 = vunpack.c.h.b16 %v559
    %v5320 = vunpack.c.l.b16 %v560
    %v5321 = vunpack.c.h.b16 %v560
    %v5322 = vunpack.c.l.b16 %v561
    %v5323 = vunpack.c.h.b16 %v561
    %v5324 = vunpack.c.l.b16 %v562
    %v5325 = vunpack.c.h.b16 %v562
    %v5326 = vunpack.c.l.b16 %v563
    %v5327 = vunpack.c.h.b16 %v563
    %v5328 = vunpack.c.l.b16 %v564
    %v5329 = vunpack.c.h.b16 %v564
    %v5330 = vunpack.c.l.b16 %v565
    %v5331 = vunpack.c.h.b16 %v565
    %v5332 = vunpack.c.l.b16 %v566
    %v5333 = vunpack.c.h.b16 %v566
    %v5334 = vunpack.c.l.b16 %v567
    %v5335 = vunpack.c.h.b16 %v567
    %v5336 = vunpack.c.l.b16 %v568
    %v5337 = vunpack.c.h.b16 %v568
    %v5338 = vunpack.c.l.b16 %v569
    %v5339 = vunpack.c.h.b16 %v569
    %v5340 = vunpack.c.l.b16 %v570
    %v5341 = vunpack.c.h.b16 %v570
    %v5342 = vunpack.c.l.b16 %v571
    %v5343 = vunpack.c.h.b16 %v571
    %v5344 = vunpack.c.l.b16 %v572
    %v5345 = vunpack.c.h.b16 %v572
    %v5346 = vunpack.c.l.b16 %v573
    %v5347 = vunpack.c.h.b16 %v573
    %v5348 = vunpack.c.l.b16 %v574
    %v5349 = vunpack.c.h.b16 %v574
    %v5350 = vunpack.c.l.b16 %v575
    %v5351 = vunpack.c.h.b16 %v575
    %v5352 = vunpack.c.l.b16 %v576
    %v5353 = vunpack.c.h.b16 %v576
    %v5354 = vunpack.c.l.b16 %v577
    %v5355 = vunpack.c.h.b16 %v577
    %v5356 = vunpack.c.l.b16 %v578
    %v5357 = vunpack.c.h.b16 %v578
    %v5358 = vunpack.c.l.b16 %v579
    %v5359 = vunpack.c.h.b16 %v579
    %v5360 = vunpack.c.l.b16 %v580
    %v5361 = vunpack.c.h.b16 %v580
    %v5362 = vunpack.c.l.b16 %v581
    %v5363 = vunpack.c.h.b16 %v581
    %v5364 = vunpack.c.l.b16 %v582
    %v5365 = vunpack.c.h.b16 %v582
    %v5366 = vunpack.c.l.b16 %v583
    %v5367 = vunpack.c.h.b16 %v583
    %v5368 = vunpack.c.l.b16 %v584
    %v5369 = vunpack.c.h.b16 %v584
    %v5370 = vunpack.c.l.b16 %v585
    %v5371 = vunpack.c.h.b16 %v585
    %v5372 = vunpack.c.l.b16 %v586
    %v5373 = vunpack.c.h.b16 %v586
    %v5374 = vunpack.c.l.b16 %v587
    %v5375 = vunpack.c.h.b16 %v587
    %v5376 = vunpack.c.l.b16 %v588
    %v5377 = vunpack.c.h.b16 %v588
    %v5378 = vunpack.c.l.b16 %v589
    %v5379 = vunpack.c.h.b16 %v589
    %v5380 = vunpack.c.l.b16 %v590
    %v5381 = vunpack.c.h.b16 %v590
    %v5382 = vunpack.c.l.b16 %v591
    %v5383 = vunpack.c.h.b16 %v591
    %v5384 = vunpack.c.l.b16 %v592
    %v5385 = vunpack.c.h.b16 %v592
    %v5386 = vunpack.c.l.b16 %v593
    %v5387 = vunpack.c.h.b16 %v593
    %v5388 = vunpack.c.l.b16 %v594
    %v5389 = vunpack.c.h.b16 %v594
    %v5390 = vunpack.c.l.b16 %v595
    %v5391 = vunpack.c.h.b16 %v595
    %v5392 = vunpack.c.l.b16 %v596
    %v5393 = vunpack.c.h.b16 %v596
    %v5394 = vunpack.c.l.b16 %v597
    %v5395 = vunpack.c.h.b16 %v597
    %v5396 = vunpack.c.l.b16 %v598
    %v5397 = vunpack.c.h.b16 %v598
    %v5398 = vunpack.c.l.b16 %v599
    %v5399 = vunpack.c.h.b16 %v599
    %v5400 = vunpack.c.l.b16 %v600
    %v5401 = vunpack.c.h.b16 %v600
    %v5402 = vunpack.c.l.b16 %v601
    %v5403 = vunpack.c.h.b16 %v601
    %v5404 = vunpack.c.l.b16 %v602
    %v5405 = vunpack.c.h.b16 %v602
    %v5406 = vunpack.c.l.b16 %v603
    %v5407 = vunpack.c.h.b16 %v603
    %v5408 = vunpack.c.l.b16 %v604
    %v5409 = vunpack.c.h.b16 %v604
    %v5410 = vunpack.c.l.b16 %v605
    %v5411 = vunpack.c.h.b16 %v605
    %v5412 = vunpack.c.l.b16 %v606
    %v5413 = vunpack.c.h.b16 %v606
    %v5414 = vunpack.c.l.b16 %v607
    %v5415 = vunpack.c.h.b16 %v607
    %v5416 = vunpack.c.l.b16 %v608
    %v5417 = vunpack.c.h.b16 %v608
    %v5418 = vunpack.c.l.b16 %v609
    %v5419 = vunpack.c.h.b16 %v609
    %v5420 = vunpack.c.l.b16 %v610
    %v5421 = vunpack.c.h.b16 %v610
    %v5422 = vunpack.c.l.b16 %v611
    %v5423 = vunpack.c.h.b16 %v611
    %v5424 = vunpack.c.l.b16 %v612
    %v5425 = vunpack.c.h.b16 %v612
    %v5426 = vunpack.c.l.b16 %v613
    %v5427 = vunpack.c.h.b16 %v613
    %v5428 = vunpack.c.l.b16 %v614
    %v5429 = vunpack.c.h.b16 %v614
    %v5430 = vunpack.c.l.b16 %v615
    %v5431 = vunpack.c.h.b16 %v615
    %v5432 = vunpack.c.l.b16 %v616
    %v5433 = vunpack.c.h.b16 %v616
    %v5434 = vunpack.c.l.b16 %v617
    %v5435 = vunpack.c.h.b16 %v617
    %v5436 = vunpack.c.l.b16 %v618
    %v5437 = vunpack.c.h.b16 %v618
    %v5438 = vunpack.c.l.b16 %v619
    %v5439 = vunpack.c.h.b16 %v619
    %v5440 = vunpack.c.l.b16 %v620
    %v5441 = vunpack.c.h.b16 %v620
    %v5442 = vunpack.c.l.b16 %v621
    %v5443 = vunpack.c.h.b16 %v621
    %v5444 = vunpack.c.l.b16 %v622
    %v5445 = vunpack.c.h.b16 %v622
    %v5446 = vunpack.c.l.b16 %v623
    %v5447 = vunpack.c.h.b16 %v623
    %v5448 = vunpack.c.l.b16 %v624
    %v5449 = vunpack.c.h.b16 %v624
    %v5450 = vunpack.c.l.b16 %v625
    %v5451 = vunpack.c.h.b16 %v625
    %v5452 = vunpack.c.l.b16 %v626
    %v5453 = vunpack.c.h.b16 %v626
    %v5454 = vunpack.c.l.b16 %v627
    %v5455 = vunpack.c.h.b16 %v627
    %v5456 = vunpack.c.l.b16 %v628
    %v5457 = vunpack.c.h.b16 %v628
    %v5458 = vunpack.c.l.b16 %v629
    %v5459 = vunpack.c.h.b16 %v629
    %v5460 = vunpack.c.l.b16 %v630
    %v5461 = vunpack.c.h.b16 %v630
    %v5462 = vunpack.c.l.b16 %v631
    %v5463 = vunpack.c.h.b16 %v631
    %v5464 = vunpack.c.l.b16 %v632
    %v5465 = vunpack.c.h.b16 %v632
    %v5466 = vunpack.c.l.b16 %v633
    %v5467 = vunpack.c.h.b16 %v633
    %v5468 = vunpack.c.l.b16 %v634
    %v5469 = vunpack.c.h.b16 %v634
    %v5470 = vunpack.c.l.b16 %v635
    %v5471 = vunpack.c.h.b16 %v635
    %v5472 = vunpack.c.l.b16 %v636
    %v5473 = vunpack.c.h.b16 %v636
    %v5474 = vunpack.c.l.b16 %v637
    %v5475 = vunpack.c.h.b16 %v637
    %v5476 = vunpack.c.l.b16 %v638
    %v5477 = vunpack.c.h.b16 %v638
    %v5478 = vunpack.c.l.b16 %v639
    %v5479 = vunpack.c.h.b16 %v639
    %v5480 = vunpack.c.l.b16 %v640
    %v5481 = vunpack.c.h.b16 %v640
    %v5482 = vunpack.c.l.b16 %v641
    %v5483 = vunpack.c.h.b16 %v641
    %v5484 = vunpack.c.l.b16 %v642
    %v5485 = vunpack.c.h.b16 %v642
    %v5486 = vunpack.c.l.b16 %v643
    %v5487 = vunpack.c.h.b16 %v643
    %v5488 = vunpack.c.l.b16 %v644
    %v5489 = vunpack.c.h.b16 %v644
    %v5490 = vunpack.c.l.b16 %v645
    %v5491 = vunpack.c.h.b16 %v645
    %v5492 = vunpack.c.l.b16 %v646
    %v5493 = vunpack.c.h.b16 %v646
    %v5494 = vunpack.c.l.b16 %v647
    %v5495 = vunpack.c.h.b16 %v647
    %v5496 = vunpack.c.l.b16 %v648
    %v5497 = vunpack.c.h.b16 %v648
    %v5498 = vunpack.c.l.b16 %v649
    %v5499 = vunpack.c.h.b16 %v649
    %v5500 = vunpack.c.l.b16 %v650
    %v5501 = vunpack.c.h.b16 %v650
    %v5502 = vunpack.c.l.b16 %v651
    %v5503 = vunpack.c.h.b16 %v651
    %v5504 = vunpack.c.l.b16 %v652
    %v5505 = vunpack.c.h.b16 %v652
    %v5506 = vunpack.c.l.b16 %v653
    %v5507 = vunpack.c.h.b16 %v653
    %v5508 = vunpack.c.l.b16 %v654
    %v5509 = vunpack.c.h.b16 %v654
    %v5510 = vunpack.c.l.b16 %v655
    %v5511 = vunpack.c.h.b16 %v655
    %v5512 = vunpack.c.l.b16 %v656
    %v5513 = vunpack.c.h.b16 %v656
    %v5514 = vunpack.c.l.b16 %v657
    %v5515 = vunpack.c.h.b16 %v657
    %v5516 = vunpack.c.l.b16 %v658
    %v5517 = vunpack.c.h.b16 %v658
    %v5518 = vunpack.c.l.b16 %v659
    %v5519 = vunpack.c.h.b16 %v659
    %v5520 = vunpack.c.l.b16 %v660
    %v5521 = vunpack.c.h.b16 %v660
    %v5522 = vunpack.c.l.b16 %v661
    %v5523 = vunpack.c.h.b16 %v661
    %v5524 = vunpack.c.l.b16 %v662
    %v5525 = vunpack.c.h.b16 %v662
    %v5526 = vunpack.c.l.b16 %v663
    %v5527 = vunpack.c.h.b16 %v663
    %v5528 = vunpack.c.l.b16 %v664
    %v5529 = vunpack.c.h.b16 %v664
    %v5530 = vunpack.c.l.b16 %v665
    %v5531 = vunpack.c.h.b16 %v665
    %v5532 = vunpack.c.l.b16 %v666
    %v5533 = vunpack.c.h.b16 %v666
    %v5534 = vunpack.c.l.b16 %v667
    %v5535 = vunpack.c.h.b16 %v667
    %v5536 = vunpack.c.l.b16 %v668
    %v5537 = vunpack.c.h.b16 %v668
    %v5538 = vunpack.c.l.b16 %v669
    %v5539 = vunpack.c.h.b16 %v669
    %v5540 = vunpack.c.l.b16 %v670
    %v5541 = vunpack.c.h.b16 %v670
    %v5542 = vunpack.c.l.b16 %v671
    %v5543 = vunpack.c.h.b16 %v671
    %v5544 = vunpack.c.l.b16 %v672
    %v5545 = vunpack.c.h.b16 %v672
    %v5546 = vunpack.c.l.b16 %v673
    %v5547 = vunpack.c.h.b16 %v673
    %v5548 = vunpack.c.l.b16 %v674
    %v5549 = vunpack.c.h.b16 %v674
    %v5550 = vunpack.c.l.b16 %v675
    %v5551 = vunpack.c.h.b16 %v675
    %v5552 = vunpack.c.l.b16 %v676
    %v5553 = vunpack.c.h.b16 %v676
    %v5554 = vunpack.c.l.b16 %v677
    %v5555 = vunpack.c.h.b16 %v677
    %v5556 = vunpack.c.l.b16 %v678
    %v5557 = vunpack.c.h.b16 %v678
    %v5558 = vunpack.c.l.b16 %v679
    %v5559 = vunpack.c.h.b16 %v679
    %v5560 = vunpack.c.l.b16 %v680
    %v5561 = vunpack.c.h.b16 %v680
    %v5562 = vunpack.c.l.b16 %v681
    %v5563 = vunpack.c.h.b16 %v681
    %v5564 = vunpack.c.l.b16 %v682
    %v5565 = vunpack.c.h.b16 %v682
    %v5566 = vunpack.c.l.b16 %v683
    %v5567 = vunpack.c.h.b16 %v683
    %v5568 = vunpack.c.l.b16 %v684
    %v5569 = vunpack.c.h.b16 %v684
    %v5570 = vunpack.c.l.b16 %v685
    %v5571 = vunpack.c.h.b16 %v685
    %v5572 = vunpack.c.l.b16 %v686
    %v5573 = vunpack.c.h.b16 %v686
    %v5574 = vunpack.c.l.b16 %v687
    %v5575 = vunpack.c.h.b16 %v687
    %v5576 = vunpack.c.l.b16 %v688
    %v5577 = vunpack.c.h.b16 %v688
    %v5578 = vunpack.c.l.b16 %v689
    %v5579 = vunpack.c.h.b16 %v689
    %v5580 = vunpack.c.l.b16 %v690
    %v5581 = vunpack.c.h.b16 %v690
    %v5582 = vunpack.c.l.b16 %v691
    %v5583 = vunpack.c.h.b16 %v691
    %v5584 = vunpack.c.l.b16 %v692
    %v5585 = vunpack.c.h.b16 %v692
    %v5586 = vunpack.c.l.b16 %v693
    %v5587 = vunpack.c.h.b16 %v693
    %v5588 = vunpack.c.l.b16 %v694
    %v5589 = vunpack.c.h.b16 %v694
    %v5590 = vunpack.c.l.b16 %v695
    %v5591 = vunpack.c.h.b16 %v695
    %v5592 = vunpack.c.l.b16 %v696
    %v5593 = vunpack.c.h.b16 %v696
    %v5594 = vunpack.c.l.b16 %v697
    %v5595 = vunpack.c.h.b16 %v697
    %v5596 = vunpack.c.l.b16 %v698
    %v5597 = vunpack.c.h.b16 %v698
    %v5598 = vunpack.c.l.b16 %v699
    %v5599 = vunpack.c.h.b16 %v699
    %v5600 = vunpack.c.l.b16 %v700
    %v5601 = vunpack.c.h.b16 %v700
    %v5602 = vunpack.c.l.b16 %v701
    %v5603 = vunpack.c.h.b16 %v701
    %v5604 = vunpack.c.l.b16 %v702
    %v5605 = vunpack.c.h.b16 %v702
    %v5606 = vunpack.c.l.b16 %v703
    %v5607 = vunpack.c.h.b16 %v703
    %v5608 = vunpack.c.l.b16 %v704
    %v5609 = vunpack.c.h.b16 %v704
    %v5610 = vunpack.c.l.b16 %v705
    %v5611 = vunpack.c.h.b16 %v705
    %v5612 = vunpack.c.l.b16 %v706
    %v5613 = vunpack.c.h.b16 %v706
    %v5614 = vunpack.c.l.b16 %v707
    %v5615 = vunpack.c.h.b16 %v707
    %v5616 = vunpack.c.l.b16 %v708
    %v5617 = vunpack.c.h.b16 %v708
    %v5618 = vunpack.c.l.b16 %v709
    %v5619 = vunpack.c.h.b16 %v709
    %v5620 = vunpack.c.l.b16 %v710
    %v5621 = vunpack.c.h.b16 %v710
    %v5622 = vunpack.c.l.b16 %v711
    %v5623 = vunpack.c.h.b16 %v711
    %v5624 = vunpack.c.l.b16 %v712
    %v5625 = vunpack.c.h.b16 %v712
    %v5626 = vunpack.c.l.b16 %v713
    %v5627 = vunpack.c.h.b16 %v713
    %v5628 = vunpack.c.l.b16 %v714
    %v5629 = vunpack.c.h.b16 %v714
    %v5630 = vunpack.c.l.b16 %v715
    %v5631 = vunpack.c.h.b16 %v715
    %v5632 = vunpack.c.l.b16 %v716
    %v5633 = vunpack.c.h.b16 %v716
    %v5634 = vunpack.c.l.b16 %v717
    %v5635 = vunpack.c.h.b16 %v717
    %v5636 = vunpack.c.l.b16 %v718
    %v5637 = vunpack.c.h.b16 %v718
    %v5638 = vunpack.c.l.b16 %v719
    %v5639 = vunpack.c.h.b16 %v719
    %v5640 = vunpack.c.l.b16 %v720
    %v5641 = vunpack.c.h.b16 %v720
    %v5642 = vunpack.c.l.b16 %v721
    %v5643 = vunpack.c.h.b16 %v721
    %v5644 = vunpack.c.l.b16 %v722
    %v5645 = vunpack.c.h.b16 %v722
    %v5646 = vunpack.c.l.b16 %v723
    %v5647 = vunpack.c.h.b16 %v723
    %v5648 = vunpack.c.l.b16 %v724
    %v5649 = vunpack.c.h.b16 %v724
    %v5650 = vunpack.c.l.b16 %v725
    %v5651 = vunpack.c.h.b16 %v725
    %v5652 = vunpack.c.l.b16 %v726
    %v5653 = vunpack.c.h.b16 %v726
    %v5654 = vunpack.c.l.b16 %v727
    %v5655 = vunpack.c.h.b16 %v727
    %v5656 = vunpack.c.l.b16 %v728
    %v5657 = vunpack.c.h.b16 %v728
    %v5658 = vunpack.c.l.b16 %v729
    %v5659 = vunpack.c.h.b16 %v729
    %v5660 = vunpack.c.l.b16 %v730
    %v5661 = vunpack.c.h.b16 %v730
    %v5662 = vunpack.c.l.b16 %v731
    %v5663 = vunpack.c.h.b16 %v731
    %v5664 = vunpack.c.l.b16 %v732
    %v5665 = vunpack.c.h.b16 %v732
    %v5666 = vunpack.c.l.b16 %v733
    %v5667 = vunpack.c.h.b16 %v733
    %v5668 = vunpack.c.l.b16 %v734
    %v5669 = vunpack.c.h.b16 %v734
    %v5670 = vunpack.c.l.b16 %v735
    %v5671 = vunpack.c.h.b16 %v735
    %v5672 = vunpack.c.l.b16 %v736
    %v5673 = vunpack.c.h.b16 %v736
    %v5674 = vunpack.c.l.b16 %v737
    %v5675 = vunpack.c.h.b16 %v737
    %v5676 = vunpack.c.l.b16 %v738
    %v5677 = vunpack.c.h.b16 %v738
    %v5678 = vunpack.c.l.b16 %v739
    %v5679 = vunpack.c.h.b16 %v739
    %v5680 = vunpack.c.l.b16 %v740
    %v5681 = vunpack.c.h.b16 %v740
    %v5682 = vunpack.c.l.b16 %v741
    %v5683 = vunpack.c.h.b16 %v741
    %v5684 = vunpack.c.l.b16 %v742
    %v5685 = vunpack.c.h.b16 %v742
    %v5686 = vunpack.c.l.b16 %v743
    %v5687 = vunpack.c.h.b16 %v743
    %v5688 = vunpack.c.l.b16 %v744
    %v5689 = vunpack.c.h.b16 %v744
    %v5690 = vunpack.c.l.b16 %v745
    %v5691 = vunpack.c.h.b16 %v745
    %v5692 = vunpack.c.l.b16 %v746
    %v5693 = vunpack.c.h.b16 %v746
    %v5694 = vunpack.c.l.b16 %v747
    %v5695 = vunpack.c.h.b16 %v747
    %v5696 = vunpack.c.l.b16 %v748
    %v5697 = vunpack.c.h.b16 %v748
    %v5698 = vunpack.c.l.b16 %v749
    %v5699 = vunpack.c.h.b16 %v749
    %v5700 = vunpack.c.l.b16 %v750
    %v5701 = vunpack.c.h.b16 %v750
    %v5702 = vunpack.c.l.b16 %v751
    %v5703 = vunpack.c.h.b16 %v751
    %v5704 = vunpack.c.l.b16 %v752
    %v5705 = vunpack.c.h.b16 %v752
    %v5706 = vunpack.c.l.b16 %v753
    %v5707 = vunpack.c.h.b16 %v753
    %v5708 = vunpack.c.l.b16 %v754
    %v5709 = vunpack.c.h.b16 %v754
    %v5710 = vunpack.c.l.b16 %v755
    %v5711 = vunpack.c.h.b16 %v755
    %v5712 = vunpack.c.l.b16 %v756
    %v5713 = vunpack.c.h.b16 %v756
    %v5714 = vunpack.c.l.b16 %v757
    %v5715 = vunpack.c.h.b16 %v757
    %v5716 = vunpack.c.l.b16 %v758
    %v5717 = vunpack.c.h.b16 %v758
    %v5718 = vunpack.c.l.b16 %v759
    %v5719 = vunpack.c.h.b16 %v759
    %v5720 = vunpack.c.l.b16 %v760
    %v5721 = vunpack.c.h.b16 %v760
    %v5722 = vunpack.c.l.b16 %v761
    %v5723 = vunpack.c.h.b16 %v761
    %v5724 = vunpack.c.l.b16 %v762
    %v5725 = vunpack.c.h.b16 %v762
    %v5726 = vunpack.c.l.b16 %v763
    %v5727 = vunpack.c.h.b16 %v763
    %v5728 = vunpack.c.l.b16 %v764
    %v5729 = vunpack.c.h.b16 %v764
    %v5730 = vunpack.c.l.b16 %v765
    %v5731 = vunpack.c.h.b16 %v765
    %v5732 = vunpack.c.l.b16 %v766
    %v5733 = vunpack.c.h.b16 %v766
    %v5734 = vunpack.c.l.b16 %v767
    %v5735 = vunpack.c.h.b16 %v767
    %v5736 = vunpack.c.l.b16 %v768
    %v5737 = vunpack.c.h.b16 %v768
    %v5738 = vunpack.c.l.b16 %v769
    %v5739 = vunpack.c.h.b16 %v769
    %v5740 = vunpack.c.l.b16 %v770
    %v5741 = vunpack.c.h.b16 %v770
    %v5742 = vunpack.c.l.b16 %v771
    %v5743 = vunpack.c.h.b16 %v771
    %v5744 = vunpack.c.l.b16 %v772
    %v5745 = vunpack.c.h.b16 %v772
    %v5746 = vunpack.c.l.b16 %v773
    %v5747 = vunpack.c.h.b16 %v773
    %v5748 = vunpack.c.l.b16 %v774
    %v5749 = vunpack.c.h.b16 %v774
    %v5750 = vunpack.c.l.b16 %v775
    %v5751 = vunpack.c.h.b16 %v775
    %v5752 = vunpack.c.l.b16 %v776
    %v5753 = vunpack.c.h.b16 %v776
    %v5754 = vunpack.c.l.b16 %v777
    %v5755 = vunpack.c.h.b16 %v777
    %v5756 = vunpack.c.l.b16 %v778
    %v5757 = vunpack.c.h.b16 %v778
    %v5758 = vunpack.c.l.b16 %v779
    %v5759 = vunpack.c.h.b16 %v779
    %v5760 = vunpack.c.l.b16 %v780
    %v5761 = vunpack.c.h.b16 %v780
    %v5762 = vunpack.c.l.b16 %v781
    %v5763 = vunpack.c.h.b16 %v781
    %v5764 = vpack.c.b16 %v4492, %v4484
    %v5765 = vpack.c.b16 %v4493, %v4485
    %v5766 = vpack.c.b16 %v4494, %v4486
    %v5767 = vpack.c.b16 %v4495, %v4487
    %v5768 = vpack.c.b16 %v4496, %v4488
    %v5769 = vpack.c.b16 %v4497, %v4489
    %v5770 = vpack.c.b16 %v4498, %v4490
    %v5771 = vpack.c.b16 %v4499, %v4491
    %v5772 = vpack.c.b16 %v4508, %v4500
    %v5773 = vpack.c.b16 %v4509, %v4501
    %v5774 = vpack.c.b16 %v4510, %v4502
    %v5775 = vpack.c.b16 %v4511, %v4503
    %v5776 = vpack.c.b16 %v4512, %v4504
    %v5777 = vpack.c.b16 %v4513, %v4505
    %v5778 = vpack.c.b16 %v4514, %v4506
    %v5779 = vpack.c.b16 %v4515, %v4507
    %v5780 = vpack.c.b16 %v4524, %v4516
    %v5781 = vpack.c.b16 %v4525, %v4517
    %v5782 = vpack.c.b16 %v4526, %v4518
    %v5783 = vpack.c.b16 %v4527, %v4519
    %v5784 = vpack.c.b16 %v4528, %v4520
    %v5785 = vpack.c.b16 %v4529, %v4521
    %v5786 = vpack.c.b16 %v4530, %v4522
    %v5787 = vpack.c.b16 %v4531, %v4523
    %v5788 = vpack.c.b16 %v4540, %v4532
    %v5789 = vpack.c.b16 %v4541, %v4533
    %v5790 = vpack.c.b16 %v4542, %v4534
    %v5791 = vpack.c.b16 %v4543, %v4535
    %v5792 = vpack.c.b16 %v4544, %v4536
    %v5793 = vpack.c.b16 %v4545, %v4537
    %v5794 = vpack.c.b16 %v4546, %v4538
    %v5795 = vpack.c.b16 %v4547, %v4539
    %v5796 = vpack.c.b16 %v4556, %v4548
    %v5797 = vpack.c.b16 %v4557, %v4549
    %v5798 = vpack.c.b16 %v4558, %v4550
    %v5799 = vpack.c.b16 %v4559, %v4551
    %v5800 = vpack.c.b16 %v4560, %v4552
    %v5801 = vpack.c.b16 %v4561, %v4553
    %v5802 = vpack.c.b16 %v4562, %v4554
    %v5803 = vpack.c.b16 %v4563, %v4555
    %v5804 = vpack.c.b16 %v4572, %v4564
    %v5805 = vpack.c.b16 %v4573, %v4565
    %v5806 = vpack.c.b16 %v4574, %v4566
    %v5807 = vpack.c.b16 %v4575, %v4567
    %v5808 = vpack.c.b16 %v4576, %v4568
    %v5809 = vpack.c.b16 %v4577, %v4569
    %v5810 = vpack.c.b16 %v4578, %v4570
    %v5811 = vpack.c.b16 %v4579, %v4571
    %v5812 = vpack.c.b16 %v4588, %v4580
    %v5813 = vpack.c.b16 %v4589, %v4581
    %v5814 = vpack.c.b16 %v4590, %v4582
    %v5815 = vpack.c.b16 %v4591, %v4583
    %v5816 = vpack.c.b16 %v4592, %v4584
    %v5817 = vpack.c.b16 %v4593, %v4585
    %v5818 = vpack.c.b16 %v4594, %v4586
    %v5819 = vpack.c.b16 %v4595, %v4587
    %v5820 = vpack.c.b16 %v4604, %v4596
    %v5821 = vpack.c.b16 %v4605, %v4597
    %v5822 = vpack.c.b16 %v4606, %v4598
    %v5823 = vpack.c.b16 %v4607, %v4599
    %v5824 = vpack.c.b16 %v4608, %v4600
    %v5825 = vpack.c.b16 %v4609, %v4601
    %v5826 = vpack.c.b16 %v4610, %v4602
    %v5827 = vpack.c.b16 %v4611, %v4603
    %v5828 = vpack.c.b16 %v4620, %v4612
    %v5829 = vpack.c.b16 %v4621, %v4613
    %v5830 = vpack.c.b16 %v4622, %v4614
    %v5831 = vpack.c.b16 %v4623, %v4615
    %v5832 = vpack.c.b16 %v4624, %v4616
    %v5833 = vpack.c.b16 %v4625, %v4617
    %v5834 = vpack.c.b16 %v4626, %v4618
    %v5835 = vpack.c.b16 %v4627, %v4619
    %v5836 = vpack.c.b16 %v4636, %v4628
    %v5837 = vpack.c.b16 %v4637, %v4629
    %v5838 = vpack.c.b16 %v4638, %v4630
    %v5839 = vpack.c.b16 %v4639, %v4631
    %v5840 = vpack.c.b16 %v4640, %v4632
    %v5841 = vpack.c.b16 %v4641, %v4633
    %v5842 = vpack.c.b16 %v4642, %v4634
    %v5843 = vpack.c.b16 %v4643, %v4635
    %v5844 = vpack.c.b16 %v4652, %v4644
    %v5845 = vpack.c.b16 %v4653, %v4645
    %v5846 = vpack.c.b16 %v4654, %v4646
    %v5847 = vpack.c.b16 %v4655, %v4647
    %v5848 = vpack.c.b16 %v4656, %v4648
    %v5849 = vpack.c.b16 %v4657, %v4649
    %v5850 = vpack.c.b16 %v4658, %v4650
    %v5851 = vpack.c.b16 %v4659, %v4651
    %v5852 = vpack.c.b16 %v4668, %v4660
    %v5853 = vpack.c.b16 %v4669, %v4661
    %v5854 = vpack.c.b16 %v4670, %v4662
    %v5855 = vpack.c.b16 %v4671, %v4663
    %v5856 = vpack.c.b16 %v4672, %v4664
    %v5857 = vpack.c.b16 %v4673, %v4665
    %v5858 = vpack.c.b16 %v4674, %v4666
    %v5859 = vpack.c.b16 %v4675, %v4667
    %v5860 = vpack.c.b16 %v4684, %v4676
    %v5861 = vpack.c.b16 %v4685, %v4677
    %v5862 = vpack.c.b16 %v4686, %v4678
    %v5863 = vpack.c.b16 %v4687, %v4679
    %v5864 = vpack.c.b16 %v4688, %v4680
    %v5865 = vpack.c.b16 %v4689, %v4681
    %v5866 = vpack.c.b16 %v4690, %v4682
    %v5867 = vpack.c.b16 %v4691, %v4683
    %v5868 = vpack.c.b16 %v4700, %v4692
    %v5869 = vpack.c.b16 %v4701, %v4693
    %v5870 = vpack.c.b16 %v4702, %v4694
    %v5871 = vpack.c.b16 %v4703, %v4695
    %v5872 = vpack.c.b16 %v4704, %v4696
    %v5873 = vpack.c.b16 %v4705, %v4697
    %v5874 = vpack.c.b16 %v4706, %v4698
    %v5875 = vpack.c.b16 %v4707, %v4699
    %v5876 = vpack.c.b16 %v4716, %v4708
    %v5877 = vpack.c.b16 %v4717, %v4709
    %v5878 = vpack.c.b16 %v4718, %v4710
    %v5879 = vpack.c.b16 %v4719, %v4711
    %v5880 = vpack.c.b16 %v4720, %v4712
    %v5881 = vpack.c.b16 %v4721, %v4713
    %v5882 = vpack.c.b16 %v4722, %v4714
    %v5883 = vpack.c.b16 %v4723, %v4715
    %v5884 = vpack.c.b16 %v4732, %v4724
    %v5885 = vpack.c.b16 %v4733, %v4725
    %v5886 = vpack.c.b16 %v4734, %v4726
    %v5887 = vpack.c.b16 %v4735, %v4727
    %v5888 = vpack.c.b16 %v4736, %v4728
    %v5889 = vpack.c.b16 %v4737, %v4729
    %v5890 = vpack.c.b16 %v4738, %v4730
    %v5891 = vpack.c.b16 %v4739, %v4731
    %v5892 = vpack.c.b16 %v4748, %v4740
    %v5893 = vpack.c.b16 %v4749, %v4741
    %v5894 = vpack.c.b16 %v4750, %v4742
    %v5895 = vpack.c.b16 %v4751, %v4743
    %v5896 = vpack.c.b16 %v4752, %v4744
    %v5897 = vpack.c.b16 %v4753, %v4745
    %v5898 = vpack.c.b16 %v4754, %v4746
    %v5899 = vpack.c.b16 %v4755, %v4747
    %v5900 = vpack.c.b16 %v4764, %v4756
    %v5901 = vpack.c.b16 %v4765, %v4757
    %v5902 = vpack.c.b16 %v4766, %v4758
    %v5903 = vpack.c.b16 %v4767, %v4759
    %v5904 = vpack.c.b16 %v4768, %v4760
    %v5905 = vpack.c.b16 %v4769, %v4761
    %v5906 = vpack.c.b16 %v4770, %v4762
    %v5907 = vpack.c.b16 %v4771, %v4763
    %v5908 = vpack.c.b16 %v4780, %v4772
    %v5909 = vpack.c.b16 %v4781, %v4773
    %v5910 = vpack.c.b16 %v4782, %v4774
    %v5911 = vpack.c.b16 %v4783, %v4775
    %v5912 = vpack.c.b16 %v4784, %v4776
    %v5913 = vpack.c.b16 %v4785, %v4777
    %v5914 = vpack.c.b16 %v4786, %v4778
    %v5915 = vpack.c.b16 %v4787, %v4779
    %v5916 = vpack.c.b16 %v4796, %v4788
    %v5917 = vpack.c.b16 %v4797, %v4789
    %v5918 = vpack.c.b16 %v4798, %v4790
    %v5919 = vpack.c.b16 %v4799, %v4791
    %v5920 = vpack.c.b16 %v4800, %v4792
    %v5921 = vpack.c.b16 %v4801, %v4793
    %v5922 = vpack.c.b16 %v4802, %v4794
    %v5923 = vpack.c.b16 %v4803, %v4795
    %v5924 = vpack.c.b16 %v4812, %v4804
    %v5925 = vpack.c.b16 %v4813, %v4805
    %v5926 = vpack.c.b16 %v4814, %v4806
    %v5927 = vpack.c.b16 %v4815, %v4807
    %v5928 = vpack.c.b16 %v4816, %v4808
    %v5929 = vpack.c.b16 %v4817, %v4809
    %v5930 = vpack.c.b16 %v4818, %v4810
    %v5931 = vpack.c.b16 %v4819, %v4811
    %v5932 = vpack.c.b16 %v4828, %v4820
    %v5933 = vpack.c.b16 %v4829, %v4821
    %v5934 = vpack.c.b16 %v4830, %v4822
    %v5935 = vpack.c.b16 %v4831, %v4823
    %v5936 = vpack.c.b16 %v4832, %v4824
    %v5937 = vpack.c.b16 %v4833, %v4825
    %v5938 = vpack.c.b16 %v4834, %v4826
    %v5939 = vpack.c.b16 %v4835, %v4827
    %v5940 = vpack.c.b16 %v4844, %v4836
    %v5941 = vpack.c.b16 %v4845, %v4837
    %v5942 = vpack.c.b16 %v4846, %v4838
    %v5943 = vpack.c.b16 %v4847, %v4839
    %v5944 = vpack.c.b16 %v4848, %v4840
    %v5945 = vpack.c.b16 %v4849, %v4841
    %v5946 = vpack.c.b16 %v4850, %v4842
    %v5947 = vpack.c.b16 %v4851, %v4843
    %v5948 = vpack.c.b16 %v4860, %v4852
    %v5949 = vpack.c.b16 %v4861, %v4853
    %v5950 = vpack.c.b16 %v4862, %v4854
    %v5951 = vpack.c.b16 %v4863, %v4855
    %v5952 = vpack.c.b16 %v4864, %v4856
    %v5953 = vpack.c.b16 %v4865, %v4857
    %v5954 = vpack.c.b16 %v4866, %v4858
    %v5955 = vpack.c.b16 %v4867, %v4859
    %v5956 = vpack.c.b16 %v4876, %v4868
    %v5957 = vpack.c.b16 %v4877, %v4869
    %v5958 = vpack.c.b16 %v4878, %v4870
    %v5959 = vpack.c.b16 %v4879, %v4871
    %v5960 = vpack.c.b16 %v4880, %v4872
    %v5961 = vpack.c.b16 %v4881, %v4873
    %v5962 = vpack.c.b16 %v4882, %v4874
    %v5963 = vpack.c.b16 %v4883, %v4875
    %v5964 = vpack.c.b16 %v4892, %v4884
    %v5965 = vpack.c.b16 %v4893, %v4885
    %v5966 = vpack.c.b16 %v4894, %v4886
    %v5967 = vpack.c.b16 %v4895, %v4887
    %v5968 = vpack.c.b16 %v4896, %v4888
    %v5969 = vpack.c.b16 %v4897, %v4889
    %v5970 = vpack.c.b16 %v4898, %v4890
    %v5971 = vpack.c.b16 %v4899, %v4891
    %v5972 = vpack.c.b16 %v4908, %v4900
    %v5973 = vpack.c.b16 %v4909, %v4901
    %v5974 = vpack.c.b16 %v4910, %v4902
    %v5975 = vpack.c.b16 %v4911, %v4903
    %v5976 = vpack.c.b16 %v4912, %v4904
    %v5977 = vpack.c.b16 %v4913, %v4905
    %v5978 = vpack.c.b16 %v4914, %v4906
    %v5979 = vpack.c.b16 %v4915, %v4907
    %v5980 = vpack.c.b16 %v4924, %v4916
    %v5981 = vpack.c.b16 %v4925, %v4917
    %v5982 = vpack.c.b16 %v4926, %v4918
    %v5983 = vpack.c.b16 %v4927, %v4919
    %v5984 = vpack.c.b16 %v4928, %v4920
    %v5985 = vpack.c.b16 %v4929, %v4921
    %v5986 = vpack.c.b16 %v4930, %v4922
    %v5987 = vpack.c.b16 %v4931, %v4923
    %v5988 = vpack.c.b16 %v4940, %v4932
    %v5989 = vpack.c.b16 %v4941, %v4933
    %v5990 = vpack.c.b16 %v4942, %v4934
    %v5991 = vpack.c.b16 %v4943, %v4935
    %v5992 = vpack.c.b16 %v4944, %v4936
    %v5993 = vpack.c.b16 %v4945, %v4937
    %v5994 = vpack.c.b16 %v4946, %v4938
    %v5995 = vpack.c.b16 %v4947, %v4939
    %v5996 = vpack.c.b16 %v4956, %v4948
    %v5997 = vpack.c.b16 %v4957, %v4949
    %v5998 = vpack.c.b16 %v4958, %v4950
    %v5999 = vpack.c.b16 %v4959, %v4951
    %v6000 = vpack.c.b16 %v4960, %v4952
    %v6001 = vpack.c.b16 %v4961, %v4953
    %v6002 = vpack.c.b16 %v4962, %v4954
    %v6003 = vpack.c.b16 %v4963, %v4955
    %v6004 = vpack.c.b16 %v4972, %v4964
    %v6005 = vpack.c.b16 %v4973, %v4965
    %v6006 = vpack.c.b16 %v4974, %v4966
    %v6007 = vpack.c.b16 %v4975, %v4967
    %v6008 = vpack.c.b16 %v4976, %v4968
    %v6009 = vpack.c.b16 %v4977, %v4969
    %v6010 = vpack.c.b16 %v4978, %v4970
    %v6011 = vpack.c.b16 %v4979, %v4971
    %v6012 = vpack.c.b16 %v4988, %v4980
    %v6013 = vpack.c.b16 %v4989, %v4981
    %v6014 = vpack.c.b16 %v4990, %v4982
    %v6015 = vpack.c.b16 %v4991, %v4983
    %v6016 = vpack.c.b16 %v4992, %v4984
    %v6017 = vpack.c.b16 %v4993, %v4985
    %v6018 = vpack.c.b16 %v4994, %v4986
    %v6019 = vpack.c.b16 %v4995, %v4987
    %v6020 = vpack.c.b16 %v5004, %v4996
    %v6021 = vpack.c.b16 %v5005, %v4997
    %v6022 = vpack.c.b16 %v5006, %v4998
    %v6023 = vpack.c.b16 %v5007, %v4999
    %v6024 = vpack.c.b16 %v5008, %v5000
    %v6025 = vpack.c.b16 %v5009, %v5001
    %v6026 = vpack.c.b16 %v5010, %v5002
    %v6027 = vpack.c.b16 %v5011, %v5003
    %v6028 = vpack.c.b16 %v5020, %v5012
    %v6029 = vpack.c.b16 %v5021, %v5013
    %v6030 = vpack.c.b16 %v5022, %v5014
    %v6031 = vpack.c.b16 %v5023, %v5015
    %v6032 = vpack.c.b16 %v5024, %v5016
    %v6033 = vpack.c.b16 %v5025, %v5017
    %v6034 = vpack.c.b16 %v5026, %v5018
    %v6035 = vpack.c.b16 %v5027, %v5019
    %v6036 = vpack.c.b16 %v5036, %v5028
    %v6037 = vpack.c.b16 %v5037, %v5029
    %v6038 = vpack.c.b16 %v5038, %v5030
    %v6039 = vpack.c.b16 %v5039, %v5031
    %v6040 = vpack.c.b16 %v5040, %v5032
    %v6041 = vpack.c.b16 %v5041, %v5033
    %v6042 = vpack.c.b16 %v5042, %v5034
    %v6043 = vpack.c.b16 %v5043, %v5035
    %v6044 = vpack.c.b16 %v5052, %v5044
    %v6045 = vpack.c.b16 %v5053, %v5045
    %v6046 = vpack.c.b16 %v5054, %v5046
    %v6047 = vpack.c.b16 %v5055, %v5047
    %v6048 = vpack.c.b16 %v5056, %v5048
    %v6049 = vpack.c.b16 %v5057, %v5049
    %v6050 = vpack.c.b16 %v5058, %v5050
    %v6051 = vpack.c.b16 %v5059, %v5051
    %v6052 = vpack.c.b16 %v5068, %v5060
    %v6053 = vpack.c.b16 %v5069, %v5061
    %v6054 = vpack.c.b16 %v5070, %v5062
    %v6055 = vpack.c.b16 %v5071, %v5063
    %v6056 = vpack.c.b16 %v5072, %v5064
    %v6057 = vpack.c.b16 %v5073, %v5065
    %v6058 = vpack.c.b16 %v5074, %v5066
    %v6059 = vpack.c.b16 %v5075, %v5067
    %v6060 = vpack.c.b16 %v5084, %v5076
    %v6061 = vpack.c.b16 %v5085, %v5077
    %v6062 = vpack.c.b16 %v5086, %v5078
    %v6063 = vpack.c.b16 %v5087, %v5079
    %v6064 = vpack.c.b16 %v5088, %v5080
    %v6065 = vpack.c.b16 %v5089, %v5081
    %v6066 = vpack.c.b16 %v5090, %v5082
    %v6067 = vpack.c.b16 %v5091, %v5083
    %v6068 = vpack.c.b16 %v5100, %v5092
    %v6069 = vpack.c.b16 %v5101, %v5093
    %v6070 = vpack.c.b16 %v5102, %v5094
    %v6071 = vpack.c.b16 %v5103, %v5095
    %v6072 = vpack.c.b16 %v5104, %v5096
    %v6073 = vpack.c.b16 %v5105, %v5097
    %v6074 = vpack.c.b16 %v5106, %v5098
    %v6075 = vpack.c.b16 %v5107, %v5099
    %v6076 = vpack.c.b16 %v5116, %v5108
    %v6077 = vpack.c.b16 %v5117, %v5109
    %v6078 = vpack.c.b16 %v5118, %v5110
    %v6079 = vpack.c.b16 %v5119, %v5111
    %v6080 = vpack.c.b16 %v5120, %v5112
    %v6081 = vpack.c.b16 %v5121, %v5113
    %v6082 = vpack.c.b16 %v5122, %v5114
    %v6083 = vpack.c.b16 %v5123, %v5115
    %v6084 = vpack.c.b16 %v5132, %v5124
    %v6085 = vpack.c.b16 %v5133, %v5125
    %v6086 = vpack.c.b16 %v5134, %v5126
    %v6087 = vpack.c.b16 %v5135, %v5127
    %v6088 = vpack.c.b16 %v5136, %v5128
    %v6089 = vpack.c.b16 %v5137, %v5129
    %v6090 = vpack.c.b16 %v5138, %v5130
    %v6091 = vpack.c.b16 %v5139, %v5131
    %v6092 = vpack.c.b16 %v5148, %v5140
    %v6093 = vpack.c.b16 %v5149, %v5141
    %v6094 = vpack.c.b16 %v5150, %v5142
    %v6095 = vpack.c.b16 %v5151, %v5143
    %v6096 = vpack.c.b16 %v5152, %v5144
    %v6097 = vpack.c.b16 %v5153, %v5145
    %v6098 = vpack.c.b16 %v5154, %v5146
    %v6099 = vpack.c.b16 %v5155, %v5147
    %v6100 = vpack.c.b16 %v5164, %v5156
    %v6101 = vpack.c.b16 %v5165, %v5157
    %v6102 = vpack.c.b16 %v5166, %v5158
    %v6103 = vpack.c.b16 %v5167, %v5159
    %v6104 = vpack.c.b16 %v5168, %v5160
    %v6105 = vpack.c.b16 %v5169, %v5161
    %v6106 = vpack.c.b16 %v5170, %v5162
    %v6107 = vpack.c.b16 %v5171, %v5163
    %v6108 = vpack.c.b16 %v5180, %v5172
    %v6109 = vpack.c.b16 %v5181, %v5173
    %v6110 = vpack.c.b16 %v5182, %v5174
    %v6111 = vpack.c.b16 %v5183, %v5175
    %v6112 = vpack.c.b16 %v5184, %v5176
    %v6113 = vpack.c.b16 %v5185, %v5177
    %v6114 = vpack.c.b16 %v5186, %v5178
    %v6115 = vpack.c.b16 %v5187, %v5179
    %v6116 = vpack.c.b16 %v5196, %v5188
    %v6117 = vpack.c.b16 %v5197, %v5189
    %v6118 = vpack.c.b16 %v5198, %v5190
    %v6119 = vpack.c.b16 %v5199, %v5191
    %v6120 = vpack.c.b16 %v5200, %v5192
    %v6121 = vpack.c.b16 %v5201, %v5193
    %v6122 = vpack.c.b16 %v5202, %v5194
    %v6123 = vpack.c.b16 %v5203, %v5195
    %v6124 = vpack.c.b16 %v5212, %v5204
    %v6125 = vpack.c.b16 %v5213, %v5205
    %v6126 = vpack.c.b16 %v5214, %v5206
    %v6127 = vpack.c.b16 %v5215, %v5207
    %v6128 = vpack.c.b16 %v5216, %v5208
    %v6129 = vpack.c.b16 %v5217, %v5209
    %v6130 = vpack.c.b16 %v5218, %v5210
    %v6131 = vpack.c.b16 %v5219, %v5211
    %v6132 = vpack.c.b16 %v5228, %v5220
    %v6133 = vpack.c.b16 %v5229, %v5221
    %v6134 = vpack.c.b16 %v5230, %v5222
    %v6135 = vpack.c.b16 %v5231, %v5223
    %v6136 = vpack.c.b16 %v5232, %v5224
    %v6137 = vpack.c.b16 %v5233, %v5225
    %v6138 = vpack.c.b16 %v5234, %v5226
    %v6139 = vpack.c.b16 %v5235, %v5227
    %v6140 = vpack.c.b16 %v5244, %v5236
    %v6141 = vpack.c.b16 %v5245, %v5237
    %v6142 = vpack.c.b16 %v5246, %v5238
    %v6143 = vpack.c.b16 %v5247, %v5239
    %v6144 = vpack.c.b16 %v5248, %v5240
    %v6145 = vpack.c.b16 %v5249, %v5241
    %v6146 = vpack.c.b16 %v5250, %v5242
    %v6147 = vpack.c.b16 %v5251, %v5243
    %v6148 = vpack.c.b16 %v5260, %v5252
    %v6149 = vpack.c.b16 %v5261, %v5253
    %v6150 = vpack.c.b16 %v5262, %v5254
    %v6151 = vpack.c.b16 %v5263, %v5255
    %v6152 = vpack.c.b16 %v5264, %v5256
    %v6153 = vpack.c.b16 %v5265, %v5257
    %v6154 = vpack.c.b16 %v5266, %v5258
    %v6155 = vpack.c.b16 %v5267, %v5259
    %v6156 = vpack.c.b16 %v5276, %v5268
    %v6157 = vpack.c.b16 %v5277, %v5269
    %v6158 = vpack.c.b16 %v5278, %v5270
    %v6159 = vpack.c.b16 %v5279, %v5271
    %v6160 = vpack.c.b16 %v5280, %v5272
    %v6161 = vpack.c.b16 %v5281, %v5273
    %v6162 = vpack.c.b16 %v5282, %v5274
    %v6163 = vpack.c.b16 %v5283, %v5275
    %v6164 = vpack.c.b16 %v5292, %v5284
    %v6165 = vpack.c.b16 %v5293, %v5285
    %v6166 = vpack.c.b16 %v5294, %v5286
    %v6167 = vpack.c.b16 %v5295, %v5287
    %v6168 = vpack.c.b16 %v5296, %v5288
    %v6169 = vpack.c.b16 %v5297, %v5289
    %v6170 = vpack.c.b16 %v5298, %v5290
    %v6171 = vpack.c.b16 %v5299, %v5291
    %v6172 = vpack.c.b16 %v5308, %v5300
    %v6173 = vpack.c.b16 %v5309, %v5301
    %v6174 = vpack.c.b16 %v5310, %v5302
    %v6175 = vpack.c.b16 %v5311, %v5303
    %v6176 = vpack.c.b16 %v5312, %v5304
    %v6177 = vpack.c.b16 %v5313, %v5305
    %v6178 = vpack.c.b16 %v5314, %v5306
    %v6179 = vpack.c.b16 %v5315, %v5307
    %v6180 = vpack.c.b16 %v5324, %v5316
    %v6181 = vpack.c.b16 %v5325, %v5317
    %v6182 = vpack.c.b16 %v5326, %v5318
    %v6183 = vpack.c.b16 %v5327, %v5319
    %v6184 = vpack.c.b16 %v5328, %v5320
    %v6185 = vpack.c.b16 %v5329, %v5321
    %v6186 = vpack.c.b16 %v5330, %v5322
    %v6187 = vpack.c.b16 %v5331, %v5323
    %v6188 = vpack.c.b16 %v5340, %v5332
    %v6189 = vpack.c.b16 %v5341, %v5333
    %v6190 = vpack.c.b16 %v5342, %v5334
    %v6191 = vpack.c.b16 %v5343, %v5335
    %v6192 = vpack.c.b16 %v5344, %v5336
    %v6193 = vpack.c.b16 %v5345, %v5337
    %v6194 = vpack.c.b16 %v5346, %v5338
    %v6195 = vpack.c.b16 %v5347, %v5339
    %v6196 = vpack.c.b16 %v5356, %v5348
    %v6197 = vpack.c.b16 %v5357, %v5349
    %v6198 = vpack.c.b16 %v5358, %v5350
    %v6199 = vpack.c.b16 %v5359, %v5351
    %v6200 = vpack.c.b16 %v5360, %v5352
    %v6201 = vpack.c.b16 %v5361, %v5353
    %v6202 = vpack.c.b16 %v5362, %v5354
    %v6203 = vpack.c.b16 %v5363, %v5355
    %v6204 = vpack.c.b16 %v5372, %v5364
    %v6205 = vpack.c.b16 %v5373, %v5365
    %v6206 = vpack.c.b16 %v5374, %v5366
    %v6207 = vpack.c.b16 %v5375, %v5367
    %v6208 = vpack.c.b16 %v5376, %v5368
    %v6209 = vpack.c.b16 %v5377, %v5369
    %v6210 = vpack.c.b16 %v5378, %v5370
    %v6211 = vpack.c.b16 %v5379, %v5371
    %v6212 = vpack.c.b16 %v5388, %v5380
    %v6213 = vpack.c.b16 %v5389, %v5381
    %v6214 = vpack.c.b16 %v5390, %v5382
    %v6215 = vpack.c.b16 %v5391, %v5383
    %v6216 = vpack.c.b16 %v5392, %v5384
    %v6217 = vpack.c.b16 %v5393, %v5385
    %v6218 = vpack.c.b16 %v5394, %v5386
    %v6219 = vpack.c.b16 %v5395, %v5387
    %v6220 = vpack.c.b16 %v5404, %v5396
    %v6221 = vpack.c.b16 %v5405, %v5397
    %v6222 = vpack.c.b16 %v5406, %v5398
    %v6223 = vpack.c.b16 %v5407, %v5399
    %v6224 = vpack.c.b16 %v5408, %v5400
    %v6225 = vpack.c.b16 %v5409, %v5401
    %v6226 = vpack.c.b16 %v5410, %v5402
    %v6227 = vpack.c.b16 %v5411, %v5403
    %v6228 = vpack.c.b16 %v5420, %v5412
    %v6229 = vpack.c.b16 %v5421, %v5413
    %v6230 = vpack.c.b16 %v5422, %v5414
    %v6231 = vpack.c.b16 %v5423, %v5415
    %v6232 = vpack.c.b16 %v5424, %v5416
    %v6233 = vpack.c.b16 %v5425, %v5417
    %v6234 = vpack.c.b16 %v5426, %v5418
    %v6235 = vpack.c.b16 %v5427, %v5419
    %v6236 = vpack.c.b16 %v5436, %v5428
    %v6237 = vpack.c.b16 %v5437, %v5429
    %v6238 = vpack.c.b16 %v5438, %v5430
    %v6239 = vpack.c.b16 %v5439, %v5431
    %v6240 = vpack.c.b16 %v5440, %v5432
    %v6241 = vpack.c.b16 %v5441, %v5433
    %v6242 = vpack.c.b16 %v5442, %v5434
    %v6243 = vpack.c.b16 %v5443, %v5435
    %v6244 = vpack.c.b16 %v5452, %v5444
    %v6245 = vpack.c.b16 %v5453, %v5445
    %v6246 = vpack.c.b16 %v5454, %v5446
    %v6247 = vpack.c.b16 %v5455, %v5447
    %v6248 = vpack.c.b16 %v5456, %v5448
    %v6249 = vpack.c.b16 %v5457, %v5449
    %v6250 = vpack.c.b16 %v5458, %v5450
    %v6251 = vpack.c.b16 %v5459, %v5451
    %v6252 = vpack.c.b16 %v5468, %v5460
    %v6253 = vpack.c.b16 %v5469, %v5461
    %v6254 = vpack.c.b16 %v5470, %v5462
    %v6255 = vpack.c.b16 %v5471, %v5463
    %v6256 = vpack.c.b16 %v5472, %v5464
    %v6257 = vpack.c.b16 %v5473, %v5465
    %v6258 = vpack.c.b16 %v5474, %v5466
    %v6259 = vpack.c.b16 %v5475, %v5467
    %v6260 = vpack.c.b16 %v5484, %v5476
    %v6261 = vpack.c.b16 %v5485, %v5477
    %v6262 = vpack.c.b16 %v5486, %v5478
    %v6263 = vpack.c.b16 %v5487, %v5479
    %v6264 = vpack.c.b16 %v5488, %v5480
    %v6265 = vpack.c.b16 %v5489, %v5481
    %v6266 = vpack.c.b16 %v5490, %v5482
    %v6267 = vpack.c.b16 %v5491, %v5483
    %v6268 = vpack.c.b16 %v5500, %v5492
    %v6269 = vpack.c.b16 %v5501, %v5493
    %v6270 = vpack.c.b16 %v5502, %v5494
    %v6271 = vpack.c.b16 %v5503, %v5495
    %v6272 = vpack.c.b16 %v5504, %v5496
    %v6273 = vpack.c.b16 %v5505, %v5497
    %v6274 = vpack.c.b16 %v5506, %v5498
    %v6275 = vpack.c.b16 %v5507, %v5499
    %v6276 = vpack.c.b16 %v5516, %v5508
    %v6277 = vpack.c.b16 %v5517, %v5509
    %v6278 = vpack.c.b16 %v5518, %v5510
    %v6279 = vpack.c.b16 %v5519, %v5511
    %v6280 = vpack.c.b16 %v5520, %v5512
    %v6281 = vpack.c.b16 %v5521, %v5513
    %v6282 = vpack.c.b16 %v5522, %v5514
    %v6283 = vpack.c.b16 %v5523, %v5515
    %v6284 = vpack.c.b16 %v5532, %v5524
    %v6285 = vpack.c.b16 %v5533, %v5525
    %v6286 = vpack.c.b16 %v5534, %v5526
    %v6287 = vpack.c.b16 %v5535, %v5527
    %v6288 = vpack.c.b16 %v5536, %v5528
    %v6289 = vpack.c.b16 %v5537, %v5529
    %v6290 = vpack.c.b16 %v5538, %v5530
    %v6291 = vpack.c.b16 %v5539, %v5531
    %v6292 = vpack.c.b16 %v5548, %v5540
    %v6293 = vpack.c.b16 %v5549, %v5541
    %v6294 = vpack.c.b16 %v5550, %v5542
    %v6295 = vpack.c.b16 %v5551, %v5543
    %v6296 = vpack.c.b16 %v5552, %v5544
    %v6297 = vpack.c.b16 %v5553, %v5545
    %v6298 = vpack.c.b16 %v5554, %v5546
    %v6299 = vpack.c.b16 %v5555, %v5547
    %v6300 = vpack.c.b16 %v5564, %v5556
    %v6301 = vpack.c.b16 %v5565, %v5557
    %v6302 = vpack.c.b16 %v5566, %v5558
    %v6303 = vpack.c.b16 %v5567, %v5559
    %v6304 = vpack.c.b16 %v5568, %v5560
    %v6305 = vpack.c.b16 %v5569, %v5561
    %v6306 = vpack.c.b16 %v5570, %v5562
    %v6307 = vpack.c.b16 %v5571, %v5563
    %v6308 = vpack.c.b16 %v5580, %v5572
    %v6309 = vpack.c.b16 %v5581, %v5573
    %v6310 = vpack.c.b16 %v5582, %v5574
    %v6311 = vpack.c.b16 %v5583, %v5575
    %v6312 = vpack.c.b16 %v5584, %v5576
    %v6313 = vpack.c.b16 %v5585, %v5577
    %v6314 = vpack.c.b16 %v5586, %v5578
    %v6315 = vpack.c.b16 %v5587, %v5579
    %v6316 = vpack.c.b16 %v5596, %v5588
    %v6317 = vpack.c.b16 %v5597, %v5589
    %v6318 = vpack.c.b16 %v5598, %v5590
    %v6319 = vpack.c.b16 %v5599, %v5591
    %v6320 = vpack.c.b16 %v5600, %v5592
    %v6321 = vpack.c.b16 %v5601, %v5593
    %v6322 = vpack.c.b16 %v5602, %v5594
    %v6323 = vpack.c.b16 %v5603, %v5595
    %v6324 = vpack.c.b16 %v5612, %v5604
    %v6325 = vpack.c.b16 %v5613, %v5605
    %v6326 = vpack.c.b16 %v5614, %v5606
    %v6327 = vpack.c.b16 %v5615, %v5607
    %v6328 = vpack.c.b16 %v5616, %v5608
    %v6329 = vpack.c.b16 %v5617, %v5609
    %v6330 = vpack.c.b16 %v5618, %v5610
    %v6331 = vpack.c.b16 %v5619, %v5611
    %v6332 = vpack.c.b16 %v5628, %v5620
    %v6333 = vpack.c.b16 %v5629, %v5621
    %v6334 = vpack.c.b16 %v5630, %v5622
    %v6335 = vpack.c.b16 %v5631, %v5623
    %v6336 = vpack.c.b16 %v5632, %v5624
    %v6337 = vpack.c.b16 %v5633, %v5625
    %v6338 = vpack.c.b16 %v5634, %v5626
    %v6339 = vpack.c.b16 %v5635, %v5627
    %v6340 = vpack.c.b16 %v5644, %v5636
    %v6341 = vpack.c.b16 %v5645, %v5637
    %v6342 = vpack.c.b16 %v5646, %v5638
    %v6343 = vpack.c.b16 %v5647, %v5639
    %v6344 = vpack.c.b16 %v5648, %v5640
    %v6345 = vpack.c.b16 %v5649, %v5641
    %v6346 = vpack.c.b16 %v5650, %v5642
    %v6347 = vpack.c.b16 %v5651, %v5643
    %v6348 = vpack.c.b16 %v5660, %v5652
    %v6349 = vpack.c.b16 %v5661, %v5653
    %v6350 = vpack.c.b16 %v5662, %v5654
    %v6351 = vpack.c.b16 %v5663, %v5655
    %v6352 = vpack.c.b16 %v5664, %v5656
    %v6353 = vpack.c.b16 %v5665, %v5657
    %v6354 = vpack.c.b16 %v5666, %v5658
    %v6355 = vpack.c.b16 %v5667, %v5659
    %v6356 = vpack.c.b16 %v5676, %v5668
    %v6357 = vpack.c.b16 %v5677, %v5669
    %v6358 = vpack.c.b16 %v5678, %v5670
    %v6359 = vpack.c.b16 %v5679, %v5671
    %v6360 = vpack.c.b16 %v5680, %v5672
    %v6361 = vpack.c.b16 %v5681, %v5673
    %v6362 = vpack.c.b16 %v5682, %v5674
    %v6363 = vpack.c.b16 %v5683, %v5675
    %v6364 = vpack.c.b16 %v5692, %v5684
    %v6365 = vpack.c.b16 %v5693, %v5685
    %v6366 = vpack.c.b16 %v5694, %v5686
    %v6367 = vpack.c.b16 %v5695, %v5687
    %v6368 = vpack.c.b16 %v5696, %v5688
    %v6369 = vpack.c.b16 %v5697, %v5689
    %v6370 = vpack.c.b16 %v5698, %v5690
    %v6371 = vpack.c.b16 %v5699, %v5691
    %v6372 = vpack.c.b16 %v5708, %v5700
    %v6373 = vpack.c.b16 %v5709, %v5701
    %v6374 = vpack.c.b16 %v5710, %v5702
    %v6375 = vpack.c.b16 %v5711, %v5703
    %v6376 = vpack.c.b16 %v5712, %v5704
    %v6377 = vpack.c.b16 %v5713, %v5705
    %v6378 = vpack.c.b16 %v5714, %v5706
    %v6379 = vpack.c.b16 %v5715, %v5707
    %v6380 = vpack.c.b16 %v5724, %v5716
    %v6381 = vpack.c.b16 %v5725, %v5717
    %v6382 = vpack.c.b16 %v5726, %v5718
    %v6383 = vpack.c.b16 %v5727, %v5719
    %v6384 = vpack.c.b16 %v5728, %v5720
    %v6385 = vpack.c.b16 %v5729, %v5721
    %v6386 = vpack.c.b16 %v5730, %v5722
    %v6387 = vpack.c.b16 %v5731, %v5723
    %v6388 = vpack.c.b16 %v5740, %v5732
    %v6389 = vpack.c.b16 %v5741, %v5733
    %v6390 = vpack.c.b16 %v5742, %v5734
    %v6391 = vpack.c.b16 %v5743, %v5735
    %v6392 = vpack.c.b16 %v5744, %v5736
    %v6393 = vpack.c.b16 %v5745, %v5737
    %v6394 = vpack.c.b16 %v5746, %v5738
    %v6395 = vpack.c.b16 %v5747, %v5739
    %v6396 = vpack.c.b16 %v5756, %v5748
    %v6397 = vpack.c.b16 %v5757, %v5749
    %v6398 = vpack.c.b16 %v5758, %v5750
    %v6399 = vpack.c.b16 %v5759, %v5751
    %v6400 = vpack.c.b16 %v5760, %v5752
    %v6401 = vpack.c.b16 %v5761, %v5753
    %v6402 = vpack.c.b16 %v5762, %v5754
    %v6403 = vpack.c.b16 %v5763, %v5755
    %7044 = vmatpush.bf16.msra.mxu0 %v5820
    %7045 = vmatpush.bf16.msra.mxu0 %v5812
    %7046 = vmatpush.bf16.msra.mxu0 %v5804
    %7047 = vmatpush.bf16.msra.mxu0 %v5796
    %7048 = vmatpush.bf16.msra.mxu0 %v5788
    %7049 = vmatpush.bf16.msra.mxu0 %v5780
    %7050 = vmatpush.bf16.msra.mxu0 %v5772
    %7051 = vmatpush.bf16.msra.mxu0 %v5764
    %7052 = vmatmul.bf16.gmra.mxu0 %v3824
    %v7053 = vpop.f32.mrf.mxu0
    %v7054 = vadd.f32 %v3202, %v7053
    %v7055 = vpop.f32.mrf.mxu0
    %v7056 = vadd.f32 %v3204, %v7055
    %7057 = vdwg.mxu0
    %7058 = vmatpush.bf16.msra.mxu0 %v5884
    %7059 = vmatpush.bf16.msra.mxu0 %v5876
    %7060 = vmatpush.bf16.msra.mxu0 %v5868
    %7061 = vmatpush.bf16.msra.mxu0 %v5860
    %7062 = vmatpush.bf16.msra.mxu0 %v5852
    %7063 = vmatpush.bf16.msra.mxu0 %v5844
    %7064 = vmatpush.bf16.msra.mxu0 %v5836
    %7065 = vmatpush.bf16.msra.mxu0 %v5828
    %7066 = vmatmul.bf16.gmra.mxu0 %v3825
    %v7067 = vpop.f32.mrf.mxu0
    %v7068 = vadd.f32 %v7054, %v7067
    %v7069 = vpop.f32.mrf.mxu0
    %v7070 = vadd.f32 %v7056, %v7069
    %7071 = vdwg.mxu0
    %7072 = vmatpush.bf16.msra.mxu0 %v5948
    %7073 = vmatpush.bf16.msra.mxu0 %v5940
    %7074 = vmatpush.bf16.msra.mxu0 %v5932
    %7075 = vmatpush.bf16.msra.mxu0 %v5924
    %7076 = vmatpush.bf16.msra.mxu0 %v5916
    %7077 = vmatpush.bf16.msra.mxu0 %v5908
    %7078 = vmatpush.bf16.msra.mxu0 %v5900
    %7079 = vmatpush.bf16.msra.mxu0 %v5892
    %7080 = vmatmul.bf16.gmra.mxu0 %v3826
    %v7081 = vpop.f32.mrf.mxu0
    %v7082 = vadd.f32 %v7068, %v7081
    %v7083 = vpop.f32.mrf.mxu0
    %v7084 = vadd.f32 %v7070, %v7083
    %7085 = vdwg.mxu0
    %7086 = vmatpush.bf16.msra.mxu0 %v6012
    %7087 = vmatpush.bf16.msra.mxu0 %v6004
    %7088 = vmatpush.bf16.msra.mxu0 %v5996
    %7089 = vmatpush.bf16.msra.mxu0 %v5988
    %7090 = vmatpush.bf16.msra.mxu0 %v5980
    %7091 = vmatpush.bf16.msra.mxu0 %v5972
    %7092 = vmatpush.bf16.msra.mxu0 %v5964
    %7093 = vmatpush.bf16.msra.mxu0 %v5956
    %7094 = vmatmul.bf16.gmra.mxu0 %v3827
    %v7095 = vpop.f32.mrf.mxu0
    %v7096 = vadd.f32 %v7082, %v7095
    %v7097 = vpop.f32.mrf.mxu0
    %v7098 = vadd.f32 %v7084, %v7097
    %7099 = vdwg.mxu0
    %7100 = vmatpush.bf16.msra.mxu0 %v6076
    %7101 = vmatpush.bf16.msra.mxu0 %v6068
    %7102 = vmatpush.bf16.msra.mxu0 %v6060
    %7103 = vmatpush.bf16.msra.mxu0 %v6052
    %7104 = vmatpush.bf16.msra.mxu0 %v6044
    %7105 = vmatpush.bf16.msra.mxu0 %v6036
    %7106 = vmatpush.bf16.msra.mxu0 %v6028
    %7107 = vmatpush.bf16.msra.mxu0 %v6020
    %7108 = vmatmul.bf16.gmra.mxu0 %v3828
    %v7109 = vpop.f32.mrf.mxu0
    %v7110 = vadd.f32 %v7096, %v7109
    %v7111 = vpop.f32.mrf.mxu0
    %v7112 = vadd.f32 %v7098, %v7111
    %7113 = vdwg.mxu0
    %7114 = vmatpush.bf16.msra.mxu0 %v6140
    %7115 = vmatpush.bf16.msra.mxu0 %v6132
    %7116 = vmatpush.bf16.msra.mxu0 %v6124
    %7117 = vmatpush.bf16.msra.mxu0 %v6116
    %7118 = vmatpush.bf16.msra.mxu0 %v6108
    %7119 = vmatpush.bf16.msra.mxu0 %v6100
    %7120 = vmatpush.bf16.msra.mxu0 %v6092
    %7121 = vmatpush.bf16.msra.mxu0 %v6084
    %7122 = vmatmul.bf16.gmra.mxu0 %v3829
    %v7123 = vpop.f32.mrf.mxu0
    %v7124 = vadd.f32 %v7110, %v7123
    %v7125 = vpop.f32.mrf.mxu0
    %v7126 = vadd.f32 %v7112, %v7125
    %7127 = vdwg.mxu0
    %7128 = vmatpush.bf16.msra.mxu0 %v6204
    %7129 = vmatpush.bf16.msra.mxu0 %v6196
    %7130 = vmatpush.bf16.msra.mxu0 %v6188
    %7131 = vmatpush.bf16.msra.mxu0 %v6180
    %7132 = vmatpush.bf16.msra.mxu0 %v6172
    %7133 = vmatpush.bf16.msra.mxu0 %v6164
    %7134 = vmatpush.bf16.msra.mxu0 %v6156
    %7135 = vmatpush.bf16.msra.mxu0 %v6148
    %7136 = vmatmul.bf16.gmra.mxu0 %v3830
    %v7137 = vpop.f32.mrf.mxu0
    %v7138 = vadd.f32 %v7124, %v7137
    %v7139 = vpop.f32.mrf.mxu0
    %v7140 = vadd.f32 %v7126, %v7139
    %7141 = vdwg.mxu0
    %7142 = vmatpush.bf16.msra.mxu0 %v6268
    %7143 = vmatpush.bf16.msra.mxu0 %v6260
    %7144 = vmatpush.bf16.msra.mxu0 %v6252
    %7145 = vmatpush.bf16.msra.mxu0 %v6244
    %7146 = vmatpush.bf16.msra.mxu0 %v6236
    %7147 = vmatpush.bf16.msra.mxu0 %v6228
    %7148 = vmatpush.bf16.msra.mxu0 %v6220
    %7149 = vmatpush.bf16.msra.mxu0 %v6212
    %7150 = vmatmul.bf16.gmra.mxu0 %v3831
    %v7151 = vpop.f32.mrf.mxu0
    %v7152 = vadd.f32 %v7138, %v7151
    %v7153 = vpop.f32.mrf.mxu0
    %v7154 = vadd.f32 %v7140, %v7153
    %7155 = vdwg.mxu0
    %7156 = vmatpush.bf16.msra.mxu0 %v6332
    %7157 = vmatpush.bf16.msra.mxu0 %v6324
    %7158 = vmatpush.bf16.msra.mxu0 %v6316
    %7159 = vmatpush.bf16.msra.mxu0 %v6308
    %7160 = vmatpush.bf16.msra.mxu0 %v6300
    %7161 = vmatpush.bf16.msra.mxu0 %v6292
    %7162 = vmatpush.bf16.msra.mxu0 %v6284
    %7163 = vmatpush.bf16.msra.mxu0 %v6276
    %7164 = vmatmul.bf16.gmra.mxu0 %v3832
    %v7165 = vpop.f32.mrf.mxu0
    %v7166 = vadd.f32 %v7152, %v7165
    %v7167 = vpop.f32.mrf.mxu0
    %v7168 = vadd.f32 %v7154, %v7167
    %7169 = vdwg.mxu0
    %7170 = vmatpush.bf16.msra.mxu0 %v6396
    %7171 = vmatpush.bf16.msra.mxu0 %v6388
    %7172 = vmatpush.bf16.msra.mxu0 %v6380
    %7173 = vmatpush.bf16.msra.mxu0 %v6372
    %7174 = vmatpush.bf16.msra.mxu0 %v6364
    %7175 = vmatpush.bf16.msra.mxu0 %v6356
    %7176 = vmatpush.bf16.msra.mxu0 %v6348
    %7177 = vmatpush.bf16.msra.mxu0 %v6340
    %7178 = vmatmul.bf16.gmra.mxu0 %v3833
    %v7179 = vpop.f32.mrf.mxu0
    %v7180 = vadd.f32 %v7166, %v7179
    %v7181 = vpop.f32.mrf.mxu0
    %v7182 = vadd.f32 %v7168, %v7181
    %7183 = vdwg.mxu0
    %7184 = vmatpush.bf16.msra.mxu0 %v5821
    %7185 = vmatpush.bf16.msra.mxu0 %v5813
    %7186 = vmatpush.bf16.msra.mxu0 %v5805
    %7187 = vmatpush.bf16.msra.mxu0 %v5797
    %7188 = vmatpush.bf16.msra.mxu0 %v5789
    %7189 = vmatpush.bf16.msra.mxu0 %v5781
    %7190 = vmatpush.bf16.msra.mxu0 %v5773
    %7191 = vmatpush.bf16.msra.mxu0 %v5765
    %7192 = vmatmul.bf16.gmra.mxu0 %v3824
    %v7193 = vpop.f32.mrf.mxu0
    %v7194 = vadd.f32 %v3286, %v7193
    %v7195 = vpop.f32.mrf.mxu0
    %v7196 = vadd.f32 %v3288, %v7195
    %7197 = vdwg.mxu0
    %7198 = vmatpush.bf16.msra.mxu0 %v5885
    %7199 = vmatpush.bf16.msra.mxu0 %v5877
    %7200 = vmatpush.bf16.msra.mxu0 %v5869
    %7201 = vmatpush.bf16.msra.mxu0 %v5861
    %7202 = vmatpush.bf16.msra.mxu0 %v5853
    %7203 = vmatpush.bf16.msra.mxu0 %v5845
    %7204 = vmatpush.bf16.msra.mxu0 %v5837
    %7205 = vmatpush.bf16.msra.mxu0 %v5829
    %7206 = vmatmul.bf16.gmra.mxu0 %v3825
    %v7207 = vpop.f32.mrf.mxu0
    %v7208 = vadd.f32 %v7194, %v7207
    %v7209 = vpop.f32.mrf.mxu0
    %v7210 = vadd.f32 %v7196, %v7209
    %7211 = vdwg.mxu0
    %7212 = vmatpush.bf16.msra.mxu0 %v5949
    %7213 = vmatpush.bf16.msra.mxu0 %v5941
    %7214 = vmatpush.bf16.msra.mxu0 %v5933
    %7215 = vmatpush.bf16.msra.mxu0 %v5925
    %7216 = vmatpush.bf16.msra.mxu0 %v5917
    %7217 = vmatpush.bf16.msra.mxu0 %v5909
    %7218 = vmatpush.bf16.msra.mxu0 %v5901
    %7219 = vmatpush.bf16.msra.mxu0 %v5893
    %7220 = vmatmul.bf16.gmra.mxu0 %v3826
    %v7221 = vpop.f32.mrf.mxu0
    %v7222 = vadd.f32 %v7208, %v7221
    %v7223 = vpop.f32.mrf.mxu0
    %v7224 = vadd.f32 %v7210, %v7223
    %7225 = vdwg.mxu0
    %7226 = vmatpush.bf16.msra.mxu0 %v6013
    %7227 = vmatpush.bf16.msra.mxu0 %v6005
    %7228 = vmatpush.bf16.msra.mxu0 %v5997
    %7229 = vmatpush.bf16.msra.mxu0 %v5989
    %7230 = vmatpush.bf16.msra.mxu0 %v5981
    %7231 = vmatpush.bf16.msra.mxu0 %v5973
    %7232 = vmatpush.bf16.msra.mxu0 %v5965
    %7233 = vmatpush.bf16.msra.mxu0 %v5957
    %7234 = vmatmul.bf16.gmra.mxu0 %v3827
    %v7235 = vpop.f32.mrf.mxu0
    %v7236 = vadd.f32 %v7222, %v7235
    %v7237 = vpop.f32.mrf.mxu0
    %v7238 = vadd.f32 %v7224, %v7237
    %7239 = vdwg.mxu0
    %7240 = vmatpush.bf16.msra.mxu0 %v6077
    %7241 = vmatpush.bf16.msra.mxu0 %v6069
    %7242 = vmatpush.bf16.msra.mxu0 %v6061
    %7243 = vmatpush.bf16.msra.mxu0 %v6053
    %7244 = vmatpush.bf16.msra.mxu0 %v6045
    %7245 = vmatpush.bf16.msra.mxu0 %v6037
    %7246 = vmatpush.bf16.msra.mxu0 %v6029
    %7247 = vmatpush.bf16.msra.mxu0 %v6021
    %7248 = vmatmul.bf16.gmra.mxu0 %v3828
    %v7249 = vpop.f32.mrf.mxu0
    %v7250 = vadd.f32 %v7236, %v7249
    %v7251 = vpop.f32.mrf.mxu0
    %v7252 = vadd.f32 %v7238, %v7251
    %7253 = vdwg.mxu0
    %7254 = vmatpush.bf16.msra.mxu0 %v6141
    %7255 = vmatpush.bf16.msra.mxu0 %v6133
    %7256 = vmatpush.bf16.msra.mxu0 %v6125
    %7257 = vmatpush.bf16.msra.mxu0 %v6117
    %7258 = vmatpush.bf16.msra.mxu0 %v6109
    %7259 = vmatpush.bf16.msra.mxu0 %v6101
    %7260 = vmatpush.bf16.msra.mxu0 %v6093
    %7261 = vmatpush.bf16.msra.mxu0 %v6085
    %7262 = vmatmul.bf16.gmra.mxu0 %v3829
    %v7263 = vpop.f32.mrf.mxu0
    %v7264 = vadd.f32 %v7250, %v7263
    %v7265 = vpop.f32.mrf.mxu0
    %v7266 = vadd.f32 %v7252, %v7265
    %7267 = vdwg.mxu0
    %7268 = vmatpush.bf16.msra.mxu0 %v6205
    %7269 = vmatpush.bf16.msra.mxu0 %v6197
    %7270 = vmatpush.bf16.msra.mxu0 %v6189
    %7271 = vmatpush.bf16.msra.mxu0 %v6181
    %7272 = vmatpush.bf16.msra.mxu0 %v6173
    %7273 = vmatpush.bf16.msra.mxu0 %v6165
    %7274 = vmatpush.bf16.msra.mxu0 %v6157
    %7275 = vmatpush.bf16.msra.mxu0 %v6149
    %7276 = vmatmul.bf16.gmra.mxu0 %v3830
    %v7277 = vpop.f32.mrf.mxu0
    %v7278 = vadd.f32 %v7264, %v7277
    %v7279 = vpop.f32.mrf.mxu0
    %v7280 = vadd.f32 %v7266, %v7279
    %7281 = vdwg.mxu0
    %7282 = vmatpush.bf16.msra.mxu0 %v6269
    %7283 = vmatpush.bf16.msra.mxu0 %v6261
    %7284 = vmatpush.bf16.msra.mxu0 %v6253
    %7285 = vmatpush.bf16.msra.mxu0 %v6245
    %7286 = vmatpush.bf16.msra.mxu0 %v6237
    %7287 = vmatpush.bf16.msra.mxu0 %v6229
    %7288 = vmatpush.bf16.msra.mxu0 %v6221
    %7289 = vmatpush.bf16.msra.mxu0 %v6213
    %7290 = vmatmul.bf16.gmra.mxu0 %v3831
    %v7291 = vpop.f32.mrf.mxu0
    %v7292 = vadd.f32 %v7278, %v7291
    %v7293 = vpop.f32.mrf.mxu0
    %v7294 = vadd.f32 %v7280, %v7293
    %7295 = vdwg.mxu0
    %7296 = vmatpush.bf16.msra.mxu0 %v6333
    %7297 = vmatpush.bf16.msra.mxu0 %v6325
    %7298 = vmatpush.bf16.msra.mxu0 %v6317
    %7299 = vmatpush.bf16.msra.mxu0 %v6309
    %7300 = vmatpush.bf16.msra.mxu0 %v6301
    %7301 = vmatpush.bf16.msra.mxu0 %v6293
    %7302 = vmatpush.bf16.msra.mxu0 %v6285
    %7303 = vmatpush.bf16.msra.mxu0 %v6277
    %7304 = vmatmul.bf16.gmra.mxu0 %v3832
    %v7305 = vpop.f32.mrf.mxu0
    %v7306 = vadd.f32 %v7292, %v7305
    %v7307 = vpop.f32.mrf.mxu0
    %v7308 = vadd.f32 %v7294, %v7307
    %7309 = vdwg.mxu0
    %7310 = vmatpush.bf16.msra.mxu0 %v6397
    %7311 = vmatpush.bf16.msra.mxu0 %v6389
    %7312 = vmatpush.bf16.msra.mxu0 %v6381
    %7313 = vmatpush.bf16.msra.mxu0 %v6373
    %7314 = vmatpush.bf16.msra.mxu0 %v6365
    %7315 = vmatpush.bf16.msra.mxu0 %v6357
    %7316 = vmatpush.bf16.msra.mxu0 %v6349
    %7317 = vmatpush.bf16.msra.mxu0 %v6341
    %7318 = vmatmul.bf16.gmra.mxu0 %v3833
    %v7319 = vpop.f32.mrf.mxu0
    %v7320 = vadd.f32 %v7306, %v7319
    %v7321 = vpop.f32.mrf.mxu0
    %v7322 = vadd.f32 %v7308, %v7321
    %7323 = vdwg.mxu0
    %7324 = vmatpush.bf16.msra.mxu0 %v5822
    %7325 = vmatpush.bf16.msra.mxu0 %v5814
    %7326 = vmatpush.bf16.msra.mxu0 %v5806
    %7327 = vmatpush.bf16.msra.mxu0 %v5798
    %7328 = vmatpush.bf16.msra.mxu0 %v5790
    %7329 = vmatpush.bf16.msra.mxu0 %v5782
    %7330 = vmatpush.bf16.msra.mxu0 %v5774
    %7331 = vmatpush.bf16.msra.mxu0 %v5766
    %7332 = vmatmul.bf16.gmra.mxu0 %v3824
    %v7333 = vpop.f32.mrf.mxu0
    %v7334 = vadd.f32 %v3370, %v7333
    %v7335 = vpop.f32.mrf.mxu0
    %v7336 = vadd.f32 %v3372, %v7335
    %7337 = vdwg.mxu0
    %7338 = vmatpush.bf16.msra.mxu0 %v5886
    %7339 = vmatpush.bf16.msra.mxu0 %v5878
    %7340 = vmatpush.bf16.msra.mxu0 %v5870
    %7341 = vmatpush.bf16.msra.mxu0 %v5862
    %7342 = vmatpush.bf16.msra.mxu0 %v5854
    %7343 = vmatpush.bf16.msra.mxu0 %v5846
    %7344 = vmatpush.bf16.msra.mxu0 %v5838
    %7345 = vmatpush.bf16.msra.mxu0 %v5830
    %7346 = vmatmul.bf16.gmra.mxu0 %v3825
    %v7347 = vpop.f32.mrf.mxu0
    %v7348 = vadd.f32 %v7334, %v7347
    %v7349 = vpop.f32.mrf.mxu0
    %v7350 = vadd.f32 %v7336, %v7349
    %7351 = vdwg.mxu0
    %7352 = vmatpush.bf16.msra.mxu0 %v5950
    %7353 = vmatpush.bf16.msra.mxu0 %v5942
    %7354 = vmatpush.bf16.msra.mxu0 %v5934
    %7355 = vmatpush.bf16.msra.mxu0 %v5926
    %7356 = vmatpush.bf16.msra.mxu0 %v5918
    %7357 = vmatpush.bf16.msra.mxu0 %v5910
    %7358 = vmatpush.bf16.msra.mxu0 %v5902
    %7359 = vmatpush.bf16.msra.mxu0 %v5894
    %7360 = vmatmul.bf16.gmra.mxu0 %v3826
    %v7361 = vpop.f32.mrf.mxu0
    %v7362 = vadd.f32 %v7348, %v7361
    %v7363 = vpop.f32.mrf.mxu0
    %v7364 = vadd.f32 %v7350, %v7363
    %7365 = vdwg.mxu0
    %7366 = vmatpush.bf16.msra.mxu0 %v6014
    %7367 = vmatpush.bf16.msra.mxu0 %v6006
    %7368 = vmatpush.bf16.msra.mxu0 %v5998
    %7369 = vmatpush.bf16.msra.mxu0 %v5990
    %7370 = vmatpush.bf16.msra.mxu0 %v5982
    %7371 = vmatpush.bf16.msra.mxu0 %v5974
    %7372 = vmatpush.bf16.msra.mxu0 %v5966
    %7373 = vmatpush.bf16.msra.mxu0 %v5958
    %7374 = vmatmul.bf16.gmra.mxu0 %v3827
    %v7375 = vpop.f32.mrf.mxu0
    %v7376 = vadd.f32 %v7362, %v7375
    %v7377 = vpop.f32.mrf.mxu0
    %v7378 = vadd.f32 %v7364, %v7377
    %7379 = vdwg.mxu0
    %7380 = vmatpush.bf16.msra.mxu0 %v6078
    %7381 = vmatpush.bf16.msra.mxu0 %v6070
    %7382 = vmatpush.bf16.msra.mxu0 %v6062
    %7383 = vmatpush.bf16.msra.mxu0 %v6054
    %7384 = vmatpush.bf16.msra.mxu0 %v6046
    %7385 = vmatpush.bf16.msra.mxu0 %v6038
    %7386 = vmatpush.bf16.msra.mxu0 %v6030
    %7387 = vmatpush.bf16.msra.mxu0 %v6022
    %7388 = vmatmul.bf16.gmra.mxu0 %v3828
    %v7389 = vpop.f32.mrf.mxu0
    %v7390 = vadd.f32 %v7376, %v7389
    %v7391 = vpop.f32.mrf.mxu0
    %v7392 = vadd.f32 %v7378, %v7391
    %7393 = vdwg.mxu0
    %7394 = vmatpush.bf16.msra.mxu0 %v6142
    %7395 = vmatpush.bf16.msra.mxu0 %v6134
    %7396 = vmatpush.bf16.msra.mxu0 %v6126
    %7397 = vmatpush.bf16.msra.mxu0 %v6118
    %7398 = vmatpush.bf16.msra.mxu0 %v6110
    %7399 = vmatpush.bf16.msra.mxu0 %v6102
    %7400 = vmatpush.bf16.msra.mxu0 %v6094
    %7401 = vmatpush.bf16.msra.mxu0 %v6086
    %7402 = vmatmul.bf16.gmra.mxu0 %v3829
    %v7403 = vpop.f32.mrf.mxu0
    %v7404 = vadd.f32 %v7390, %v7403
    %v7405 = vpop.f32.mrf.mxu0
    %v7406 = vadd.f32 %v7392, %v7405
    %7407 = vdwg.mxu0
    %7408 = vmatpush.bf16.msra.mxu0 %v6206
    %7409 = vmatpush.bf16.msra.mxu0 %v6198
    %7410 = vmatpush.bf16.msra.mxu0 %v6190
    %7411 = vmatpush.bf16.msra.mxu0 %v6182
    %7412 = vmatpush.bf16.msra.mxu0 %v6174
    %7413 = vmatpush.bf16.msra.mxu0 %v6166
    %7414 = vmatpush.bf16.msra.mxu0 %v6158
    %7415 = vmatpush.bf16.msra.mxu0 %v6150
    %7416 = vmatmul.bf16.gmra.mxu0 %v3830
    %v7417 = vpop.f32.mrf.mxu0
    %v7418 = vadd.f32 %v7404, %v7417
    %v7419 = vpop.f32.mrf.mxu0
    %v7420 = vadd.f32 %v7406, %v7419
    %7421 = vdwg.mxu0
    %7422 = vmatpush.bf16.msra.mxu0 %v6270
    %7423 = vmatpush.bf16.msra.mxu0 %v6262
    %7424 = vmatpush.bf16.msra.mxu0 %v6254
    %7425 = vmatpush.bf16.msra.mxu0 %v6246
    %7426 = vmatpush.bf16.msra.mxu0 %v6238
    %7427 = vmatpush.bf16.msra.mxu0 %v6230
    %7428 = vmatpush.bf16.msra.mxu0 %v6222
    %7429 = vmatpush.bf16.msra.mxu0 %v6214
    %7430 = vmatmul.bf16.gmra.mxu0 %v3831
    %v7431 = vpop.f32.mrf.mxu0
    %v7432 = vadd.f32 %v7418, %v7431
    %v7433 = vpop.f32.mrf.mxu0
    %v7434 = vadd.f32 %v7420, %v7433
    %7435 = vdwg.mxu0
    %7436 = vmatpush.bf16.msra.mxu0 %v6334
    %7437 = vmatpush.bf16.msra.mxu0 %v6326
    %7438 = vmatpush.bf16.msra.mxu0 %v6318
    %7439 = vmatpush.bf16.msra.mxu0 %v6310
    %7440 = vmatpush.bf16.msra.mxu0 %v6302
    %7441 = vmatpush.bf16.msra.mxu0 %v6294
    %7442 = vmatpush.bf16.msra.mxu0 %v6286
    %7443 = vmatpush.bf16.msra.mxu0 %v6278
    %7444 = vmatmul.bf16.gmra.mxu0 %v3832
    %v7445 = vpop.f32.mrf.mxu0
    %v7446 = vadd.f32 %v7432, %v7445
    %v7447 = vpop.f32.mrf.mxu0
    %v7448 = vadd.f32 %v7434, %v7447
    %7449 = vdwg.mxu0
    %7450 = vmatpush.bf16.msra.mxu0 %v6398
    %7451 = vmatpush.bf16.msra.mxu0 %v6390
    %7452 = vmatpush.bf16.msra.mxu0 %v6382
    %7453 = vmatpush.bf16.msra.mxu0 %v6374
    %7454 = vmatpush.bf16.msra.mxu0 %v6366
    %7455 = vmatpush.bf16.msra.mxu0 %v6358
    %7456 = vmatpush.bf16.msra.mxu0 %v6350
    %7457 = vmatpush.bf16.msra.mxu0 %v6342
    %7458 = vmatmul.bf16.gmra.mxu0 %v3833
    %v7459 = vpop.f32.mrf.mxu0
    %v7460 = vadd.f32 %v7446, %v7459
    %v7461 = vpop.f32.mrf.mxu0
    %v7462 = vadd.f32 %v7448, %v7461
    %7463 = vdwg.mxu0
    %7464 = vmatpush.bf16.msra.mxu0 %v5823
    %7465 = vmatpush.bf16.msra.mxu0 %v5815
    %7466 = vmatpush.bf16.msra.mxu0 %v5807
    %7467 = vmatpush.bf16.msra.mxu0 %v5799
    %7468 = vmatpush.bf16.msra.mxu0 %v5791
    %7469 = vmatpush.bf16.msra.mxu0 %v5783
    %7470 = vmatpush.bf16.msra.mxu0 %v5775
    %7471 = vmatpush.bf16.msra.mxu0 %v5767
    %7472 = vmatmul.bf16.gmra.mxu0 %v3824
    %v7473 = vpop.f32.mrf.mxu0
    %v7474 = vadd.f32 %v3454, %v7473
    %v7475 = vpop.f32.mrf.mxu0
    %v7476 = vadd.f32 %v3456, %v7475
    %7477 = vdwg.mxu0
    %7478 = vmatpush.bf16.msra.mxu0 %v5887
    %7479 = vmatpush.bf16.msra.mxu0 %v5879
    %7480 = vmatpush.bf16.msra.mxu0 %v5871
    %7481 = vmatpush.bf16.msra.mxu0 %v5863
    %7482 = vmatpush.bf16.msra.mxu0 %v5855
    %7483 = vmatpush.bf16.msra.mxu0 %v5847
    %7484 = vmatpush.bf16.msra.mxu0 %v5839
    %7485 = vmatpush.bf16.msra.mxu0 %v5831
    %7486 = vmatmul.bf16.gmra.mxu0 %v3825
    %v7487 = vpop.f32.mrf.mxu0
    %v7488 = vadd.f32 %v7474, %v7487
    %v7489 = vpop.f32.mrf.mxu0
    %v7490 = vadd.f32 %v7476, %v7489
    %7491 = vdwg.mxu0
    %7492 = vmatpush.bf16.msra.mxu0 %v5951
    %7493 = vmatpush.bf16.msra.mxu0 %v5943
    %7494 = vmatpush.bf16.msra.mxu0 %v5935
    %7495 = vmatpush.bf16.msra.mxu0 %v5927
    %7496 = vmatpush.bf16.msra.mxu0 %v5919
    %7497 = vmatpush.bf16.msra.mxu0 %v5911
    %7498 = vmatpush.bf16.msra.mxu0 %v5903
    %7499 = vmatpush.bf16.msra.mxu0 %v5895
    %7500 = vmatmul.bf16.gmra.mxu0 %v3826
    %v7501 = vpop.f32.mrf.mxu0
    %v7502 = vadd.f32 %v7488, %v7501
    %v7503 = vpop.f32.mrf.mxu0
    %v7504 = vadd.f32 %v7490, %v7503
    %7505 = vdwg.mxu0
    %7506 = vmatpush.bf16.msra.mxu0 %v6015
    %7507 = vmatpush.bf16.msra.mxu0 %v6007
    %7508 = vmatpush.bf16.msra.mxu0 %v5999
    %7509 = vmatpush.bf16.msra.mxu0 %v5991
    %7510 = vmatpush.bf16.msra.mxu0 %v5983
    %7511 = vmatpush.bf16.msra.mxu0 %v5975
    %7512 = vmatpush.bf16.msra.mxu0 %v5967
    %7513 = vmatpush.bf16.msra.mxu0 %v5959
    %7514 = vmatmul.bf16.gmra.mxu0 %v3827
    %v7515 = vpop.f32.mrf.mxu0
    %v7516 = vadd.f32 %v7502, %v7515
    %v7517 = vpop.f32.mrf.mxu0
    %v7518 = vadd.f32 %v7504, %v7517
    %7519 = vdwg.mxu0
    %7520 = vmatpush.bf16.msra.mxu0 %v6079
    %7521 = vmatpush.bf16.msra.mxu0 %v6071
    %7522 = vmatpush.bf16.msra.mxu0 %v6063
    %7523 = vmatpush.bf16.msra.mxu0 %v6055
    %7524 = vmatpush.bf16.msra.mxu0 %v6047
    %7525 = vmatpush.bf16.msra.mxu0 %v6039
    %7526 = vmatpush.bf16.msra.mxu0 %v6031
    %7527 = vmatpush.bf16.msra.mxu0 %v6023
    %7528 = vmatmul.bf16.gmra.mxu0 %v3828
    %v7529 = vpop.f32.mrf.mxu0
    %v7530 = vadd.f32 %v7516, %v7529
    %v7531 = vpop.f32.mrf.mxu0
    %v7532 = vadd.f32 %v7518, %v7531
    %7533 = vdwg.mxu0
    %7534 = vmatpush.bf16.msra.mxu0 %v6143
    %7535 = vmatpush.bf16.msra.mxu0 %v6135
    %7536 = vmatpush.bf16.msra.mxu0 %v6127
    %7537 = vmatpush.bf16.msra.mxu0 %v6119
    %7538 = vmatpush.bf16.msra.mxu0 %v6111
    %7539 = vmatpush.bf16.msra.mxu0 %v6103
    %7540 = vmatpush.bf16.msra.mxu0 %v6095
    %7541 = vmatpush.bf16.msra.mxu0 %v6087
    %7542 = vmatmul.bf16.gmra.mxu0 %v3829
    %v7543 = vpop.f32.mrf.mxu0
    %v7544 = vadd.f32 %v7530, %v7543
    %v7545 = vpop.f32.mrf.mxu0
    %v7546 = vadd.f32 %v7532, %v7545
    %7547 = vdwg.mxu0
    %7548 = vmatpush.bf16.msra.mxu0 %v6207
    %7549 = vmatpush.bf16.msra.mxu0 %v6199
    %7550 = vmatpush.bf16.msra.mxu0 %v6191
    %7551 = vmatpush.bf16.msra.mxu0 %v6183
    %7552 = vmatpush.bf16.msra.mxu0 %v6175
    %7553 = vmatpush.bf16.msra.mxu0 %v6167
    %7554 = vmatpush.bf16.msra.mxu0 %v6159
    %7555 = vmatpush.bf16.msra.mxu0 %v6151
    %7556 = vmatmul.bf16.gmra.mxu0 %v3830
    %v7557 = vpop.f32.mrf.mxu0
    %v7558 = vadd.f32 %v7544, %v7557
    %v7559 = vpop.f32.mrf.mxu0
    %v7560 = vadd.f32 %v7546, %v7559
    %7561 = vdwg.mxu0
    %7562 = vmatpush.bf16.msra.mxu0 %v6271
    %7563 = vmatpush.bf16.msra.mxu0 %v6263
    %7564 = vmatpush.bf16.msra.mxu0 %v6255
    %7565 = vmatpush.bf16.msra.mxu0 %v6247
    %7566 = vmatpush.bf16.msra.mxu0 %v6239
    %7567 = vmatpush.bf16.msra.mxu0 %v6231
    %7568 = vmatpush.bf16.msra.mxu0 %v6223
    %7569 = vmatpush.bf16.msra.mxu0 %v6215
    %7570 = vmatmul.bf16.gmra.mxu0 %v3831
    %v7571 = vpop.f32.mrf.mxu0
    %v7572 = vadd.f32 %v7558, %v7571
    %v7573 = vpop.f32.mrf.mxu0
    %v7574 = vadd.f32 %v7560, %v7573
    %7575 = vdwg.mxu0
    %7576 = vmatpush.bf16.msra.mxu0 %v6335
    %7577 = vmatpush.bf16.msra.mxu0 %v6327
    %7578 = vmatpush.bf16.msra.mxu0 %v6319
    %7579 = vmatpush.bf16.msra.mxu0 %v6311
    %7580 = vmatpush.bf16.msra.mxu0 %v6303
    %7581 = vmatpush.bf16.msra.mxu0 %v6295
    %7582 = vmatpush.bf16.msra.mxu0 %v6287
    %7583 = vmatpush.bf16.msra.mxu0 %v6279
    %7584 = vmatmul.bf16.gmra.mxu0 %v3832
    %v7585 = vpop.f32.mrf.mxu0
    %v7586 = vadd.f32 %v7572, %v7585
    %v7587 = vpop.f32.mrf.mxu0
    %v7588 = vadd.f32 %v7574, %v7587
    %7589 = vdwg.mxu0
    %7590 = vmatpush.bf16.msra.mxu0 %v6399
    %7591 = vmatpush.bf16.msra.mxu0 %v6391
    %7592 = vmatpush.bf16.msra.mxu0 %v6383
    %7593 = vmatpush.bf16.msra.mxu0 %v6375
    %7594 = vmatpush.bf16.msra.mxu0 %v6367
    %7595 = vmatpush.bf16.msra.mxu0 %v6359
    %7596 = vmatpush.bf16.msra.mxu0 %v6351
    %7597 = vmatpush.bf16.msra.mxu0 %v6343
    %7598 = vmatmul.bf16.gmra.mxu0 %v3833
    %v7599 = vpop.f32.mrf.mxu0
    %v7600 = vadd.f32 %v7586, %v7599
    %v7601 = vpop.f32.mrf.mxu0
    %v7602 = vadd.f32 %v7588, %v7601
    %7603 = vdwg.mxu0
    %7604 = vmatpush.bf16.msra.mxu0 %v5824
    %7605 = vmatpush.bf16.msra.mxu0 %v5816
    %7606 = vmatpush.bf16.msra.mxu0 %v5808
    %7607 = vmatpush.bf16.msra.mxu0 %v5800
    %7608 = vmatpush.bf16.msra.mxu0 %v5792
    %7609 = vmatpush.bf16.msra.mxu0 %v5784
    %7610 = vmatpush.bf16.msra.mxu0 %v5776
    %7611 = vmatpush.bf16.msra.mxu0 %v5768
    %7612 = vmatmul.bf16.gmra.mxu0 %v3824
    %v7613 = vpop.f32.mrf.mxu0
    %v7614 = vadd.f32 %v3538, %v7613
    %v7615 = vpop.f32.mrf.mxu0
    %v7616 = vadd.f32 %v3540, %v7615
    %7617 = vdwg.mxu0
    %7618 = vmatpush.bf16.msra.mxu0 %v5888
    %7619 = vmatpush.bf16.msra.mxu0 %v5880
    %7620 = vmatpush.bf16.msra.mxu0 %v5872
    %7621 = vmatpush.bf16.msra.mxu0 %v5864
    %7622 = vmatpush.bf16.msra.mxu0 %v5856
    %7623 = vmatpush.bf16.msra.mxu0 %v5848
    %7624 = vmatpush.bf16.msra.mxu0 %v5840
    %7625 = vmatpush.bf16.msra.mxu0 %v5832
    %7626 = vmatmul.bf16.gmra.mxu0 %v3825
    %v7627 = vpop.f32.mrf.mxu0
    %v7628 = vadd.f32 %v7614, %v7627
    %v7629 = vpop.f32.mrf.mxu0
    %v7630 = vadd.f32 %v7616, %v7629
    %7631 = vdwg.mxu0
    %7632 = vmatpush.bf16.msra.mxu0 %v5952
    %7633 = vmatpush.bf16.msra.mxu0 %v5944
    %7634 = vmatpush.bf16.msra.mxu0 %v5936
    %7635 = vmatpush.bf16.msra.mxu0 %v5928
    %7636 = vmatpush.bf16.msra.mxu0 %v5920
    %7637 = vmatpush.bf16.msra.mxu0 %v5912
    %7638 = vmatpush.bf16.msra.mxu0 %v5904
    %7639 = vmatpush.bf16.msra.mxu0 %v5896
    %7640 = vmatmul.bf16.gmra.mxu0 %v3826
    %v7641 = vpop.f32.mrf.mxu0
    %v7642 = vadd.f32 %v7628, %v7641
    %v7643 = vpop.f32.mrf.mxu0
    %v7644 = vadd.f32 %v7630, %v7643
    %7645 = vdwg.mxu0
    %7646 = vmatpush.bf16.msra.mxu0 %v6016
    %7647 = vmatpush.bf16.msra.mxu0 %v6008
    %7648 = vmatpush.bf16.msra.mxu0 %v6000
    %7649 = vmatpush.bf16.msra.mxu0 %v5992
    %7650 = vmatpush.bf16.msra.mxu0 %v5984
    %7651 = vmatpush.bf16.msra.mxu0 %v5976
    %7652 = vmatpush.bf16.msra.mxu0 %v5968
    %7653 = vmatpush.bf16.msra.mxu0 %v5960
    %7654 = vmatmul.bf16.gmra.mxu0 %v3827
    %v7655 = vpop.f32.mrf.mxu0
    %v7656 = vadd.f32 %v7642, %v7655
    %v7657 = vpop.f32.mrf.mxu0
    %v7658 = vadd.f32 %v7644, %v7657
    %7659 = vdwg.mxu0
    %7660 = vmatpush.bf16.msra.mxu0 %v6080
    %7661 = vmatpush.bf16.msra.mxu0 %v6072
    %7662 = vmatpush.bf16.msra.mxu0 %v6064
    %7663 = vmatpush.bf16.msra.mxu0 %v6056
    %7664 = vmatpush.bf16.msra.mxu0 %v6048
    %7665 = vmatpush.bf16.msra.mxu0 %v6040
    %7666 = vmatpush.bf16.msra.mxu0 %v6032
    %7667 = vmatpush.bf16.msra.mxu0 %v6024
    %7668 = vmatmul.bf16.gmra.mxu0 %v3828
    %v7669 = vpop.f32.mrf.mxu0
    %v7670 = vadd.f32 %v7656, %v7669
    %v7671 = vpop.f32.mrf.mxu0
    %v7672 = vadd.f32 %v7658, %v7671
    %7673 = vdwg.mxu0
    %7674 = vmatpush.bf16.msra.mxu0 %v6144
    %7675 = vmatpush.bf16.msra.mxu0 %v6136
    %7676 = vmatpush.bf16.msra.mxu0 %v6128
    %7677 = vmatpush.bf16.msra.mxu0 %v6120
    %7678 = vmatpush.bf16.msra.mxu0 %v6112
    %7679 = vmatpush.bf16.msra.mxu0 %v6104
    %7680 = vmatpush.bf16.msra.mxu0 %v6096
    %7681 = vmatpush.bf16.msra.mxu0 %v6088
    %7682 = vmatmul.bf16.gmra.mxu0 %v3829
    %v7683 = vpop.f32.mrf.mxu0
    %v7684 = vadd.f32 %v7670, %v7683
    %v7685 = vpop.f32.mrf.mxu0
    %v7686 = vadd.f32 %v7672, %v7685
    %7687 = vdwg.mxu0
    %7688 = vmatpush.bf16.msra.mxu0 %v6208
    %7689 = vmatpush.bf16.msra.mxu0 %v6200
    %7690 = vmatpush.bf16.msra.mxu0 %v6192
    %7691 = vmatpush.bf16.msra.mxu0 %v6184
    %7692 = vmatpush.bf16.msra.mxu0 %v6176
    %7693 = vmatpush.bf16.msra.mxu0 %v6168
    %7694 = vmatpush.bf16.msra.mxu0 %v6160
    %7695 = vmatpush.bf16.msra.mxu0 %v6152
    %7696 = vmatmul.bf16.gmra.mxu0 %v3830
    %v7697 = vpop.f32.mrf.mxu0
    %v7698 = vadd.f32 %v7684, %v7697
    %v7699 = vpop.f32.mrf.mxu0
    %v7700 = vadd.f32 %v7686, %v7699
    %7701 = vdwg.mxu0
    %7702 = vmatpush.bf16.msra.mxu0 %v6272
    %7703 = vmatpush.bf16.msra.mxu0 %v6264
    %7704 = vmatpush.bf16.msra.mxu0 %v6256
    %7705 = vmatpush.bf16.msra.mxu0 %v6248
    %7706 = vmatpush.bf16.msra.mxu0 %v6240
    %7707 = vmatpush.bf16.msra.mxu0 %v6232
    %7708 = vmatpush.bf16.msra.mxu0 %v6224
    %7709 = vmatpush.bf16.msra.mxu0 %v6216
    %7710 = vmatmul.bf16.gmra.mxu0 %v3831
    %v7711 = vpop.f32.mrf.mxu0
    %v7712 = vadd.f32 %v7698, %v7711
    %v7713 = vpop.f32.mrf.mxu0
    %v7714 = vadd.f32 %v7700, %v7713
    %7715 = vdwg.mxu0
    %7716 = vmatpush.bf16.msra.mxu0 %v6336
    %7717 = vmatpush.bf16.msra.mxu0 %v6328
    %7718 = vmatpush.bf16.msra.mxu0 %v6320
    %7719 = vmatpush.bf16.msra.mxu0 %v6312
    %7720 = vmatpush.bf16.msra.mxu0 %v6304
    %7721 = vmatpush.bf16.msra.mxu0 %v6296
    %7722 = vmatpush.bf16.msra.mxu0 %v6288
    %7723 = vmatpush.bf16.msra.mxu0 %v6280
    %7724 = vmatmul.bf16.gmra.mxu0 %v3832
    %v7725 = vpop.f32.mrf.mxu0
    %v7726 = vadd.f32 %v7712, %v7725
    %v7727 = vpop.f32.mrf.mxu0
    %v7728 = vadd.f32 %v7714, %v7727
    %7729 = vdwg.mxu0
    %7730 = vmatpush.bf16.msra.mxu0 %v6400
    %7731 = vmatpush.bf16.msra.mxu0 %v6392
    %7732 = vmatpush.bf16.msra.mxu0 %v6384
    %7733 = vmatpush.bf16.msra.mxu0 %v6376
    %7734 = vmatpush.bf16.msra.mxu0 %v6368
    %7735 = vmatpush.bf16.msra.mxu0 %v6360
    %7736 = vmatpush.bf16.msra.mxu0 %v6352
    %7737 = vmatpush.bf16.msra.mxu0 %v6344
    %7738 = vmatmul.bf16.gmra.mxu0 %v3833
    %v7739 = vpop.f32.mrf.mxu0
    %v7740 = vadd.f32 %v7726, %v7739
    %v7741 = vpop.f32.mrf.mxu0
    %v7742 = vadd.f32 %v7728, %v7741
    %7743 = vdwg.mxu0
    %7744 = vmatpush.bf16.msra.mxu0 %v5825
    %7745 = vmatpush.bf16.msra.mxu0 %v5817
    %7746 = vmatpush.bf16.msra.mxu0 %v5809
    %7747 = vmatpush.bf16.msra.mxu0 %v5801
    %7748 = vmatpush.bf16.msra.mxu0 %v5793
    %7749 = vmatpush.bf16.msra.mxu0 %v5785
    %7750 = vmatpush.bf16.msra.mxu0 %v5777
    %7751 = vmatpush.bf16.msra.mxu0 %v5769
    %7752 = vmatmul.bf16.gmra.mxu0 %v3824
    %v7753 = vpop.f32.mrf.mxu0
    %v7754 = vadd.f32 %v3622, %v7753
    %v7755 = vpop.f32.mrf.mxu0
    %v7756 = vadd.f32 %v3624, %v7755
    %7757 = vdwg.mxu0
    %7758 = vmatpush.bf16.msra.mxu0 %v5889
    %7759 = vmatpush.bf16.msra.mxu0 %v5881
    %7760 = vmatpush.bf16.msra.mxu0 %v5873
    %7761 = vmatpush.bf16.msra.mxu0 %v5865
    %7762 = vmatpush.bf16.msra.mxu0 %v5857
    %7763 = vmatpush.bf16.msra.mxu0 %v5849
    %7764 = vmatpush.bf16.msra.mxu0 %v5841
    %7765 = vmatpush.bf16.msra.mxu0 %v5833
    %7766 = vmatmul.bf16.gmra.mxu0 %v3825
    %v7767 = vpop.f32.mrf.mxu0
    %v7768 = vadd.f32 %v7754, %v7767
    %v7769 = vpop.f32.mrf.mxu0
    %v7770 = vadd.f32 %v7756, %v7769
    %7771 = vdwg.mxu0
    %7772 = vmatpush.bf16.msra.mxu0 %v5953
    %7773 = vmatpush.bf16.msra.mxu0 %v5945
    %7774 = vmatpush.bf16.msra.mxu0 %v5937
    %7775 = vmatpush.bf16.msra.mxu0 %v5929
    %7776 = vmatpush.bf16.msra.mxu0 %v5921
    %7777 = vmatpush.bf16.msra.mxu0 %v5913
    %7778 = vmatpush.bf16.msra.mxu0 %v5905
    %7779 = vmatpush.bf16.msra.mxu0 %v5897
    %7780 = vmatmul.bf16.gmra.mxu0 %v3826
    %v7781 = vpop.f32.mrf.mxu0
    %v7782 = vadd.f32 %v7768, %v7781
    %v7783 = vpop.f32.mrf.mxu0
    %v7784 = vadd.f32 %v7770, %v7783
    %7785 = vdwg.mxu0
    %7786 = vmatpush.bf16.msra.mxu0 %v6017
    %7787 = vmatpush.bf16.msra.mxu0 %v6009
    %7788 = vmatpush.bf16.msra.mxu0 %v6001
    %7789 = vmatpush.bf16.msra.mxu0 %v5993
    %7790 = vmatpush.bf16.msra.mxu0 %v5985
    %7791 = vmatpush.bf16.msra.mxu0 %v5977
    %7792 = vmatpush.bf16.msra.mxu0 %v5969
    %7793 = vmatpush.bf16.msra.mxu0 %v5961
    %7794 = vmatmul.bf16.gmra.mxu0 %v3827
    %v7795 = vpop.f32.mrf.mxu0
    %v7796 = vadd.f32 %v7782, %v7795
    %v7797 = vpop.f32.mrf.mxu0
    %v7798 = vadd.f32 %v7784, %v7797
    %7799 = vdwg.mxu0
    %7800 = vmatpush.bf16.msra.mxu0 %v6081
    %7801 = vmatpush.bf16.msra.mxu0 %v6073
    %7802 = vmatpush.bf16.msra.mxu0 %v6065
    %7803 = vmatpush.bf16.msra.mxu0 %v6057
    %7804 = vmatpush.bf16.msra.mxu0 %v6049
    %7805 = vmatpush.bf16.msra.mxu0 %v6041
    %7806 = vmatpush.bf16.msra.mxu0 %v6033
    %7807 = vmatpush.bf16.msra.mxu0 %v6025
    %7808 = vmatmul.bf16.gmra.mxu0 %v3828
    %v7809 = vpop.f32.mrf.mxu0
    %v7810 = vadd.f32 %v7796, %v7809
    %v7811 = vpop.f32.mrf.mxu0
    %v7812 = vadd.f32 %v7798, %v7811
    %7813 = vdwg.mxu0
    %7814 = vmatpush.bf16.msra.mxu0 %v6145
    %7815 = vmatpush.bf16.msra.mxu0 %v6137
    %7816 = vmatpush.bf16.msra.mxu0 %v6129
    %7817 = vmatpush.bf16.msra.mxu0 %v6121
    %7818 = vmatpush.bf16.msra.mxu0 %v6113
    %7819 = vmatpush.bf16.msra.mxu0 %v6105
    %7820 = vmatpush.bf16.msra.mxu0 %v6097
    %7821 = vmatpush.bf16.msra.mxu0 %v6089
    %7822 = vmatmul.bf16.gmra.mxu0 %v3829
    %v7823 = vpop.f32.mrf.mxu0
    %v7824 = vadd.f32 %v7810, %v7823
    %v7825 = vpop.f32.mrf.mxu0
    %v7826 = vadd.f32 %v7812, %v7825
    %7827 = vdwg.mxu0
    %7828 = vmatpush.bf16.msra.mxu0 %v6209
    %7829 = vmatpush.bf16.msra.mxu0 %v6201
    %7830 = vmatpush.bf16.msra.mxu0 %v6193
    %7831 = vmatpush.bf16.msra.mxu0 %v6185
    %7832 = vmatpush.bf16.msra.mxu0 %v6177
    %7833 = vmatpush.bf16.msra.mxu0 %v6169
    %7834 = vmatpush.bf16.msra.mxu0 %v6161
    %7835 = vmatpush.bf16.msra.mxu0 %v6153
    %7836 = vmatmul.bf16.gmra.mxu0 %v3830
    %v7837 = vpop.f32.mrf.mxu0
    %v7838 = vadd.f32 %v7824, %v7837
    %v7839 = vpop.f32.mrf.mxu0
    %v7840 = vadd.f32 %v7826, %v7839
    %7841 = vdwg.mxu0
    %7842 = vmatpush.bf16.msra.mxu0 %v6273
    %7843 = vmatpush.bf16.msra.mxu0 %v6265
    %7844 = vmatpush.bf16.msra.mxu0 %v6257
    %7845 = vmatpush.bf16.msra.mxu0 %v6249
    %7846 = vmatpush.bf16.msra.mxu0 %v6241
    %7847 = vmatpush.bf16.msra.mxu0 %v6233
    %7848 = vmatpush.bf16.msra.mxu0 %v6225
    %7849 = vmatpush.bf16.msra.mxu0 %v6217
    %7850 = vmatmul.bf16.gmra.mxu0 %v3831
    %v7851 = vpop.f32.mrf.mxu0
    %v7852 = vadd.f32 %v7838, %v7851
    %v7853 = vpop.f32.mrf.mxu0
    %v7854 = vadd.f32 %v7840, %v7853
    %7855 = vdwg.mxu0
    %7856 = vmatpush.bf16.msra.mxu0 %v6337
    %7857 = vmatpush.bf16.msra.mxu0 %v6329
    %7858 = vmatpush.bf16.msra.mxu0 %v6321
    %7859 = vmatpush.bf16.msra.mxu0 %v6313
    %7860 = vmatpush.bf16.msra.mxu0 %v6305
    %7861 = vmatpush.bf16.msra.mxu0 %v6297
    %7862 = vmatpush.bf16.msra.mxu0 %v6289
    %7863 = vmatpush.bf16.msra.mxu0 %v6281
    %7864 = vmatmul.bf16.gmra.mxu0 %v3832
    %v7865 = vpop.f32.mrf.mxu0
    %v7866 = vadd.f32 %v7852, %v7865
    %v7867 = vpop.f32.mrf.mxu0
    %v7868 = vadd.f32 %v7854, %v7867
    %7869 = vdwg.mxu0
    %7870 = vmatpush.bf16.msra.mxu0 %v6401
    %7871 = vmatpush.bf16.msra.mxu0 %v6393
    %7872 = vmatpush.bf16.msra.mxu0 %v6385
    %7873 = vmatpush.bf16.msra.mxu0 %v6377
    %7874 = vmatpush.bf16.msra.mxu0 %v6369
    %7875 = vmatpush.bf16.msra.mxu0 %v6361
    %7876 = vmatpush.bf16.msra.mxu0 %v6353
    %7877 = vmatpush.bf16.msra.mxu0 %v6345
    %7878 = vmatmul.bf16.gmra.mxu0 %v3833
    %v7879 = vpop.f32.mrf.mxu0
    %v7880 = vadd.f32 %v7866, %v7879
    %v7881 = vpop.f32.mrf.mxu0
    %v7882 = vadd.f32 %v7868, %v7881
    %7883 = vdwg.mxu0
    %7884 = vmatpush.bf16.msra.mxu0 %v5826
    %7885 = vmatpush.bf16.msra.mxu0 %v5818
    %7886 = vmatpush.bf16.msra.mxu0 %v5810
    %7887 = vmatpush.bf16.msra.mxu0 %v5802
    %7888 = vmatpush.bf16.msra.mxu0 %v5794
    %7889 = vmatpush.bf16.msra.mxu0 %v5786
    %7890 = vmatpush.bf16.msra.mxu0 %v5778
    %7891 = vmatpush.bf16.msra.mxu0 %v5770
    %7892 = vmatmul.bf16.gmra.mxu0 %v3824
    %v7893 = vpop.f32.mrf.mxu0
    %v7894 = vadd.f32 %v3706, %v7893
    %v7895 = vpop.f32.mrf.mxu0
    %v7896 = vadd.f32 %v3708, %v7895
    %7897 = vdwg.mxu0
    %7898 = vmatpush.bf16.msra.mxu0 %v5890
    %7899 = vmatpush.bf16.msra.mxu0 %v5882
    %7900 = vmatpush.bf16.msra.mxu0 %v5874
    %7901 = vmatpush.bf16.msra.mxu0 %v5866
    %7902 = vmatpush.bf16.msra.mxu0 %v5858
    %7903 = vmatpush.bf16.msra.mxu0 %v5850
    %7904 = vmatpush.bf16.msra.mxu0 %v5842
    %7905 = vmatpush.bf16.msra.mxu0 %v5834
    %7906 = vmatmul.bf16.gmra.mxu0 %v3825
    %v7907 = vpop.f32.mrf.mxu0
    %v7908 = vadd.f32 %v7894, %v7907
    %v7909 = vpop.f32.mrf.mxu0
    %v7910 = vadd.f32 %v7896, %v7909
    %7911 = vdwg.mxu0
    %7912 = vmatpush.bf16.msra.mxu0 %v5954
    %7913 = vmatpush.bf16.msra.mxu0 %v5946
    %7914 = vmatpush.bf16.msra.mxu0 %v5938
    %7915 = vmatpush.bf16.msra.mxu0 %v5930
    %7916 = vmatpush.bf16.msra.mxu0 %v5922
    %7917 = vmatpush.bf16.msra.mxu0 %v5914
    %7918 = vmatpush.bf16.msra.mxu0 %v5906
    %7919 = vmatpush.bf16.msra.mxu0 %v5898
    %7920 = vmatmul.bf16.gmra.mxu0 %v3826
    %v7921 = vpop.f32.mrf.mxu0
    %v7922 = vadd.f32 %v7908, %v7921
    %v7923 = vpop.f32.mrf.mxu0
    %v7924 = vadd.f32 %v7910, %v7923
    %7925 = vdwg.mxu0
    %7926 = vmatpush.bf16.msra.mxu0 %v6018
    %7927 = vmatpush.bf16.msra.mxu0 %v6010
    %7928 = vmatpush.bf16.msra.mxu0 %v6002
    %7929 = vmatpush.bf16.msra.mxu0 %v5994
    %7930 = vmatpush.bf16.msra.mxu0 %v5986
    %7931 = vmatpush.bf16.msra.mxu0 %v5978
    %7932 = vmatpush.bf16.msra.mxu0 %v5970
    %7933 = vmatpush.bf16.msra.mxu0 %v5962
    %7934 = vmatmul.bf16.gmra.mxu0 %v3827
    %v7935 = vpop.f32.mrf.mxu0
    %v7936 = vadd.f32 %v7922, %v7935
    %v7937 = vpop.f32.mrf.mxu0
    %v7938 = vadd.f32 %v7924, %v7937
    %7939 = vdwg.mxu0
    %7940 = vmatpush.bf16.msra.mxu0 %v6082
    %7941 = vmatpush.bf16.msra.mxu0 %v6074
    %7942 = vmatpush.bf16.msra.mxu0 %v6066
    %7943 = vmatpush.bf16.msra.mxu0 %v6058
    %7944 = vmatpush.bf16.msra.mxu0 %v6050
    %7945 = vmatpush.bf16.msra.mxu0 %v6042
    %7946 = vmatpush.bf16.msra.mxu0 %v6034
    %7947 = vmatpush.bf16.msra.mxu0 %v6026
    %7948 = vmatmul.bf16.gmra.mxu0 %v3828
    %v7949 = vpop.f32.mrf.mxu0
    %v7950 = vadd.f32 %v7936, %v7949
    %v7951 = vpop.f32.mrf.mxu0
    %v7952 = vadd.f32 %v7938, %v7951
    %7953 = vdwg.mxu0
    %7954 = vmatpush.bf16.msra.mxu0 %v6146
    %7955 = vmatpush.bf16.msra.mxu0 %v6138
    %7956 = vmatpush.bf16.msra.mxu0 %v6130
    %7957 = vmatpush.bf16.msra.mxu0 %v6122
    %7958 = vmatpush.bf16.msra.mxu0 %v6114
    %7959 = vmatpush.bf16.msra.mxu0 %v6106
    %7960 = vmatpush.bf16.msra.mxu0 %v6098
    %7961 = vmatpush.bf16.msra.mxu0 %v6090
    %7962 = vmatmul.bf16.gmra.mxu0 %v3829
    %v7963 = vpop.f32.mrf.mxu0
    %v7964 = vadd.f32 %v7950, %v7963
    %v7965 = vpop.f32.mrf.mxu0
    %v7966 = vadd.f32 %v7952, %v7965
    %7967 = vdwg.mxu0
    %7968 = vmatpush.bf16.msra.mxu0 %v6210
    %7969 = vmatpush.bf16.msra.mxu0 %v6202
    %7970 = vmatpush.bf16.msra.mxu0 %v6194
    %7971 = vmatpush.bf16.msra.mxu0 %v6186
    %7972 = vmatpush.bf16.msra.mxu0 %v6178
    %7973 = vmatpush.bf16.msra.mxu0 %v6170
    %7974 = vmatpush.bf16.msra.mxu0 %v6162
    %7975 = vmatpush.bf16.msra.mxu0 %v6154
    %7976 = vmatmul.bf16.gmra.mxu0 %v3830
    %v7977 = vpop.f32.mrf.mxu0
    %v7978 = vadd.f32 %v7964, %v7977
    %v7979 = vpop.f32.mrf.mxu0
    %v7980 = vadd.f32 %v7966, %v7979
    %7981 = vdwg.mxu0
    %7982 = vmatpush.bf16.msra.mxu0 %v6274
    %7983 = vmatpush.bf16.msra.mxu0 %v6266
    %7984 = vmatpush.bf16.msra.mxu0 %v6258
    %7985 = vmatpush.bf16.msra.mxu0 %v6250
    %7986 = vmatpush.bf16.msra.mxu0 %v6242
    %7987 = vmatpush.bf16.msra.mxu0 %v6234
    %7988 = vmatpush.bf16.msra.mxu0 %v6226
    %7989 = vmatpush.bf16.msra.mxu0 %v6218
    %7990 = vmatmul.bf16.gmra.mxu0 %v3831
    %v7991 = vpop.f32.mrf.mxu0
    %v7992 = vadd.f32 %v7978, %v7991
    %v7993 = vpop.f32.mrf.mxu0
    %v7994 = vadd.f32 %v7980, %v7993
    %7995 = vdwg.mxu0
    %7996 = vmatpush.bf16.msra.mxu0 %v6338
    %7997 = vmatpush.bf16.msra.mxu0 %v6330
    %7998 = vmatpush.bf16.msra.mxu0 %v6322
    %7999 = vmatpush.bf16.msra.mxu0 %v6314
    %8000 = vmatpush.bf16.msra.mxu0 %v6306
    %8001 = vmatpush.bf16.msra.mxu0 %v6298
    %8002 = vmatpush.bf16.msra.mxu0 %v6290
    %8003 = vmatpush.bf16.msra.mxu0 %v6282
    %8004 = vmatmul.bf16.gmra.mxu0 %v3832
    %v8005 = vpop.f32.mrf.mxu0
    %v8006 = vadd.f32 %v7992, %v8005
    %v8007 = vpop.f32.mrf.mxu0
    %v8008 = vadd.f32 %v7994, %v8007
    %8009 = vdwg.mxu0
    %8010 = vmatpush.bf16.msra.mxu0 %v6402
    %8011 = vmatpush.bf16.msra.mxu0 %v6394
    %8012 = vmatpush.bf16.msra.mxu0 %v6386
    %8013 = vmatpush.bf16.msra.mxu0 %v6378
    %8014 = vmatpush.bf16.msra.mxu0 %v6370
    %8015 = vmatpush.bf16.msra.mxu0 %v6362
    %8016 = vmatpush.bf16.msra.mxu0 %v6354
    %8017 = vmatpush.bf16.msra.mxu0 %v6346
    %8018 = vmatmul.bf16.gmra.mxu0 %v3833
    %v8019 = vpop.f32.mrf.mxu0
    %v8020 = vadd.f32 %v8006, %v8019
    %v8021 = vpop.f32.mrf.mxu0
    %v8022 = vadd.f32 %v8008, %v8021
    %8023 = vdwg.mxu0
    %8024 = vmatpush.bf16.msra.mxu0 %v5827
    %8025 = vmatpush.bf16.msra.mxu0 %v5819
    %8026 = vmatpush.bf16.msra.mxu0 %v5811
    %8027 = vmatpush.bf16.msra.mxu0 %v5803
    %8028 = vmatpush.bf16.msra.mxu0 %v5795
    %8029 = vmatpush.bf16.msra.mxu0 %v5787
    %8030 = vmatpush.bf16.msra.mxu0 %v5779
    %8031 = vmatpush.bf16.msra.mxu0 %v5771
    %8032 = vmatmul.bf16.gmra.mxu0 %v3824
    %v8033 = vpop.f32.mrf.mxu0
    %v8034 = vadd.f32 %v3790, %v8033
    %v8035 = vpop.f32.mrf.mxu0
    %v8036 = vadd.f32 %v3792, %v8035
    %8037 = vdwg.mxu0
    %8038 = vmatpush.bf16.msra.mxu0 %v5891
    %8039 = vmatpush.bf16.msra.mxu0 %v5883
    %8040 = vmatpush.bf16.msra.mxu0 %v5875
    %8041 = vmatpush.bf16.msra.mxu0 %v5867
    %8042 = vmatpush.bf16.msra.mxu0 %v5859
    %8043 = vmatpush.bf16.msra.mxu0 %v5851
    %8044 = vmatpush.bf16.msra.mxu0 %v5843
    %8045 = vmatpush.bf16.msra.mxu0 %v5835
    %8046 = vmatmul.bf16.gmra.mxu0 %v3825
    %v8047 = vpop.f32.mrf.mxu0
    %v8048 = vadd.f32 %v8034, %v8047
    %v8049 = vpop.f32.mrf.mxu0
    %v8050 = vadd.f32 %v8036, %v8049
    %8051 = vdwg.mxu0
    %8052 = vmatpush.bf16.msra.mxu0 %v5955
    %8053 = vmatpush.bf16.msra.mxu0 %v5947
    %8054 = vmatpush.bf16.msra.mxu0 %v5939
    %8055 = vmatpush.bf16.msra.mxu0 %v5931
    %8056 = vmatpush.bf16.msra.mxu0 %v5923
    %8057 = vmatpush.bf16.msra.mxu0 %v5915
    %8058 = vmatpush.bf16.msra.mxu0 %v5907
    %8059 = vmatpush.bf16.msra.mxu0 %v5899
    %8060 = vmatmul.bf16.gmra.mxu0 %v3826
    %v8061 = vpop.f32.mrf.mxu0
    %v8062 = vadd.f32 %v8048, %v8061
    %v8063 = vpop.f32.mrf.mxu0
    %v8064 = vadd.f32 %v8050, %v8063
    %8065 = vdwg.mxu0
    %8066 = vmatpush.bf16.msra.mxu0 %v6019
    %8067 = vmatpush.bf16.msra.mxu0 %v6011
    %8068 = vmatpush.bf16.msra.mxu0 %v6003
    %8069 = vmatpush.bf16.msra.mxu0 %v5995
    %8070 = vmatpush.bf16.msra.mxu0 %v5987
    %8071 = vmatpush.bf16.msra.mxu0 %v5979
    %8072 = vmatpush.bf16.msra.mxu0 %v5971
    %8073 = vmatpush.bf16.msra.mxu0 %v5963
    %8074 = vmatmul.bf16.gmra.mxu0 %v3827
    %v8075 = vpop.f32.mrf.mxu0
    %v8076 = vadd.f32 %v8062, %v8075
    %v8077 = vpop.f32.mrf.mxu0
    %v8078 = vadd.f32 %v8064, %v8077
    %8079 = vdwg.mxu0
    %8080 = vmatpush.bf16.msra.mxu0 %v6083
    %8081 = vmatpush.bf16.msra.mxu0 %v6075
    %8082 = vmatpush.bf16.msra.mxu0 %v6067
    %8083 = vmatpush.bf16.msra.mxu0 %v6059
    %8084 = vmatpush.bf16.msra.mxu0 %v6051
    %8085 = vmatpush.bf16.msra.mxu0 %v6043
    %8086 = vmatpush.bf16.msra.mxu0 %v6035
    %8087 = vmatpush.bf16.msra.mxu0 %v6027
    %8088 = vmatmul.bf16.gmra.mxu0 %v3828
    %v8089 = vpop.f32.mrf.mxu0
    %v8090 = vadd.f32 %v8076, %v8089
    %v8091 = vpop.f32.mrf.mxu0
    %v8092 = vadd.f32 %v8078, %v8091
    %8093 = vdwg.mxu0
    %8094 = vmatpush.bf16.msra.mxu0 %v6147
    %8095 = vmatpush.bf16.msra.mxu0 %v6139
    %8096 = vmatpush.bf16.msra.mxu0 %v6131
    %8097 = vmatpush.bf16.msra.mxu0 %v6123
    %8098 = vmatpush.bf16.msra.mxu0 %v6115
    %8099 = vmatpush.bf16.msra.mxu0 %v6107
    %8100 = vmatpush.bf16.msra.mxu0 %v6099
    %8101 = vmatpush.bf16.msra.mxu0 %v6091
    %8102 = vmatmul.bf16.gmra.mxu0 %v3829
    %v8103 = vpop.f32.mrf.mxu0
    %v8104 = vadd.f32 %v8090, %v8103
    %v8105 = vpop.f32.mrf.mxu0
    %v8106 = vadd.f32 %v8092, %v8105
    %8107 = vdwg.mxu0
    %8108 = vmatpush.bf16.msra.mxu0 %v6211
    %8109 = vmatpush.bf16.msra.mxu0 %v6203
    %8110 = vmatpush.bf16.msra.mxu0 %v6195
    %8111 = vmatpush.bf16.msra.mxu0 %v6187
    %8112 = vmatpush.bf16.msra.mxu0 %v6179
    %8113 = vmatpush.bf16.msra.mxu0 %v6171
    %8114 = vmatpush.bf16.msra.mxu0 %v6163
    %8115 = vmatpush.bf16.msra.mxu0 %v6155
    %8116 = vmatmul.bf16.gmra.mxu0 %v3830
    %v8117 = vpop.f32.mrf.mxu0
    %v8118 = vadd.f32 %v8104, %v8117
    %v8119 = vpop.f32.mrf.mxu0
    %v8120 = vadd.f32 %v8106, %v8119
    %8121 = vdwg.mxu0
    %8122 = vmatpush.bf16.msra.mxu0 %v6275
    %8123 = vmatpush.bf16.msra.mxu0 %v6267
    %8124 = vmatpush.bf16.msra.mxu0 %v6259
    %8125 = vmatpush.bf16.msra.mxu0 %v6251
    %8126 = vmatpush.bf16.msra.mxu0 %v6243
    %8127 = vmatpush.bf16.msra.mxu0 %v6235
    %8128 = vmatpush.bf16.msra.mxu0 %v6227
    %8129 = vmatpush.bf16.msra.mxu0 %v6219
    %8130 = vmatmul.bf16.gmra.mxu0 %v3831
    %v8131 = vpop.f32.mrf.mxu0
    %v8132 = vadd.f32 %v8118, %v8131
    %v8133 = vpop.f32.mrf.mxu0
    %v8134 = vadd.f32 %v8120, %v8133
    %8135 = vdwg.mxu0
    %8136 = vmatpush.bf16.msra.mxu0 %v6339
    %8137 = vmatpush.bf16.msra.mxu0 %v6331
    %8138 = vmatpush.bf16.msra.mxu0 %v6323
    %8139 = vmatpush.bf16.msra.mxu0 %v6315
    %8140 = vmatpush.bf16.msra.mxu0 %v6307
    %8141 = vmatpush.bf16.msra.mxu0 %v6299
    %8142 = vmatpush.bf16.msra.mxu0 %v6291
    %8143 = vmatpush.bf16.msra.mxu0 %v6283
    %8144 = vmatmul.bf16.gmra.mxu0 %v3832
    %v8145 = vpop.f32.mrf.mxu0
    %v8146 = vadd.f32 %v8132, %v8145
    %v8147 = vpop.f32.mrf.mxu0
    %v8148 = vadd.f32 %v8134, %v8147
    %8149 = vdwg.mxu0
    %8150 = vmatpush.bf16.msra.mxu0 %v6403
    %8151 = vmatpush.bf16.msra.mxu0 %v6395
    %8152 = vmatpush.bf16.msra.mxu0 %v6387
    %8153 = vmatpush.bf16.msra.mxu0 %v6379
    %8154 = vmatpush.bf16.msra.mxu0 %v6371
    %8155 = vmatpush.bf16.msra.mxu0 %v6363
    %8156 = vmatpush.bf16.msra.mxu0 %v6355
    %8157 = vmatpush.bf16.msra.mxu0 %v6347
    %8158 = vmatmul.bf16.gmra.mxu0 %v3833
    %v8159 = vpop.f32.mrf.mxu0
    %v8160 = vadd.f32 %v8146, %v8159
    %v8161 = vpop.f32.mrf.mxu0
    %v8162 = vadd.f32 %v8148, %v8161
    %8163 = vdwg.mxu0
    %v8164 = vld [vmem:[#allocation10] sm:$0xff]
    %v8166 = vperm.slane %v8164, 0
    %v8167 = vperm.slane %v8164, 1
    %v8168 = vperm.slane %v8164, 2
    %v8169 = vperm.slane %v8164, 3
    %v8170 = vperm.slane %v8164, 4
    %v8171 = vperm.slane %v8164, 5
    %v8172 = vperm.slane %v8164, 6
    %v8173 = vperm.slane %v8164, 7
    %v8182 = vadd.f32 %v7180, %v8166
    %v8183 = vadd.f32 %v7320, %v8167
    %v8184 = vadd.f32 %v7460, %v8168
    %v8185 = vadd.f32 %v7600, %v8169
    %v8186 = vadd.f32 %v7740, %v8170
    %v8187 = vadd.f32 %v7880, %v8171
    %v8188 = vadd.f32 %v8020, %v8172
    %v8189 = vadd.f32 %v8160, %v8173
    %v8190 = vadd.f32 %v7182, %v8166
    %v8191 = vadd.f32 %v7322, %v8167
    %v8192 = vadd.f32 %v7462, %v8168
    %v8193 = vadd.f32 %v7602, %v8169
    %v8194 = vadd.f32 %v7742, %v8170
    %v8195 = vadd.f32 %v7882, %v8171
    %v8196 = vadd.f32 %v8022, %v8172
    %v8197 = vadd.f32 %v8162, %v8173
    %v8198 = vmax.f32 %v8182, 0.0
    %v8199 = vmax.f32 %v8183, 0.0
    %v8200 = vmax.f32 %v8184, 0.0
    %v8201 = vmax.f32 %v8185, 0.0
    %v8202 = vmax.f32 %v8186, 0.0
    %v8203 = vmax.f32 %v8187, 0.0
    %v8204 = vmax.f32 %v8188, 0.0
    %v8205 = vmax.f32 %v8189, 0.0
    %v8206 = vmax.f32 %v8190, 0.0
    %v8207 = vmax.f32 %v8191, 0.0
    %v8208 = vmax.f32 %v8192, 0.0
    %v8209 = vmax.f32 %v8193, 0.0
    %v8210 = vmax.f32 %v8194, 0.0
    %v8211 = vmax.f32 %v8195, 0.0
    %v8212 = vmax.f32 %v8196, 0.0
    %v8213 = vmax.f32 %v8197, 0.0
    %v8214 = vpack.c.bf16 %v8206, %v8198
    %v8215 = vpack.c.bf16 %v8207, %v8199
    %v8216 = vpack.c.bf16 %v8208, %v8200
    %v8217 = vpack.c.bf16 %v8209, %v8201
    %v8218 = vpack.c.bf16 %v8210, %v8202
    %v8219 = vpack.c.bf16 %v8211, %v8203
    %v8220 = vpack.c.bf16 %v8212, %v8204
    %v8221 = vpack.c.bf16 %v8213, %v8205
    %v8222 = vld [vmem:[#allocation11] sm:$0xf]
    %v8223 = vld [vmem:[#allocation11 + $0x4] sm:$0xf]
    %v8224 = vld [vmem:[#allocation11 + $0x8] sm:$0xf]
    %v8225 = vld [vmem:[#allocation11 + $0xc] sm:$0xf]
    %v8226 = vld [vmem:[#allocation11 + $0x10] sm:$0xf]
    %v8227 = vld [vmem:[#allocation11 + $0x14] sm:$0xf]
    %v8228 = vld [vmem:[#allocation11 + $0x18] sm:$0xf]
    %v8229 = vld [vmem:[#allocation11 + $0x1c] sm:$0xf]
    %v8230 = vld [vmem:[#allocation11 + $0x20] sm:$0xf]
    %v8231 = vld [vmem:[#allocation11 + $0x24] sm:$0xf]
    %v8232 = vld [vmem:[#allocation11 + $0x28] sm:$0xf]
    %v8233 = vld [vmem:[#allocation11 + $0x2c] sm:$0xf]
    %v8234 = vld [vmem:[#allocation11 + $0x30] sm:$0xf]
    %v8235 = vld [vmem:[#allocation11 + $0x34] sm:$0xf]
    %v8236 = vld [vmem:[#allocation11 + $0x38] sm:$0xf]
    %v8237 = vld [vmem:[#allocation11 + $0x3c] sm:$0xf]
    %v8238 = vld [vmem:[#allocation11 + $0x40] sm:$0xf]
    %v8239 = vld [vmem:[#allocation11 + $0x44] sm:$0xf]
    %v8240 = vld [vmem:[#allocation11 + $0x48] sm:$0xf]
    %v8241 = vld [vmem:[#allocation11 + $0x4c] sm:$0xf]
    %v8242 = vld [vmem:[#allocation11 + $0x50] sm:$0xf]
    %v8243 = vld [vmem:[#allocation11 + $0x54] sm:$0xf]
    %v8244 = vld [vmem:[#allocation11 + $0x58] sm:$0xf]
    %v8245 = vld [vmem:[#allocation11 + $0x5c] sm:$0xf]
    %v8246 = vld [vmem:[#allocation11 + $0x60] sm:$0xf]
    %v8247 = vld [vmem:[#allocation11 + $0x64] sm:$0xf]
    %v8248 = vld [vmem:[#allocation11 + $0x68] sm:$0xf]
    %v8249 = vld [vmem:[#allocation11 + $0x6c] sm:$0xf]
    %v8250 = vld [vmem:[#allocation11 + $0x70] sm:$0xf]
    %v8251 = vld [vmem:[#allocation11 + $0x74] sm:$0xf]
    %v8252 = vld [vmem:[#allocation11 + $0x78] sm:$0xf]
    %v8253 = vld [vmem:[#allocation11 + $0x7c] sm:$0xf]
    %v8254 = vld [vmem:[#allocation11 + $0x80] sm:$0xf]
    %v8255 = vld [vmem:[#allocation11 + $0x84] sm:$0xf]
    %v8256 = vld [vmem:[#allocation11 + $0x88] sm:$0xf]
    %v8257 = vld [vmem:[#allocation11 + $0x8c] sm:$0xf]
    %v8258 = vld [vmem:[#allocation11 + $0x90] sm:$0xf]
    %v8259 = vld [vmem:[#allocation11 + $0x94] sm:$0xf]
    %v8260 = vld [vmem:[#allocation11 + $0x98] sm:$0xf]
    %v8261 = vld [vmem:[#allocation11 + $0x9c] sm:$0xf]
    %v8262 = vld [vmem:[#allocation11 + $0xa0] sm:$0xf]
    %v8263 = vld [vmem:[#allocation11 + $0xa4] sm:$0xf]
    %v8264 = vld [vmem:[#allocation11 + $0xa8] sm:$0xf]
    %v8265 = vld [vmem:[#allocation11 + $0xac] sm:$0xf]
    %v8266 = vld [vmem:[#allocation11 + $0xb0] sm:$0xf]
    %v8267 = vld [vmem:[#allocation11 + $0xb4] sm:$0xf]
    %v8268 = vld [vmem:[#allocation11 + $0xb8] sm:$0xf]
    %v8269 = vld [vmem:[#allocation11 + $0xbc] sm:$0xf]
    %v8270 = vld [vmem:[#allocation11 + $0xc0] sm:$0xf]
    %v8271 = vld [vmem:[#allocation11 + $0xc4] sm:$0xf]
    %v8272 = vld [vmem:[#allocation11 + $0xc8] sm:$0xf]
    %v8273 = vld [vmem:[#allocation11 + $0xcc] sm:$0xf]
    %v8274 = vld [vmem:[#allocation11 + $0xd0] sm:$0xf]
    %v8275 = vld [vmem:[#allocation11 + $0xd4] sm:$0xf]
    %v8276 = vld [vmem:[#allocation11 + $0xd8] sm:$0xf]
    %v8277 = vld [vmem:[#allocation11 + $0xdc] sm:$0xf]
    %v8278 = vld [vmem:[#allocation11 + $0xe0] sm:$0xf]
    %v8279 = vld [vmem:[#allocation11 + $0xe4] sm:$0xf]
    %v8280 = vld [vmem:[#allocation11 + $0xe8] sm:$0xf]
    %v8281 = vld [vmem:[#allocation11 + $0xec] sm:$0xf]
    %v8282 = vld [vmem:[#allocation11 + $0xf0] sm:$0xf]
    %v8283 = vld [vmem:[#allocation11 + $0xf4] sm:$0xf]
    %v8284 = vld [vmem:[#allocation11 + $0xf8] sm:$0xf]
    %v8285 = vld [vmem:[#allocation11 + $0xfc] sm:$0xf]
    %v8286 = vld [vmem:[#allocation11 + $0x100] sm:$0xf]
    %v8287 = vld [vmem:[#allocation11 + $0x104] sm:$0xf]
    %v8288 = vld [vmem:[#allocation11 + $0x108] sm:$0xf]
    %v8289 = vld [vmem:[#allocation11 + $0x10c] sm:$0xf]
    %v8290 = vld [vmem:[#allocation11 + $0x110] sm:$0xf]
    %v8291 = vld [vmem:[#allocation11 + $0x114] sm:$0xf]
    %v8292 = vld [vmem:[#allocation11 + $0x118] sm:$0xf]
    %v8293 = vld [vmem:[#allocation11 + $0x11c] sm:$0xf]
    %v8294 = vld [vmem:[#allocation11 + $0x120] sm:$0xf]
    %v8295 = vld [vmem:[#allocation11 + $0x124] sm:$0xf]
    %v8296 = vld [vmem:[#allocation11 + $0x128] sm:$0xf]
    %v8297 = vld [vmem:[#allocation11 + $0x12c] sm:$0xf]
    %v8298 = vld [vmem:[#allocation11 + $0x130] sm:$0xf]
    %v8299 = vld [vmem:[#allocation11 + $0x134] sm:$0xf]
    %v8300 = vld [vmem:[#allocation11 + $0x138] sm:$0xf]
    %v8301 = vld [vmem:[#allocation11 + $0x13c] sm:$0xf]
    %v8302 = vld [vmem:[#allocation11 + $0x140] sm:$0xf]
    %v8303 = vld [vmem:[#allocation11 + $0x144] sm:$0xf]
    %v8304 = vld [vmem:[#allocation11 + $0x148] sm:$0xf]
    %v8305 = vld [vmem:[#allocation11 + $0x14c] sm:$0xf]
    %v8306 = vld [vmem:[#allocation11 + $0x150] sm:$0xf]
    %v8307 = vld [vmem:[#allocation11 + $0x154] sm:$0xf]
    %v8308 = vld [vmem:[#allocation11 + $0x158] sm:$0xf]
    %v8309 = vld [vmem:[#allocation11 + $0x15c] sm:$0xf]
    %v8310 = vld [vmem:[#allocation11 + $0x160] sm:$0xf]
    %v8311 = vld [vmem:[#allocation11 + $0x164] sm:$0xf]
    %v8312 = vld [vmem:[#allocation11 + $0x168] sm:$0xf]
    %v8313 = vld [vmem:[#allocation11 + $0x16c] sm:$0xf]
    %v8314 = vld [vmem:[#allocation11 + $0x170] sm:$0xf]
    %v8315 = vld [vmem:[#allocation11 + $0x174] sm:$0xf]
    %v8316 = vld [vmem:[#allocation11 + $0x178] sm:$0xf]
    %v8317 = vld [vmem:[#allocation11 + $0x17c] sm:$0xf]
    %v8318 = vld [vmem:[#allocation11 + $0x180] sm:$0xf]
    %v8319 = vld [vmem:[#allocation11 + $0x184] sm:$0xf]
    %v8320 = vld [vmem:[#allocation11 + $0x188] sm:$0xf]
    %v8321 = vld [vmem:[#allocation11 + $0x18c] sm:$0xf]
    %v8322 = vld [vmem:[#allocation11 + $0x190] sm:$0xf]
    %v8323 = vld [vmem:[#allocation11 + $0x194] sm:$0xf]
    %v8324 = vld [vmem:[#allocation11 + $0x198] sm:$0xf]
    %v8325 = vld [vmem:[#allocation11 + $0x19c] sm:$0xf]
    %v8326 = vld [vmem:[#allocation11 + $0x1a0] sm:$0xf]
    %v8327 = vld [vmem:[#allocation11 + $0x1a4] sm:$0xf]
    %v8328 = vld [vmem:[#allocation11 + $0x1a8] sm:$0xf]
    %v8329 = vld [vmem:[#allocation11 + $0x1ac] sm:$0xf]
    %v8330 = vld [vmem:[#allocation11 + $0x1b0] sm:$0xf]
    %v8331 = vld [vmem:[#allocation11 + $0x1b4] sm:$0xf]
    %v8332 = vld [vmem:[#allocation11 + $0x1b8] sm:$0xf]
    %v8333 = vld [vmem:[#allocation11 + $0x1bc] sm:$0xf]
    %v8334 = vld [vmem:[#allocation11 + $0x1c0] sm:$0xf]
    %v8335 = vld [vmem:[#allocation11 + $0x1c4] sm:$0xf]
    %v8336 = vld [vmem:[#allocation11 + $0x1c8] sm:$0xf]
    %v8337 = vld [vmem:[#allocation11 + $0x1cc] sm:$0xf]
    %v8338 = vld [vmem:[#allocation11 + $0x1d0] sm:$0xf]
    %v8339 = vld [vmem:[#allocation11 + $0x1d4] sm:$0xf]
    %v8340 = vld [vmem:[#allocation11 + $0x1d8] sm:$0xf]
    %v8341 = vld [vmem:[#allocation11 + $0x1dc] sm:$0xf]
    %v8342 = vld [vmem:[#allocation11 + $0x1e0] sm:$0xf]
    %v8343 = vld [vmem:[#allocation11 + $0x1e4] sm:$0xf]
    %v8344 = vld [vmem:[#allocation11 + $0x1e8] sm:$0xf]
    %v8345 = vld [vmem:[#allocation11 + $0x1ec] sm:$0xf]
    %v8346 = vld [vmem:[#allocation11 + $0x1f0] sm:$0xf]
    %v8347 = vld [vmem:[#allocation11 + $0x1f4] sm:$0xf]
    %v8348 = vld [vmem:[#allocation11 + $0x1f8] sm:$0xf]
    %v8349 = vld [vmem:[#allocation11 + $0x1fc] sm:$0xf]
    %v8350 = vld [vmem:[#allocation13] sm:$0x1]
    %v8352 = vperm.slane %v8350, 0
    %v8482 = vunpack.c.l.b16 %v8222
    %v8483 = vunpack.c.l.b16 %v8223
    %v8484 = vunpack.c.l.b16 %v8224
    %v8485 = vunpack.c.l.b16 %v8225
    %v8486 = vunpack.c.l.b16 %v8226
    %v8487 = vunpack.c.l.b16 %v8227
    %v8488 = vunpack.c.l.b16 %v8228
    %v8489 = vunpack.c.l.b16 %v8229
    %v8490 = vunpack.c.l.b16 %v8230
    %v8491 = vunpack.c.l.b16 %v8231
    %v8492 = vunpack.c.l.b16 %v8232
    %v8493 = vunpack.c.l.b16 %v8233
    %v8494 = vunpack.c.l.b16 %v8234
    %v8495 = vunpack.c.l.b16 %v8235
    %v8496 = vunpack.c.l.b16 %v8236
    %v8497 = vunpack.c.l.b16 %v8237
    %v8498 = vunpack.c.l.b16 %v8238
    %v8499 = vunpack.c.l.b16 %v8239
    %v8500 = vunpack.c.l.b16 %v8240
    %v8501 = vunpack.c.l.b16 %v8241
    %v8502 = vunpack.c.l.b16 %v8242
    %v8503 = vunpack.c.l.b16 %v8243
    %v8504 = vunpack.c.l.b16 %v8244
    %v8505 = vunpack.c.l.b16 %v8245
    %v8506 = vunpack.c.l.b16 %v8246
    %v8507 = vunpack.c.l.b16 %v8247
    %v8508 = vunpack.c.l.b16 %v8248
    %v8509 = vunpack.c.l.b16 %v8249
    %v8510 = vunpack.c.l.b16 %v8250
    %v8511 = vunpack.c.l.b16 %v8251
    %v8512 = vunpack.c.l.b16 %v8252
    %v8513 = vunpack.c.l.b16 %v8253
    %v8514 = vunpack.c.l.b16 %v8254
    %v8515 = vunpack.c.l.b16 %v8255
    %v8516 = vunpack.c.l.b16 %v8256
    %v8517 = vunpack.c.l.b16 %v8257
    %v8518 = vunpack.c.l.b16 %v8258
    %v8519 = vunpack.c.l.b16 %v8259
    %v8520 = vunpack.c.l.b16 %v8260
    %v8521 = vunpack.c.l.b16 %v8261
    %v8522 = vunpack.c.l.b16 %v8262
    %v8523 = vunpack.c.l.b16 %v8263
    %v8524 = vunpack.c.l.b16 %v8264
    %v8525 = vunpack.c.l.b16 %v8265
    %v8526 = vunpack.c.l.b16 %v8266
    %v8527 = vunpack.c.l.b16 %v8267
    %v8528 = vunpack.c.l.b16 %v8268
    %v8529 = vunpack.c.l.b16 %v8269
    %v8530 = vunpack.c.l.b16 %v8270
    %v8531 = vunpack.c.l.b16 %v8271
    %v8532 = vunpack.c.l.b16 %v8272
    %v8533 = vunpack.c.l.b16 %v8273
    %v8534 = vunpack.c.l.b16 %v8274
    %v8535 = vunpack.c.l.b16 %v8275
    %v8536 = vunpack.c.l.b16 %v8276
    %v8537 = vunpack.c.l.b16 %v8277
    %v8538 = vunpack.c.l.b16 %v8278
    %v8539 = vunpack.c.l.b16 %v8279
    %v8540 = vunpack.c.l.b16 %v8280
    %v8541 = vunpack.c.l.b16 %v8281
    %v8542 = vunpack.c.l.b16 %v8282
    %v8543 = vunpack.c.l.b16 %v8283
    %v8544 = vunpack.c.l.b16 %v8284
    %v8545 = vunpack.c.l.b16 %v8285
    %v8546 = vunpack.c.l.b16 %v8286
    %v8547 = vunpack.c.l.b16 %v8287
    %v8548 = vunpack.c.l.b16 %v8288
    %v8549 = vunpack.c.l.b16 %v8289
    %v8550 = vunpack.c.l.b16 %v8290
    %v8551 = vunpack.c.l.b16 %v8291
    %v8552 = vunpack.c.l.b16 %v8292
    %v8553 = vunpack.c.l.b16 %v8293
    %v8554 = vunpack.c.l.b16 %v8294
    %v8555 = vunpack.c.l.b16 %v8295
    %v8556 = vunpack.c.l.b16 %v8296
    %v8557 = vunpack.c.l.b16 %v8297
    %v8558 = vunpack.c.l.b16 %v8298
    %v8559 = vunpack.c.l.b16 %v8299
    %v8560 = vunpack.c.l.b16 %v8300
    %v8561 = vunpack.c.l.b16 %v8301
    %v8562 = vunpack.c.l.b16 %v8302
    %v8563 = vunpack.c.l.b16 %v8303
    %v8564 = vunpack.c.l.b16 %v8304
    %v8565 = vunpack.c.l.b16 %v8305
    %v8566 = vunpack.c.l.b16 %v8306
    %v8567 = vunpack.c.l.b16 %v8307
    %v8568 = vunpack.c.l.b16 %v8308
    %v8569 = vunpack.c.l.b16 %v8309
    %v8570 = vunpack.c.l.b16 %v8310
    %v8571 = vunpack.c.l.b16 %v8311
    %v8572 = vunpack.c.l.b16 %v8312
    %v8573 = vunpack.c.l.b16 %v8313
    %v8574 = vunpack.c.l.b16 %v8314
    %v8575 = vunpack.c.l.b16 %v8315
    %v8576 = vunpack.c.l.b16 %v8316
    %v8577 = vunpack.c.l.b16 %v8317
    %v8578 = vunpack.c.l.b16 %v8318
    %v8579 = vunpack.c.l.b16 %v8319
    %v8580 = vunpack.c.l.b16 %v8320
    %v8581 = vunpack.c.l.b16 %v8321
    %v8582 = vunpack.c.l.b16 %v8322
    %v8583 = vunpack.c.l.b16 %v8323
    %v8584 = vunpack.c.l.b16 %v8324
    %v8585 = vunpack.c.l.b16 %v8325
    %v8586 = vunpack.c.l.b16 %v8326
    %v8587 = vunpack.c.l.b16 %v8327
    %v8588 = vunpack.c.l.b16 %v8328
    %v8589 = vunpack.c.l.b16 %v8329
    %v8590 = vunpack.c.l.b16 %v8330
    %v8591 = vunpack.c.l.b16 %v8331
    %v8592 = vunpack.c.l.b16 %v8332
    %v8593 = vunpack.c.l.b16 %v8333
    %v8594 = vunpack.c.l.b16 %v8334
    %v8595 = vunpack.c.l.b16 %v8335
    %v8596 = vunpack.c.l.b16 %v8336
    %v8597 = vunpack.c.l.b16 %v8337
    %v8598 = vunpack.c.l.b16 %v8338
    %v8599 = vunpack.c.l.b16 %v8339
    %v8600 = vunpack.c.l.b16 %v8340
    %v8601 = vunpack.c.l.b16 %v8341
    %v8602 = vunpack.c.l.b16 %v8342
    %v8603 = vunpack.c.l.b16 %v8343
    %v8604 = vunpack.c.l.b16 %v8344
    %v8605 = vunpack.c.l.b16 %v8345
    %v8606 = vunpack.c.l.b16 %v8346
    %v8607 = vunpack.c.l.b16 %v8347
    %v8608 = vunpack.c.l.b16 %v8348
    %v8609 = vunpack.c.l.b16 %v8349
    %v8610 = vpack.c.b16 %v8483, %v8482
    %v8611 = vpack.c.b16 %v8485, %v8484
    %v8612 = vpack.c.b16 %v8487, %v8486
    %v8613 = vpack.c.b16 %v8489, %v8488
    %v8614 = vpack.c.b16 %v8491, %v8490
    %v8615 = vpack.c.b16 %v8493, %v8492
    %v8616 = vpack.c.b16 %v8495, %v8494
    %v8617 = vpack.c.b16 %v8497, %v8496
    %v8618 = vpack.c.b16 %v8499, %v8498
    %v8619 = vpack.c.b16 %v8501, %v8500
    %v8620 = vpack.c.b16 %v8503, %v8502
    %v8621 = vpack.c.b16 %v8505, %v8504
    %v8622 = vpack.c.b16 %v8507, %v8506
    %v8623 = vpack.c.b16 %v8509, %v8508
    %v8624 = vpack.c.b16 %v8511, %v8510
    %v8625 = vpack.c.b16 %v8513, %v8512
    %v8626 = vpack.c.b16 %v8515, %v8514
    %v8627 = vpack.c.b16 %v8517, %v8516
    %v8628 = vpack.c.b16 %v8519, %v8518
    %v8629 = vpack.c.b16 %v8521, %v8520
    %v8630 = vpack.c.b16 %v8523, %v8522
    %v8631 = vpack.c.b16 %v8525, %v8524
    %v8632 = vpack.c.b16 %v8527, %v8526
    %v8633 = vpack.c.b16 %v8529, %v8528
    %v8634 = vpack.c.b16 %v8531, %v8530
    %v8635 = vpack.c.b16 %v8533, %v8532
    %v8636 = vpack.c.b16 %v8535, %v8534
    %v8637 = vpack.c.b16 %v8537, %v8536
    %v8638 = vpack.c.b16 %v8539, %v8538
    %v8639 = vpack.c.b16 %v8541, %v8540
    %v8640 = vpack.c.b16 %v8543, %v8542
    %v8641 = vpack.c.b16 %v8545, %v8544
    %v8642 = vpack.c.b16 %v8547, %v8546
    %v8643 = vpack.c.b16 %v8549, %v8548
    %v8644 = vpack.c.b16 %v8551, %v8550
    %v8645 = vpack.c.b16 %v8553, %v8552
    %v8646 = vpack.c.b16 %v8555, %v8554
    %v8647 = vpack.c.b16 %v8557, %v8556
    %v8648 = vpack.c.b16 %v8559, %v8558
    %v8649 = vpack.c.b16 %v8561, %v8560
    %v8650 = vpack.c.b16 %v8563, %v8562
    %v8651 = vpack.c.b16 %v8565, %v8564
    %v8652 = vpack.c.b16 %v8567, %v8566
    %v8653 = vpack.c.b16 %v8569, %v8568
    %v8654 = vpack.c.b16 %v8571, %v8570
    %v8655 = vpack.c.b16 %v8573, %v8572
    %v8656 = vpack.c.b16 %v8575, %v8574
    %v8657 = vpack.c.b16 %v8577, %v8576
    %v8658 = vpack.c.b16 %v8579, %v8578
    %v8659 = vpack.c.b16 %v8581, %v8580
    %v8660 = vpack.c.b16 %v8583, %v8582
    %v8661 = vpack.c.b16 %v8585, %v8584
    %v8662 = vpack.c.b16 %v8587, %v8586
    %v8663 = vpack.c.b16 %v8589, %v8588
    %v8664 = vpack.c.b16 %v8591, %v8590
    %v8665 = vpack.c.b16 %v8593, %v8592
    %v8666 = vpack.c.b16 %v8595, %v8594
    %v8667 = vpack.c.b16 %v8597, %v8596
    %v8668 = vpack.c.b16 %v8599, %v8598
    %v8669 = vpack.c.b16 %v8601, %v8600
    %v8670 = vpack.c.b16 %v8603, %v8602
    %v8671 = vpack.c.b16 %v8605, %v8604
    %v8672 = vpack.c.b16 %v8607, %v8606
    %v8673 = vpack.c.b16 %v8609, %v8608
    %8738 = vmatpush.bf16.msra.mxu0 %v8617
    %8739 = vmatpush.bf16.msra.mxu0 %v8616
    %8740 = vmatpush.bf16.msra.mxu0 %v8615
    %8741 = vmatpush.bf16.msra.mxu0 %v8614
    %8742 = vmatpush.bf16.msra.mxu0 %v8613
    %8743 = vmatpush.bf16.msra.mxu0 %v8612
    %8744 = vmatpush.bf16.msra.mxu0 %v8611
    %8745 = vmatpush.bf16.msra.mxu0 %v8610
    %8746 = vmatmul.bf16.gmra.mxu0 %v8214
    %v8747 = vpop.f32.mrf.mxu0
    %v8748 = vadd.f32 %v8352, %v8747
    %v8749 = vpop.f32.mrf.mxu0
    %v8750 = vadd.f32 %v8352, %v8749
    %8751 = vdwg.mxu0
    %8752 = vmatpush.bf16.msra.mxu0 %v8625
    %8753 = vmatpush.bf16.msra.mxu0 %v8624
    %8754 = vmatpush.bf16.msra.mxu0 %v8623
    %8755 = vmatpush.bf16.msra.mxu0 %v8622
    %8756 = vmatpush.bf16.msra.mxu0 %v8621
    %8757 = vmatpush.bf16.msra.mxu0 %v8620
    %8758 = vmatpush.bf16.msra.mxu0 %v8619
    %8759 = vmatpush.bf16.msra.mxu0 %v8618
    %8760 = vmatmul.bf16.gmra.mxu0 %v8215
    %v8761 = vpop.f32.mrf.mxu0
    %v8762 = vadd.f32 %v8748, %v8761
    %v8763 = vpop.f32.mrf.mxu0
    %v8764 = vadd.f32 %v8750, %v8763
    %8765 = vdwg.mxu0
    %8766 = vmatpush.bf16.msra.mxu0 %v8633
    %8767 = vmatpush.bf16.msra.mxu0 %v8632
    %8768 = vmatpush.bf16.msra.mxu0 %v8631
    %8769 = vmatpush.bf16.msra.mxu0 %v8630
    %8770 = vmatpush.bf16.msra.mxu0 %v8629
    %8771 = vmatpush.bf16.msra.mxu0 %v8628
    %8772 = vmatpush.bf16.msra.mxu0 %v8627
    %8773 = vmatpush.bf16.msra.mxu0 %v8626
    %8774 = vmatmul.bf16.gmra.mxu0 %v8216
    %v8775 = vpop.f32.mrf.mxu0
    %v8776 = vadd.f32 %v8762, %v8775
    %v8777 = vpop.f32.mrf.mxu0
    %v8778 = vadd.f32 %v8764, %v8777
    %8779 = vdwg.mxu0
    %8780 = vmatpush.bf16.msra.mxu0 %v8641
    %8781 = vmatpush.bf16.msra.mxu0 %v8640
    %8782 = vmatpush.bf16.msra.mxu0 %v8639
    %8783 = vmatpush.bf16.msra.mxu0 %v8638
    %8784 = vmatpush.bf16.msra.mxu0 %v8637
    %8785 = vmatpush.bf16.msra.mxu0 %v8636
    %8786 = vmatpush.bf16.msra.mxu0 %v8635
    %8787 = vmatpush.bf16.msra.mxu0 %v8634
    %8788 = vmatmul.bf16.gmra.mxu0 %v8217
    %v8789 = vpop.f32.mrf.mxu0
    %v8790 = vadd.f32 %v8776, %v8789
    %v8791 = vpop.f32.mrf.mxu0
    %v8792 = vadd.f32 %v8778, %v8791
    %8793 = vdwg.mxu0
    %8794 = vmatpush.bf16.msra.mxu0 %v8649
    %8795 = vmatpush.bf16.msra.mxu0 %v8648
    %8796 = vmatpush.bf16.msra.mxu0 %v8647
    %8797 = vmatpush.bf16.msra.mxu0 %v8646
    %8798 = vmatpush.bf16.msra.mxu0 %v8645
    %8799 = vmatpush.bf16.msra.mxu0 %v8644
    %8800 = vmatpush.bf16.msra.mxu0 %v8643
    %8801 = vmatpush.bf16.msra.mxu0 %v8642
    %8802 = vmatmul.bf16.gmra.mxu0 %v8218
    %v8803 = vpop.f32.mrf.mxu0
    %v8804 = vadd.f32 %v8790, %v8803
    %v8805 = vpop.f32.mrf.mxu0
    %v8806 = vadd.f32 %v8792, %v8805
    %8807 = vdwg.mxu0
    %8808 = vmatpush.bf16.msra.mxu0 %v8657
    %8809 = vmatpush.bf16.msra.mxu0 %v8656
    %8810 = vmatpush.bf16.msra.mxu0 %v8655
    %8811 = vmatpush.bf16.msra.mxu0 %v8654
    %8812 = vmatpush.bf16.msra.mxu0 %v8653
    %8813 = vmatpush.bf16.msra.mxu0 %v8652
    %8814 = vmatpush.bf16.msra.mxu0 %v8651
    %8815 = vmatpush.bf16.msra.mxu0 %v8650
    %8816 = vmatmul.bf16.gmra.mxu0 %v8219
    %v8817 = vpop.f32.mrf.mxu0
    %v8818 = vadd.f32 %v8804, %v8817
    %v8819 = vpop.f32.mrf.mxu0
    %v8820 = vadd.f32 %v8806, %v8819
    %8821 = vdwg.mxu0
    %8822 = vmatpush.bf16.msra.mxu0 %v8665
    %8823 = vmatpush.bf16.msra.mxu0 %v8664
    %8824 = vmatpush.bf16.msra.mxu0 %v8663
    %8825 = vmatpush.bf16.msra.mxu0 %v8662
    %8826 = vmatpush.bf16.msra.mxu0 %v8661
    %8827 = vmatpush.bf16.msra.mxu0 %v8660
    %8828 = vmatpush.bf16.msra.mxu0 %v8659
    %8829 = vmatpush.bf16.msra.mxu0 %v8658
    %8830 = vmatmul.bf16.gmra.mxu0 %v8220
    %v8831 = vpop.f32.mrf.mxu0
    %v8832 = vadd.f32 %v8818, %v8831
    %v8833 = vpop.f32.mrf.mxu0
    %v8834 = vadd.f32 %v8820, %v8833
    %8835 = vdwg.mxu0
    %8836 = vmatpush.bf16.msra.mxu0 %v8673
    %8837 = vmatpush.bf16.msra.mxu0 %v8672
    %8838 = vmatpush.bf16.msra.mxu0 %v8671
    %8839 = vmatpush.bf16.msra.mxu0 %v8670
    %8840 = vmatpush.bf16.msra.mxu0 %v8669
    %8841 = vmatpush.bf16.msra.mxu0 %v8668
    %8842 = vmatpush.bf16.msra.mxu0 %v8667
    %8843 = vmatpush.bf16.msra.mxu0 %v8666
    %8844 = vmatmul.bf16.gmra.mxu0 %v8221
    %v8845 = vpop.f32.mrf.mxu0
    %v8846 = vadd.f32 %v8832, %v8845
    %v8847 = vpop.f32.mrf.mxu0
    %v8848 = vadd.f32 %v8834, %v8847
    %8849 = vdwg.mxu0
    %8850 = vst [vmem:[#allocation14] sm:$0xff] %v8846
    %8851 = vst [vmem:[#allocation14 + $0x8] sm:$0xff] %v8848
    // Predicated region
    $region58: #{tpu_custom_call.1} parent=1 // pred_check
      _
    $region59: #{tpu_custom_call.1} parent=1 // pred_check_branch
      %8853 = sbr.rel (0) target = $region61
    $region60: #{tpu_custom_call.1} parent=1 // pred_region
      %8855 = vsyncadd [#allocation4], 0
      %s8856 = sshll.u32 [#allocation14], 4
      %s8857 = int_to_ptr.vmem [resolvable:$true] %s8856
      %s8858 = sshll.u32 %s7, 4
      %s8859 = int_to_ptr.hbm [resolvable:$true] %s8858
      %8864 = dma.vmem_to_hbm [thread:$0]  %s8857, 256, %s8859, [#allocation4], 128, 128, 8
    $region61: #{tpu_custom_call.1} parent=1 // pred_fallthru
      _
    // Predicated region
    $region62: #{tpu_custom_call.1} parent=1 // pred_check
      _
    $region63: #{tpu_custom_call.1} parent=1 // pred_check_branch
      %8866 = sbr.rel (0) target = $region65
    $region64: #{tpu_custom_call.1} parent=1 // pred_region
      %8868 = dma.done [#allocation4], 256
    $region65: #{tpu_custom_call.1} parent=1 // pred_fallthru
      _
    %8869 = vsyncpa [#allocation3], 1
    %8870 = vsyncpa [#allocation6], 1
    %8871 = vsyncpa [#allocation9], 1
    %8872 = vsyncpa [#allocation12], 1
    %8873 = vsyncpa [#allocation4], 1

</llo_original>
